<compile_context>
chip_gen: v7x
topology: tpu7x:2x2x1
jax: 0.10.0
libtpu: 0.0.40
codegen_flags: <defaults>
</compile_context>

<pallas_src>
import functools

import numpy as np
import jax
import jax.numpy as jnp
from jax.experimental import pallas as pl
from jax.experimental.pallas import tpu as pltpu

BN_EPS = 1e-5


# ----------------------------- fused Pallas kernel ------------------------------ #

def fused_kernel(x_ref, gap_ref, wc_ref, w1_ref, w2p_ref, sel_ref, vec_ref, out_ref, *, wp):
    """Backbone children[-2] hot path + MLP projector, fully fused.

    x_ref  : (B*Hp*Wp + 2*Wp + 2, Cin) f32  zero-padded NHWC input, flattened over (B,Hp,Wp),
                                            with shift-headroom rows appended (Hp=H+2, Wp=W+2)
    gap_ref: (B, B*Hp*Wp)            f32  block-diagonal masked-average matrix (1/(H*W) on
                                            valid interior positions, 0 on pad/garbage rows)
    wc_ref : (9*Cin, Cout)           f32  conv weight, row = (ky*3+kx)*Cin + ci
    w1_ref : (Cout, hidden)          f32  projector Linear 1
    w2p_ref: (hidden, PACK_W)        f32  projector Linear 2, lane-padded (w2 in cols [:proj])
    sel_ref: (Cout, PACK_W)          f32  selection matrix placing h into cols [proj:proj+Cout]
    vec_ref: (5, PACK_W)             f32  packed [conv bias | b1 | gamma | beta | packed b2]
    out_ref: (B, PACK_W)             f32  [projection | representation | zeros]
    """
    nvalid = gap_ref.shape[1]
    cin = x_ref.shape[1]
    cout = wc_ref.shape[1]
    hidden = w1_ref.shape[1]

    vec = vec_ref[...]                         # one tiny packed operand
    b_conv = vec[0:1, :cout]
    b1 = vec[1:2, :hidden]
    gamma = vec[2:3, :hidden]
    beta = vec[3:4, :hidden]
    b_out = vec[4:5, :]                        # b2 in cols [:proj], zeros elsewhere

    wc = wc_ref[...]                           # (9*Cin, Cout)

    # --- backbone: 3x3 conv (pad=1) as 9 shifted-slab matmuls; patches built in VMEM,
    #     never materialized in HBM.  Tiny K/N means low MXU utilization, but the kernel
    #     is launch/overhead-bound at these channel counts (per review).
    z = jnp.zeros((nvalid, cout), jnp.float32)
    for idx in range(9):
        ky, kx = idx // 3, idx % 3
        view = x_ref[pl.ds(ky * wp + kx, nvalid), :]            # (nvalid, Cin), static offset
        z = z + jnp.dot(view, wc[idx * cin:(idx + 1) * cin, :],
                        preferred_element_type=jnp.float32)
    z = jnp.maximum(z + b_conv, 0.0)                            # conv bias + ReLU

    # --- hooked hidden: masked global average pool as a block-diagonal matmul (idle MXU),
    #     also discards the padded / wrap-around rows of the shifted-slab conv.
    h = jnp.dot(gap_ref[...], z, preferred_element_type=jnp.float32)   # (B, Cout) == flatten(hook)

    # --- projector: Linear -> BatchNorm1d (training-mode batch stats) -> ReLU -> Linear ---
    y = jnp.dot(h, w1_ref[...], preferred_element_type=jnp.float32) + b1
    mu = jnp.mean(y, axis=0, keepdims=True)
    var = jnp.mean((y - mu) ** 2, axis=0, keepdims=True)        # biased var, like torch BN
    yn = (y - mu) * jax.lax.rsqrt(var + BN_EPS) * gamma + beta
    a = jnp.maximum(yn, 0.0)

    # Single lane-dense store: [projection | representation | zeros] in one (B, PACK_W) slab.
    out_ref[...] = (jnp.dot(a, w2p_ref[...], preferred_element_type=jnp.float32)
                    + jnp.dot(h, sel_ref[...], preferred_element_type=jnp.float32)
                    + b_out)


# ------------------------------ params & one-time packing ----------------------------- #

def init_params(key, cin=4, cout=8, projection_hidden_size=32, projection_size=16):
    ks = jax.random.split(key, 3)
    p = {}
    p["w_conv"] = jax.random.normal(ks[0], (3, 3, cin, cout), jnp.float32) * 0.1
    p["b_conv"] = jnp.zeros((1, cout), jnp.float32)
    p["w1"] = jax.random.normal(ks[1], (cin * 0 + cout, projection_hidden_size), jnp.float32) * 0.1
    p["b1"] = jnp.zeros((1, projection_hidden_size), jnp.float32)
    p["gamma"] = jnp.ones((1, projection_hidden_size), jnp.float32)    # BN weight init
    p["beta"] = jnp.zeros((1, projection_hidden_size), jnp.float32)    # BN bias init
    p["w2"] = jax.random.normal(ks[2], (projection_hidden_size, projection_size),
                                jnp.float32) * 0.1
    p["b2"] = jnp.zeros((1, projection_size), jnp.float32)
    return p


def pack_params(params, *, batch, height, width):
    """One-time, host-side packing of every constant operand (hoisted out of the jitted
    forward per review): flattened conv weight, packed per-feature vector, lane-padded w2,
    representation selection matrix, and the masked-GAP matrix."""
    cin, cout = params["w_conv"].shape[2], params["w_conv"].shape[3]
    hidden = params["w1"].shape[1]
    proj = params["w2"].shape[1]
    pack_w = int(np.ceil(max(hidden, cout, proj + cout) / 128.0)) * 128   # lane-dense width
    hp, wp = height + 2, width + 2
    nvalid = batch * hp * wp

    wc = np.asarray(params["w_conv"], np.float32).reshape(9 * cin, cout)

    vec = np.zeros((5, pack_w), np.float32)
    vec[0, :cout] = np.asarray(params["b_conv"]).reshape(-1)
    vec[1, :hidden] = np.asarray(params["b1"]).reshape(-1)
    vec[2, :hidden] = np.asarray(params["gamma"]).reshape(-1)
    vec[3, :hidden] = np.asarray(params["beta"]).reshape(-1)
    vec[4, :proj] = np.asarray(params["b2"]).reshape(-1)

    w2p = np.zeros((hidden, pack_w), np.float32)
    w2p[:, :proj] = np.asarray(params["w2"])
    sel = np.zeros((cout, pack_w), np.float32)
    sel[np.arange(cout), proj + np.arange(cout)] = 1.0          # drop h into cols [proj:proj+cout]

    gap = np.zeros((batch, nvalid), np.float32)
    inv = 1.0 / float(height * width)
    for b in range(batch):
        for y in range(height):
            base = b * hp * wp + y * wp
            gap[b, base:base + width] = inv                     # valid interior rows only

    return {"wc": jnp.asarray(wc), "w1": jnp.asarray(params["w1"], jnp.float32),
            "w2p": jnp.asarray(w2p), "sel": jnp.asarray(sel),
            "vec": jnp.asarray(vec), "gap": jnp.asarray(gap)}


# ------------------------------ forward (JAX glue) ----------------------------------- #

@functools.partial(jax.jit, static_argnames=("proj_size",))
def net_wrapper_forward(x_nchw, packed, *, proj_size):
    """Returns (projection, representation), matching NetWrapper.forward()."""
    B, C, H, W = x_nchw.shape
    hp, wp = H + 2, W + 2
    nvalid = B * hp * wp
    cout = packed["wc"].shape[1]
    hidden = packed["w1"].shape[1]
    pack_w = packed["w2p"].shape[1]

    # Layout glue only (no 9x im2col expansion): NCHW -> NHWC, zero-pad borders, flatten,
    # append shift-headroom zero rows for the in-kernel shifted-slab slices.
    x = jnp.transpose(x_nchw, (0, 2, 3, 1)).astype(jnp.float32)
    xp = jnp.pad(x, ((0, 0), (1, 1), (1, 1), (0, 0)))
    xflat = jnp.pad(xp.reshape(nvalid, C), ((0, 2 * wp + 2), (0, 0)))

    flops = (2 * nvalid * 9 * C * cout          # conv dots
             + 2 * B * nvalid * cout            # masked GAP matmul
             + 2 * B * cout * hidden            # projector linear 1
             + 2 * B * hidden * pack_w          # projector linear 2 (padded)
             + 2 * B * cout * pack_w)           # representation selection matmul
    bytes_accessed = 4 * (int(xflat.size) + sum(int(v.size) for v in packed.values())
                          + B * pack_w)

    vmem_spec = lambda: pl.BlockSpec(memory_space=pltpu.MemorySpace.VMEM)
    out = pl.pallas_call(
        functools.partial(fused_kernel, wp=wp),
        out_shape=jax.ShapeDtypeStruct((B, pack_w), jnp.float32),
        in_specs=[vmem_spec() for _ in range(7)],
        out_specs=vmem_spec(),
        # Explicit scoped-VMEM budget (defaults are 16/32/32 MiB on v5e/v6e/v7x; v7x has
        # only 64 MiB physical).  Actual footprint here is ~1-2 MiB.
        compiler_params=pltpu.CompilerParams(vmem_limit_bytes=32 * 1024 * 1024),
        cost_estimate=pl.CostEstimate(flops=flops, transcendentals=hidden,
                                      bytes_accessed=bytes_accessed),
    )(xflat, packed["gap"], packed["wc"], packed["w1"], packed["w2p"],
      packed["sel"], packed["vec"])

    projection = out[:, :proj_size]
    representation = out[:, proj_size:proj_size + cout]
    return projection, representation


def reference_representation(x_nchw, params):
    """Pure-JAX reference for the hooked hidden (conv + ReLU + GAP), for a sanity check."""
    w = jnp.transpose(params["w_conv"], (3, 2, 0, 1))            # (Cout, Cin, 3, 3), torch layout
    z = jax.lax.conv(x_nchw.astype(jnp.float32), w, (1, 1), "SAME",
                     precision=jax.lax.Precision.HIGHEST)
    z = jnp.maximum(z + params["b_conv"].reshape(1, -1, 1, 1), 0.0)
    return jnp.mean(z, axis=(2, 3))                              # (B, Cout)


if __name__ == "__main__":
    key = jax.random.PRNGKey(0)
    kx_, kp = jax.random.split(key)
    x = jax.random.normal(kx_, (2, 4, 16, 16), jnp.float32)      # NCHW, like the torch module
    params = init_params(kp, cin=4, cout=8,
                         projection_hidden_size=32, projection_size=16)
    packed = pack_params(params, batch=2, height=16, width=16)   # one-time, outside the hot path

    projection, representation = net_wrapper_forward(x, packed, proj_size=16)
    jax.block_until_ready((projection, representation))

    assert projection.shape == (2, 16), projection.shape
    assert representation.shape == (2, 8), representation.shape
    assert projection.dtype == jnp.float32 and representation.dtype == jnp.float32
    assert bool(jnp.all(jnp.isfinite(projection)))
    assert bool(jnp.all(jnp.isfinite(representation)))

    # Sanity-check the in-kernel shifted-slab conv + masked GAP against a pure-JAX reference.
    rep_ref = reference_representation(x, params)
    assert bool(jnp.allclose(representation, rep_ref, rtol=2e-2, atol=1e-4)), \
        "representation mismatch vs pure-JAX reference"

    # TODO(synk): the forward-hook / @singleton projector caching is Python-side control flow
    # with no kernel equivalent; it is resolved statically here (projector built once).
    # TODO(synk): BatchNorm1d eval-mode (running_mean/var) path is not implemented; this
    # matches torch training-mode batch statistics only.
    print("KERNEL_OK")
</pallas_src>

<mosaic_0001>
module attributes {stable_mosaic.version = 11 : i64} {
  func.func @fused_kernel(%arg0: memref<686x4xf32, #tpu.memory_space<vmem>>, %arg1: memref<2x648xf32, #tpu.memory_space<vmem>>, %arg2: memref<36x8xf32, #tpu.memory_space<vmem>>, %arg3: memref<8x32xf32, #tpu.memory_space<vmem>>, %arg4: memref<32x128xf32, #tpu.memory_space<vmem>>, %arg5: memref<8x128xf32, #tpu.memory_space<vmem>>, %arg6: memref<5x128xf32, #tpu.memory_space<vmem>>, %arg7: memref<2x128xf32, #tpu.memory_space<vmem>>) attributes {dimension_semantics = [], scalar_prefetch = 0 : i64, scratch_operands = 0 : i64, tpu.core_type = #tpu.core_type<tc>} {
    %c0 = arith.constant 0 : index
    %c0_0 = arith.constant 0 : index
    %0 = vector.load %arg6[%c0, %c0_0] : memref<5x128xf32, #tpu.memory_space<vmem>>, vector<5x128xf32>
    %1 = vector.extract_strided_slice %0 {offsets = [0, 0], sizes = [1, 8], strides = [1, 1]} : vector<5x128xf32> to vector<1x8xf32>
    %2 = vector.extract_strided_slice %0 {offsets = [1, 0], sizes = [1, 32], strides = [1, 1]} : vector<5x128xf32> to vector<1x32xf32>
    %3 = vector.extract_strided_slice %0 {offsets = [2, 0], sizes = [1, 32], strides = [1, 1]} : vector<5x128xf32> to vector<1x32xf32>
    %4 = vector.extract_strided_slice %0 {offsets = [3, 0], sizes = [1, 32], strides = [1, 1]} : vector<5x128xf32> to vector<1x32xf32>
    %5 = vector.extract_strided_slice %0 {offsets = [4, 0], sizes = [1, 128], strides = [1, 1]} : vector<5x128xf32> to vector<1x128xf32>
    %c0_1 = arith.constant 0 : index
    %c0_2 = arith.constant 0 : index
    %6 = vector.load %arg2[%c0_1, %c0_2] : memref<36x8xf32, #tpu.memory_space<vmem>>, vector<36x8xf32>
    %cst = arith.constant 0.000000e+00 : f32
    %7 = vector.broadcast %cst : f32 to vector<648x8xf32>
    %c0_3 = arith.constant 0 : index
    %c0_4 = arith.constant 0 : index
    %8 = vector.load %arg0[%c0_3, %c0_4] : memref<686x4xf32, #tpu.memory_space<vmem>>, vector<648x4xf32>
    %9 = vector.extract_strided_slice %6 {offsets = [0, 0], sizes = [4, 8], strides = [1, 1]} : vector<36x8xf32> to vector<4x8xf32>
    %cst_5 = arith.constant dense<0.000000e+00> : vector<648x8xf32>
    %10 = tpu.matmul %8, %9, %cst_5 {dimension_numbers = #tpu.dot_dimension_numbers<[1], [0], [0], [1], [0, 0, 1, 1], [], []>} : vector<648x4xf32>, vector<4x8xf32>, vector<648x8xf32> -> vector<648x8xf32>
    %11 = arith.addf %7, %10 : vector<648x8xf32>
    %c1 = arith.constant 1 : index
    %c0_6 = arith.constant 0 : index
    %12 = vector.load %arg0[%c1, %c0_6] : memref<686x4xf32, #tpu.memory_space<vmem>>, vector<648x4xf32>
    %13 = vector.extract_strided_slice %6 {offsets = [4, 0], sizes = [4, 8], strides = [1, 1]} : vector<36x8xf32> to vector<4x8xf32>
    %cst_7 = arith.constant dense<0.000000e+00> : vector<648x8xf32>
    %14 = tpu.matmul %12, %13, %cst_7 {dimension_numbers = #tpu.dot_dimension_numbers<[1], [0], [0], [1], [0, 0, 1, 1], [], []>} : vector<648x4xf32>, vector<4x8xf32>, vector<648x8xf32> -> vector<648x8xf32>
    %15 = arith.addf %11, %14 : vector<648x8xf32>
    %c2 = arith.constant 2 : index
    %c0_8 = arith.constant 0 : index
    %16 = vector.load %arg0[%c2, %c0_8] : memref<686x4xf32, #tpu.memory_space<vmem>>, vector<648x4xf32>
    %17 = vector.extract_strided_slice %6 {offsets = [8, 0], sizes = [4, 8], strides = [1, 1]} : vector<36x8xf32> to vector<4x8xf32>
    %cst_9 = arith.constant dense<0.000000e+00> : vector<648x8xf32>
    %18 = tpu.matmul %16, %17, %cst_9 {dimension_numbers = #tpu.dot_dimension_numbers<[1], [0], [0], [1], [0, 0, 1, 1], [], []>} : vector<648x4xf32>, vector<4x8xf32>, vector<648x8xf32> -> vector<648x8xf32>
    %19 = arith.addf %15, %18 : vector<648x8xf32>
    %c18 = arith.constant 18 : index
    %c0_10 = arith.constant 0 : index
    %20 = vector.load %arg0[%c18, %c0_10] : memref<686x4xf32, #tpu.memory_space<vmem>>, vector<648x4xf32>
    %21 = vector.extract_strided_slice %6 {offsets = [12, 0], sizes = [4, 8], strides = [1, 1]} : vector<36x8xf32> to vector<4x8xf32>
    %cst_11 = arith.constant dense<0.000000e+00> : vector<648x8xf32>
    %22 = tpu.matmul %20, %21, %cst_11 {dimension_numbers = #tpu.dot_dimension_numbers<[1], [0], [0], [1], [0, 0, 1, 1], [], []>} : vector<648x4xf32>, vector<4x8xf32>, vector<648x8xf32> -> vector<648x8xf32>
    %23 = arith.addf %19, %22 : vector<648x8xf32>
    %c19 = arith.constant 19 : index
    %c0_12 = arith.constant 0 : index
    %24 = vector.load %arg0[%c19, %c0_12] : memref<686x4xf32, #tpu.memory_space<vmem>>, vector<648x4xf32>
    %25 = vector.extract_strided_slice %6 {offsets = [16, 0], sizes = [4, 8], strides = [1, 1]} : vector<36x8xf32> to vector<4x8xf32>
    %cst_13 = arith.constant dense<0.000000e+00> : vector<648x8xf32>
    %26 = tpu.matmul %24, %25, %cst_13 {dimension_numbers = #tpu.dot_dimension_numbers<[1], [0], [0], [1], [0, 0, 1, 1], [], []>} : vector<648x4xf32>, vector<4x8xf32>, vector<648x8xf32> -> vector<648x8xf32>
    %27 = arith.addf %23, %26 : vector<648x8xf32>
    %c20 = arith.constant 20 : index
    %c0_14 = arith.constant 0 : index
    %28 = vector.load %arg0[%c20, %c0_14] : memref<686x4xf32, #tpu.memory_space<vmem>>, vector<648x4xf32>
    %29 = vector.extract_strided_slice %6 {offsets = [20, 0], sizes = [4, 8], strides = [1, 1]} : vector<36x8xf32> to vector<4x8xf32>
    %cst_15 = arith.constant dense<0.000000e+00> : vector<648x8xf32>
    %30 = tpu.matmul %28, %29, %cst_15 {dimension_numbers = #tpu.dot_dimension_numbers<[1], [0], [0], [1], [0, 0, 1, 1], [], []>} : vector<648x4xf32>, vector<4x8xf32>, vector<648x8xf32> -> vector<648x8xf32>
    %31 = arith.addf %27, %30 : vector<648x8xf32>
    %c36 = arith.constant 36 : index
    %c0_16 = arith.constant 0 : index
    %32 = vector.load %arg0[%c36, %c0_16] : memref<686x4xf32, #tpu.memory_space<vmem>>, vector<648x4xf32>
    %33 = vector.extract_strided_slice %6 {offsets = [24, 0], sizes = [4, 8], strides = [1, 1]} : vector<36x8xf32> to vector<4x8xf32>
    %cst_17 = arith.constant dense<0.000000e+00> : vector<648x8xf32>
    %34 = tpu.matmul %32, %33, %cst_17 {dimension_numbers = #tpu.dot_dimension_numbers<[1], [0], [0], [1], [0, 0, 1, 1], [], []>} : vector<648x4xf32>, vector<4x8xf32>, vector<648x8xf32> -> vector<648x8xf32>
    %35 = arith.addf %31, %34 : vector<648x8xf32>
    %c37 = arith.constant 37 : index
    %c0_18 = arith.constant 0 : index
    %36 = vector.load %arg0[%c37, %c0_18] : memref<686x4xf32, #tpu.memory_space<vmem>>, vector<648x4xf32>
    %37 = vector.extract_strided_slice %6 {offsets = [28, 0], sizes = [4, 8], strides = [1, 1]} : vector<36x8xf32> to vector<4x8xf32>
    %cst_19 = arith.constant dense<0.000000e+00> : vector<648x8xf32>
    %38 = tpu.matmul %36, %37, %cst_19 {dimension_numbers = #tpu.dot_dimension_numbers<[1], [0], [0], [1], [0, 0, 1, 1], [], []>} : vector<648x4xf32>, vector<4x8xf32>, vector<648x8xf32> -> vector<648x8xf32>
    %39 = arith.addf %35, %38 : vector<648x8xf32>
    %c38 = arith.constant 38 : index
    %c0_20 = arith.constant 0 : index
    %40 = vector.load %arg0[%c38, %c0_20] : memref<686x4xf32, #tpu.memory_space<vmem>>, vector<648x4xf32>
    %41 = vector.extract_strided_slice %6 {offsets = [32, 0], sizes = [4, 8], strides = [1, 1]} : vector<36x8xf32> to vector<4x8xf32>
    %cst_21 = arith.constant dense<0.000000e+00> : vector<648x8xf32>
    %42 = tpu.matmul %40, %41, %cst_21 {dimension_numbers = #tpu.dot_dimension_numbers<[1], [0], [0], [1], [0, 0, 1, 1], [], []>} : vector<648x4xf32>, vector<4x8xf32>, vector<648x8xf32> -> vector<648x8xf32>
    %43 = arith.addf %39, %42 : vector<648x8xf32>
    %44 = vector.broadcast %1 : vector<1x8xf32> to vector<648x8xf32>
    %45 = arith.addf %43, %44 : vector<648x8xf32>
    %cst_22 = arith.constant 0.000000e+00 : f32
    %46 = vector.broadcast %cst_22 : f32 to vector<648x8xf32>
    %47 = arith.maximumf %45, %46 : vector<648x8xf32>
    %c0_23 = arith.constant 0 : index
    %c0_24 = arith.constant 0 : index
    %48 = vector.load %arg1[%c0_23, %c0_24] : memref<2x648xf32, #tpu.memory_space<vmem>>, vector<2x648xf32>
    %cst_25 = arith.constant dense<0.000000e+00> : vector<2x8xf32>
    %49 = tpu.matmul %48, %47, %cst_25 {dimension_numbers = #tpu.dot_dimension_numbers<[1], [0], [0], [1], [0, 0, 1, 1], [], []>} : vector<2x648xf32>, vector<648x8xf32>, vector<2x8xf32> -> vector<2x8xf32>
    %c0_26 = arith.constant 0 : index
    %c0_27 = arith.constant 0 : index
    %50 = vector.load %arg3[%c0_26, %c0_27] : memref<8x32xf32, #tpu.memory_space<vmem>>, vector<8x32xf32>
    %cst_28 = arith.constant dense<0.000000e+00> : vector<2x32xf32>
    %51 = tpu.matmul %49, %50, %cst_28 {dimension_numbers = #tpu.dot_dimension_numbers<[1], [0], [0], [1], [0, 0, 1, 1], [], []>} : vector<2x8xf32>, vector<8x32xf32>, vector<2x32xf32> -> vector<2x32xf32>
    %52 = vector.broadcast %2 : vector<1x32xf32> to vector<2x32xf32>
    %53 = arith.addf %51, %52 : vector<2x32xf32>
    %cst_29 = arith.constant dense<0.000000e+00> : vector<32xf32>
    %54 = vector.multi_reduction <add>, %53, %cst_29 [0] : vector<2x32xf32> to vector<32xf32>
    %55 = vector.shape_cast %54 : vector<32xf32> to vector<1x32xf32>
    %cst_30 = arith.constant 2.000000e+00 : f32
    %56 = vector.broadcast %cst_30 : f32 to vector<1x32xf32>
    %57 = arith.divf %55, %56 : vector<1x32xf32>
    %58 = vector.broadcast %57 : vector<1x32xf32> to vector<2x32xf32>
    %59 = arith.subf %53, %58 : vector<2x32xf32>
    %60 = arith.mulf %59, %59 : vector<2x32xf32>
    %cst_31 = arith.constant dense<0.000000e+00> : vector<32xf32>
    %61 = vector.multi_reduction <add>, %60, %cst_31 [0] : vector<2x32xf32> to vector<32xf32>
    %62 = vector.shape_cast %61 : vector<32xf32> to vector<1x32xf32>
    %cst_32 = arith.constant 2.000000e+00 : f32
    %63 = vector.broadcast %cst_32 : f32 to vector<1x32xf32>
    %64 = arith.divf %62, %63 : vector<1x32xf32>
    %65 = vector.broadcast %57 : vector<1x32xf32> to vector<2x32xf32>
    %66 = arith.subf %53, %65 : vector<2x32xf32>
    %cst_33 = arith.constant 9.99999974E-6 : f32
    %67 = vector.broadcast %cst_33 : f32 to vector<1x32xf32>
    %68 = arith.addf %64, %67 : vector<1x32xf32>
    %69 = math.rsqrt %68 : vector<1x32xf32>
    %70 = vector.broadcast %69 : vector<1x32xf32> to vector<2x32xf32>
    %71 = arith.mulf %66, %70 : vector<2x32xf32>
    %72 = vector.broadcast %3 : vector<1x32xf32> to vector<2x32xf32>
    %73 = arith.mulf %71, %72 : vector<2x32xf32>
    %74 = vector.broadcast %4 : vector<1x32xf32> to vector<2x32xf32>
    %75 = arith.addf %73, %74 : vector<2x32xf32>
    %cst_34 = arith.constant 0.000000e+00 : f32
    %76 = vector.broadcast %cst_34 : f32 to vector<2x32xf32>
    %77 = arith.maximumf %75, %76 : vector<2x32xf32>
    %c0_35 = arith.constant 0 : index
    %c0_36 = arith.constant 0 : index
    %78 = vector.load %arg4[%c0_35, %c0_36] : memref<32x128xf32, #tpu.memory_space<vmem>>, vector<32x128xf32>
    %cst_37 = arith.constant dense<0.000000e+00> : vector<2x128xf32>
    %79 = tpu.matmul %77, %78, %cst_37 {dimension_numbers = #tpu.dot_dimension_numbers<[1], [0], [0], [1], [0, 0, 1, 1], [], []>} : vector<2x32xf32>, vector<32x128xf32>, vector<2x128xf32> -> vector<2x128xf32>
    %c0_38 = arith.constant 0 : index
    %c0_39 = arith.constant 0 : index
    %80 = vector.load %arg5[%c0_38, %c0_39] : memref<8x128xf32, #tpu.memory_space<vmem>>, vector<8x128xf32>
    %cst_40 = arith.constant dense<0.000000e+00> : vector<2x128xf32>
    %81 = tpu.matmul %49, %80, %cst_40 {dimension_numbers = #tpu.dot_dimension_numbers<[1], [0], [0], [1], [0, 0, 1, 1], [], []>} : vector<2x8xf32>, vector<8x128xf32>, vector<2x128xf32> -> vector<2x128xf32>
    %82 = arith.addf %79, %81 : vector<2x128xf32>
    %83 = vector.broadcast %5 : vector<1x128xf32> to vector<2x128xf32>
    %84 = arith.addf %82, %83 : vector<2x128xf32>
    %c0_41 = arith.constant 0 : index
    %c0_42 = arith.constant 0 : index
    %85 = vector.load %arg7[%c0_41, %c0_42] : memref<2x128xf32, #tpu.memory_space<vmem>>, vector<2x128xf32>
    tpu.vector_store %arg7[%c0_41, %c0_42], %84 {strides = array<i32>} : memref<2x128xf32, #tpu.memory_space<vmem>>, vector<2x128xf32>,
    return
  }
}

</mosaic_0001>

<llo_original>
// kernel: net_wrapper_forward.1
$region0: #{net_wrapper_forward.1}
  #allocation0 [shape = 'u32[]', space=smem, size = 0x4, offset = 0x4, fixed_abs, tag = 'smem constant byte address 0x4 - core index']
  #allocation1 [shape = 'u32[144,128]{1,0:T(1,128)}', space=vmem, size = 0x12000, scoped, tag = 'internal scratch']
  %s0 = inlined_call_operand.vmem [shape: f32[686,4], index: 0, kind: input, shape index: {}]
  %s1 = inlined_call_operand.vmem [shape: f32[2,648], index: 1, kind: input, shape index: {}]
  %s2 = inlined_call_operand.vmem [shape: f32[36,8], index: 2, kind: input, shape index: {}]
  %s3 = inlined_call_operand.vmem [shape: f32[8,32], index: 3, kind: input, shape index: {}]
  %s4 = inlined_call_operand.vmem [shape: f32[32,128], index: 4, kind: input, shape index: {}]
  %s5 = inlined_call_operand.vmem [shape: f32[8,128], index: 5, kind: input, shape index: {}]
  %s6 = inlined_call_operand.vmem [shape: f32[5,128], index: 6, kind: input, shape index: {}]
  %s7 = inlined_call_operand.vmem [shape: f32[2,128], index: 7, kind: output, shape index: {}]
  %s8 = sld [smem:[#allocation0]]
  $region38: #{net_wrapper_forward.1} parent=0
    _
  %s10 = ssub.s32 1, %s8
  %s11 = scalar_select 0, %s10, %s8
  // Predicated region
  $region2: #{net_wrapper_forward.1} parent=0 // pred_check
    _
  $region3: #{net_wrapper_forward.1} parent=0 // pred_check_branch
    %13 = sbr.rel (0) target = $region5
  $region4: #{net_wrapper_forward.1} parent=0 // pred_region
    _
  $region5: #{net_wrapper_forward.1} parent=0 // pred_fallthru
    _
  // Predicated region
  $region6: #{net_wrapper_forward.1} parent=0 // pred_check
    _
  $region7: #{net_wrapper_forward.1} parent=0 // pred_check_branch
    %15 = sbr.rel (0) target = $region9
  $region8: #{net_wrapper_forward.1} parent=0 // pred_region
    _
  $region9: #{net_wrapper_forward.1} parent=0 // pred_fallthru
    _
  // Predicated region
  $region10: #{net_wrapper_forward.1} parent=0 // pred_check
    _
  $region11: #{net_wrapper_forward.1} parent=0 // pred_check_branch
    %17 = sbr.rel (0) target = $region13
  $region12: #{net_wrapper_forward.1} parent=0 // pred_region
    _
  $region13: #{net_wrapper_forward.1} parent=0 // pred_fallthru
    _
  // Predicated region
  $region14: #{net_wrapper_forward.1} parent=0 // pred_check
    _
  $region15: #{net_wrapper_forward.1} parent=0 // pred_check_branch
    %19 = sbr.rel (0) target = $region17
  $region16: #{net_wrapper_forward.1} parent=0 // pred_region
    _
  $region17: #{net_wrapper_forward.1} parent=0 // pred_fallthru
    _
  // Predicated region
  $region18: #{net_wrapper_forward.1} parent=0 // pred_check
    _
  $region19: #{net_wrapper_forward.1} parent=0 // pred_check_branch
    %21 = sbr.rel (0) target = $region21
  $region20: #{net_wrapper_forward.1} parent=0 // pred_region
    _
  $region21: #{net_wrapper_forward.1} parent=0 // pred_fallthru
    _
  // Predicated region
  $region22: #{net_wrapper_forward.1} parent=0 // pred_check
    _
  $region23: #{net_wrapper_forward.1} parent=0 // pred_check_branch
    %23 = sbr.rel (0) target = $region25
  $region24: #{net_wrapper_forward.1} parent=0 // pred_region
    _
  $region25: #{net_wrapper_forward.1} parent=0 // pred_fallthru
    _
  // Predicated region
  $region26: #{net_wrapper_forward.1} parent=0 // pred_check
    _
  $region27: #{net_wrapper_forward.1} parent=0 // pred_check_branch
    %25 = sbr.rel (0) target = $region29
  $region28: #{net_wrapper_forward.1} parent=0 // pred_region
    _
  $region29: #{net_wrapper_forward.1} parent=0 // pred_fallthru
    _
  %v26 = vld [vmem:[%s6] sm:$0x1f]
  %v27 = vld [vmem:[%s2] sm:$0xff]
  %v28 = vld [vmem:[%s2 + $0x8] sm:$0xff]
  %v29 = vld [vmem:[%s2 + $0x10] sm:$0xff]
  %v30 = vld [vmem:[%s2 + $0x18] sm:$0xff]
  %v31 = vld [vmem:[%s2 + $0x20] sm:$0xf]
  %v32 = vld [vmem:[%s0] sm:$0xff]
  %v33 = vld [vmem:[%s0 + $0x8] sm:$0xff]
  %v34 = vld [vmem:[%s0 + $0x10] sm:$0xff]
  %v35 = vld [vmem:[%s0 + $0x18] sm:$0xff]
  %v36 = vld [vmem:[%s0 + $0x20] sm:$0xff]
  %v37 = vld [vmem:[%s0 + $0x28] sm:$0xff]
  %v38 = vld [vmem:[%s0 + $0x30] sm:$0xff]
  %v39 = vld [vmem:[%s0 + $0x38] sm:$0xff]
  %v40 = vld [vmem:[%s0 + $0x40] sm:$0xff]
  %v41 = vld [vmem:[%s0 + $0x48] sm:$0xff]
  %v42 = vld [vmem:[%s0 + $0x50] sm:$0xff]
  %v43 = vld [vmem:[%s0 + $0x58] sm:$0xff]
  %v44 = vld [vmem:[%s0 + $0x60] sm:$0xff]
  %v45 = vld [vmem:[%s0 + $0x68] sm:$0xff]
  %v46 = vld [vmem:[%s0 + $0x70] sm:$0xff]
  %v47 = vld [vmem:[%s0 + $0x78] sm:$0xff]
  %v48 = vld [vmem:[%s0 + $0x80] sm:$0xff]
  %v49 = vld [vmem:[%s0 + $0x88] sm:$0xff]
  %v50 = vld [vmem:[%s0 + $0x90] sm:$0xff]
  %v51 = vld [vmem:[%s0 + $0x98] sm:$0xff]
  %v52 = vld [vmem:[%s0 + $0xa0] sm:$0xff]
  %v53 = vld [vmem:[%s0 + $0xa8] sm:$0xff]
  %v54 = vld [vmem:[%s0 + $0xb0] sm:$0xff]
  %v55 = vld [vmem:[%s0 + $0xb8] sm:$0xff]
  %v56 = vld [vmem:[%s0 + $0xc0] sm:$0xff]
  %v57 = vld [vmem:[%s0 + $0xc8] sm:$0xff]
  %v58 = vld [vmem:[%s0 + $0xd0] sm:$0xff]
  %v59 = vld [vmem:[%s0 + $0xd8] sm:$0xff]
  %v60 = vld [vmem:[%s0 + $0xe0] sm:$0xff]
  %v61 = vld [vmem:[%s0 + $0xe8] sm:$0xff]
  %v62 = vld [vmem:[%s0 + $0xf0] sm:$0xff]
  %v63 = vld [vmem:[%s0 + $0xf8] sm:$0xff]
  %v64 = vld [vmem:[%s0 + $0x100] sm:$0xff]
  %v65 = vld [vmem:[%s0 + $0x108] sm:$0xff]
  %v66 = vld [vmem:[%s0 + $0x110] sm:$0xff]
  %v67 = vld [vmem:[%s0 + $0x118] sm:$0xff]
  %v68 = vld [vmem:[%s0 + $0x120] sm:$0xff]
  %v69 = vld [vmem:[%s0 + $0x128] sm:$0xff]
  %v70 = vld [vmem:[%s0 + $0x130] sm:$0xff]
  %v71 = vld [vmem:[%s0 + $0x138] sm:$0xff]
  %v72 = vld [vmem:[%s0 + $0x140] sm:$0xff]
  %v73 = vld [vmem:[%s0 + $0x148] sm:$0xff]
  %v74 = vld [vmem:[%s0 + $0x150] sm:$0xff]
  %v75 = vld [vmem:[%s0 + $0x158] sm:$0xff]
  %v76 = vld [vmem:[%s0 + $0x160] sm:$0xff]
  %v77 = vld [vmem:[%s0 + $0x168] sm:$0xff]
  %v78 = vld [vmem:[%s0 + $0x170] sm:$0xff]
  %v79 = vld [vmem:[%s0 + $0x178] sm:$0xff]
  %v80 = vld [vmem:[%s0 + $0x180] sm:$0xff]
  %v81 = vld [vmem:[%s0 + $0x188] sm:$0xff]
  %v82 = vld [vmem:[%s0 + $0x190] sm:$0xff]
  %v83 = vld [vmem:[%s0 + $0x198] sm:$0xff]
  %v84 = vld [vmem:[%s0 + $0x1a0] sm:$0xff]
  %v85 = vld [vmem:[%s0 + $0x1a8] sm:$0xff]
  %v86 = vld [vmem:[%s0 + $0x1b0] sm:$0xff]
  %v87 = vld [vmem:[%s0 + $0x1b8] sm:$0xff]
  %v88 = vld [vmem:[%s0 + $0x1c0] sm:$0xff]
  %v89 = vld [vmem:[%s0 + $0x1c8] sm:$0xff]
  %v90 = vld [vmem:[%s0 + $0x1d0] sm:$0xff]
  %v91 = vld [vmem:[%s0 + $0x1d8] sm:$0xff]
  %v92 = vld [vmem:[%s0 + $0x1e0] sm:$0xff]
  %v93 = vld [vmem:[%s0 + $0x1e8] sm:$0xff]
  %v94 = vld [vmem:[%s0 + $0x1f0] sm:$0xff]
  %v95 = vld [vmem:[%s0 + $0x1f8] sm:$0xff]
  %v96 = vld [vmem:[%s0 + $0x200] sm:$0xff]
  %v97 = vld [vmem:[%s0 + $0x208] sm:$0xff]
  %v98 = vld [vmem:[%s0 + $0x210] sm:$0xff]
  %v99 = vld [vmem:[%s0 + $0x218] sm:$0xff]
  %v100 = vld [vmem:[%s0 + $0x220] sm:$0xff]
  %v101 = vld [vmem:[%s0 + $0x228] sm:$0xff]
  %v102 = vld [vmem:[%s0 + $0x230] sm:$0xff]
  %v103 = vld [vmem:[%s0 + $0x238] sm:$0xff]
  %v104 = vld [vmem:[%s0 + $0x240] sm:$0xff]
  %v105 = vld [vmem:[%s0 + $0x248] sm:$0xff]
  %v106 = vld [vmem:[%s0 + $0x250] sm:$0xff]
  %v107 = vld [vmem:[%s0 + $0x258] sm:$0xff]
  %v108 = vld [vmem:[%s0 + $0x260] sm:$0xff]
  %v109 = vld [vmem:[%s0 + $0x268] sm:$0xff]
  %v110 = vld [vmem:[%s0 + $0x270] sm:$0xff]
  %v111 = vld [vmem:[%s0 + $0x278] sm:$0xff]
  %v112 = vld [vmem:[%s0 + $0x280] sm:$0xff]
  %v113 = vld [vmem:[%s0 + $0x1] sm:$0xff]
  %v114 = vld [vmem:[%s0 + $0x9] sm:$0xff]
  %v115 = vld [vmem:[%s0 + $0x11] sm:$0xff]
  %v116 = vld [vmem:[%s0 + $0x19] sm:$0xff]
  %v117 = vld [vmem:[%s0 + $0x21] sm:$0xff]
  %v118 = vld [vmem:[%s0 + $0x29] sm:$0xff]
  %v119 = vld [vmem:[%s0 + $0x31] sm:$0xff]
  %v120 = vld [vmem:[%s0 + $0x39] sm:$0xff]
  %v121 = vld [vmem:[%s0 + $0x41] sm:$0xff]
  %v122 = vld [vmem:[%s0 + $0x49] sm:$0xff]
  %v123 = vld [vmem:[%s0 + $0x51] sm:$0xff]
  %v124 = vld [vmem:[%s0 + $0x59] sm:$0xff]
  %v125 = vld [vmem:[%s0 + $0x61] sm:$0xff]
  %v126 = vld [vmem:[%s0 + $0x69] sm:$0xff]
  %v127 = vld [vmem:[%s0 + $0x71] sm:$0xff]
  %v128 = vld [vmem:[%s0 + $0x79] sm:$0xff]
  %v129 = vld [vmem:[%s0 + $0x81] sm:$0xff]
  %v130 = vld [vmem:[%s0 + $0x89] sm:$0xff]
  %v131 = vld [vmem:[%s0 + $0x91] sm:$0xff]
  %v132 = vld [vmem:[%s0 + $0x99] sm:$0xff]
  %v133 = vld [vmem:[%s0 + $0xa1] sm:$0xff]
  %v134 = vld [vmem:[%s0 + $0xa9] sm:$0xff]
  %v135 = vld [vmem:[%s0 + $0xb1] sm:$0xff]
  %v136 = vld [vmem:[%s0 + $0xb9] sm:$0xff]
  %v137 = vld [vmem:[%s0 + $0xc1] sm:$0xff]
  %v138 = vld [vmem:[%s0 + $0xc9] sm:$0xff]
  %v139 = vld [vmem:[%s0 + $0xd1] sm:$0xff]
  %v140 = vld [vmem:[%s0 + $0xd9] sm:$0xff]
  %v141 = vld [vmem:[%s0 + $0xe1] sm:$0xff]
  %v142 = vld [vmem:[%s0 + $0xe9] sm:$0xff]
  %v143 = vld [vmem:[%s0 + $0xf1] sm:$0xff]
  %v144 = vld [vmem:[%s0 + $0xf9] sm:$0xff]
  %v145 = vld [vmem:[%s0 + $0x101] sm:$0xff]
  %v146 = vld [vmem:[%s0 + $0x109] sm:$0xff]
  %v147 = vld [vmem:[%s0 + $0x111] sm:$0xff]
  %v148 = vld [vmem:[%s0 + $0x119] sm:$0xff]
  %v149 = vld [vmem:[%s0 + $0x121] sm:$0xff]
  %v150 = vld [vmem:[%s0 + $0x129] sm:$0xff]
  %v151 = vld [vmem:[%s0 + $0x131] sm:$0xff]
  %v152 = vld [vmem:[%s0 + $0x139] sm:$0xff]
  %v153 = vld [vmem:[%s0 + $0x141] sm:$0xff]
  %v154 = vld [vmem:[%s0 + $0x149] sm:$0xff]
  %v155 = vld [vmem:[%s0 + $0x151] sm:$0xff]
  %v156 = vld [vmem:[%s0 + $0x159] sm:$0xff]
  %v157 = vld [vmem:[%s0 + $0x161] sm:$0xff]
  %v158 = vld [vmem:[%s0 + $0x169] sm:$0xff]
  %v159 = vld [vmem:[%s0 + $0x171] sm:$0xff]
  %v160 = vld [vmem:[%s0 + $0x179] sm:$0xff]
  %v161 = vld [vmem:[%s0 + $0x181] sm:$0xff]
  %v162 = vld [vmem:[%s0 + $0x189] sm:$0xff]
  %v163 = vld [vmem:[%s0 + $0x191] sm:$0xff]
  %v164 = vld [vmem:[%s0 + $0x199] sm:$0xff]
  %v165 = vld [vmem:[%s0 + $0x1a1] sm:$0xff]
  %v166 = vld [vmem:[%s0 + $0x1a9] sm:$0xff]
  %v167 = vld [vmem:[%s0 + $0x1b1] sm:$0xff]
  %v168 = vld [vmem:[%s0 + $0x1b9] sm:$0xff]
  %v169 = vld [vmem:[%s0 + $0x1c1] sm:$0xff]
  %v170 = vld [vmem:[%s0 + $0x1c9] sm:$0xff]
  %v171 = vld [vmem:[%s0 + $0x1d1] sm:$0xff]
  %v172 = vld [vmem:[%s0 + $0x1d9] sm:$0xff]
  %v173 = vld [vmem:[%s0 + $0x1e1] sm:$0xff]
  %v174 = vld [vmem:[%s0 + $0x1e9] sm:$0xff]
  %v175 = vld [vmem:[%s0 + $0x1f1] sm:$0xff]
  %v176 = vld [vmem:[%s0 + $0x1f9] sm:$0xff]
  %v177 = vld [vmem:[%s0 + $0x201] sm:$0xff]
  %v178 = vld [vmem:[%s0 + $0x209] sm:$0xff]
  %v179 = vld [vmem:[%s0 + $0x211] sm:$0xff]
  %v180 = vld [vmem:[%s0 + $0x219] sm:$0xff]
  %v181 = vld [vmem:[%s0 + $0x221] sm:$0xff]
  %v182 = vld [vmem:[%s0 + $0x229] sm:$0xff]
  %v183 = vld [vmem:[%s0 + $0x231] sm:$0xff]
  %v184 = vld [vmem:[%s0 + $0x239] sm:$0xff]
  %v185 = vld [vmem:[%s0 + $0x241] sm:$0xff]
  %v186 = vld [vmem:[%s0 + $0x249] sm:$0xff]
  %v187 = vld [vmem:[%s0 + $0x251] sm:$0xff]
  %v188 = vld [vmem:[%s0 + $0x259] sm:$0xff]
  %v189 = vld [vmem:[%s0 + $0x261] sm:$0xff]
  %v190 = vld [vmem:[%s0 + $0x269] sm:$0xff]
  %v191 = vld [vmem:[%s0 + $0x271] sm:$0xff]
  %v192 = vld [vmem:[%s0 + $0x279] sm:$0xff]
  %v193 = vld [vmem:[%s0 + $0x281] sm:$0xff]
  %v195 = vrot.slane %v27, 4
  %vm196 = vcmask 31744
  %v198 = vsel %vm196, %v113, 0
  %v201 = vsel %vm196, %v114, 0
  %v204 = vsel %vm196, %v115, 0
  %v207 = vsel %vm196, %v116, 0
  %v210 = vsel %vm196, %v117, 0
  %v213 = vsel %vm196, %v118, 0
  %v216 = vsel %vm196, %v119, 0
  %v219 = vsel %vm196, %v120, 0
  %v222 = vsel %vm196, %v121, 0
  %v225 = vsel %vm196, %v122, 0
  %v228 = vsel %vm196, %v123, 0
  %v231 = vsel %vm196, %v124, 0
  %v234 = vsel %vm196, %v125, 0
  %v237 = vsel %vm196, %v126, 0
  %v240 = vsel %vm196, %v127, 0
  %v243 = vsel %vm196, %v128, 0
  %v246 = vsel %vm196, %v129, 0
  %v249 = vsel %vm196, %v130, 0
  %v252 = vsel %vm196, %v131, 0
  %v255 = vsel %vm196, %v132, 0
  %v258 = vsel %vm196, %v133, 0
  %v261 = vsel %vm196, %v134, 0
  %v264 = vsel %vm196, %v135, 0
  %v267 = vsel %vm196, %v136, 0
  %v270 = vsel %vm196, %v137, 0
  %v273 = vsel %vm196, %v138, 0
  %v276 = vsel %vm196, %v139, 0
  %v279 = vsel %vm196, %v140, 0
  %v282 = vsel %vm196, %v141, 0
  %v285 = vsel %vm196, %v142, 0
  %v288 = vsel %vm196, %v143, 0
  %v291 = vsel %vm196, %v144, 0
  %v294 = vsel %vm196, %v145, 0
  %v297 = vsel %vm196, %v146, 0
  %v300 = vsel %vm196, %v147, 0
  %v303 = vsel %vm196, %v148, 0
  %v306 = vsel %vm196, %v149, 0
  %v309 = vsel %vm196, %v150, 0
  %v312 = vsel %vm196, %v151, 0
  %v315 = vsel %vm196, %v152, 0
  %v318 = vsel %vm196, %v153, 0
  %v321 = vsel %vm196, %v154, 0
  %v324 = vsel %vm196, %v155, 0
  %v327 = vsel %vm196, %v156, 0
  %v330 = vsel %vm196, %v157, 0
  %v333 = vsel %vm196, %v158, 0
  %v336 = vsel %vm196, %v159, 0
  %v339 = vsel %vm196, %v160, 0
  %v342 = vsel %vm196, %v161, 0
  %v345 = vsel %vm196, %v162, 0
  %v348 = vsel %vm196, %v163, 0
  %v351 = vsel %vm196, %v164, 0
  %v354 = vsel %vm196, %v165, 0
  %v357 = vsel %vm196, %v166, 0
  %v360 = vsel %vm196, %v167, 0
  %v363 = vsel %vm196, %v168, 0
  %v366 = vsel %vm196, %v169, 0
  %v369 = vsel %vm196, %v170, 0
  %v372 = vsel %vm196, %v171, 0
  %v375 = vsel %vm196, %v172, 0
  %v378 = vsel %vm196, %v173, 0
  %v381 = vsel %vm196, %v174, 0
  %v384 = vsel %vm196, %v175, 0
  %v387 = vsel %vm196, %v176, 0
  %v390 = vsel %vm196, %v177, 0
  %v393 = vsel %vm196, %v178, 0
  %v396 = vsel %vm196, %v179, 0
  %v399 = vsel %vm196, %v180, 0
  %v402 = vsel %vm196, %v181, 0
  %v405 = vsel %vm196, %v182, 0
  %v408 = vsel %vm196, %v183, 0
  %v411 = vsel %vm196, %v184, 0
  %v414 = vsel %vm196, %v185, 0
  %v417 = vsel %vm196, %v186, 0
  %v420 = vsel %vm196, %v187, 0
  %v423 = vsel %vm196, %v188, 0
  %v426 = vsel %vm196, %v189, 0
  %v429 = vsel %vm196, %v190, 0
  %v432 = vsel %vm196, %v191, 0
  %v435 = vsel %vm196, %v192, 0
  %v438 = vsel %vm196, %v193, 0
  %vm440 = vcmask 1043456
  %v441 = vsel %vm440, %v195, 0
  %443 = vmatprep.subr.mxu0 0.0
  %444 = vmatpush1.msra.mxu0 %v441
  %445 = vmatprep.subr.mxu0 0.0
  %446 = vmatpush1.msra.mxu0 0.0
  %447 = vmatprep.subr.mxu0 0.0
  %448 = vmatpush1.msra.mxu0 0.0
  %449 = vmatprep.subr.mxu0 0.0
  %450 = vmatpush1.msra.mxu0 0.0
  %451 = vmatprep.subr.mxu0 0.0
  %452 = vmatpush1.msra.mxu0 0.0
  %453 = vmatprep.subr.mxu0 0.0
  %454 = vmatpush1.msra.mxu0 0.0
  %455 = vmatprep.subr.mxu0 0.0
  %456 = vmatpush1.msra.mxu0 0.0
  %457 = vmatprep.subr.mxu0 0.0
  %458 = vmatpush1.msra.mxu0 0.0
  %459 = vmatprep.subr.mxu0 0.0
  %460 = vmatpush1.msra.mxu0 0.0
  %461 = vmatprep.subr.mxu0 0.0
  %462 = vmatpush1.msra.mxu0 0.0
  %463 = vmatprep.subr.mxu0 0.0
  %464 = vmatpush1.msra.mxu0 0.0
  %465 = vmatprep.subr.mxu0 0.0
  %466 = vmatpush1.msra.mxu0 0.0
  %467 = vmatprep.subr.mxu0 0.0
  %468 = vmatpush1.msra.mxu0 0.0
  %469 = vmatprep.subr.mxu0 0.0
  %470 = vmatpush1.msra.mxu0 0.0
  %471 = vmatprep.subr.mxu0 0.0
  %472 = vmatpush1.msra.mxu0 0.0
  %473 = vmatprep.subr.mxu0 0.0
  %474 = vmatpush1.msra.mxu0 0.0
  %475 = vmatprep.subr.mxu0 0.0
  %476 = vmatpush1.msra.mxu0 0.0
  %477 = vmatprep.subr.mxu0 0.0
  %478 = vmatpush1.msra.mxu0 0.0
  %479 = vmatprep.subr.mxu0 0.0
  %480 = vmatpush1.msra.mxu0 0.0
  %481 = vmatprep.subr.mxu0 0.0
  %482 = vmatpush1.msra.mxu0 0.0
  %483 = vmatprep.subr.mxu0 0.0
  %484 = vmatpush1.msra.mxu0 0.0
  %485 = vmatprep.subr.mxu0 0.0
  %486 = vmatpush1.msra.mxu0 0.0
  %487 = vmatprep.subr.mxu0 0.0
  %488 = vmatpush1.msra.mxu0 0.0
  %489 = vmatprep.subr.mxu0 0.0
  %490 = vmatpush1.msra.mxu0 0.0
  %491 = vmatprep.subr.mxu0 0.0
  %492 = vmatpush1.msra.mxu0 0.0
  %493 = vmatprep.subr.mxu0 0.0
  %494 = vmatpush1.msra.mxu0 0.0
  %495 = vmatprep.subr.mxu0 0.0
  %496 = vmatpush1.msra.mxu0 0.0
  %497 = vmatprep.subr.mxu0 0.0
  %498 = vmatpush1.msra.mxu0 0.0
  %499 = vmatprep.subr.mxu0 0.0
  %500 = vmatpush1.msra.mxu0 0.0
  %501 = vmatprep.subr.mxu0 0.0
  %502 = vmatpush1.msra.mxu0 0.0
  %503 = vmatprep.subr.mxu0 0.0
  %504 = vmatpush1.msra.mxu0 0.0
  %505 = vmatprep.subr.mxu0 0.0
  %506 = vmatpush1.msra.mxu0 0.0
  %507 = vmatprep.mubr.f32.mxu0 0.0
  %508 = vmatmul.mubr.f32.gmra.mrb[0].mxu0 %v198
  %v509 = vpop.f32.mrb[0].mxu0
  %v510 = vadd.f32 0.0, %v509
  %v511 = vpop.f32.mrb[0].mxu0
  %512 = vmatprep.mubr.f32.mxu0 0.0
  %513 = vmatmul.mubr.f32.gmra.mrb[0].mxu0 %v201
  %v514 = vpop.f32.mrb[0].mxu0
  %v515 = vadd.f32 0.0, %v514
  %v516 = vpop.f32.mrb[0].mxu0
  %517 = vmatprep.mubr.f32.mxu0 0.0
  %518 = vmatmul.mubr.f32.gmra.mrb[0].mxu0 %v204
  %v519 = vpop.f32.mrb[0].mxu0
  %v520 = vadd.f32 0.0, %v519
  %v521 = vpop.f32.mrb[0].mxu0
  %522 = vmatprep.mubr.f32.mxu0 0.0
  %523 = vmatmul.mubr.f32.gmra.mrb[0].mxu0 %v207
  %v524 = vpop.f32.mrb[0].mxu0
  %v525 = vadd.f32 0.0, %v524
  %v526 = vpop.f32.mrb[0].mxu0
  %527 = vmatprep.mubr.f32.mxu0 0.0
  %528 = vmatmul.mubr.f32.gmra.mrb[0].mxu0 %v210
  %v529 = vpop.f32.mrb[0].mxu0
  %v530 = vadd.f32 0.0, %v529
  %v531 = vpop.f32.mrb[0].mxu0
  %532 = vmatprep.mubr.f32.mxu0 0.0
  %533 = vmatmul.mubr.f32.gmra.mrb[0].mxu0 %v213
  %v534 = vpop.f32.mrb[0].mxu0
  %v535 = vadd.f32 0.0, %v534
  %v536 = vpop.f32.mrb[0].mxu0
  %537 = vmatprep.mubr.f32.mxu0 0.0
  %538 = vmatmul.mubr.f32.gmra.mrb[0].mxu0 %v216
  %v539 = vpop.f32.mrb[0].mxu0
  %v540 = vadd.f32 0.0, %v539
  %v541 = vpop.f32.mrb[0].mxu0
  %542 = vmatprep.mubr.f32.mxu0 0.0
  %543 = vmatmul.mubr.f32.gmra.mrb[0].mxu0 %v219
  %v544 = vpop.f32.mrb[0].mxu0
  %v545 = vadd.f32 0.0, %v544
  %v546 = vpop.f32.mrb[0].mxu0
  %547 = vmatprep.mubr.f32.mxu0 0.0
  %548 = vmatmul.mubr.f32.gmra.mrb[0].mxu0 %v222
  %v549 = vpop.f32.mrb[0].mxu0
  %v550 = vadd.f32 0.0, %v549
  %v551 = vpop.f32.mrb[0].mxu0
  %552 = vmatprep.mubr.f32.mxu0 0.0
  %553 = vmatmul.mubr.f32.gmra.mrb[0].mxu0 %v225
  %v554 = vpop.f32.mrb[0].mxu0
  %v555 = vadd.f32 0.0, %v554
  %v556 = vpop.f32.mrb[0].mxu0
  %557 = vmatprep.mubr.f32.mxu0 0.0
  %558 = vmatmul.mubr.f32.gmra.mrb[0].mxu0 %v228
  %v559 = vpop.f32.mrb[0].mxu0
  %v560 = vadd.f32 0.0, %v559
  %v561 = vpop.f32.mrb[0].mxu0
  %562 = vmatprep.mubr.f32.mxu0 0.0
  %563 = vmatmul.mubr.f32.gmra.mrb[0].mxu0 %v231
  %v564 = vpop.f32.mrb[0].mxu0
  %v565 = vadd.f32 0.0, %v564
  %v566 = vpop.f32.mrb[0].mxu0
  %567 = vmatprep.mubr.f32.mxu0 0.0
  %568 = vmatmul.mubr.f32.gmra.mrb[0].mxu0 %v234
  %v569 = vpop.f32.mrb[0].mxu0
  %v570 = vadd.f32 0.0, %v569
  %v571 = vpop.f32.mrb[0].mxu0
  %572 = vmatprep.mubr.f32.mxu0 0.0
  %573 = vmatmul.mubr.f32.gmra.mrb[0].mxu0 %v237
  %v574 = vpop.f32.mrb[0].mxu0
  %v575 = vadd.f32 0.0, %v574
  %v576 = vpop.f32.mrb[0].mxu0
  %577 = vmatprep.mubr.f32.mxu0 0.0
  %578 = vmatmul.mubr.f32.gmra.mrb[0].mxu0 %v240
  %v579 = vpop.f32.mrb[0].mxu0
  %v580 = vadd.f32 0.0, %v579
  %v581 = vpop.f32.mrb[0].mxu0
  %582 = vmatprep.mubr.f32.mxu0 0.0
  %583 = vmatmul.mubr.f32.gmra.mrb[0].mxu0 %v243
  %v584 = vpop.f32.mrb[0].mxu0
  %v585 = vadd.f32 0.0, %v584
  %v586 = vpop.f32.mrb[0].mxu0
  %587 = vmatprep.mubr.f32.mxu0 0.0
  %588 = vmatmul.mubr.f32.gmra.mrb[0].mxu0 %v246
  %v589 = vpop.f32.mrb[0].mxu0
  %v590 = vadd.f32 0.0, %v589
  %v591 = vpop.f32.mrb[0].mxu0
  %592 = vmatprep.mubr.f32.mxu0 0.0
  %593 = vmatmul.mubr.f32.gmra.mrb[0].mxu0 %v249
  %v594 = vpop.f32.mrb[0].mxu0
  %v595 = vadd.f32 0.0, %v594
  %v596 = vpop.f32.mrb[0].mxu0
  %597 = vmatprep.mubr.f32.mxu0 0.0
  %598 = vmatmul.mubr.f32.gmra.mrb[0].mxu0 %v252
  %v599 = vpop.f32.mrb[0].mxu0
  %v600 = vadd.f32 0.0, %v599
  %v601 = vpop.f32.mrb[0].mxu0
  %602 = vmatprep.mubr.f32.mxu0 0.0
  %603 = vmatmul.mubr.f32.gmra.mrb[0].mxu0 %v255
  %v604 = vpop.f32.mrb[0].mxu0
  %v605 = vadd.f32 0.0, %v604
  %v606 = vpop.f32.mrb[0].mxu0
  %607 = vmatprep.mubr.f32.mxu0 0.0
  %608 = vmatmul.mubr.f32.gmra.mrb[0].mxu0 %v258
  %v609 = vpop.f32.mrb[0].mxu0
  %v610 = vadd.f32 0.0, %v609
  %v611 = vpop.f32.mrb[0].mxu0
  %612 = vmatprep.mubr.f32.mxu0 0.0
  %613 = vmatmul.mubr.f32.gmra.mrb[0].mxu0 %v261
  %v614 = vpop.f32.mrb[0].mxu0
  %v615 = vadd.f32 0.0, %v614
  %v616 = vpop.f32.mrb[0].mxu0
  %617 = vmatprep.mubr.f32.mxu0 0.0
  %618 = vmatmul.mubr.f32.gmra.mrb[0].mxu0 %v264
  %v619 = vpop.f32.mrb[0].mxu0
  %v620 = vadd.f32 0.0, %v619
  %v621 = vpop.f32.mrb[0].mxu0
  %622 = vmatprep.mubr.f32.mxu0 0.0
  %623 = vmatmul.mubr.f32.gmra.mrb[0].mxu0 %v267
  %v624 = vpop.f32.mrb[0].mxu0
  %v625 = vadd.f32 0.0, %v624
  %v626 = vpop.f32.mrb[0].mxu0
  %627 = vmatprep.mubr.f32.mxu0 0.0
  %628 = vmatmul.mubr.f32.gmra.mrb[0].mxu0 %v270
  %v629 = vpop.f32.mrb[0].mxu0
  %v630 = vadd.f32 0.0, %v629
  %v631 = vpop.f32.mrb[0].mxu0
  %632 = vmatprep.mubr.f32.mxu0 0.0
  %633 = vmatmul.mubr.f32.gmra.mrb[0].mxu0 %v273
  %v634 = vpop.f32.mrb[0].mxu0
  %v635 = vadd.f32 0.0, %v634
  %v636 = vpop.f32.mrb[0].mxu0
  %637 = vmatprep.mubr.f32.mxu0 0.0
  %638 = vmatmul.mubr.f32.gmra.mrb[0].mxu0 %v276
  %v639 = vpop.f32.mrb[0].mxu0
  %v640 = vadd.f32 0.0, %v639
  %v641 = vpop.f32.mrb[0].mxu0
  %642 = vmatprep.mubr.f32.mxu0 0.0
  %643 = vmatmul.mubr.f32.gmra.mrb[0].mxu0 %v279
  %v644 = vpop.f32.mrb[0].mxu0
  %v645 = vadd.f32 0.0, %v644
  %v646 = vpop.f32.mrb[0].mxu0
  %647 = vmatprep.mubr.f32.mxu0 0.0
  %648 = vmatmul.mubr.f32.gmra.mrb[0].mxu0 %v282
  %v649 = vpop.f32.mrb[0].mxu0
  %v650 = vadd.f32 0.0, %v649
  %v651 = vpop.f32.mrb[0].mxu0
  %652 = vmatprep.mubr.f32.mxu0 0.0
  %653 = vmatmul.mubr.f32.gmra.mrb[0].mxu0 %v285
  %v654 = vpop.f32.mrb[0].mxu0
  %v655 = vadd.f32 0.0, %v654
  %v656 = vpop.f32.mrb[0].mxu0
  %657 = vmatprep.mubr.f32.mxu0 0.0
  %658 = vmatmul.mubr.f32.gmra.mrb[0].mxu0 %v288
  %v659 = vpop.f32.mrb[0].mxu0
  %v660 = vadd.f32 0.0, %v659
  %v661 = vpop.f32.mrb[0].mxu0
  %662 = vmatprep.mubr.f32.mxu0 0.0
  %663 = vmatmul.mubr.f32.gmra.mrb[0].mxu0 %v291
  %v664 = vpop.f32.mrb[0].mxu0
  %v665 = vadd.f32 0.0, %v664
  %v666 = vpop.f32.mrb[0].mxu0
  %667 = vmatprep.mubr.f32.mxu0 0.0
  %668 = vmatmul.mubr.f32.gmra.mrb[0].mxu0 %v294
  %v669 = vpop.f32.mrb[0].mxu0
  %v670 = vadd.f32 0.0, %v669
  %v671 = vpop.f32.mrb[0].mxu0
  %672 = vmatprep.mubr.f32.mxu0 0.0
  %673 = vmatmul.mubr.f32.gmra.mrb[0].mxu0 %v297
  %v674 = vpop.f32.mrb[0].mxu0
  %v675 = vadd.f32 0.0, %v674
  %v676 = vpop.f32.mrb[0].mxu0
  %677 = vmatprep.mubr.f32.mxu0 0.0
  %678 = vmatmul.mubr.f32.gmra.mrb[0].mxu0 %v300
  %v679 = vpop.f32.mrb[0].mxu0
  %v680 = vadd.f32 0.0, %v679
  %v681 = vpop.f32.mrb[0].mxu0
  %682 = vmatprep.mubr.f32.mxu0 0.0
  %683 = vmatmul.mubr.f32.gmra.mrb[0].mxu0 %v303
  %v684 = vpop.f32.mrb[0].mxu0
  %v685 = vadd.f32 0.0, %v684
  %v686 = vpop.f32.mrb[0].mxu0
  %687 = vmatprep.mubr.f32.mxu0 0.0
  %688 = vmatmul.mubr.f32.gmra.mrb[0].mxu0 %v306
  %v689 = vpop.f32.mrb[0].mxu0
  %v690 = vadd.f32 0.0, %v689
  %v691 = vpop.f32.mrb[0].mxu0
  %692 = vmatprep.mubr.f32.mxu0 0.0
  %693 = vmatmul.mubr.f32.gmra.mrb[0].mxu0 %v309
  %v694 = vpop.f32.mrb[0].mxu0
  %v695 = vadd.f32 0.0, %v694
  %v696 = vpop.f32.mrb[0].mxu0
  %697 = vmatprep.mubr.f32.mxu0 0.0
  %698 = vmatmul.mubr.f32.gmra.mrb[0].mxu0 %v312
  %v699 = vpop.f32.mrb[0].mxu0
  %v700 = vadd.f32 0.0, %v699
  %v701 = vpop.f32.mrb[0].mxu0
  %702 = vmatprep.mubr.f32.mxu0 0.0
  %703 = vmatmul.mubr.f32.gmra.mrb[0].mxu0 %v315
  %v704 = vpop.f32.mrb[0].mxu0
  %v705 = vadd.f32 0.0, %v704
  %v706 = vpop.f32.mrb[0].mxu0
  %707 = vmatprep.mubr.f32.mxu0 0.0
  %708 = vmatmul.mubr.f32.gmra.mrb[0].mxu0 %v318
  %v709 = vpop.f32.mrb[0].mxu0
  %v710 = vadd.f32 0.0, %v709
  %v711 = vpop.f32.mrb[0].mxu0
  %712 = vmatprep.mubr.f32.mxu0 0.0
  %713 = vmatmul.mubr.f32.gmra.mrb[0].mxu0 %v321
  %v714 = vpop.f32.mrb[0].mxu0
  %v715 = vadd.f32 0.0, %v714
  %v716 = vpop.f32.mrb[0].mxu0
  %717 = vmatprep.mubr.f32.mxu0 0.0
  %718 = vmatmul.mubr.f32.gmra.mrb[0].mxu0 %v324
  %v719 = vpop.f32.mrb[0].mxu0
  %v720 = vadd.f32 0.0, %v719
  %v721 = vpop.f32.mrb[0].mxu0
  %722 = vmatprep.mubr.f32.mxu0 0.0
  %723 = vmatmul.mubr.f32.gmra.mrb[0].mxu0 %v327
  %v724 = vpop.f32.mrb[0].mxu0
  %v725 = vadd.f32 0.0, %v724
  %v726 = vpop.f32.mrb[0].mxu0
  %727 = vmatprep.mubr.f32.mxu0 0.0
  %728 = vmatmul.mubr.f32.gmra.mrb[0].mxu0 %v330
  %v729 = vpop.f32.mrb[0].mxu0
  %v730 = vadd.f32 0.0, %v729
  %v731 = vpop.f32.mrb[0].mxu0
  %732 = vmatprep.mubr.f32.mxu0 0.0
  %733 = vmatmul.mubr.f32.gmra.mrb[0].mxu0 %v333
  %v734 = vpop.f32.mrb[0].mxu0
  %v735 = vadd.f32 0.0, %v734
  %v736 = vpop.f32.mrb[0].mxu0
  %737 = vmatprep.mubr.f32.mxu0 0.0
  %738 = vmatmul.mubr.f32.gmra.mrb[0].mxu0 %v336
  %v739 = vpop.f32.mrb[0].mxu0
  %v740 = vadd.f32 0.0, %v739
  %v741 = vpop.f32.mrb[0].mxu0
  %742 = vmatprep.mubr.f32.mxu0 0.0
  %743 = vmatmul.mubr.f32.gmra.mrb[0].mxu0 %v339
  %v744 = vpop.f32.mrb[0].mxu0
  %v745 = vadd.f32 0.0, %v744
  %v746 = vpop.f32.mrb[0].mxu0
  %747 = vmatprep.mubr.f32.mxu0 0.0
  %748 = vmatmul.mubr.f32.gmra.mrb[0].mxu0 %v342
  %v749 = vpop.f32.mrb[0].mxu0
  %v750 = vadd.f32 0.0, %v749
  %v751 = vpop.f32.mrb[0].mxu0
  %752 = vmatprep.mubr.f32.mxu0 0.0
  %753 = vmatmul.mubr.f32.gmra.mrb[0].mxu0 %v345
  %v754 = vpop.f32.mrb[0].mxu0
  %v755 = vadd.f32 0.0, %v754
  %v756 = vpop.f32.mrb[0].mxu0
  %757 = vmatprep.mubr.f32.mxu0 0.0
  %758 = vmatmul.mubr.f32.gmra.mrb[0].mxu0 %v348
  %v759 = vpop.f32.mrb[0].mxu0
  %v760 = vadd.f32 0.0, %v759
  %v761 = vpop.f32.mrb[0].mxu0
  %762 = vmatprep.mubr.f32.mxu0 0.0
  %763 = vmatmul.mubr.f32.gmra.mrb[0].mxu0 %v351
  %v764 = vpop.f32.mrb[0].mxu0
  %v765 = vadd.f32 0.0, %v764
  %v766 = vpop.f32.mrb[0].mxu0
  %767 = vmatprep.mubr.f32.mxu0 0.0
  %768 = vmatmul.mubr.f32.gmra.mrb[0].mxu0 %v354
  %v769 = vpop.f32.mrb[0].mxu0
  %v770 = vadd.f32 0.0, %v769
  %v771 = vpop.f32.mrb[0].mxu0
  %772 = vmatprep.mubr.f32.mxu0 0.0
  %773 = vmatmul.mubr.f32.gmra.mrb[0].mxu0 %v357
  %v774 = vpop.f32.mrb[0].mxu0
  %v775 = vadd.f32 0.0, %v774
  %v776 = vpop.f32.mrb[0].mxu0
  %777 = vmatprep.mubr.f32.mxu0 0.0
  %778 = vmatmul.mubr.f32.gmra.mrb[0].mxu0 %v360
  %v779 = vpop.f32.mrb[0].mxu0
  %v780 = vadd.f32 0.0, %v779
  %v781 = vpop.f32.mrb[0].mxu0
  %782 = vmatprep.mubr.f32.mxu0 0.0
  %783 = vmatmul.mubr.f32.gmra.mrb[0].mxu0 %v363
  %v784 = vpop.f32.mrb[0].mxu0
  %v785 = vadd.f32 0.0, %v784
  %v786 = vpop.f32.mrb[0].mxu0
  %787 = vmatprep.mubr.f32.mxu0 0.0
  %788 = vmatmul.mubr.f32.gmra.mrb[0].mxu0 %v366
  %v789 = vpop.f32.mrb[0].mxu0
  %v790 = vadd.f32 0.0, %v789
  %v791 = vpop.f32.mrb[0].mxu0
  %792 = vmatprep.mubr.f32.mxu0 0.0
  %793 = vmatmul.mubr.f32.gmra.mrb[0].mxu0 %v369
  %v794 = vpop.f32.mrb[0].mxu0
  %v795 = vadd.f32 0.0, %v794
  %v796 = vpop.f32.mrb[0].mxu0
  %797 = vmatprep.mubr.f32.mxu0 0.0
  %798 = vmatmul.mubr.f32.gmra.mrb[0].mxu0 %v372
  %v799 = vpop.f32.mrb[0].mxu0
  %v800 = vadd.f32 0.0, %v799
  %v801 = vpop.f32.mrb[0].mxu0
  %802 = vmatprep.mubr.f32.mxu0 0.0
  %803 = vmatmul.mubr.f32.gmra.mrb[0].mxu0 %v375
  %v804 = vpop.f32.mrb[0].mxu0
  %v805 = vadd.f32 0.0, %v804
  %v806 = vpop.f32.mrb[0].mxu0
  %807 = vmatprep.mubr.f32.mxu0 0.0
  %808 = vmatmul.mubr.f32.gmra.mrb[0].mxu0 %v378
  %v809 = vpop.f32.mrb[0].mxu0
  %v810 = vadd.f32 0.0, %v809
  %v811 = vpop.f32.mrb[0].mxu0
  %812 = vmatprep.mubr.f32.mxu0 0.0
  %813 = vmatmul.mubr.f32.gmra.mrb[0].mxu0 %v381
  %v814 = vpop.f32.mrb[0].mxu0
  %v815 = vadd.f32 0.0, %v814
  %v816 = vpop.f32.mrb[0].mxu0
  %817 = vmatprep.mubr.f32.mxu0 0.0
  %818 = vmatmul.mubr.f32.gmra.mrb[0].mxu0 %v384
  %v819 = vpop.f32.mrb[0].mxu0
  %v820 = vadd.f32 0.0, %v819
  %v821 = vpop.f32.mrb[0].mxu0
  %822 = vmatprep.mubr.f32.mxu0 0.0
  %823 = vmatmul.mubr.f32.gmra.mrb[0].mxu0 %v387
  %v824 = vpop.f32.mrb[0].mxu0
  %v825 = vadd.f32 0.0, %v824
  %v826 = vpop.f32.mrb[0].mxu0
  %827 = vmatprep.mubr.f32.mxu0 0.0
  %828 = vmatmul.mubr.f32.gmra.mrb[0].mxu0 %v390
  %v829 = vpop.f32.mrb[0].mxu0
  %v830 = vadd.f32 0.0, %v829
  %v831 = vpop.f32.mrb[0].mxu0
  %832 = vmatprep.mubr.f32.mxu0 0.0
  %833 = vmatmul.mubr.f32.gmra.mrb[0].mxu0 %v393
  %v834 = vpop.f32.mrb[0].mxu0
  %v835 = vadd.f32 0.0, %v834
  %v836 = vpop.f32.mrb[0].mxu0
  %837 = vmatprep.mubr.f32.mxu0 0.0
  %838 = vmatmul.mubr.f32.gmra.mrb[0].mxu0 %v396
  %v839 = vpop.f32.mrb[0].mxu0
  %v840 = vadd.f32 0.0, %v839
  %v841 = vpop.f32.mrb[0].mxu0
  %842 = vmatprep.mubr.f32.mxu0 0.0
  %843 = vmatmul.mubr.f32.gmra.mrb[0].mxu0 %v399
  %v844 = vpop.f32.mrb[0].mxu0
  %v845 = vadd.f32 0.0, %v844
  %v846 = vpop.f32.mrb[0].mxu0
  %847 = vmatprep.mubr.f32.mxu0 0.0
  %848 = vmatmul.mubr.f32.gmra.mrb[0].mxu0 %v402
  %v849 = vpop.f32.mrb[0].mxu0
  %v850 = vadd.f32 0.0, %v849
  %v851 = vpop.f32.mrb[0].mxu0
  %852 = vmatprep.mubr.f32.mxu0 0.0
  %853 = vmatmul.mubr.f32.gmra.mrb[0].mxu0 %v405
  %v854 = vpop.f32.mrb[0].mxu0
  %v855 = vadd.f32 0.0, %v854
  %v856 = vpop.f32.mrb[0].mxu0
  %857 = vmatprep.mubr.f32.mxu0 0.0
  %858 = vmatmul.mubr.f32.gmra.mrb[0].mxu0 %v408
  %v859 = vpop.f32.mrb[0].mxu0
  %v860 = vadd.f32 0.0, %v859
  %v861 = vpop.f32.mrb[0].mxu0
  %862 = vmatprep.mubr.f32.mxu0 0.0
  %863 = vmatmul.mubr.f32.gmra.mrb[0].mxu0 %v411
  %v864 = vpop.f32.mrb[0].mxu0
  %v865 = vadd.f32 0.0, %v864
  %v866 = vpop.f32.mrb[0].mxu0
  %867 = vmatprep.mubr.f32.mxu0 0.0
  %868 = vmatmul.mubr.f32.gmra.mrb[0].mxu0 %v414
  %v869 = vpop.f32.mrb[0].mxu0
  %v870 = vadd.f32 0.0, %v869
  %v871 = vpop.f32.mrb[0].mxu0
  %872 = vmatprep.mubr.f32.mxu0 0.0
  %873 = vmatmul.mubr.f32.gmra.mrb[0].mxu0 %v417
  %v874 = vpop.f32.mrb[0].mxu0
  %v875 = vadd.f32 0.0, %v874
  %v876 = vpop.f32.mrb[0].mxu0
  %877 = vmatprep.mubr.f32.mxu0 0.0
  %878 = vmatmul.mubr.f32.gmra.mrb[0].mxu0 %v420
  %v879 = vpop.f32.mrb[0].mxu0
  %v880 = vadd.f32 0.0, %v879
  %v881 = vpop.f32.mrb[0].mxu0
  %882 = vmatprep.mubr.f32.mxu0 0.0
  %883 = vmatmul.mubr.f32.gmra.mrb[0].mxu0 %v423
  %v884 = vpop.f32.mrb[0].mxu0
  %v885 = vadd.f32 0.0, %v884
  %v886 = vpop.f32.mrb[0].mxu0
  %887 = vmatprep.mubr.f32.mxu0 0.0
  %888 = vmatmul.mubr.f32.gmra.mrb[0].mxu0 %v426
  %v889 = vpop.f32.mrb[0].mxu0
  %v890 = vadd.f32 0.0, %v889
  %v891 = vpop.f32.mrb[0].mxu0
  %892 = vmatprep.mubr.f32.mxu0 0.0
  %893 = vmatmul.mubr.f32.gmra.mrb[0].mxu0 %v429
  %v894 = vpop.f32.mrb[0].mxu0
  %v895 = vadd.f32 0.0, %v894
  %v896 = vpop.f32.mrb[0].mxu0
  %897 = vmatprep.mubr.f32.mxu0 0.0
  %898 = vmatmul.mubr.f32.gmra.mrb[0].mxu0 %v432
  %v899 = vpop.f32.mrb[0].mxu0
  %v900 = vadd.f32 0.0, %v899
  %v901 = vpop.f32.mrb[0].mxu0
  %902 = vmatprep.mubr.f32.mxu0 0.0
  %903 = vmatmul.mubr.f32.gmra.mrb[0].mxu0 %v435
  %v904 = vpop.f32.mrb[0].mxu0
  %v905 = vadd.f32 0.0, %v904
  %v906 = vpop.f32.mrb[0].mxu0
  %907 = vmatprep.mubr.f32.mxu0 0.0
  %908 = vmatmul.mubr.f32.gmra.mrb[0].mxu0 %v438
  %v909 = vpop.f32.mrb[0].mxu0
  %v910 = vadd.f32 0.0, %v909
  %v911 = vpop.f32.mrb[0].mxu0
  %912 = vdwg.mxu0
  %v914 = vsel %vm196, %v32, 0
  %v917 = vsel %vm196, %v33, 0
  %v920 = vsel %vm196, %v34, 0
  %v923 = vsel %vm196, %v35, 0
  %v926 = vsel %vm196, %v36, 0
  %v929 = vsel %vm196, %v37, 0
  %v932 = vsel %vm196, %v38, 0
  %v935 = vsel %vm196, %v39, 0
  %v938 = vsel %vm196, %v40, 0
  %v941 = vsel %vm196, %v41, 0
  %v944 = vsel %vm196, %v42, 0
  %v947 = vsel %vm196, %v43, 0
  %v950 = vsel %vm196, %v44, 0
  %v953 = vsel %vm196, %v45, 0
  %v956 = vsel %vm196, %v46, 0
  %v959 = vsel %vm196, %v47, 0
  %v962 = vsel %vm196, %v48, 0
  %v965 = vsel %vm196, %v49, 0
  %v968 = vsel %vm196, %v50, 0
  %v971 = vsel %vm196, %v51, 0
  %v974 = vsel %vm196, %v52, 0
  %v977 = vsel %vm196, %v53, 0
  %v980 = vsel %vm196, %v54, 0
  %v983 = vsel %vm196, %v55, 0
  %v986 = vsel %vm196, %v56, 0
  %v989 = vsel %vm196, %v57, 0
  %v992 = vsel %vm196, %v58, 0
  %v995 = vsel %vm196, %v59, 0
  %v998 = vsel %vm196, %v60, 0
  %v1001 = vsel %vm196, %v61, 0
  %v1004 = vsel %vm196, %v62, 0
  %v1007 = vsel %vm196, %v63, 0
  %v1010 = vsel %vm196, %v64, 0
  %v1013 = vsel %vm196, %v65, 0
  %v1016 = vsel %vm196, %v66, 0
  %v1019 = vsel %vm196, %v67, 0
  %v1022 = vsel %vm196, %v68, 0
  %v1025 = vsel %vm196, %v69, 0
  %v1028 = vsel %vm196, %v70, 0
  %v1031 = vsel %vm196, %v71, 0
  %v1034 = vsel %vm196, %v72, 0
  %v1037 = vsel %vm196, %v73, 0
  %v1040 = vsel %vm196, %v74, 0
  %v1043 = vsel %vm196, %v75, 0
  %v1046 = vsel %vm196, %v76, 0
  %v1049 = vsel %vm196, %v77, 0
  %v1052 = vsel %vm196, %v78, 0
  %v1055 = vsel %vm196, %v79, 0
  %v1058 = vsel %vm196, %v80, 0
  %v1061 = vsel %vm196, %v81, 0
  %v1064 = vsel %vm196, %v82, 0
  %v1067 = vsel %vm196, %v83, 0
  %v1070 = vsel %vm196, %v84, 0
  %v1073 = vsel %vm196, %v85, 0
  %v1076 = vsel %vm196, %v86, 0
  %v1079 = vsel %vm196, %v87, 0
  %v1082 = vsel %vm196, %v88, 0
  %v1085 = vsel %vm196, %v89, 0
  %v1088 = vsel %vm196, %v90, 0
  %v1091 = vsel %vm196, %v91, 0
  %v1094 = vsel %vm196, %v92, 0
  %v1097 = vsel %vm196, %v93, 0
  %v1100 = vsel %vm196, %v94, 0
  %v1103 = vsel %vm196, %v95, 0
  %v1106 = vsel %vm196, %v96, 0
  %v1109 = vsel %vm196, %v97, 0
  %v1112 = vsel %vm196, %v98, 0
  %v1115 = vsel %vm196, %v99, 0
  %v1118 = vsel %vm196, %v100, 0
  %v1121 = vsel %vm196, %v101, 0
  %v1124 = vsel %vm196, %v102, 0
  %v1127 = vsel %vm196, %v103, 0
  %v1130 = vsel %vm196, %v104, 0
  %v1133 = vsel %vm196, %v105, 0
  %v1136 = vsel %vm196, %v106, 0
  %v1139 = vsel %vm196, %v107, 0
  %v1142 = vsel %vm196, %v108, 0
  %v1145 = vsel %vm196, %v109, 0
  %v1148 = vsel %vm196, %v110, 0
  %v1151 = vsel %vm196, %v111, 0
  %v1154 = vsel %vm196, %v112, 0
  %v1156 = vsel %vm440, %v27, 0
  %1158 = vmatprep.subr.mxu0 0.0
  %1159 = vmatpush1.msra.mxu0 %v1156
  %1160 = vmatprep.subr.mxu0 0.0
  %1161 = vmatpush1.msra.mxu0 0.0
  %1162 = vmatprep.subr.mxu0 0.0
  %1163 = vmatpush1.msra.mxu0 0.0
  %1164 = vmatprep.subr.mxu0 0.0
  %1165 = vmatpush1.msra.mxu0 0.0
  %1166 = vmatprep.subr.mxu0 0.0
  %1167 = vmatpush1.msra.mxu0 0.0
  %1168 = vmatprep.subr.mxu0 0.0
  %1169 = vmatpush1.msra.mxu0 0.0
  %1170 = vmatprep.subr.mxu0 0.0
  %1171 = vmatpush1.msra.mxu0 0.0
  %1172 = vmatprep.subr.mxu0 0.0
  %1173 = vmatpush1.msra.mxu0 0.0
  %1174 = vmatprep.subr.mxu0 0.0
  %1175 = vmatpush1.msra.mxu0 0.0
  %1176 = vmatprep.subr.mxu0 0.0
  %1177 = vmatpush1.msra.mxu0 0.0
  %1178 = vmatprep.subr.mxu0 0.0
  %1179 = vmatpush1.msra.mxu0 0.0
  %1180 = vmatprep.subr.mxu0 0.0
  %1181 = vmatpush1.msra.mxu0 0.0
  %1182 = vmatprep.subr.mxu0 0.0
  %1183 = vmatpush1.msra.mxu0 0.0
  %1184 = vmatprep.subr.mxu0 0.0
  %1185 = vmatpush1.msra.mxu0 0.0
  %1186 = vmatprep.subr.mxu0 0.0
  %1187 = vmatpush1.msra.mxu0 0.0
  %1188 = vmatprep.subr.mxu0 0.0
  %1189 = vmatpush1.msra.mxu0 0.0
  %1190 = vmatprep.subr.mxu0 0.0
  %1191 = vmatpush1.msra.mxu0 0.0
  %1192 = vmatprep.subr.mxu0 0.0
  %1193 = vmatpush1.msra.mxu0 0.0
  %1194 = vmatprep.subr.mxu0 0.0
  %1195 = vmatpush1.msra.mxu0 0.0
  %1196 = vmatprep.subr.mxu0 0.0
  %1197 = vmatpush1.msra.mxu0 0.0
  %1198 = vmatprep.subr.mxu0 0.0
  %1199 = vmatpush1.msra.mxu0 0.0
  %1200 = vmatprep.subr.mxu0 0.0
  %1201 = vmatpush1.msra.mxu0 0.0
  %1202 = vmatprep.subr.mxu0 0.0
  %1203 = vmatpush1.msra.mxu0 0.0
  %1204 = vmatprep.subr.mxu0 0.0
  %1205 = vmatpush1.msra.mxu0 0.0
  %1206 = vmatprep.subr.mxu0 0.0
  %1207 = vmatpush1.msra.mxu0 0.0
  %1208 = vmatprep.subr.mxu0 0.0
  %1209 = vmatpush1.msra.mxu0 0.0
  %1210 = vmatprep.subr.mxu0 0.0
  %1211 = vmatpush1.msra.mxu0 0.0
  %1212 = vmatprep.subr.mxu0 0.0
  %1213 = vmatpush1.msra.mxu0 0.0
  %1214 = vmatprep.subr.mxu0 0.0
  %1215 = vmatpush1.msra.mxu0 0.0
  %1216 = vmatprep.subr.mxu0 0.0
  %1217 = vmatpush1.msra.mxu0 0.0
  %1218 = vmatprep.subr.mxu0 0.0
  %1219 = vmatpush1.msra.mxu0 0.0
  %1220 = vmatprep.subr.mxu0 0.0
  %1221 = vmatpush1.msra.mxu0 0.0
  %1222 = vmatprep.mubr.f32.mxu0 0.0
  %1223 = vmatmul.mubr.f32.gmra.mrb[0].mxu0 %v914
  %v1224 = vpop.f32.mrb[0].mxu0
  %v1225 = vadd.f32 %v510, %v1224
  %v1226 = vpop.f32.mrb[0].mxu0
  %1227 = vmatprep.mubr.f32.mxu0 0.0
  %1228 = vmatmul.mubr.f32.gmra.mrb[0].mxu0 %v917
  %v1229 = vpop.f32.mrb[0].mxu0
  %v1230 = vadd.f32 %v515, %v1229
  %v1231 = vpop.f32.mrb[0].mxu0
  %1232 = vmatprep.mubr.f32.mxu0 0.0
  %1233 = vmatmul.mubr.f32.gmra.mrb[0].mxu0 %v920
  %v1234 = vpop.f32.mrb[0].mxu0
  %v1235 = vadd.f32 %v520, %v1234
  %v1236 = vpop.f32.mrb[0].mxu0
  %1237 = vmatprep.mubr.f32.mxu0 0.0
  %1238 = vmatmul.mubr.f32.gmra.mrb[0].mxu0 %v923
  %v1239 = vpop.f32.mrb[0].mxu0
  %v1240 = vadd.f32 %v525, %v1239
  %v1241 = vpop.f32.mrb[0].mxu0
  %1242 = vmatprep.mubr.f32.mxu0 0.0
  %1243 = vmatmul.mubr.f32.gmra.mrb[0].mxu0 %v926
  %v1244 = vpop.f32.mrb[0].mxu0
  %v1245 = vadd.f32 %v530, %v1244
  %v1246 = vpop.f32.mrb[0].mxu0
  %1247 = vmatprep.mubr.f32.mxu0 0.0
  %1248 = vmatmul.mubr.f32.gmra.mrb[0].mxu0 %v929
  %v1249 = vpop.f32.mrb[0].mxu0
  %v1250 = vadd.f32 %v535, %v1249
  %v1251 = vpop.f32.mrb[0].mxu0
  %1252 = vmatprep.mubr.f32.mxu0 0.0
  %1253 = vmatmul.mubr.f32.gmra.mrb[0].mxu0 %v932
  %v1254 = vpop.f32.mrb[0].mxu0
  %v1255 = vadd.f32 %v540, %v1254
  %v1256 = vpop.f32.mrb[0].mxu0
  %1257 = vmatprep.mubr.f32.mxu0 0.0
  %1258 = vmatmul.mubr.f32.gmra.mrb[0].mxu0 %v935
  %v1259 = vpop.f32.mrb[0].mxu0
  %v1260 = vadd.f32 %v545, %v1259
  %v1261 = vpop.f32.mrb[0].mxu0
  %1262 = vmatprep.mubr.f32.mxu0 0.0
  %1263 = vmatmul.mubr.f32.gmra.mrb[0].mxu0 %v938
  %v1264 = vpop.f32.mrb[0].mxu0
  %v1265 = vadd.f32 %v550, %v1264
  %v1266 = vpop.f32.mrb[0].mxu0
  %1267 = vmatprep.mubr.f32.mxu0 0.0
  %1268 = vmatmul.mubr.f32.gmra.mrb[0].mxu0 %v941
  %v1269 = vpop.f32.mrb[0].mxu0
  %v1270 = vadd.f32 %v555, %v1269
  %v1271 = vpop.f32.mrb[0].mxu0
  %1272 = vmatprep.mubr.f32.mxu0 0.0
  %1273 = vmatmul.mubr.f32.gmra.mrb[0].mxu0 %v944
  %v1274 = vpop.f32.mrb[0].mxu0
  %v1275 = vadd.f32 %v560, %v1274
  %v1276 = vpop.f32.mrb[0].mxu0
  %1277 = vmatprep.mubr.f32.mxu0 0.0
  %1278 = vmatmul.mubr.f32.gmra.mrb[0].mxu0 %v947
  %v1279 = vpop.f32.mrb[0].mxu0
  %v1280 = vadd.f32 %v565, %v1279
  %v1281 = vpop.f32.mrb[0].mxu0
  %1282 = vmatprep.mubr.f32.mxu0 0.0
  %1283 = vmatmul.mubr.f32.gmra.mrb[0].mxu0 %v950
  %v1284 = vpop.f32.mrb[0].mxu0
  %v1285 = vadd.f32 %v570, %v1284
  %v1286 = vpop.f32.mrb[0].mxu0
  %1287 = vmatprep.mubr.f32.mxu0 0.0
  %1288 = vmatmul.mubr.f32.gmra.mrb[0].mxu0 %v953
  %v1289 = vpop.f32.mrb[0].mxu0
  %v1290 = vadd.f32 %v575, %v1289
  %v1291 = vpop.f32.mrb[0].mxu0
  %1292 = vmatprep.mubr.f32.mxu0 0.0
  %1293 = vmatmul.mubr.f32.gmra.mrb[0].mxu0 %v956
  %v1294 = vpop.f32.mrb[0].mxu0
  %v1295 = vadd.f32 %v580, %v1294
  %v1296 = vpop.f32.mrb[0].mxu0
  %1297 = vmatprep.mubr.f32.mxu0 0.0
  %1298 = vmatmul.mubr.f32.gmra.mrb[0].mxu0 %v959
  %v1299 = vpop.f32.mrb[0].mxu0
  %v1300 = vadd.f32 %v585, %v1299
  %v1301 = vpop.f32.mrb[0].mxu0
  %1302 = vmatprep.mubr.f32.mxu0 0.0
  %1303 = vmatmul.mubr.f32.gmra.mrb[0].mxu0 %v962
  %v1304 = vpop.f32.mrb[0].mxu0
  %v1305 = vadd.f32 %v590, %v1304
  %v1306 = vpop.f32.mrb[0].mxu0
  %1307 = vmatprep.mubr.f32.mxu0 0.0
  %1308 = vmatmul.mubr.f32.gmra.mrb[0].mxu0 %v965
  %v1309 = vpop.f32.mrb[0].mxu0
  %v1310 = vadd.f32 %v595, %v1309
  %v1311 = vpop.f32.mrb[0].mxu0
  %1312 = vmatprep.mubr.f32.mxu0 0.0
  %1313 = vmatmul.mubr.f32.gmra.mrb[0].mxu0 %v968
  %v1314 = vpop.f32.mrb[0].mxu0
  %v1315 = vadd.f32 %v600, %v1314
  %v1316 = vpop.f32.mrb[0].mxu0
  %1317 = vmatprep.mubr.f32.mxu0 0.0
  %1318 = vmatmul.mubr.f32.gmra.mrb[0].mxu0 %v971
  %v1319 = vpop.f32.mrb[0].mxu0
  %v1320 = vadd.f32 %v605, %v1319
  %v1321 = vpop.f32.mrb[0].mxu0
  %1322 = vmatprep.mubr.f32.mxu0 0.0
  %1323 = vmatmul.mubr.f32.gmra.mrb[0].mxu0 %v974
  %v1324 = vpop.f32.mrb[0].mxu0
  %v1325 = vadd.f32 %v610, %v1324
  %v1326 = vpop.f32.mrb[0].mxu0
  %1327 = vmatprep.mubr.f32.mxu0 0.0
  %1328 = vmatmul.mubr.f32.gmra.mrb[0].mxu0 %v977
  %v1329 = vpop.f32.mrb[0].mxu0
  %v1330 = vadd.f32 %v615, %v1329
  %v1331 = vpop.f32.mrb[0].mxu0
  %1332 = vmatprep.mubr.f32.mxu0 0.0
  %1333 = vmatmul.mubr.f32.gmra.mrb[0].mxu0 %v980
  %v1334 = vpop.f32.mrb[0].mxu0
  %v1335 = vadd.f32 %v620, %v1334
  %v1336 = vpop.f32.mrb[0].mxu0
  %1337 = vmatprep.mubr.f32.mxu0 0.0
  %1338 = vmatmul.mubr.f32.gmra.mrb[0].mxu0 %v983
  %v1339 = vpop.f32.mrb[0].mxu0
  %v1340 = vadd.f32 %v625, %v1339
  %v1341 = vpop.f32.mrb[0].mxu0
  %1342 = vmatprep.mubr.f32.mxu0 0.0
  %1343 = vmatmul.mubr.f32.gmra.mrb[0].mxu0 %v986
  %v1344 = vpop.f32.mrb[0].mxu0
  %v1345 = vadd.f32 %v630, %v1344
  %v1346 = vpop.f32.mrb[0].mxu0
  %1347 = vmatprep.mubr.f32.mxu0 0.0
  %1348 = vmatmul.mubr.f32.gmra.mrb[0].mxu0 %v989
  %v1349 = vpop.f32.mrb[0].mxu0
  %v1350 = vadd.f32 %v635, %v1349
  %v1351 = vpop.f32.mrb[0].mxu0
  %1352 = vmatprep.mubr.f32.mxu0 0.0
  %1353 = vmatmul.mubr.f32.gmra.mrb[0].mxu0 %v992
  %v1354 = vpop.f32.mrb[0].mxu0
  %v1355 = vadd.f32 %v640, %v1354
  %v1356 = vpop.f32.mrb[0].mxu0
  %1357 = vmatprep.mubr.f32.mxu0 0.0
  %1358 = vmatmul.mubr.f32.gmra.mrb[0].mxu0 %v995
  %v1359 = vpop.f32.mrb[0].mxu0
  %v1360 = vadd.f32 %v645, %v1359
  %v1361 = vpop.f32.mrb[0].mxu0
  %1362 = vmatprep.mubr.f32.mxu0 0.0
  %1363 = vmatmul.mubr.f32.gmra.mrb[0].mxu0 %v998
  %v1364 = vpop.f32.mrb[0].mxu0
  %v1365 = vadd.f32 %v650, %v1364
  %v1366 = vpop.f32.mrb[0].mxu0
  %1367 = vmatprep.mubr.f32.mxu0 0.0
  %1368 = vmatmul.mubr.f32.gmra.mrb[0].mxu0 %v1001
  %v1369 = vpop.f32.mrb[0].mxu0
  %v1370 = vadd.f32 %v655, %v1369
  %v1371 = vpop.f32.mrb[0].mxu0
  %1372 = vmatprep.mubr.f32.mxu0 0.0
  %1373 = vmatmul.mubr.f32.gmra.mrb[0].mxu0 %v1004
  %v1374 = vpop.f32.mrb[0].mxu0
  %v1375 = vadd.f32 %v660, %v1374
  %v1376 = vpop.f32.mrb[0].mxu0
  %1377 = vmatprep.mubr.f32.mxu0 0.0
  %1378 = vmatmul.mubr.f32.gmra.mrb[0].mxu0 %v1007
  %v1379 = vpop.f32.mrb[0].mxu0
  %v1380 = vadd.f32 %v665, %v1379
  %v1381 = vpop.f32.mrb[0].mxu0
  %1382 = vmatprep.mubr.f32.mxu0 0.0
  %1383 = vmatmul.mubr.f32.gmra.mrb[0].mxu0 %v1010
  %v1384 = vpop.f32.mrb[0].mxu0
  %v1385 = vadd.f32 %v670, %v1384
  %v1386 = vpop.f32.mrb[0].mxu0
  %1387 = vmatprep.mubr.f32.mxu0 0.0
  %1388 = vmatmul.mubr.f32.gmra.mrb[0].mxu0 %v1013
  %v1389 = vpop.f32.mrb[0].mxu0
  %v1390 = vadd.f32 %v675, %v1389
  %v1391 = vpop.f32.mrb[0].mxu0
  %1392 = vmatprep.mubr.f32.mxu0 0.0
  %1393 = vmatmul.mubr.f32.gmra.mrb[0].mxu0 %v1016
  %v1394 = vpop.f32.mrb[0].mxu0
  %v1395 = vadd.f32 %v680, %v1394
  %v1396 = vpop.f32.mrb[0].mxu0
  %1397 = vmatprep.mubr.f32.mxu0 0.0
  %1398 = vmatmul.mubr.f32.gmra.mrb[0].mxu0 %v1019
  %v1399 = vpop.f32.mrb[0].mxu0
  %v1400 = vadd.f32 %v685, %v1399
  %v1401 = vpop.f32.mrb[0].mxu0
  %1402 = vmatprep.mubr.f32.mxu0 0.0
  %1403 = vmatmul.mubr.f32.gmra.mrb[0].mxu0 %v1022
  %v1404 = vpop.f32.mrb[0].mxu0
  %v1405 = vadd.f32 %v690, %v1404
  %v1406 = vpop.f32.mrb[0].mxu0
  %1407 = vmatprep.mubr.f32.mxu0 0.0
  %1408 = vmatmul.mubr.f32.gmra.mrb[0].mxu0 %v1025
  %v1409 = vpop.f32.mrb[0].mxu0
  %v1410 = vadd.f32 %v695, %v1409
  %v1411 = vpop.f32.mrb[0].mxu0
  %1412 = vmatprep.mubr.f32.mxu0 0.0
  %1413 = vmatmul.mubr.f32.gmra.mrb[0].mxu0 %v1028
  %v1414 = vpop.f32.mrb[0].mxu0
  %v1415 = vadd.f32 %v700, %v1414
  %v1416 = vpop.f32.mrb[0].mxu0
  %1417 = vmatprep.mubr.f32.mxu0 0.0
  %1418 = vmatmul.mubr.f32.gmra.mrb[0].mxu0 %v1031
  %v1419 = vpop.f32.mrb[0].mxu0
  %v1420 = vadd.f32 %v705, %v1419
  %v1421 = vpop.f32.mrb[0].mxu0
  %1422 = vmatprep.mubr.f32.mxu0 0.0
  %1423 = vmatmul.mubr.f32.gmra.mrb[0].mxu0 %v1034
  %v1424 = vpop.f32.mrb[0].mxu0
  %v1425 = vadd.f32 %v710, %v1424
  %v1426 = vpop.f32.mrb[0].mxu0
  %1427 = vmatprep.mubr.f32.mxu0 0.0
  %1428 = vmatmul.mubr.f32.gmra.mrb[0].mxu0 %v1037
  %v1429 = vpop.f32.mrb[0].mxu0
  %v1430 = vadd.f32 %v715, %v1429
  %v1431 = vpop.f32.mrb[0].mxu0
  %1432 = vmatprep.mubr.f32.mxu0 0.0
  %1433 = vmatmul.mubr.f32.gmra.mrb[0].mxu0 %v1040
  %v1434 = vpop.f32.mrb[0].mxu0
  %v1435 = vadd.f32 %v720, %v1434
  %v1436 = vpop.f32.mrb[0].mxu0
  %1437 = vmatprep.mubr.f32.mxu0 0.0
  %1438 = vmatmul.mubr.f32.gmra.mrb[0].mxu0 %v1043
  %v1439 = vpop.f32.mrb[0].mxu0
  %v1440 = vadd.f32 %v725, %v1439
  %v1441 = vpop.f32.mrb[0].mxu0
  %1442 = vmatprep.mubr.f32.mxu0 0.0
  %1443 = vmatmul.mubr.f32.gmra.mrb[0].mxu0 %v1046
  %v1444 = vpop.f32.mrb[0].mxu0
  %v1445 = vadd.f32 %v730, %v1444
  %v1446 = vpop.f32.mrb[0].mxu0
  %1447 = vmatprep.mubr.f32.mxu0 0.0
  %1448 = vmatmul.mubr.f32.gmra.mrb[0].mxu0 %v1049
  %v1449 = vpop.f32.mrb[0].mxu0
  %v1450 = vadd.f32 %v735, %v1449
  %v1451 = vpop.f32.mrb[0].mxu0
  %1452 = vmatprep.mubr.f32.mxu0 0.0
  %1453 = vmatmul.mubr.f32.gmra.mrb[0].mxu0 %v1052
  %v1454 = vpop.f32.mrb[0].mxu0
  %v1455 = vadd.f32 %v740, %v1454
  %v1456 = vpop.f32.mrb[0].mxu0
  %1457 = vmatprep.mubr.f32.mxu0 0.0
  %1458 = vmatmul.mubr.f32.gmra.mrb[0].mxu0 %v1055
  %v1459 = vpop.f32.mrb[0].mxu0
  %v1460 = vadd.f32 %v745, %v1459
  %v1461 = vpop.f32.mrb[0].mxu0
  %1462 = vmatprep.mubr.f32.mxu0 0.0
  %1463 = vmatmul.mubr.f32.gmra.mrb[0].mxu0 %v1058
  %v1464 = vpop.f32.mrb[0].mxu0
  %v1465 = vadd.f32 %v750, %v1464
  %v1466 = vpop.f32.mrb[0].mxu0
  %1467 = vmatprep.mubr.f32.mxu0 0.0
  %1468 = vmatmul.mubr.f32.gmra.mrb[0].mxu0 %v1061
  %v1469 = vpop.f32.mrb[0].mxu0
  %v1470 = vadd.f32 %v755, %v1469
  %v1471 = vpop.f32.mrb[0].mxu0
  %1472 = vmatprep.mubr.f32.mxu0 0.0
  %1473 = vmatmul.mubr.f32.gmra.mrb[0].mxu0 %v1064
  %v1474 = vpop.f32.mrb[0].mxu0
  %v1475 = vadd.f32 %v760, %v1474
  %v1476 = vpop.f32.mrb[0].mxu0
  %1477 = vmatprep.mubr.f32.mxu0 0.0
  %1478 = vmatmul.mubr.f32.gmra.mrb[0].mxu0 %v1067
  %v1479 = vpop.f32.mrb[0].mxu0
  %v1480 = vadd.f32 %v765, %v1479
  %v1481 = vpop.f32.mrb[0].mxu0
  %1482 = vmatprep.mubr.f32.mxu0 0.0
  %1483 = vmatmul.mubr.f32.gmra.mrb[0].mxu0 %v1070
  %v1484 = vpop.f32.mrb[0].mxu0
  %v1485 = vadd.f32 %v770, %v1484
  %v1486 = vpop.f32.mrb[0].mxu0
  %1487 = vmatprep.mubr.f32.mxu0 0.0
  %1488 = vmatmul.mubr.f32.gmra.mrb[0].mxu0 %v1073
  %v1489 = vpop.f32.mrb[0].mxu0
  %v1490 = vadd.f32 %v775, %v1489
  %v1491 = vpop.f32.mrb[0].mxu0
  %1492 = vmatprep.mubr.f32.mxu0 0.0
  %1493 = vmatmul.mubr.f32.gmra.mrb[0].mxu0 %v1076
  %v1494 = vpop.f32.mrb[0].mxu0
  %v1495 = vadd.f32 %v780, %v1494
  %v1496 = vpop.f32.mrb[0].mxu0
  %1497 = vmatprep.mubr.f32.mxu0 0.0
  %1498 = vmatmul.mubr.f32.gmra.mrb[0].mxu0 %v1079
  %v1499 = vpop.f32.mrb[0].mxu0
  %v1500 = vadd.f32 %v785, %v1499
  %v1501 = vpop.f32.mrb[0].mxu0
  %1502 = vmatprep.mubr.f32.mxu0 0.0
  %1503 = vmatmul.mubr.f32.gmra.mrb[0].mxu0 %v1082
  %v1504 = vpop.f32.mrb[0].mxu0
  %v1505 = vadd.f32 %v790, %v1504
  %v1506 = vpop.f32.mrb[0].mxu0
  %1507 = vmatprep.mubr.f32.mxu0 0.0
  %1508 = vmatmul.mubr.f32.gmra.mrb[0].mxu0 %v1085
  %v1509 = vpop.f32.mrb[0].mxu0
  %v1510 = vadd.f32 %v795, %v1509
  %v1511 = vpop.f32.mrb[0].mxu0
  %1512 = vmatprep.mubr.f32.mxu0 0.0
  %1513 = vmatmul.mubr.f32.gmra.mrb[0].mxu0 %v1088
  %v1514 = vpop.f32.mrb[0].mxu0
  %v1515 = vadd.f32 %v800, %v1514
  %v1516 = vpop.f32.mrb[0].mxu0
  %1517 = vmatprep.mubr.f32.mxu0 0.0
  %1518 = vmatmul.mubr.f32.gmra.mrb[0].mxu0 %v1091
  %v1519 = vpop.f32.mrb[0].mxu0
  %v1520 = vadd.f32 %v805, %v1519
  %v1521 = vpop.f32.mrb[0].mxu0
  %1522 = vmatprep.mubr.f32.mxu0 0.0
  %1523 = vmatmul.mubr.f32.gmra.mrb[0].mxu0 %v1094
  %v1524 = vpop.f32.mrb[0].mxu0
  %v1525 = vadd.f32 %v810, %v1524
  %v1526 = vpop.f32.mrb[0].mxu0
  %1527 = vmatprep.mubr.f32.mxu0 0.0
  %1528 = vmatmul.mubr.f32.gmra.mrb[0].mxu0 %v1097
  %v1529 = vpop.f32.mrb[0].mxu0
  %v1530 = vadd.f32 %v815, %v1529
  %v1531 = vpop.f32.mrb[0].mxu0
  %1532 = vmatprep.mubr.f32.mxu0 0.0
  %1533 = vmatmul.mubr.f32.gmra.mrb[0].mxu0 %v1100
  %v1534 = vpop.f32.mrb[0].mxu0
  %v1535 = vadd.f32 %v820, %v1534
  %v1536 = vpop.f32.mrb[0].mxu0
  %1537 = vmatprep.mubr.f32.mxu0 0.0
  %1538 = vmatmul.mubr.f32.gmra.mrb[0].mxu0 %v1103
  %v1539 = vpop.f32.mrb[0].mxu0
  %v1540 = vadd.f32 %v825, %v1539
  %v1541 = vpop.f32.mrb[0].mxu0
  %1542 = vmatprep.mubr.f32.mxu0 0.0
  %1543 = vmatmul.mubr.f32.gmra.mrb[0].mxu0 %v1106
  %v1544 = vpop.f32.mrb[0].mxu0
  %v1545 = vadd.f32 %v830, %v1544
  %v1546 = vpop.f32.mrb[0].mxu0
  %1547 = vmatprep.mubr.f32.mxu0 0.0
  %1548 = vmatmul.mubr.f32.gmra.mrb[0].mxu0 %v1109
  %v1549 = vpop.f32.mrb[0].mxu0
  %v1550 = vadd.f32 %v835, %v1549
  %v1551 = vpop.f32.mrb[0].mxu0
  %1552 = vmatprep.mubr.f32.mxu0 0.0
  %1553 = vmatmul.mubr.f32.gmra.mrb[0].mxu0 %v1112
  %v1554 = vpop.f32.mrb[0].mxu0
  %v1555 = vadd.f32 %v840, %v1554
  %v1556 = vpop.f32.mrb[0].mxu0
  %1557 = vmatprep.mubr.f32.mxu0 0.0
  %1558 = vmatmul.mubr.f32.gmra.mrb[0].mxu0 %v1115
  %v1559 = vpop.f32.mrb[0].mxu0
  %v1560 = vadd.f32 %v845, %v1559
  %v1561 = vpop.f32.mrb[0].mxu0
  %1562 = vmatprep.mubr.f32.mxu0 0.0
  %1563 = vmatmul.mubr.f32.gmra.mrb[0].mxu0 %v1118
  %v1564 = vpop.f32.mrb[0].mxu0
  %v1565 = vadd.f32 %v850, %v1564
  %v1566 = vpop.f32.mrb[0].mxu0
  %1567 = vmatprep.mubr.f32.mxu0 0.0
  %1568 = vmatmul.mubr.f32.gmra.mrb[0].mxu0 %v1121
  %v1569 = vpop.f32.mrb[0].mxu0
  %v1570 = vadd.f32 %v855, %v1569
  %v1571 = vpop.f32.mrb[0].mxu0
  %1572 = vmatprep.mubr.f32.mxu0 0.0
  %1573 = vmatmul.mubr.f32.gmra.mrb[0].mxu0 %v1124
  %v1574 = vpop.f32.mrb[0].mxu0
  %v1575 = vadd.f32 %v860, %v1574
  %v1576 = vpop.f32.mrb[0].mxu0
  %1577 = vmatprep.mubr.f32.mxu0 0.0
  %1578 = vmatmul.mubr.f32.gmra.mrb[0].mxu0 %v1127
  %v1579 = vpop.f32.mrb[0].mxu0
  %v1580 = vadd.f32 %v865, %v1579
  %v1581 = vpop.f32.mrb[0].mxu0
  %1582 = vmatprep.mubr.f32.mxu0 0.0
  %1583 = vmatmul.mubr.f32.gmra.mrb[0].mxu0 %v1130
  %v1584 = vpop.f32.mrb[0].mxu0
  %v1585 = vadd.f32 %v870, %v1584
  %v1586 = vpop.f32.mrb[0].mxu0
  %1587 = vmatprep.mubr.f32.mxu0 0.0
  %1588 = vmatmul.mubr.f32.gmra.mrb[0].mxu0 %v1133
  %v1589 = vpop.f32.mrb[0].mxu0
  %v1590 = vadd.f32 %v875, %v1589
  %v1591 = vpop.f32.mrb[0].mxu0
  %1592 = vmatprep.mubr.f32.mxu0 0.0
  %1593 = vmatmul.mubr.f32.gmra.mrb[0].mxu0 %v1136
  %v1594 = vpop.f32.mrb[0].mxu0
  %v1595 = vadd.f32 %v880, %v1594
  %v1596 = vpop.f32.mrb[0].mxu0
  %1597 = vmatprep.mubr.f32.mxu0 0.0
  %1598 = vmatmul.mubr.f32.gmra.mrb[0].mxu0 %v1139
  %v1599 = vpop.f32.mrb[0].mxu0
  %v1600 = vadd.f32 %v885, %v1599
  %v1601 = vpop.f32.mrb[0].mxu0
  %1602 = vmatprep.mubr.f32.mxu0 0.0
  %1603 = vmatmul.mubr.f32.gmra.mrb[0].mxu0 %v1142
  %v1604 = vpop.f32.mrb[0].mxu0
  %v1605 = vadd.f32 %v890, %v1604
  %v1606 = vpop.f32.mrb[0].mxu0
  %1607 = vmatprep.mubr.f32.mxu0 0.0
  %1608 = vmatmul.mubr.f32.gmra.mrb[0].mxu0 %v1145
  %v1609 = vpop.f32.mrb[0].mxu0
  %v1610 = vadd.f32 %v895, %v1609
  %v1611 = vpop.f32.mrb[0].mxu0
  %1612 = vmatprep.mubr.f32.mxu0 0.0
  %1613 = vmatmul.mubr.f32.gmra.mrb[0].mxu0 %v1148
  %v1614 = vpop.f32.mrb[0].mxu0
  %v1615 = vadd.f32 %v900, %v1614
  %v1616 = vpop.f32.mrb[0].mxu0
  %1617 = vmatprep.mubr.f32.mxu0 0.0
  %1618 = vmatmul.mubr.f32.gmra.mrb[0].mxu0 %v1151
  %v1619 = vpop.f32.mrb[0].mxu0
  %v1620 = vadd.f32 %v905, %v1619
  %v1621 = vpop.f32.mrb[0].mxu0
  %1622 = vmatprep.mubr.f32.mxu0 0.0
  %1623 = vmatmul.mubr.f32.gmra.mrb[0].mxu0 %v1154
  %v1624 = vpop.f32.mrb[0].mxu0
  %v1625 = vadd.f32 %v910, %v1624
  %v1626 = vpop.f32.mrb[0].mxu0
  %1627 = vdwg.mxu0
  %v1628 = vld [vmem:[%s0 + $0x2] sm:$0xff]
  %v1629 = vld [vmem:[%s0 + $0xa] sm:$0xff]
  %v1630 = vld [vmem:[%s0 + $0x12] sm:$0xff]
  %v1631 = vld [vmem:[%s0 + $0x1a] sm:$0xff]
  %v1632 = vld [vmem:[%s0 + $0x22] sm:$0xff]
  %v1633 = vld [vmem:[%s0 + $0x2a] sm:$0xff]
  %v1634 = vld [vmem:[%s0 + $0x32] sm:$0xff]
  %v1635 = vld [vmem:[%s0 + $0x3a] sm:$0xff]
  %v1636 = vld [vmem:[%s0 + $0x42] sm:$0xff]
  %v1637 = vld [vmem:[%s0 + $0x4a] sm:$0xff]
  %v1638 = vld [vmem:[%s0 + $0x52] sm:$0xff]
  %v1639 = vld [vmem:[%s0 + $0x5a] sm:$0xff]
  %v1640 = vld [vmem:[%s0 + $0x62] sm:$0xff]
  %v1641 = vld [vmem:[%s0 + $0x6a] sm:$0xff]
  %v1642 = vld [vmem:[%s0 + $0x72] sm:$0xff]
  %v1643 = vld [vmem:[%s0 + $0x7a] sm:$0xff]
  %v1644 = vld [vmem:[%s0 + $0x82] sm:$0xff]
  %v1645 = vld [vmem:[%s0 + $0x8a] sm:$0xff]
  %v1646 = vld [vmem:[%s0 + $0x92] sm:$0xff]
  %v1647 = vld [vmem:[%s0 + $0x9a] sm:$0xff]
  %v1648 = vld [vmem:[%s0 + $0xa2] sm:$0xff]
  %v1649 = vld [vmem:[%s0 + $0xaa] sm:$0xff]
  %v1650 = vld [vmem:[%s0 + $0xb2] sm:$0xff]
  %v1651 = vld [vmem:[%s0 + $0xba] sm:$0xff]
  %v1652 = vld [vmem:[%s0 + $0xc2] sm:$0xff]
  %v1653 = vld [vmem:[%s0 + $0xca] sm:$0xff]
  %v1654 = vld [vmem:[%s0 + $0xd2] sm:$0xff]
  %v1655 = vld [vmem:[%s0 + $0xda] sm:$0xff]
  %v1656 = vld [vmem:[%s0 + $0xe2] sm:$0xff]
  %v1657 = vld [vmem:[%s0 + $0xea] sm:$0xff]
  %v1658 = vld [vmem:[%s0 + $0xf2] sm:$0xff]
  %v1659 = vld [vmem:[%s0 + $0xfa] sm:$0xff]
  %v1660 = vld [vmem:[%s0 + $0x102] sm:$0xff]
  %v1661 = vld [vmem:[%s0 + $0x10a] sm:$0xff]
  %v1662 = vld [vmem:[%s0 + $0x112] sm:$0xff]
  %v1663 = vld [vmem:[%s0 + $0x11a] sm:$0xff]
  %v1664 = vld [vmem:[%s0 + $0x122] sm:$0xff]
  %v1665 = vld [vmem:[%s0 + $0x12a] sm:$0xff]
  %v1666 = vld [vmem:[%s0 + $0x132] sm:$0xff]
  %v1667 = vld [vmem:[%s0 + $0x13a] sm:$0xff]
  %v1668 = vld [vmem:[%s0 + $0x142] sm:$0xff]
  %v1669 = vld [vmem:[%s0 + $0x14a] sm:$0xff]
  %v1670 = vld [vmem:[%s0 + $0x152] sm:$0xff]
  %v1671 = vld [vmem:[%s0 + $0x15a] sm:$0xff]
  %v1672 = vld [vmem:[%s0 + $0x162] sm:$0xff]
  %v1673 = vld [vmem:[%s0 + $0x16a] sm:$0xff]
  %v1674 = vld [vmem:[%s0 + $0x172] sm:$0xff]
  %v1675 = vld [vmem:[%s0 + $0x17a] sm:$0xff]
  %v1676 = vld [vmem:[%s0 + $0x182] sm:$0xff]
  %v1677 = vld [vmem:[%s0 + $0x18a] sm:$0xff]
  %v1678 = vld [vmem:[%s0 + $0x192] sm:$0xff]
  %v1679 = vld [vmem:[%s0 + $0x19a] sm:$0xff]
  %v1680 = vld [vmem:[%s0 + $0x1a2] sm:$0xff]
  %v1681 = vld [vmem:[%s0 + $0x1aa] sm:$0xff]
  %v1682 = vld [vmem:[%s0 + $0x1b2] sm:$0xff]
  %v1683 = vld [vmem:[%s0 + $0x1ba] sm:$0xff]
  %v1684 = vld [vmem:[%s0 + $0x1c2] sm:$0xff]
  %v1685 = vld [vmem:[%s0 + $0x1ca] sm:$0xff]
  %v1686 = vld [vmem:[%s0 + $0x1d2] sm:$0xff]
  %v1687 = vld [vmem:[%s0 + $0x1da] sm:$0xff]
  %v1688 = vld [vmem:[%s0 + $0x1e2] sm:$0xff]
  %v1689 = vld [vmem:[%s0 + $0x1ea] sm:$0xff]
  %v1690 = vld [vmem:[%s0 + $0x1f2] sm:$0xff]
  %v1691 = vld [vmem:[%s0 + $0x1fa] sm:$0xff]
  %v1692 = vld [vmem:[%s0 + $0x202] sm:$0xff]
  %v1693 = vld [vmem:[%s0 + $0x20a] sm:$0xff]
  %v1694 = vld [vmem:[%s0 + $0x212] sm:$0xff]
  %v1695 = vld [vmem:[%s0 + $0x21a] sm:$0xff]
  %v1696 = vld [vmem:[%s0 + $0x222] sm:$0xff]
  %v1697 = vld [vmem:[%s0 + $0x22a] sm:$0xff]
  %v1698 = vld [vmem:[%s0 + $0x232] sm:$0xff]
  %v1699 = vld [vmem:[%s0 + $0x23a] sm:$0xff]
  %v1700 = vld [vmem:[%s0 + $0x242] sm:$0xff]
  %v1701 = vld [vmem:[%s0 + $0x24a] sm:$0xff]
  %v1702 = vld [vmem:[%s0 + $0x252] sm:$0xff]
  %v1703 = vld [vmem:[%s0 + $0x25a] sm:$0xff]
  %v1704 = vld [vmem:[%s0 + $0x262] sm:$0xff]
  %v1705 = vld [vmem:[%s0 + $0x26a] sm:$0xff]
  %v1706 = vld [vmem:[%s0 + $0x272] sm:$0xff]
  %v1707 = vld [vmem:[%s0 + $0x27a] sm:$0xff]
  %v1708 = vld [vmem:[%s0 + $0x282] sm:$0xff]
  %v1710 = vsel %vm196, %v1628, 0
  %v1713 = vsel %vm196, %v1629, 0
  %v1716 = vsel %vm196, %v1630, 0
  %v1719 = vsel %vm196, %v1631, 0
  %v1722 = vsel %vm196, %v1632, 0
  %v1725 = vsel %vm196, %v1633, 0
  %v1728 = vsel %vm196, %v1634, 0
  %v1731 = vsel %vm196, %v1635, 0
  %v1734 = vsel %vm196, %v1636, 0
  %v1737 = vsel %vm196, %v1637, 0
  %v1740 = vsel %vm196, %v1638, 0
  %v1743 = vsel %vm196, %v1639, 0
  %v1746 = vsel %vm196, %v1640, 0
  %v1749 = vsel %vm196, %v1641, 0
  %v1752 = vsel %vm196, %v1642, 0
  %v1755 = vsel %vm196, %v1643, 0
  %v1758 = vsel %vm196, %v1644, 0
  %v1761 = vsel %vm196, %v1645, 0
  %v1764 = vsel %vm196, %v1646, 0
  %v1767 = vsel %vm196, %v1647, 0
  %v1770 = vsel %vm196, %v1648, 0
  %v1773 = vsel %vm196, %v1649, 0
  %v1776 = vsel %vm196, %v1650, 0
  %v1779 = vsel %vm196, %v1651, 0
  %v1782 = vsel %vm196, %v1652, 0
  %v1785 = vsel %vm196, %v1653, 0
  %v1788 = vsel %vm196, %v1654, 0
  %v1791 = vsel %vm196, %v1655, 0
  %v1794 = vsel %vm196, %v1656, 0
  %v1797 = vsel %vm196, %v1657, 0
  %v1800 = vsel %vm196, %v1658, 0
  %v1803 = vsel %vm196, %v1659, 0
  %v1806 = vsel %vm196, %v1660, 0
  %v1809 = vsel %vm196, %v1661, 0
  %v1812 = vsel %vm196, %v1662, 0
  %v1815 = vsel %vm196, %v1663, 0
  %v1818 = vsel %vm196, %v1664, 0
  %v1821 = vsel %vm196, %v1665, 0
  %v1824 = vsel %vm196, %v1666, 0
  %v1827 = vsel %vm196, %v1667, 0
  %v1830 = vsel %vm196, %v1668, 0
  %v1833 = vsel %vm196, %v1669, 0
  %v1836 = vsel %vm196, %v1670, 0
  %v1839 = vsel %vm196, %v1671, 0
  %v1842 = vsel %vm196, %v1672, 0
  %v1845 = vsel %vm196, %v1673, 0
  %v1848 = vsel %vm196, %v1674, 0
  %v1851 = vsel %vm196, %v1675, 0
  %v1854 = vsel %vm196, %v1676, 0
  %v1857 = vsel %vm196, %v1677, 0
  %v1860 = vsel %vm196, %v1678, 0
  %v1863 = vsel %vm196, %v1679, 0
  %v1866 = vsel %vm196, %v1680, 0
  %v1869 = vsel %vm196, %v1681, 0
  %v1872 = vsel %vm196, %v1682, 0
  %v1875 = vsel %vm196, %v1683, 0
  %v1878 = vsel %vm196, %v1684, 0
  %v1881 = vsel %vm196, %v1685, 0
  %v1884 = vsel %vm196, %v1686, 0
  %v1887 = vsel %vm196, %v1687, 0
  %v1890 = vsel %vm196, %v1688, 0
  %v1893 = vsel %vm196, %v1689, 0
  %v1896 = vsel %vm196, %v1690, 0
  %v1899 = vsel %vm196, %v1691, 0
  %v1902 = vsel %vm196, %v1692, 0
  %v1905 = vsel %vm196, %v1693, 0
  %v1908 = vsel %vm196, %v1694, 0
  %v1911 = vsel %vm196, %v1695, 0
  %v1914 = vsel %vm196, %v1696, 0
  %v1917 = vsel %vm196, %v1697, 0
  %v1920 = vsel %vm196, %v1698, 0
  %v1923 = vsel %vm196, %v1699, 0
  %v1926 = vsel %vm196, %v1700, 0
  %v1929 = vsel %vm196, %v1701, 0
  %v1932 = vsel %vm196, %v1702, 0
  %v1935 = vsel %vm196, %v1703, 0
  %v1938 = vsel %vm196, %v1704, 0
  %v1941 = vsel %vm196, %v1705, 0
  %v1944 = vsel %vm196, %v1706, 0
  %v1947 = vsel %vm196, %v1707, 0
  %v1950 = vsel %vm196, %v1708, 0
  %v1953 = vsel %vm440, %v28, 0
  %1955 = vmatprep.subr.mxu0 0.0
  %1956 = vmatpush1.msra.mxu0 %v1953
  %1957 = vmatprep.subr.mxu0 0.0
  %1958 = vmatpush1.msra.mxu0 0.0
  %1959 = vmatprep.subr.mxu0 0.0
  %1960 = vmatpush1.msra.mxu0 0.0
  %1961 = vmatprep.subr.mxu0 0.0
  %1962 = vmatpush1.msra.mxu0 0.0
  %1963 = vmatprep.subr.mxu0 0.0
  %1964 = vmatpush1.msra.mxu0 0.0
  %1965 = vmatprep.subr.mxu0 0.0
  %1966 = vmatpush1.msra.mxu0 0.0
  %1967 = vmatprep.subr.mxu0 0.0
  %1968 = vmatpush1.msra.mxu0 0.0
  %1969 = vmatprep.subr.mxu0 0.0
  %1970 = vmatpush1.msra.mxu0 0.0
  %1971 = vmatprep.subr.mxu0 0.0
  %1972 = vmatpush1.msra.mxu0 0.0
  %1973 = vmatprep.subr.mxu0 0.0
  %1974 = vmatpush1.msra.mxu0 0.0
  %1975 = vmatprep.subr.mxu0 0.0
  %1976 = vmatpush1.msra.mxu0 0.0
  %1977 = vmatprep.subr.mxu0 0.0
  %1978 = vmatpush1.msra.mxu0 0.0
  %1979 = vmatprep.subr.mxu0 0.0
  %1980 = vmatpush1.msra.mxu0 0.0
  %1981 = vmatprep.subr.mxu0 0.0
  %1982 = vmatpush1.msra.mxu0 0.0
  %1983 = vmatprep.subr.mxu0 0.0
  %1984 = vmatpush1.msra.mxu0 0.0
  %1985 = vmatprep.subr.mxu0 0.0
  %1986 = vmatpush1.msra.mxu0 0.0
  %1987 = vmatprep.subr.mxu0 0.0
  %1988 = vmatpush1.msra.mxu0 0.0
  %1989 = vmatprep.subr.mxu0 0.0
  %1990 = vmatpush1.msra.mxu0 0.0
  %1991 = vmatprep.subr.mxu0 0.0
  %1992 = vmatpush1.msra.mxu0 0.0
  %1993 = vmatprep.subr.mxu0 0.0
  %1994 = vmatpush1.msra.mxu0 0.0
  %1995 = vmatprep.subr.mxu0 0.0
  %1996 = vmatpush1.msra.mxu0 0.0
  %1997 = vmatprep.subr.mxu0 0.0
  %1998 = vmatpush1.msra.mxu0 0.0
  %1999 = vmatprep.subr.mxu0 0.0
  %2000 = vmatpush1.msra.mxu0 0.0
  %2001 = vmatprep.subr.mxu0 0.0
  %2002 = vmatpush1.msra.mxu0 0.0
  %2003 = vmatprep.subr.mxu0 0.0
  %2004 = vmatpush1.msra.mxu0 0.0
  %2005 = vmatprep.subr.mxu0 0.0
  %2006 = vmatpush1.msra.mxu0 0.0
  %2007 = vmatprep.subr.mxu0 0.0
  %2008 = vmatpush1.msra.mxu0 0.0
  %2009 = vmatprep.subr.mxu0 0.0
  %2010 = vmatpush1.msra.mxu0 0.0
  %2011 = vmatprep.subr.mxu0 0.0
  %2012 = vmatpush1.msra.mxu0 0.0
  %2013 = vmatprep.subr.mxu0 0.0
  %2014 = vmatpush1.msra.mxu0 0.0
  %2015 = vmatprep.subr.mxu0 0.0
  %2016 = vmatpush1.msra.mxu0 0.0
  %2017 = vmatprep.subr.mxu0 0.0
  %2018 = vmatpush1.msra.mxu0 0.0
  %2019 = vmatprep.mubr.f32.mxu0 0.0
  %2020 = vmatmul.mubr.f32.gmra.mrb[0].mxu0 %v1710
  %v2021 = vpop.f32.mrb[0].mxu0
  %v2022 = vadd.f32 0.0, %v2021
  %v2023 = vpop.f32.mrb[0].mxu0
  %2024 = vmatprep.mubr.f32.mxu0 0.0
  %2025 = vmatmul.mubr.f32.gmra.mrb[0].mxu0 %v1713
  %v2026 = vpop.f32.mrb[0].mxu0
  %v2027 = vadd.f32 0.0, %v2026
  %v2028 = vpop.f32.mrb[0].mxu0
  %2029 = vmatprep.mubr.f32.mxu0 0.0
  %2030 = vmatmul.mubr.f32.gmra.mrb[0].mxu0 %v1716
  %v2031 = vpop.f32.mrb[0].mxu0
  %v2032 = vadd.f32 0.0, %v2031
  %v2033 = vpop.f32.mrb[0].mxu0
  %2034 = vmatprep.mubr.f32.mxu0 0.0
  %2035 = vmatmul.mubr.f32.gmra.mrb[0].mxu0 %v1719
  %v2036 = vpop.f32.mrb[0].mxu0
  %v2037 = vadd.f32 0.0, %v2036
  %v2038 = vpop.f32.mrb[0].mxu0
  %2039 = vmatprep.mubr.f32.mxu0 0.0
  %2040 = vmatmul.mubr.f32.gmra.mrb[0].mxu0 %v1722
  %v2041 = vpop.f32.mrb[0].mxu0
  %v2042 = vadd.f32 0.0, %v2041
  %v2043 = vpop.f32.mrb[0].mxu0
  %2044 = vmatprep.mubr.f32.mxu0 0.0
  %2045 = vmatmul.mubr.f32.gmra.mrb[0].mxu0 %v1725
  %v2046 = vpop.f32.mrb[0].mxu0
  %v2047 = vadd.f32 0.0, %v2046
  %v2048 = vpop.f32.mrb[0].mxu0
  %2049 = vmatprep.mubr.f32.mxu0 0.0
  %2050 = vmatmul.mubr.f32.gmra.mrb[0].mxu0 %v1728
  %v2051 = vpop.f32.mrb[0].mxu0
  %v2052 = vadd.f32 0.0, %v2051
  %v2053 = vpop.f32.mrb[0].mxu0
  %2054 = vmatprep.mubr.f32.mxu0 0.0
  %2055 = vmatmul.mubr.f32.gmra.mrb[0].mxu0 %v1731
  %v2056 = vpop.f32.mrb[0].mxu0
  %v2057 = vadd.f32 0.0, %v2056
  %v2058 = vpop.f32.mrb[0].mxu0
  %2059 = vmatprep.mubr.f32.mxu0 0.0
  %2060 = vmatmul.mubr.f32.gmra.mrb[0].mxu0 %v1734
  %v2061 = vpop.f32.mrb[0].mxu0
  %v2062 = vadd.f32 0.0, %v2061
  %v2063 = vpop.f32.mrb[0].mxu0
  %2064 = vmatprep.mubr.f32.mxu0 0.0
  %2065 = vmatmul.mubr.f32.gmra.mrb[0].mxu0 %v1737
  %v2066 = vpop.f32.mrb[0].mxu0
  %v2067 = vadd.f32 0.0, %v2066
  %v2068 = vpop.f32.mrb[0].mxu0
  %2069 = vmatprep.mubr.f32.mxu0 0.0
  %2070 = vmatmul.mubr.f32.gmra.mrb[0].mxu0 %v1740
  %v2071 = vpop.f32.mrb[0].mxu0
  %v2072 = vadd.f32 0.0, %v2071
  %v2073 = vpop.f32.mrb[0].mxu0
  %2074 = vmatprep.mubr.f32.mxu0 0.0
  %2075 = vmatmul.mubr.f32.gmra.mrb[0].mxu0 %v1743
  %v2076 = vpop.f32.mrb[0].mxu0
  %v2077 = vadd.f32 0.0, %v2076
  %v2078 = vpop.f32.mrb[0].mxu0
  %2079 = vmatprep.mubr.f32.mxu0 0.0
  %2080 = vmatmul.mubr.f32.gmra.mrb[0].mxu0 %v1746
  %v2081 = vpop.f32.mrb[0].mxu0
  %v2082 = vadd.f32 0.0, %v2081
  %v2083 = vpop.f32.mrb[0].mxu0
  %2084 = vmatprep.mubr.f32.mxu0 0.0
  %2085 = vmatmul.mubr.f32.gmra.mrb[0].mxu0 %v1749
  %v2086 = vpop.f32.mrb[0].mxu0
  %v2087 = vadd.f32 0.0, %v2086
  %v2088 = vpop.f32.mrb[0].mxu0
  %2089 = vmatprep.mubr.f32.mxu0 0.0
  %2090 = vmatmul.mubr.f32.gmra.mrb[0].mxu0 %v1752
  %v2091 = vpop.f32.mrb[0].mxu0
  %v2092 = vadd.f32 0.0, %v2091
  %v2093 = vpop.f32.mrb[0].mxu0
  %2094 = vmatprep.mubr.f32.mxu0 0.0
  %2095 = vmatmul.mubr.f32.gmra.mrb[0].mxu0 %v1755
  %v2096 = vpop.f32.mrb[0].mxu0
  %v2097 = vadd.f32 0.0, %v2096
  %v2098 = vpop.f32.mrb[0].mxu0
  %2099 = vmatprep.mubr.f32.mxu0 0.0
  %2100 = vmatmul.mubr.f32.gmra.mrb[0].mxu0 %v1758
  %v2101 = vpop.f32.mrb[0].mxu0
  %v2102 = vadd.f32 0.0, %v2101
  %v2103 = vpop.f32.mrb[0].mxu0
  %2104 = vmatprep.mubr.f32.mxu0 0.0
  %2105 = vmatmul.mubr.f32.gmra.mrb[0].mxu0 %v1761
  %v2106 = vpop.f32.mrb[0].mxu0
  %v2107 = vadd.f32 0.0, %v2106
  %v2108 = vpop.f32.mrb[0].mxu0
  %2109 = vmatprep.mubr.f32.mxu0 0.0
  %2110 = vmatmul.mubr.f32.gmra.mrb[0].mxu0 %v1764
  %v2111 = vpop.f32.mrb[0].mxu0
  %v2112 = vadd.f32 0.0, %v2111
  %v2113 = vpop.f32.mrb[0].mxu0
  %2114 = vmatprep.mubr.f32.mxu0 0.0
  %2115 = vmatmul.mubr.f32.gmra.mrb[0].mxu0 %v1767
  %v2116 = vpop.f32.mrb[0].mxu0
  %v2117 = vadd.f32 0.0, %v2116
  %v2118 = vpop.f32.mrb[0].mxu0
  %2119 = vmatprep.mubr.f32.mxu0 0.0
  %2120 = vmatmul.mubr.f32.gmra.mrb[0].mxu0 %v1770
  %v2121 = vpop.f32.mrb[0].mxu0
  %v2122 = vadd.f32 0.0, %v2121
  %v2123 = vpop.f32.mrb[0].mxu0
  %2124 = vmatprep.mubr.f32.mxu0 0.0
  %2125 = vmatmul.mubr.f32.gmra.mrb[0].mxu0 %v1773
  %v2126 = vpop.f32.mrb[0].mxu0
  %v2127 = vadd.f32 0.0, %v2126
  %v2128 = vpop.f32.mrb[0].mxu0
  %2129 = vmatprep.mubr.f32.mxu0 0.0
  %2130 = vmatmul.mubr.f32.gmra.mrb[0].mxu0 %v1776
  %v2131 = vpop.f32.mrb[0].mxu0
  %v2132 = vadd.f32 0.0, %v2131
  %v2133 = vpop.f32.mrb[0].mxu0
  %2134 = vmatprep.mubr.f32.mxu0 0.0
  %2135 = vmatmul.mubr.f32.gmra.mrb[0].mxu0 %v1779
  %v2136 = vpop.f32.mrb[0].mxu0
  %v2137 = vadd.f32 0.0, %v2136
  %v2138 = vpop.f32.mrb[0].mxu0
  %2139 = vmatprep.mubr.f32.mxu0 0.0
  %2140 = vmatmul.mubr.f32.gmra.mrb[0].mxu0 %v1782
  %v2141 = vpop.f32.mrb[0].mxu0
  %v2142 = vadd.f32 0.0, %v2141
  %v2143 = vpop.f32.mrb[0].mxu0
  %2144 = vmatprep.mubr.f32.mxu0 0.0
  %2145 = vmatmul.mubr.f32.gmra.mrb[0].mxu0 %v1785
  %v2146 = vpop.f32.mrb[0].mxu0
  %v2147 = vadd.f32 0.0, %v2146
  %v2148 = vpop.f32.mrb[0].mxu0
  %2149 = vmatprep.mubr.f32.mxu0 0.0
  %2150 = vmatmul.mubr.f32.gmra.mrb[0].mxu0 %v1788
  %v2151 = vpop.f32.mrb[0].mxu0
  %v2152 = vadd.f32 0.0, %v2151
  %v2153 = vpop.f32.mrb[0].mxu0
  %2154 = vmatprep.mubr.f32.mxu0 0.0
  %2155 = vmatmul.mubr.f32.gmra.mrb[0].mxu0 %v1791
  %v2156 = vpop.f32.mrb[0].mxu0
  %v2157 = vadd.f32 0.0, %v2156
  %v2158 = vpop.f32.mrb[0].mxu0
  %2159 = vmatprep.mubr.f32.mxu0 0.0
  %2160 = vmatmul.mubr.f32.gmra.mrb[0].mxu0 %v1794
  %v2161 = vpop.f32.mrb[0].mxu0
  %v2162 = vadd.f32 0.0, %v2161
  %v2163 = vpop.f32.mrb[0].mxu0
  %2164 = vmatprep.mubr.f32.mxu0 0.0
  %2165 = vmatmul.mubr.f32.gmra.mrb[0].mxu0 %v1797
  %v2166 = vpop.f32.mrb[0].mxu0
  %v2167 = vadd.f32 0.0, %v2166
  %v2168 = vpop.f32.mrb[0].mxu0
  %2169 = vmatprep.mubr.f32.mxu0 0.0
  %2170 = vmatmul.mubr.f32.gmra.mrb[0].mxu0 %v1800
  %v2171 = vpop.f32.mrb[0].mxu0
  %v2172 = vadd.f32 0.0, %v2171
  %v2173 = vpop.f32.mrb[0].mxu0
  %2174 = vmatprep.mubr.f32.mxu0 0.0
  %2175 = vmatmul.mubr.f32.gmra.mrb[0].mxu0 %v1803
  %v2176 = vpop.f32.mrb[0].mxu0
  %v2177 = vadd.f32 0.0, %v2176
  %v2178 = vpop.f32.mrb[0].mxu0
  %2179 = vmatprep.mubr.f32.mxu0 0.0
  %2180 = vmatmul.mubr.f32.gmra.mrb[0].mxu0 %v1806
  %v2181 = vpop.f32.mrb[0].mxu0
  %v2182 = vadd.f32 0.0, %v2181
  %v2183 = vpop.f32.mrb[0].mxu0
  %2184 = vmatprep.mubr.f32.mxu0 0.0
  %2185 = vmatmul.mubr.f32.gmra.mrb[0].mxu0 %v1809
  %v2186 = vpop.f32.mrb[0].mxu0
  %v2187 = vadd.f32 0.0, %v2186
  %v2188 = vpop.f32.mrb[0].mxu0
  %2189 = vmatprep.mubr.f32.mxu0 0.0
  %2190 = vmatmul.mubr.f32.gmra.mrb[0].mxu0 %v1812
  %v2191 = vpop.f32.mrb[0].mxu0
  %v2192 = vadd.f32 0.0, %v2191
  %v2193 = vpop.f32.mrb[0].mxu0
  %2194 = vmatprep.mubr.f32.mxu0 0.0
  %2195 = vmatmul.mubr.f32.gmra.mrb[0].mxu0 %v1815
  %v2196 = vpop.f32.mrb[0].mxu0
  %v2197 = vadd.f32 0.0, %v2196
  %v2198 = vpop.f32.mrb[0].mxu0
  %2199 = vmatprep.mubr.f32.mxu0 0.0
  %2200 = vmatmul.mubr.f32.gmra.mrb[0].mxu0 %v1818
  %v2201 = vpop.f32.mrb[0].mxu0
  %v2202 = vadd.f32 0.0, %v2201
  %v2203 = vpop.f32.mrb[0].mxu0
  %2204 = vmatprep.mubr.f32.mxu0 0.0
  %2205 = vmatmul.mubr.f32.gmra.mrb[0].mxu0 %v1821
  %v2206 = vpop.f32.mrb[0].mxu0
  %v2207 = vadd.f32 0.0, %v2206
  %v2208 = vpop.f32.mrb[0].mxu0
  %2209 = vmatprep.mubr.f32.mxu0 0.0
  %2210 = vmatmul.mubr.f32.gmra.mrb[0].mxu0 %v1824
  %v2211 = vpop.f32.mrb[0].mxu0
  %v2212 = vadd.f32 0.0, %v2211
  %v2213 = vpop.f32.mrb[0].mxu0
  %2214 = vmatprep.mubr.f32.mxu0 0.0
  %2215 = vmatmul.mubr.f32.gmra.mrb[0].mxu0 %v1827
  %v2216 = vpop.f32.mrb[0].mxu0
  %v2217 = vadd.f32 0.0, %v2216
  %v2218 = vpop.f32.mrb[0].mxu0
  %2219 = vmatprep.mubr.f32.mxu0 0.0
  %2220 = vmatmul.mubr.f32.gmra.mrb[0].mxu0 %v1830
  %v2221 = vpop.f32.mrb[0].mxu0
  %v2222 = vadd.f32 0.0, %v2221
  %v2223 = vpop.f32.mrb[0].mxu0
  %2224 = vmatprep.mubr.f32.mxu0 0.0
  %2225 = vmatmul.mubr.f32.gmra.mrb[0].mxu0 %v1833
  %v2226 = vpop.f32.mrb[0].mxu0
  %v2227 = vadd.f32 0.0, %v2226
  %v2228 = vpop.f32.mrb[0].mxu0
  %2229 = vmatprep.mubr.f32.mxu0 0.0
  %2230 = vmatmul.mubr.f32.gmra.mrb[0].mxu0 %v1836
  %v2231 = vpop.f32.mrb[0].mxu0
  %v2232 = vadd.f32 0.0, %v2231
  %v2233 = vpop.f32.mrb[0].mxu0
  %2234 = vmatprep.mubr.f32.mxu0 0.0
  %2235 = vmatmul.mubr.f32.gmra.mrb[0].mxu0 %v1839
  %v2236 = vpop.f32.mrb[0].mxu0
  %v2237 = vadd.f32 0.0, %v2236
  %v2238 = vpop.f32.mrb[0].mxu0
  %2239 = vmatprep.mubr.f32.mxu0 0.0
  %2240 = vmatmul.mubr.f32.gmra.mrb[0].mxu0 %v1842
  %v2241 = vpop.f32.mrb[0].mxu0
  %v2242 = vadd.f32 0.0, %v2241
  %v2243 = vpop.f32.mrb[0].mxu0
  %2244 = vmatprep.mubr.f32.mxu0 0.0
  %2245 = vmatmul.mubr.f32.gmra.mrb[0].mxu0 %v1845
  %v2246 = vpop.f32.mrb[0].mxu0
  %v2247 = vadd.f32 0.0, %v2246
  %v2248 = vpop.f32.mrb[0].mxu0
  %2249 = vmatprep.mubr.f32.mxu0 0.0
  %2250 = vmatmul.mubr.f32.gmra.mrb[0].mxu0 %v1848
  %v2251 = vpop.f32.mrb[0].mxu0
  %v2252 = vadd.f32 0.0, %v2251
  %v2253 = vpop.f32.mrb[0].mxu0
  %2254 = vmatprep.mubr.f32.mxu0 0.0
  %2255 = vmatmul.mubr.f32.gmra.mrb[0].mxu0 %v1851
  %v2256 = vpop.f32.mrb[0].mxu0
  %v2257 = vadd.f32 0.0, %v2256
  %v2258 = vpop.f32.mrb[0].mxu0
  %2259 = vmatprep.mubr.f32.mxu0 0.0
  %2260 = vmatmul.mubr.f32.gmra.mrb[0].mxu0 %v1854
  %v2261 = vpop.f32.mrb[0].mxu0
  %v2262 = vadd.f32 0.0, %v2261
  %v2263 = vpop.f32.mrb[0].mxu0
  %2264 = vmatprep.mubr.f32.mxu0 0.0
  %2265 = vmatmul.mubr.f32.gmra.mrb[0].mxu0 %v1857
  %v2266 = vpop.f32.mrb[0].mxu0
  %v2267 = vadd.f32 0.0, %v2266
  %v2268 = vpop.f32.mrb[0].mxu0
  %2269 = vmatprep.mubr.f32.mxu0 0.0
  %2270 = vmatmul.mubr.f32.gmra.mrb[0].mxu0 %v1860
  %v2271 = vpop.f32.mrb[0].mxu0
  %v2272 = vadd.f32 0.0, %v2271
  %v2273 = vpop.f32.mrb[0].mxu0
  %2274 = vmatprep.mubr.f32.mxu0 0.0
  %2275 = vmatmul.mubr.f32.gmra.mrb[0].mxu0 %v1863
  %v2276 = vpop.f32.mrb[0].mxu0
  %v2277 = vadd.f32 0.0, %v2276
  %v2278 = vpop.f32.mrb[0].mxu0
  %2279 = vmatprep.mubr.f32.mxu0 0.0
  %2280 = vmatmul.mubr.f32.gmra.mrb[0].mxu0 %v1866
  %v2281 = vpop.f32.mrb[0].mxu0
  %v2282 = vadd.f32 0.0, %v2281
  %v2283 = vpop.f32.mrb[0].mxu0
  %2284 = vmatprep.mubr.f32.mxu0 0.0
  %2285 = vmatmul.mubr.f32.gmra.mrb[0].mxu0 %v1869
  %v2286 = vpop.f32.mrb[0].mxu0
  %v2287 = vadd.f32 0.0, %v2286
  %v2288 = vpop.f32.mrb[0].mxu0
  %2289 = vmatprep.mubr.f32.mxu0 0.0
  %2290 = vmatmul.mubr.f32.gmra.mrb[0].mxu0 %v1872
  %v2291 = vpop.f32.mrb[0].mxu0
  %v2292 = vadd.f32 0.0, %v2291
  %v2293 = vpop.f32.mrb[0].mxu0
  %2294 = vmatprep.mubr.f32.mxu0 0.0
  %2295 = vmatmul.mubr.f32.gmra.mrb[0].mxu0 %v1875
  %v2296 = vpop.f32.mrb[0].mxu0
  %v2297 = vadd.f32 0.0, %v2296
  %v2298 = vpop.f32.mrb[0].mxu0
  %2299 = vmatprep.mubr.f32.mxu0 0.0
  %2300 = vmatmul.mubr.f32.gmra.mrb[0].mxu0 %v1878
  %v2301 = vpop.f32.mrb[0].mxu0
  %v2302 = vadd.f32 0.0, %v2301
  %v2303 = vpop.f32.mrb[0].mxu0
  %2304 = vmatprep.mubr.f32.mxu0 0.0
  %2305 = vmatmul.mubr.f32.gmra.mrb[0].mxu0 %v1881
  %v2306 = vpop.f32.mrb[0].mxu0
  %v2307 = vadd.f32 0.0, %v2306
  %v2308 = vpop.f32.mrb[0].mxu0
  %2309 = vmatprep.mubr.f32.mxu0 0.0
  %2310 = vmatmul.mubr.f32.gmra.mrb[0].mxu0 %v1884
  %v2311 = vpop.f32.mrb[0].mxu0
  %v2312 = vadd.f32 0.0, %v2311
  %v2313 = vpop.f32.mrb[0].mxu0
  %2314 = vmatprep.mubr.f32.mxu0 0.0
  %2315 = vmatmul.mubr.f32.gmra.mrb[0].mxu0 %v1887
  %v2316 = vpop.f32.mrb[0].mxu0
  %v2317 = vadd.f32 0.0, %v2316
  %v2318 = vpop.f32.mrb[0].mxu0
  %2319 = vmatprep.mubr.f32.mxu0 0.0
  %2320 = vmatmul.mubr.f32.gmra.mrb[0].mxu0 %v1890
  %v2321 = vpop.f32.mrb[0].mxu0
  %v2322 = vadd.f32 0.0, %v2321
  %v2323 = vpop.f32.mrb[0].mxu0
  %2324 = vmatprep.mubr.f32.mxu0 0.0
  %2325 = vmatmul.mubr.f32.gmra.mrb[0].mxu0 %v1893
  %v2326 = vpop.f32.mrb[0].mxu0
  %v2327 = vadd.f32 0.0, %v2326
  %v2328 = vpop.f32.mrb[0].mxu0
  %2329 = vmatprep.mubr.f32.mxu0 0.0
  %2330 = vmatmul.mubr.f32.gmra.mrb[0].mxu0 %v1896
  %v2331 = vpop.f32.mrb[0].mxu0
  %v2332 = vadd.f32 0.0, %v2331
  %v2333 = vpop.f32.mrb[0].mxu0
  %2334 = vmatprep.mubr.f32.mxu0 0.0
  %2335 = vmatmul.mubr.f32.gmra.mrb[0].mxu0 %v1899
  %v2336 = vpop.f32.mrb[0].mxu0
  %v2337 = vadd.f32 0.0, %v2336
  %v2338 = vpop.f32.mrb[0].mxu0
  %2339 = vmatprep.mubr.f32.mxu0 0.0
  %2340 = vmatmul.mubr.f32.gmra.mrb[0].mxu0 %v1902
  %v2341 = vpop.f32.mrb[0].mxu0
  %v2342 = vadd.f32 0.0, %v2341
  %v2343 = vpop.f32.mrb[0].mxu0
  %2344 = vmatprep.mubr.f32.mxu0 0.0
  %2345 = vmatmul.mubr.f32.gmra.mrb[0].mxu0 %v1905
  %v2346 = vpop.f32.mrb[0].mxu0
  %v2347 = vadd.f32 0.0, %v2346
  %v2348 = vpop.f32.mrb[0].mxu0
  %2349 = vmatprep.mubr.f32.mxu0 0.0
  %2350 = vmatmul.mubr.f32.gmra.mrb[0].mxu0 %v1908
  %v2351 = vpop.f32.mrb[0].mxu0
  %v2352 = vadd.f32 0.0, %v2351
  %v2353 = vpop.f32.mrb[0].mxu0
  %2354 = vmatprep.mubr.f32.mxu0 0.0
  %2355 = vmatmul.mubr.f32.gmra.mrb[0].mxu0 %v1911
  %v2356 = vpop.f32.mrb[0].mxu0
  %v2357 = vadd.f32 0.0, %v2356
  %v2358 = vpop.f32.mrb[0].mxu0
  %2359 = vmatprep.mubr.f32.mxu0 0.0
  %2360 = vmatmul.mubr.f32.gmra.mrb[0].mxu0 %v1914
  %v2361 = vpop.f32.mrb[0].mxu0
  %v2362 = vadd.f32 0.0, %v2361
  %v2363 = vpop.f32.mrb[0].mxu0
  %2364 = vmatprep.mubr.f32.mxu0 0.0
  %2365 = vmatmul.mubr.f32.gmra.mrb[0].mxu0 %v1917
  %v2366 = vpop.f32.mrb[0].mxu0
  %v2367 = vadd.f32 0.0, %v2366
  %v2368 = vpop.f32.mrb[0].mxu0
  %2369 = vmatprep.mubr.f32.mxu0 0.0
  %2370 = vmatmul.mubr.f32.gmra.mrb[0].mxu0 %v1920
  %v2371 = vpop.f32.mrb[0].mxu0
  %v2372 = vadd.f32 0.0, %v2371
  %v2373 = vpop.f32.mrb[0].mxu0
  %2374 = vmatprep.mubr.f32.mxu0 0.0
  %2375 = vmatmul.mubr.f32.gmra.mrb[0].mxu0 %v1923
  %v2376 = vpop.f32.mrb[0].mxu0
  %v2377 = vadd.f32 0.0, %v2376
  %v2378 = vpop.f32.mrb[0].mxu0
  %2379 = vmatprep.mubr.f32.mxu0 0.0
  %2380 = vmatmul.mubr.f32.gmra.mrb[0].mxu0 %v1926
  %v2381 = vpop.f32.mrb[0].mxu0
  %v2382 = vadd.f32 0.0, %v2381
  %v2383 = vpop.f32.mrb[0].mxu0
  %2384 = vmatprep.mubr.f32.mxu0 0.0
  %2385 = vmatmul.mubr.f32.gmra.mrb[0].mxu0 %v1929
  %v2386 = vpop.f32.mrb[0].mxu0
  %v2387 = vadd.f32 0.0, %v2386
  %v2388 = vpop.f32.mrb[0].mxu0
  %2389 = vmatprep.mubr.f32.mxu0 0.0
  %2390 = vmatmul.mubr.f32.gmra.mrb[0].mxu0 %v1932
  %v2391 = vpop.f32.mrb[0].mxu0
  %v2392 = vadd.f32 0.0, %v2391
  %v2393 = vpop.f32.mrb[0].mxu0
  %2394 = vmatprep.mubr.f32.mxu0 0.0
  %2395 = vmatmul.mubr.f32.gmra.mrb[0].mxu0 %v1935
  %v2396 = vpop.f32.mrb[0].mxu0
  %v2397 = vadd.f32 0.0, %v2396
  %v2398 = vpop.f32.mrb[0].mxu0
  %2399 = vmatprep.mubr.f32.mxu0 0.0
  %2400 = vmatmul.mubr.f32.gmra.mrb[0].mxu0 %v1938
  %v2401 = vpop.f32.mrb[0].mxu0
  %v2402 = vadd.f32 0.0, %v2401
  %v2403 = vpop.f32.mrb[0].mxu0
  %2404 = vmatprep.mubr.f32.mxu0 0.0
  %2405 = vmatmul.mubr.f32.gmra.mrb[0].mxu0 %v1941
  %v2406 = vpop.f32.mrb[0].mxu0
  %v2407 = vadd.f32 0.0, %v2406
  %v2408 = vpop.f32.mrb[0].mxu0
  %2409 = vmatprep.mubr.f32.mxu0 0.0
  %2410 = vmatmul.mubr.f32.gmra.mrb[0].mxu0 %v1944
  %v2411 = vpop.f32.mrb[0].mxu0
  %v2412 = vadd.f32 0.0, %v2411
  %v2413 = vpop.f32.mrb[0].mxu0
  %2414 = vmatprep.mubr.f32.mxu0 0.0
  %2415 = vmatmul.mubr.f32.gmra.mrb[0].mxu0 %v1947
  %v2416 = vpop.f32.mrb[0].mxu0
  %v2417 = vadd.f32 0.0, %v2416
  %v2418 = vpop.f32.mrb[0].mxu0
  %2419 = vmatprep.mubr.f32.mxu0 0.0
  %2420 = vmatmul.mubr.f32.gmra.mrb[0].mxu0 %v1950
  %v2421 = vpop.f32.mrb[0].mxu0
  %v2422 = vadd.f32 0.0, %v2421
  %v2423 = vpop.f32.mrb[0].mxu0
  %2424 = vdwg.mxu0
  %v2425 = vadd.f32 %v1225, %v2022
  %v2426 = vadd.f32 %v1230, %v2027
  %v2427 = vadd.f32 %v1235, %v2032
  %v2428 = vadd.f32 %v1240, %v2037
  %v2429 = vadd.f32 %v1245, %v2042
  %v2430 = vadd.f32 %v1250, %v2047
  %v2431 = vadd.f32 %v1255, %v2052
  %v2432 = vadd.f32 %v1260, %v2057
  %v2433 = vadd.f32 %v1265, %v2062
  %v2434 = vadd.f32 %v1270, %v2067
  %v2435 = vadd.f32 %v1275, %v2072
  %v2436 = vadd.f32 %v1280, %v2077
  %v2437 = vadd.f32 %v1285, %v2082
  %v2438 = vadd.f32 %v1290, %v2087
  %v2439 = vadd.f32 %v1295, %v2092
  %v2440 = vadd.f32 %v1300, %v2097
  %v2441 = vadd.f32 %v1305, %v2102
  %v2442 = vadd.f32 %v1310, %v2107
  %v2443 = vadd.f32 %v1315, %v2112
  %v2444 = vadd.f32 %v1320, %v2117
  %v2445 = vadd.f32 %v1325, %v2122
  %v2446 = vadd.f32 %v1330, %v2127
  %v2447 = vadd.f32 %v1335, %v2132
  %v2448 = vadd.f32 %v1340, %v2137
  %v2449 = vadd.f32 %v1345, %v2142
  %v2450 = vadd.f32 %v1350, %v2147
  %v2451 = vadd.f32 %v1355, %v2152
  %v2452 = vadd.f32 %v1360, %v2157
  %v2453 = vadd.f32 %v1365, %v2162
  %v2454 = vadd.f32 %v1370, %v2167
  %v2455 = vadd.f32 %v1375, %v2172
  %v2456 = vadd.f32 %v1380, %v2177
  %v2457 = vadd.f32 %v1385, %v2182
  %v2458 = vadd.f32 %v1390, %v2187
  %v2459 = vadd.f32 %v1395, %v2192
  %v2460 = vadd.f32 %v1400, %v2197
  %v2461 = vadd.f32 %v1405, %v2202
  %v2462 = vadd.f32 %v1410, %v2207
  %v2463 = vadd.f32 %v1415, %v2212
  %v2464 = vadd.f32 %v1420, %v2217
  %v2465 = vadd.f32 %v1425, %v2222
  %v2466 = vadd.f32 %v1430, %v2227
  %v2467 = vadd.f32 %v1435, %v2232
  %v2468 = vadd.f32 %v1440, %v2237
  %v2469 = vadd.f32 %v1445, %v2242
  %v2470 = vadd.f32 %v1450, %v2247
  %v2471 = vadd.f32 %v1455, %v2252
  %v2472 = vadd.f32 %v1460, %v2257
  %v2473 = vadd.f32 %v1465, %v2262
  %v2474 = vadd.f32 %v1470, %v2267
  %v2475 = vadd.f32 %v1475, %v2272
  %v2476 = vadd.f32 %v1480, %v2277
  %v2477 = vadd.f32 %v1485, %v2282
  %v2478 = vadd.f32 %v1490, %v2287
  %v2479 = vadd.f32 %v1495, %v2292
  %v2480 = vadd.f32 %v1500, %v2297
  %v2481 = vadd.f32 %v1505, %v2302
  %v2482 = vadd.f32 %v1510, %v2307
  %v2483 = vadd.f32 %v1515, %v2312
  %v2484 = vadd.f32 %v1520, %v2317
  %v2485 = vadd.f32 %v1525, %v2322
  %v2486 = vadd.f32 %v1530, %v2327
  %v2487 = vadd.f32 %v1535, %v2332
  %v2488 = vadd.f32 %v1540, %v2337
  %v2489 = vadd.f32 %v1545, %v2342
  %v2490 = vadd.f32 %v1550, %v2347
  %v2491 = vadd.f32 %v1555, %v2352
  %v2492 = vadd.f32 %v1560, %v2357
  %v2493 = vadd.f32 %v1565, %v2362
  %v2494 = vadd.f32 %v1570, %v2367
  %v2495 = vadd.f32 %v1575, %v2372
  %v2496 = vadd.f32 %v1580, %v2377
  %v2497 = vadd.f32 %v1585, %v2382
  %v2498 = vadd.f32 %v1590, %v2387
  %v2499 = vadd.f32 %v1595, %v2392
  %v2500 = vadd.f32 %v1600, %v2397
  %v2501 = vadd.f32 %v1605, %v2402
  %v2502 = vadd.f32 %v1610, %v2407
  %v2503 = vadd.f32 %v1615, %v2412
  %v2504 = vadd.f32 %v1620, %v2417
  %v2505 = vadd.f32 %v1625, %v2422
  %v2506 = vld [vmem:[%s0 + $0x12] sm:$0xff]
  %v2507 = vld [vmem:[%s0 + $0x1a] sm:$0xff]
  %v2508 = vld [vmem:[%s0 + $0x22] sm:$0xff]
  %v2509 = vld [vmem:[%s0 + $0x2a] sm:$0xff]
  %v2510 = vld [vmem:[%s0 + $0x32] sm:$0xff]
  %v2511 = vld [vmem:[%s0 + $0x3a] sm:$0xff]
  %v2512 = vld [vmem:[%s0 + $0x42] sm:$0xff]
  %v2513 = vld [vmem:[%s0 + $0x4a] sm:$0xff]
  %v2514 = vld [vmem:[%s0 + $0x52] sm:$0xff]
  %v2515 = vld [vmem:[%s0 + $0x5a] sm:$0xff]
  %v2516 = vld [vmem:[%s0 + $0x62] sm:$0xff]
  %v2517 = vld [vmem:[%s0 + $0x6a] sm:$0xff]
  %v2518 = vld [vmem:[%s0 + $0x72] sm:$0xff]
  %v2519 = vld [vmem:[%s0 + $0x7a] sm:$0xff]
  %v2520 = vld [vmem:[%s0 + $0x82] sm:$0xff]
  %v2521 = vld [vmem:[%s0 + $0x8a] sm:$0xff]
  %v2522 = vld [vmem:[%s0 + $0x92] sm:$0xff]
  %v2523 = vld [vmem:[%s0 + $0x9a] sm:$0xff]
  %v2524 = vld [vmem:[%s0 + $0xa2] sm:$0xff]
  %v2525 = vld [vmem:[%s0 + $0xaa] sm:$0xff]
  %v2526 = vld [vmem:[%s0 + $0xb2] sm:$0xff]
  %v2527 = vld [vmem:[%s0 + $0xba] sm:$0xff]
  %v2528 = vld [vmem:[%s0 + $0xc2] sm:$0xff]
  %v2529 = vld [vmem:[%s0 + $0xca] sm:$0xff]
  %v2530 = vld [vmem:[%s0 + $0xd2] sm:$0xff]
  %v2531 = vld [vmem:[%s0 + $0xda] sm:$0xff]
  %v2532 = vld [vmem:[%s0 + $0xe2] sm:$0xff]
  %v2533 = vld [vmem:[%s0 + $0xea] sm:$0xff]
  %v2534 = vld [vmem:[%s0 + $0xf2] sm:$0xff]
  %v2535 = vld [vmem:[%s0 + $0xfa] sm:$0xff]
  %v2536 = vld [vmem:[%s0 + $0x102] sm:$0xff]
  %v2537 = vld [vmem:[%s0 + $0x10a] sm:$0xff]
  %v2538 = vld [vmem:[%s0 + $0x112] sm:$0xff]
  %v2539 = vld [vmem:[%s0 + $0x11a] sm:$0xff]
  %v2540 = vld [vmem:[%s0 + $0x122] sm:$0xff]
  %v2541 = vld [vmem:[%s0 + $0x12a] sm:$0xff]
  %v2542 = vld [vmem:[%s0 + $0x132] sm:$0xff]
  %v2543 = vld [vmem:[%s0 + $0x13a] sm:$0xff]
  %v2544 = vld [vmem:[%s0 + $0x142] sm:$0xff]
  %v2545 = vld [vmem:[%s0 + $0x14a] sm:$0xff]
  %v2546 = vld [vmem:[%s0 + $0x152] sm:$0xff]
  %v2547 = vld [vmem:[%s0 + $0x15a] sm:$0xff]
  %v2548 = vld [vmem:[%s0 + $0x162] sm:$0xff]
  %v2549 = vld [vmem:[%s0 + $0x16a] sm:$0xff]
  %v2550 = vld [vmem:[%s0 + $0x172] sm:$0xff]
  %v2551 = vld [vmem:[%s0 + $0x17a] sm:$0xff]
  %v2552 = vld [vmem:[%s0 + $0x182] sm:$0xff]
  %v2553 = vld [vmem:[%s0 + $0x18a] sm:$0xff]
  %v2554 = vld [vmem:[%s0 + $0x192] sm:$0xff]
  %v2555 = vld [vmem:[%s0 + $0x19a] sm:$0xff]
  %v2556 = vld [vmem:[%s0 + $0x1a2] sm:$0xff]
  %v2557 = vld [vmem:[%s0 + $0x1aa] sm:$0xff]
  %v2558 = vld [vmem:[%s0 + $0x1b2] sm:$0xff]
  %v2559 = vld [vmem:[%s0 + $0x1ba] sm:$0xff]
  %v2560 = vld [vmem:[%s0 + $0x1c2] sm:$0xff]
  %v2561 = vld [vmem:[%s0 + $0x1ca] sm:$0xff]
  %v2562 = vld [vmem:[%s0 + $0x1d2] sm:$0xff]
  %v2563 = vld [vmem:[%s0 + $0x1da] sm:$0xff]
  %v2564 = vld [vmem:[%s0 + $0x1e2] sm:$0xff]
  %v2565 = vld [vmem:[%s0 + $0x1ea] sm:$0xff]
  %v2566 = vld [vmem:[%s0 + $0x1f2] sm:$0xff]
  %v2567 = vld [vmem:[%s0 + $0x1fa] sm:$0xff]
  %v2568 = vld [vmem:[%s0 + $0x202] sm:$0xff]
  %v2569 = vld [vmem:[%s0 + $0x20a] sm:$0xff]
  %v2570 = vld [vmem:[%s0 + $0x212] sm:$0xff]
  %v2571 = vld [vmem:[%s0 + $0x21a] sm:$0xff]
  %v2572 = vld [vmem:[%s0 + $0x222] sm:$0xff]
  %v2573 = vld [vmem:[%s0 + $0x22a] sm:$0xff]
  %v2574 = vld [vmem:[%s0 + $0x232] sm:$0xff]
  %v2575 = vld [vmem:[%s0 + $0x23a] sm:$0xff]
  %v2576 = vld [vmem:[%s0 + $0x242] sm:$0xff]
  %v2577 = vld [vmem:[%s0 + $0x24a] sm:$0xff]
  %v2578 = vld [vmem:[%s0 + $0x252] sm:$0xff]
  %v2579 = vld [vmem:[%s0 + $0x25a] sm:$0xff]
  %v2580 = vld [vmem:[%s0 + $0x262] sm:$0xff]
  %v2581 = vld [vmem:[%s0 + $0x26a] sm:$0xff]
  %v2582 = vld [vmem:[%s0 + $0x272] sm:$0xff]
  %v2583 = vld [vmem:[%s0 + $0x27a] sm:$0xff]
  %v2584 = vld [vmem:[%s0 + $0x282] sm:$0xff]
  %v2585 = vld [vmem:[%s0 + $0x28a] sm:$0xff]
  %v2586 = vld [vmem:[%s0 + $0x292] sm:$0xff]
  %v2587 = vrot.slane %v28, 4
  %v2589 = vsel %vm196, %v2506, 0
  %v2592 = vsel %vm196, %v2507, 0
  %v2595 = vsel %vm196, %v2508, 0
  %v2598 = vsel %vm196, %v2509, 0
  %v2601 = vsel %vm196, %v2510, 0
  %v2604 = vsel %vm196, %v2511, 0
  %v2607 = vsel %vm196, %v2512, 0
  %v2610 = vsel %vm196, %v2513, 0
  %v2613 = vsel %vm196, %v2514, 0
  %v2616 = vsel %vm196, %v2515, 0
  %v2619 = vsel %vm196, %v2516, 0
  %v2622 = vsel %vm196, %v2517, 0
  %v2625 = vsel %vm196, %v2518, 0
  %v2628 = vsel %vm196, %v2519, 0
  %v2631 = vsel %vm196, %v2520, 0
  %v2634 = vsel %vm196, %v2521, 0
  %v2637 = vsel %vm196, %v2522, 0
  %v2640 = vsel %vm196, %v2523, 0
  %v2643 = vsel %vm196, %v2524, 0
  %v2646 = vsel %vm196, %v2525, 0
  %v2649 = vsel %vm196, %v2526, 0
  %v2652 = vsel %vm196, %v2527, 0
  %v2655 = vsel %vm196, %v2528, 0
  %v2658 = vsel %vm196, %v2529, 0
  %v2661 = vsel %vm196, %v2530, 0
  %v2664 = vsel %vm196, %v2531, 0
  %v2667 = vsel %vm196, %v2532, 0
  %v2670 = vsel %vm196, %v2533, 0
  %v2673 = vsel %vm196, %v2534, 0
  %v2676 = vsel %vm196, %v2535, 0
  %v2679 = vsel %vm196, %v2536, 0
  %v2682 = vsel %vm196, %v2537, 0
  %v2685 = vsel %vm196, %v2538, 0
  %v2688 = vsel %vm196, %v2539, 0
  %v2691 = vsel %vm196, %v2540, 0
  %v2694 = vsel %vm196, %v2541, 0
  %v2697 = vsel %vm196, %v2542, 0
  %v2700 = vsel %vm196, %v2543, 0
  %v2703 = vsel %vm196, %v2544, 0
  %v2706 = vsel %vm196, %v2545, 0
  %v2709 = vsel %vm196, %v2546, 0
  %v2712 = vsel %vm196, %v2547, 0
  %v2715 = vsel %vm196, %v2548, 0
  %v2718 = vsel %vm196, %v2549, 0
  %v2721 = vsel %vm196, %v2550, 0
  %v2724 = vsel %vm196, %v2551, 0
  %v2727 = vsel %vm196, %v2552, 0
  %v2730 = vsel %vm196, %v2553, 0
  %v2733 = vsel %vm196, %v2554, 0
  %v2736 = vsel %vm196, %v2555, 0
  %v2739 = vsel %vm196, %v2556, 0
  %v2742 = vsel %vm196, %v2557, 0
  %v2745 = vsel %vm196, %v2558, 0
  %v2748 = vsel %vm196, %v2559, 0
  %v2751 = vsel %vm196, %v2560, 0
  %v2754 = vsel %vm196, %v2561, 0
  %v2757 = vsel %vm196, %v2562, 0
  %v2760 = vsel %vm196, %v2563, 0
  %v2763 = vsel %vm196, %v2564, 0
  %v2766 = vsel %vm196, %v2565, 0
  %v2769 = vsel %vm196, %v2566, 0
  %v2772 = vsel %vm196, %v2567, 0
  %v2775 = vsel %vm196, %v2568, 0
  %v2778 = vsel %vm196, %v2569, 0
  %v2781 = vsel %vm196, %v2570, 0
  %v2784 = vsel %vm196, %v2571, 0
  %v2787 = vsel %vm196, %v2572, 0
  %v2790 = vsel %vm196, %v2573, 0
  %v2793 = vsel %vm196, %v2574, 0
  %v2796 = vsel %vm196, %v2575, 0
  %v2799 = vsel %vm196, %v2576, 0
  %v2802 = vsel %vm196, %v2577, 0
  %v2805 = vsel %vm196, %v2578, 0
  %v2808 = vsel %vm196, %v2579, 0
  %v2811 = vsel %vm196, %v2580, 0
  %v2814 = vsel %vm196, %v2581, 0
  %v2817 = vsel %vm196, %v2582, 0
  %v2820 = vsel %vm196, %v2583, 0
  %v2823 = vsel %vm196, %v2584, 0
  %v2826 = vsel %vm196, %v2585, 0
  %v2829 = vsel %vm196, %v2586, 0
  %v2831 = vsel %vm440, %v2587, 0
  %2833 = vmatprep.subr.mxu0 0.0
  %2834 = vmatpush1.msra.mxu0 %v2831
  %2835 = vmatprep.subr.mxu0 0.0
  %2836 = vmatpush1.msra.mxu0 0.0
  %2837 = vmatprep.subr.mxu0 0.0
  %2838 = vmatpush1.msra.mxu0 0.0
  %2839 = vmatprep.subr.mxu0 0.0
  %2840 = vmatpush1.msra.mxu0 0.0
  %2841 = vmatprep.subr.mxu0 0.0
  %2842 = vmatpush1.msra.mxu0 0.0
  %2843 = vmatprep.subr.mxu0 0.0
  %2844 = vmatpush1.msra.mxu0 0.0
  %2845 = vmatprep.subr.mxu0 0.0
  %2846 = vmatpush1.msra.mxu0 0.0
  %2847 = vmatprep.subr.mxu0 0.0
  %2848 = vmatpush1.msra.mxu0 0.0
  %2849 = vmatprep.subr.mxu0 0.0
  %2850 = vmatpush1.msra.mxu0 0.0
  %2851 = vmatprep.subr.mxu0 0.0
  %2852 = vmatpush1.msra.mxu0 0.0
  %2853 = vmatprep.subr.mxu0 0.0
  %2854 = vmatpush1.msra.mxu0 0.0
  %2855 = vmatprep.subr.mxu0 0.0
  %2856 = vmatpush1.msra.mxu0 0.0
  %2857 = vmatprep.subr.mxu0 0.0
  %2858 = vmatpush1.msra.mxu0 0.0
  %2859 = vmatprep.subr.mxu0 0.0
  %2860 = vmatpush1.msra.mxu0 0.0
  %2861 = vmatprep.subr.mxu0 0.0
  %2862 = vmatpush1.msra.mxu0 0.0
  %2863 = vmatprep.subr.mxu0 0.0
  %2864 = vmatpush1.msra.mxu0 0.0
  %2865 = vmatprep.subr.mxu0 0.0
  %2866 = vmatpush1.msra.mxu0 0.0
  %2867 = vmatprep.subr.mxu0 0.0
  %2868 = vmatpush1.msra.mxu0 0.0
  %2869 = vmatprep.subr.mxu0 0.0
  %2870 = vmatpush1.msra.mxu0 0.0
  %2871 = vmatprep.subr.mxu0 0.0
  %2872 = vmatpush1.msra.mxu0 0.0
  %2873 = vmatprep.subr.mxu0 0.0
  %2874 = vmatpush1.msra.mxu0 0.0
  %2875 = vmatprep.subr.mxu0 0.0
  %2876 = vmatpush1.msra.mxu0 0.0
  %2877 = vmatprep.subr.mxu0 0.0
  %2878 = vmatpush1.msra.mxu0 0.0
  %2879 = vmatprep.subr.mxu0 0.0
  %2880 = vmatpush1.msra.mxu0 0.0
  %2881 = vmatprep.subr.mxu0 0.0
  %2882 = vmatpush1.msra.mxu0 0.0
  %2883 = vmatprep.subr.mxu0 0.0
  %2884 = vmatpush1.msra.mxu0 0.0
  %2885 = vmatprep.subr.mxu0 0.0
  %2886 = vmatpush1.msra.mxu0 0.0
  %2887 = vmatprep.subr.mxu0 0.0
  %2888 = vmatpush1.msra.mxu0 0.0
  %2889 = vmatprep.subr.mxu0 0.0
  %2890 = vmatpush1.msra.mxu0 0.0
  %2891 = vmatprep.subr.mxu0 0.0
  %2892 = vmatpush1.msra.mxu0 0.0
  %2893 = vmatprep.subr.mxu0 0.0
  %2894 = vmatpush1.msra.mxu0 0.0
  %2895 = vmatprep.subr.mxu0 0.0
  %2896 = vmatpush1.msra.mxu0 0.0
  %2897 = vmatprep.mubr.f32.mxu0 0.0
  %2898 = vmatmul.mubr.f32.gmra.mrb[0].mxu0 %v2589
  %v2899 = vpop.f32.mrb[0].mxu0
  %v2900 = vadd.f32 0.0, %v2899
  %v2901 = vpop.f32.mrb[0].mxu0
  %2902 = vmatprep.mubr.f32.mxu0 0.0
  %2903 = vmatmul.mubr.f32.gmra.mrb[0].mxu0 %v2592
  %v2904 = vpop.f32.mrb[0].mxu0
  %v2905 = vadd.f32 0.0, %v2904
  %v2906 = vpop.f32.mrb[0].mxu0
  %2907 = vmatprep.mubr.f32.mxu0 0.0
  %2908 = vmatmul.mubr.f32.gmra.mrb[0].mxu0 %v2595
  %v2909 = vpop.f32.mrb[0].mxu0
  %v2910 = vadd.f32 0.0, %v2909
  %v2911 = vpop.f32.mrb[0].mxu0
  %2912 = vmatprep.mubr.f32.mxu0 0.0
  %2913 = vmatmul.mubr.f32.gmra.mrb[0].mxu0 %v2598
  %v2914 = vpop.f32.mrb[0].mxu0
  %v2915 = vadd.f32 0.0, %v2914
  %v2916 = vpop.f32.mrb[0].mxu0
  %2917 = vmatprep.mubr.f32.mxu0 0.0
  %2918 = vmatmul.mubr.f32.gmra.mrb[0].mxu0 %v2601
  %v2919 = vpop.f32.mrb[0].mxu0
  %v2920 = vadd.f32 0.0, %v2919
  %v2921 = vpop.f32.mrb[0].mxu0
  %2922 = vmatprep.mubr.f32.mxu0 0.0
  %2923 = vmatmul.mubr.f32.gmra.mrb[0].mxu0 %v2604
  %v2924 = vpop.f32.mrb[0].mxu0
  %v2925 = vadd.f32 0.0, %v2924
  %v2926 = vpop.f32.mrb[0].mxu0
  %2927 = vmatprep.mubr.f32.mxu0 0.0
  %2928 = vmatmul.mubr.f32.gmra.mrb[0].mxu0 %v2607
  %v2929 = vpop.f32.mrb[0].mxu0
  %v2930 = vadd.f32 0.0, %v2929
  %v2931 = vpop.f32.mrb[0].mxu0
  %2932 = vmatprep.mubr.f32.mxu0 0.0
  %2933 = vmatmul.mubr.f32.gmra.mrb[0].mxu0 %v2610
  %v2934 = vpop.f32.mrb[0].mxu0
  %v2935 = vadd.f32 0.0, %v2934
  %v2936 = vpop.f32.mrb[0].mxu0
  %2937 = vmatprep.mubr.f32.mxu0 0.0
  %2938 = vmatmul.mubr.f32.gmra.mrb[0].mxu0 %v2613
  %v2939 = vpop.f32.mrb[0].mxu0
  %v2940 = vadd.f32 0.0, %v2939
  %v2941 = vpop.f32.mrb[0].mxu0
  %2942 = vmatprep.mubr.f32.mxu0 0.0
  %2943 = vmatmul.mubr.f32.gmra.mrb[0].mxu0 %v2616
  %v2944 = vpop.f32.mrb[0].mxu0
  %v2945 = vadd.f32 0.0, %v2944
  %v2946 = vpop.f32.mrb[0].mxu0
  %2947 = vmatprep.mubr.f32.mxu0 0.0
  %2948 = vmatmul.mubr.f32.gmra.mrb[0].mxu0 %v2619
  %v2949 = vpop.f32.mrb[0].mxu0
  %v2950 = vadd.f32 0.0, %v2949
  %v2951 = vpop.f32.mrb[0].mxu0
  %2952 = vmatprep.mubr.f32.mxu0 0.0
  %2953 = vmatmul.mubr.f32.gmra.mrb[0].mxu0 %v2622
  %v2954 = vpop.f32.mrb[0].mxu0
  %v2955 = vadd.f32 0.0, %v2954
  %v2956 = vpop.f32.mrb[0].mxu0
  %2957 = vmatprep.mubr.f32.mxu0 0.0
  %2958 = vmatmul.mubr.f32.gmra.mrb[0].mxu0 %v2625
  %v2959 = vpop.f32.mrb[0].mxu0
  %v2960 = vadd.f32 0.0, %v2959
  %v2961 = vpop.f32.mrb[0].mxu0
  %2962 = vmatprep.mubr.f32.mxu0 0.0
  %2963 = vmatmul.mubr.f32.gmra.mrb[0].mxu0 %v2628
  %v2964 = vpop.f32.mrb[0].mxu0
  %v2965 = vadd.f32 0.0, %v2964
  %v2966 = vpop.f32.mrb[0].mxu0
  %2967 = vmatprep.mubr.f32.mxu0 0.0
  %2968 = vmatmul.mubr.f32.gmra.mrb[0].mxu0 %v2631
  %v2969 = vpop.f32.mrb[0].mxu0
  %v2970 = vadd.f32 0.0, %v2969
  %v2971 = vpop.f32.mrb[0].mxu0
  %2972 = vmatprep.mubr.f32.mxu0 0.0
  %2973 = vmatmul.mubr.f32.gmra.mrb[0].mxu0 %v2634
  %v2974 = vpop.f32.mrb[0].mxu0
  %v2975 = vadd.f32 0.0, %v2974
  %v2976 = vpop.f32.mrb[0].mxu0
  %2977 = vmatprep.mubr.f32.mxu0 0.0
  %2978 = vmatmul.mubr.f32.gmra.mrb[0].mxu0 %v2637
  %v2979 = vpop.f32.mrb[0].mxu0
  %v2980 = vadd.f32 0.0, %v2979
  %v2981 = vpop.f32.mrb[0].mxu0
  %2982 = vmatprep.mubr.f32.mxu0 0.0
  %2983 = vmatmul.mubr.f32.gmra.mrb[0].mxu0 %v2640
  %v2984 = vpop.f32.mrb[0].mxu0
  %v2985 = vadd.f32 0.0, %v2984
  %v2986 = vpop.f32.mrb[0].mxu0
  %2987 = vmatprep.mubr.f32.mxu0 0.0
  %2988 = vmatmul.mubr.f32.gmra.mrb[0].mxu0 %v2643
  %v2989 = vpop.f32.mrb[0].mxu0
  %v2990 = vadd.f32 0.0, %v2989
  %v2991 = vpop.f32.mrb[0].mxu0
  %2992 = vmatprep.mubr.f32.mxu0 0.0
  %2993 = vmatmul.mubr.f32.gmra.mrb[0].mxu0 %v2646
  %v2994 = vpop.f32.mrb[0].mxu0
  %v2995 = vadd.f32 0.0, %v2994
  %v2996 = vpop.f32.mrb[0].mxu0
  %2997 = vmatprep.mubr.f32.mxu0 0.0
  %2998 = vmatmul.mubr.f32.gmra.mrb[0].mxu0 %v2649
  %v2999 = vpop.f32.mrb[0].mxu0
  %v3000 = vadd.f32 0.0, %v2999
  %v3001 = vpop.f32.mrb[0].mxu0
  %3002 = vmatprep.mubr.f32.mxu0 0.0
  %3003 = vmatmul.mubr.f32.gmra.mrb[0].mxu0 %v2652
  %v3004 = vpop.f32.mrb[0].mxu0
  %v3005 = vadd.f32 0.0, %v3004
  %v3006 = vpop.f32.mrb[0].mxu0
  %3007 = vmatprep.mubr.f32.mxu0 0.0
  %3008 = vmatmul.mubr.f32.gmra.mrb[0].mxu0 %v2655
  %v3009 = vpop.f32.mrb[0].mxu0
  %v3010 = vadd.f32 0.0, %v3009
  %v3011 = vpop.f32.mrb[0].mxu0
  %3012 = vmatprep.mubr.f32.mxu0 0.0
  %3013 = vmatmul.mubr.f32.gmra.mrb[0].mxu0 %v2658
  %v3014 = vpop.f32.mrb[0].mxu0
  %v3015 = vadd.f32 0.0, %v3014
  %v3016 = vpop.f32.mrb[0].mxu0
  %3017 = vmatprep.mubr.f32.mxu0 0.0
  %3018 = vmatmul.mubr.f32.gmra.mrb[0].mxu0 %v2661
  %v3019 = vpop.f32.mrb[0].mxu0
  %v3020 = vadd.f32 0.0, %v3019
  %v3021 = vpop.f32.mrb[0].mxu0
  %3022 = vmatprep.mubr.f32.mxu0 0.0
  %3023 = vmatmul.mubr.f32.gmra.mrb[0].mxu0 %v2664
  %v3024 = vpop.f32.mrb[0].mxu0
  %v3025 = vadd.f32 0.0, %v3024
  %v3026 = vpop.f32.mrb[0].mxu0
  %3027 = vmatprep.mubr.f32.mxu0 0.0
  %3028 = vmatmul.mubr.f32.gmra.mrb[0].mxu0 %v2667
  %v3029 = vpop.f32.mrb[0].mxu0
  %v3030 = vadd.f32 0.0, %v3029
  %v3031 = vpop.f32.mrb[0].mxu0
  %3032 = vmatprep.mubr.f32.mxu0 0.0
  %3033 = vmatmul.mubr.f32.gmra.mrb[0].mxu0 %v2670
  %v3034 = vpop.f32.mrb[0].mxu0
  %v3035 = vadd.f32 0.0, %v3034
  %v3036 = vpop.f32.mrb[0].mxu0
  %3037 = vmatprep.mubr.f32.mxu0 0.0
  %3038 = vmatmul.mubr.f32.gmra.mrb[0].mxu0 %v2673
  %v3039 = vpop.f32.mrb[0].mxu0
  %v3040 = vadd.f32 0.0, %v3039
  %v3041 = vpop.f32.mrb[0].mxu0
  %3042 = vmatprep.mubr.f32.mxu0 0.0
  %3043 = vmatmul.mubr.f32.gmra.mrb[0].mxu0 %v2676
  %v3044 = vpop.f32.mrb[0].mxu0
  %v3045 = vadd.f32 0.0, %v3044
  %v3046 = vpop.f32.mrb[0].mxu0
  %3047 = vmatprep.mubr.f32.mxu0 0.0
  %3048 = vmatmul.mubr.f32.gmra.mrb[0].mxu0 %v2679
  %v3049 = vpop.f32.mrb[0].mxu0
  %v3050 = vadd.f32 0.0, %v3049
  %v3051 = vpop.f32.mrb[0].mxu0
  %3052 = vmatprep.mubr.f32.mxu0 0.0
  %3053 = vmatmul.mubr.f32.gmra.mrb[0].mxu0 %v2682
  %v3054 = vpop.f32.mrb[0].mxu0
  %v3055 = vadd.f32 0.0, %v3054
  %v3056 = vpop.f32.mrb[0].mxu0
  %3057 = vmatprep.mubr.f32.mxu0 0.0
  %3058 = vmatmul.mubr.f32.gmra.mrb[0].mxu0 %v2685
  %v3059 = vpop.f32.mrb[0].mxu0
  %v3060 = vadd.f32 0.0, %v3059
  %v3061 = vpop.f32.mrb[0].mxu0
  %3062 = vmatprep.mubr.f32.mxu0 0.0
  %3063 = vmatmul.mubr.f32.gmra.mrb[0].mxu0 %v2688
  %v3064 = vpop.f32.mrb[0].mxu0
  %v3065 = vadd.f32 0.0, %v3064
  %v3066 = vpop.f32.mrb[0].mxu0
  %3067 = vmatprep.mubr.f32.mxu0 0.0
  %3068 = vmatmul.mubr.f32.gmra.mrb[0].mxu0 %v2691
  %v3069 = vpop.f32.mrb[0].mxu0
  %v3070 = vadd.f32 0.0, %v3069
  %v3071 = vpop.f32.mrb[0].mxu0
  %3072 = vmatprep.mubr.f32.mxu0 0.0
  %3073 = vmatmul.mubr.f32.gmra.mrb[0].mxu0 %v2694
  %v3074 = vpop.f32.mrb[0].mxu0
  %v3075 = vadd.f32 0.0, %v3074
  %v3076 = vpop.f32.mrb[0].mxu0
  %3077 = vmatprep.mubr.f32.mxu0 0.0
  %3078 = vmatmul.mubr.f32.gmra.mrb[0].mxu0 %v2697
  %v3079 = vpop.f32.mrb[0].mxu0
  %v3080 = vadd.f32 0.0, %v3079
  %v3081 = vpop.f32.mrb[0].mxu0
  %3082 = vmatprep.mubr.f32.mxu0 0.0
  %3083 = vmatmul.mubr.f32.gmra.mrb[0].mxu0 %v2700
  %v3084 = vpop.f32.mrb[0].mxu0
  %v3085 = vadd.f32 0.0, %v3084
  %v3086 = vpop.f32.mrb[0].mxu0
  %3087 = vmatprep.mubr.f32.mxu0 0.0
  %3088 = vmatmul.mubr.f32.gmra.mrb[0].mxu0 %v2703
  %v3089 = vpop.f32.mrb[0].mxu0
  %v3090 = vadd.f32 0.0, %v3089
  %v3091 = vpop.f32.mrb[0].mxu0
  %3092 = vmatprep.mubr.f32.mxu0 0.0
  %3093 = vmatmul.mubr.f32.gmra.mrb[0].mxu0 %v2706
  %v3094 = vpop.f32.mrb[0].mxu0
  %v3095 = vadd.f32 0.0, %v3094
  %v3096 = vpop.f32.mrb[0].mxu0
  %3097 = vmatprep.mubr.f32.mxu0 0.0
  %3098 = vmatmul.mubr.f32.gmra.mrb[0].mxu0 %v2709
  %v3099 = vpop.f32.mrb[0].mxu0
  %v3100 = vadd.f32 0.0, %v3099
  %v3101 = vpop.f32.mrb[0].mxu0
  %3102 = vmatprep.mubr.f32.mxu0 0.0
  %3103 = vmatmul.mubr.f32.gmra.mrb[0].mxu0 %v2712
  %v3104 = vpop.f32.mrb[0].mxu0
  %v3105 = vadd.f32 0.0, %v3104
  %v3106 = vpop.f32.mrb[0].mxu0
  %3107 = vmatprep.mubr.f32.mxu0 0.0
  %3108 = vmatmul.mubr.f32.gmra.mrb[0].mxu0 %v2715
  %v3109 = vpop.f32.mrb[0].mxu0
  %v3110 = vadd.f32 0.0, %v3109
  %v3111 = vpop.f32.mrb[0].mxu0
  %3112 = vmatprep.mubr.f32.mxu0 0.0
  %3113 = vmatmul.mubr.f32.gmra.mrb[0].mxu0 %v2718
  %v3114 = vpop.f32.mrb[0].mxu0
  %v3115 = vadd.f32 0.0, %v3114
  %v3116 = vpop.f32.mrb[0].mxu0
  %3117 = vmatprep.mubr.f32.mxu0 0.0
  %3118 = vmatmul.mubr.f32.gmra.mrb[0].mxu0 %v2721
  %v3119 = vpop.f32.mrb[0].mxu0
  %v3120 = vadd.f32 0.0, %v3119
  %v3121 = vpop.f32.mrb[0].mxu0
  %3122 = vmatprep.mubr.f32.mxu0 0.0
  %3123 = vmatmul.mubr.f32.gmra.mrb[0].mxu0 %v2724
  %v3124 = vpop.f32.mrb[0].mxu0
  %v3125 = vadd.f32 0.0, %v3124
  %v3126 = vpop.f32.mrb[0].mxu0
  %3127 = vmatprep.mubr.f32.mxu0 0.0
  %3128 = vmatmul.mubr.f32.gmra.mrb[0].mxu0 %v2727
  %v3129 = vpop.f32.mrb[0].mxu0
  %v3130 = vadd.f32 0.0, %v3129
  %v3131 = vpop.f32.mrb[0].mxu0
  %3132 = vmatprep.mubr.f32.mxu0 0.0
  %3133 = vmatmul.mubr.f32.gmra.mrb[0].mxu0 %v2730
  %v3134 = vpop.f32.mrb[0].mxu0
  %v3135 = vadd.f32 0.0, %v3134
  %v3136 = vpop.f32.mrb[0].mxu0
  %3137 = vmatprep.mubr.f32.mxu0 0.0
  %3138 = vmatmul.mubr.f32.gmra.mrb[0].mxu0 %v2733
  %v3139 = vpop.f32.mrb[0].mxu0
  %v3140 = vadd.f32 0.0, %v3139
  %v3141 = vpop.f32.mrb[0].mxu0
  %3142 = vmatprep.mubr.f32.mxu0 0.0
  %3143 = vmatmul.mubr.f32.gmra.mrb[0].mxu0 %v2736
  %v3144 = vpop.f32.mrb[0].mxu0
  %v3145 = vadd.f32 0.0, %v3144
  %v3146 = vpop.f32.mrb[0].mxu0
  %3147 = vmatprep.mubr.f32.mxu0 0.0
  %3148 = vmatmul.mubr.f32.gmra.mrb[0].mxu0 %v2739
  %v3149 = vpop.f32.mrb[0].mxu0
  %v3150 = vadd.f32 0.0, %v3149
  %v3151 = vpop.f32.mrb[0].mxu0
  %3152 = vmatprep.mubr.f32.mxu0 0.0
  %3153 = vmatmul.mubr.f32.gmra.mrb[0].mxu0 %v2742
  %v3154 = vpop.f32.mrb[0].mxu0
  %v3155 = vadd.f32 0.0, %v3154
  %v3156 = vpop.f32.mrb[0].mxu0
  %3157 = vmatprep.mubr.f32.mxu0 0.0
  %3158 = vmatmul.mubr.f32.gmra.mrb[0].mxu0 %v2745
  %v3159 = vpop.f32.mrb[0].mxu0
  %v3160 = vadd.f32 0.0, %v3159
  %v3161 = vpop.f32.mrb[0].mxu0
  %3162 = vmatprep.mubr.f32.mxu0 0.0
  %3163 = vmatmul.mubr.f32.gmra.mrb[0].mxu0 %v2748
  %v3164 = vpop.f32.mrb[0].mxu0
  %v3165 = vadd.f32 0.0, %v3164
  %v3166 = vpop.f32.mrb[0].mxu0
  %3167 = vmatprep.mubr.f32.mxu0 0.0
  %3168 = vmatmul.mubr.f32.gmra.mrb[0].mxu0 %v2751
  %v3169 = vpop.f32.mrb[0].mxu0
  %v3170 = vadd.f32 0.0, %v3169
  %v3171 = vpop.f32.mrb[0].mxu0
  %3172 = vmatprep.mubr.f32.mxu0 0.0
  %3173 = vmatmul.mubr.f32.gmra.mrb[0].mxu0 %v2754
  %v3174 = vpop.f32.mrb[0].mxu0
  %v3175 = vadd.f32 0.0, %v3174
  %v3176 = vpop.f32.mrb[0].mxu0
  %3177 = vmatprep.mubr.f32.mxu0 0.0
  %3178 = vmatmul.mubr.f32.gmra.mrb[0].mxu0 %v2757
  %v3179 = vpop.f32.mrb[0].mxu0
  %v3180 = vadd.f32 0.0, %v3179
  %v3181 = vpop.f32.mrb[0].mxu0
  %3182 = vmatprep.mubr.f32.mxu0 0.0
  %3183 = vmatmul.mubr.f32.gmra.mrb[0].mxu0 %v2760
  %v3184 = vpop.f32.mrb[0].mxu0
  %v3185 = vadd.f32 0.0, %v3184
  %v3186 = vpop.f32.mrb[0].mxu0
  %3187 = vmatprep.mubr.f32.mxu0 0.0
  %3188 = vmatmul.mubr.f32.gmra.mrb[0].mxu0 %v2763
  %v3189 = vpop.f32.mrb[0].mxu0
  %v3190 = vadd.f32 0.0, %v3189
  %v3191 = vpop.f32.mrb[0].mxu0
  %3192 = vmatprep.mubr.f32.mxu0 0.0
  %3193 = vmatmul.mubr.f32.gmra.mrb[0].mxu0 %v2766
  %v3194 = vpop.f32.mrb[0].mxu0
  %v3195 = vadd.f32 0.0, %v3194
  %v3196 = vpop.f32.mrb[0].mxu0
  %3197 = vmatprep.mubr.f32.mxu0 0.0
  %3198 = vmatmul.mubr.f32.gmra.mrb[0].mxu0 %v2769
  %v3199 = vpop.f32.mrb[0].mxu0
  %v3200 = vadd.f32 0.0, %v3199
  %v3201 = vpop.f32.mrb[0].mxu0
  %3202 = vmatprep.mubr.f32.mxu0 0.0
  %3203 = vmatmul.mubr.f32.gmra.mrb[0].mxu0 %v2772
  %v3204 = vpop.f32.mrb[0].mxu0
  %v3205 = vadd.f32 0.0, %v3204
  %v3206 = vpop.f32.mrb[0].mxu0
  %3207 = vmatprep.mubr.f32.mxu0 0.0
  %3208 = vmatmul.mubr.f32.gmra.mrb[0].mxu0 %v2775
  %v3209 = vpop.f32.mrb[0].mxu0
  %v3210 = vadd.f32 0.0, %v3209
  %v3211 = vpop.f32.mrb[0].mxu0
  %3212 = vmatprep.mubr.f32.mxu0 0.0
  %3213 = vmatmul.mubr.f32.gmra.mrb[0].mxu0 %v2778
  %v3214 = vpop.f32.mrb[0].mxu0
  %v3215 = vadd.f32 0.0, %v3214
  %v3216 = vpop.f32.mrb[0].mxu0
  %3217 = vmatprep.mubr.f32.mxu0 0.0
  %3218 = vmatmul.mubr.f32.gmra.mrb[0].mxu0 %v2781
  %v3219 = vpop.f32.mrb[0].mxu0
  %v3220 = vadd.f32 0.0, %v3219
  %v3221 = vpop.f32.mrb[0].mxu0
  %3222 = vmatprep.mubr.f32.mxu0 0.0
  %3223 = vmatmul.mubr.f32.gmra.mrb[0].mxu0 %v2784
  %v3224 = vpop.f32.mrb[0].mxu0
  %v3225 = vadd.f32 0.0, %v3224
  %v3226 = vpop.f32.mrb[0].mxu0
  %3227 = vmatprep.mubr.f32.mxu0 0.0
  %3228 = vmatmul.mubr.f32.gmra.mrb[0].mxu0 %v2787
  %v3229 = vpop.f32.mrb[0].mxu0
  %v3230 = vadd.f32 0.0, %v3229
  %v3231 = vpop.f32.mrb[0].mxu0
  %3232 = vmatprep.mubr.f32.mxu0 0.0
  %3233 = vmatmul.mubr.f32.gmra.mrb[0].mxu0 %v2790
  %v3234 = vpop.f32.mrb[0].mxu0
  %v3235 = vadd.f32 0.0, %v3234
  %v3236 = vpop.f32.mrb[0].mxu0
  %3237 = vmatprep.mubr.f32.mxu0 0.0
  %3238 = vmatmul.mubr.f32.gmra.mrb[0].mxu0 %v2793
  %v3239 = vpop.f32.mrb[0].mxu0
  %v3240 = vadd.f32 0.0, %v3239
  %v3241 = vpop.f32.mrb[0].mxu0
  %3242 = vmatprep.mubr.f32.mxu0 0.0
  %3243 = vmatmul.mubr.f32.gmra.mrb[0].mxu0 %v2796
  %v3244 = vpop.f32.mrb[0].mxu0
  %v3245 = vadd.f32 0.0, %v3244
  %v3246 = vpop.f32.mrb[0].mxu0
  %3247 = vmatprep.mubr.f32.mxu0 0.0
  %3248 = vmatmul.mubr.f32.gmra.mrb[0].mxu0 %v2799
  %v3249 = vpop.f32.mrb[0].mxu0
  %v3250 = vadd.f32 0.0, %v3249
  %v3251 = vpop.f32.mrb[0].mxu0
  %3252 = vmatprep.mubr.f32.mxu0 0.0
  %3253 = vmatmul.mubr.f32.gmra.mrb[0].mxu0 %v2802
  %v3254 = vpop.f32.mrb[0].mxu0
  %v3255 = vadd.f32 0.0, %v3254
  %v3256 = vpop.f32.mrb[0].mxu0
  %3257 = vmatprep.mubr.f32.mxu0 0.0
  %3258 = vmatmul.mubr.f32.gmra.mrb[0].mxu0 %v2805
  %v3259 = vpop.f32.mrb[0].mxu0
  %v3260 = vadd.f32 0.0, %v3259
  %v3261 = vpop.f32.mrb[0].mxu0
  %3262 = vmatprep.mubr.f32.mxu0 0.0
  %3263 = vmatmul.mubr.f32.gmra.mrb[0].mxu0 %v2808
  %v3264 = vpop.f32.mrb[0].mxu0
  %v3265 = vadd.f32 0.0, %v3264
  %v3266 = vpop.f32.mrb[0].mxu0
  %3267 = vmatprep.mubr.f32.mxu0 0.0
  %3268 = vmatmul.mubr.f32.gmra.mrb[0].mxu0 %v2811
  %v3269 = vpop.f32.mrb[0].mxu0
  %v3270 = vadd.f32 0.0, %v3269
  %v3271 = vpop.f32.mrb[0].mxu0
  %3272 = vmatprep.mubr.f32.mxu0 0.0
  %3273 = vmatmul.mubr.f32.gmra.mrb[0].mxu0 %v2814
  %v3274 = vpop.f32.mrb[0].mxu0
  %v3275 = vadd.f32 0.0, %v3274
  %v3276 = vpop.f32.mrb[0].mxu0
  %3277 = vmatprep.mubr.f32.mxu0 0.0
  %3278 = vmatmul.mubr.f32.gmra.mrb[0].mxu0 %v2817
  %v3279 = vpop.f32.mrb[0].mxu0
  %v3280 = vadd.f32 0.0, %v3279
  %v3281 = vpop.f32.mrb[0].mxu0
  %3282 = vmatprep.mubr.f32.mxu0 0.0
  %3283 = vmatmul.mubr.f32.gmra.mrb[0].mxu0 %v2820
  %v3284 = vpop.f32.mrb[0].mxu0
  %v3285 = vadd.f32 0.0, %v3284
  %v3286 = vpop.f32.mrb[0].mxu0
  %3287 = vmatprep.mubr.f32.mxu0 0.0
  %3288 = vmatmul.mubr.f32.gmra.mrb[0].mxu0 %v2823
  %v3289 = vpop.f32.mrb[0].mxu0
  %v3290 = vadd.f32 0.0, %v3289
  %v3291 = vpop.f32.mrb[0].mxu0
  %3292 = vmatprep.mubr.f32.mxu0 0.0
  %3293 = vmatmul.mubr.f32.gmra.mrb[0].mxu0 %v2826
  %v3294 = vpop.f32.mrb[0].mxu0
  %v3295 = vadd.f32 0.0, %v3294
  %v3296 = vpop.f32.mrb[0].mxu0
  %3297 = vmatprep.mubr.f32.mxu0 0.0
  %3298 = vmatmul.mubr.f32.gmra.mrb[0].mxu0 %v2829
  %v3299 = vpop.f32.mrb[0].mxu0
  %v3300 = vadd.f32 0.0, %v3299
  %v3301 = vpop.f32.mrb[0].mxu0
  %3302 = vdwg.mxu0
  %v3303 = vadd.f32 %v2425, %v2900
  %v3304 = vadd.f32 %v2426, %v2905
  %v3305 = vadd.f32 %v2427, %v2910
  %v3306 = vadd.f32 %v2428, %v2915
  %v3307 = vadd.f32 %v2429, %v2920
  %v3308 = vadd.f32 %v2430, %v2925
  %v3309 = vadd.f32 %v2431, %v2930
  %v3310 = vadd.f32 %v2432, %v2935
  %v3311 = vadd.f32 %v2433, %v2940
  %v3312 = vadd.f32 %v2434, %v2945
  %v3313 = vadd.f32 %v2435, %v2950
  %v3314 = vadd.f32 %v2436, %v2955
  %v3315 = vadd.f32 %v2437, %v2960
  %v3316 = vadd.f32 %v2438, %v2965
  %v3317 = vadd.f32 %v2439, %v2970
  %v3318 = vadd.f32 %v2440, %v2975
  %v3319 = vadd.f32 %v2441, %v2980
  %v3320 = vadd.f32 %v2442, %v2985
  %v3321 = vadd.f32 %v2443, %v2990
  %v3322 = vadd.f32 %v2444, %v2995
  %v3323 = vadd.f32 %v2445, %v3000
  %v3324 = vadd.f32 %v2446, %v3005
  %v3325 = vadd.f32 %v2447, %v3010
  %v3326 = vadd.f32 %v2448, %v3015
  %v3327 = vadd.f32 %v2449, %v3020
  %v3328 = vadd.f32 %v2450, %v3025
  %v3329 = vadd.f32 %v2451, %v3030
  %v3330 = vadd.f32 %v2452, %v3035
  %v3331 = vadd.f32 %v2453, %v3040
  %v3332 = vadd.f32 %v2454, %v3045
  %v3333 = vadd.f32 %v2455, %v3050
  %v3334 = vadd.f32 %v2456, %v3055
  %v3335 = vadd.f32 %v2457, %v3060
  %v3336 = vadd.f32 %v2458, %v3065
  %v3337 = vadd.f32 %v2459, %v3070
  %v3338 = vadd.f32 %v2460, %v3075
  %v3339 = vadd.f32 %v2461, %v3080
  %v3340 = vadd.f32 %v2462, %v3085
  %v3341 = vadd.f32 %v2463, %v3090
  %v3342 = vadd.f32 %v2464, %v3095
  %v3343 = vadd.f32 %v2465, %v3100
  %v3344 = vadd.f32 %v2466, %v3105
  %v3345 = vadd.f32 %v2467, %v3110
  %v3346 = vadd.f32 %v2468, %v3115
  %v3347 = vadd.f32 %v2469, %v3120
  %v3348 = vadd.f32 %v2470, %v3125
  %v3349 = vadd.f32 %v2471, %v3130
  %v3350 = vadd.f32 %v2472, %v3135
  %v3351 = vadd.f32 %v2473, %v3140
  %v3352 = vadd.f32 %v2474, %v3145
  %v3353 = vadd.f32 %v2475, %v3150
  %v3354 = vadd.f32 %v2476, %v3155
  %v3355 = vadd.f32 %v2477, %v3160
  %v3356 = vadd.f32 %v2478, %v3165
  %v3357 = vadd.f32 %v2479, %v3170
  %v3358 = vadd.f32 %v2480, %v3175
  %v3359 = vadd.f32 %v2481, %v3180
  %v3360 = vadd.f32 %v2482, %v3185
  %v3361 = vadd.f32 %v2483, %v3190
  %v3362 = vadd.f32 %v2484, %v3195
  %v3363 = vadd.f32 %v2485, %v3200
  %v3364 = vadd.f32 %v2486, %v3205
  %v3365 = vadd.f32 %v2487, %v3210
  %v3366 = vadd.f32 %v2488, %v3215
  %v3367 = vadd.f32 %v2489, %v3220
  %v3368 = vadd.f32 %v2490, %v3225
  %v3369 = vadd.f32 %v2491, %v3230
  %v3370 = vadd.f32 %v2492, %v3235
  %v3371 = vadd.f32 %v2493, %v3240
  %v3372 = vadd.f32 %v2494, %v3245
  %v3373 = vadd.f32 %v2495, %v3250
  %v3374 = vadd.f32 %v2496, %v3255
  %v3375 = vadd.f32 %v2497, %v3260
  %v3376 = vadd.f32 %v2498, %v3265
  %v3377 = vadd.f32 %v2499, %v3270
  %v3378 = vadd.f32 %v2500, %v3275
  %v3379 = vadd.f32 %v2501, %v3280
  %v3380 = vadd.f32 %v2502, %v3285
  %v3381 = vadd.f32 %v2503, %v3290
  %v3382 = vadd.f32 %v2504, %v3295
  %v3383 = vadd.f32 %v2505, %v3300
  %v3384 = vld [vmem:[%s0 + $0x13] sm:$0xff]
  %v3385 = vld [vmem:[%s0 + $0x1b] sm:$0xff]
  %v3386 = vld [vmem:[%s0 + $0x23] sm:$0xff]
  %v3387 = vld [vmem:[%s0 + $0x2b] sm:$0xff]
  %v3388 = vld [vmem:[%s0 + $0x33] sm:$0xff]
  %v3389 = vld [vmem:[%s0 + $0x3b] sm:$0xff]
  %v3390 = vld [vmem:[%s0 + $0x43] sm:$0xff]
  %v3391 = vld [vmem:[%s0 + $0x4b] sm:$0xff]
  %v3392 = vld [vmem:[%s0 + $0x53] sm:$0xff]
  %v3393 = vld [vmem:[%s0 + $0x5b] sm:$0xff]
  %v3394 = vld [vmem:[%s0 + $0x63] sm:$0xff]
  %v3395 = vld [vmem:[%s0 + $0x6b] sm:$0xff]
  %v3396 = vld [vmem:[%s0 + $0x73] sm:$0xff]
  %v3397 = vld [vmem:[%s0 + $0x7b] sm:$0xff]
  %v3398 = vld [vmem:[%s0 + $0x83] sm:$0xff]
  %v3399 = vld [vmem:[%s0 + $0x8b] sm:$0xff]
  %v3400 = vld [vmem:[%s0 + $0x93] sm:$0xff]
  %v3401 = vld [vmem:[%s0 + $0x9b] sm:$0xff]
  %v3402 = vld [vmem:[%s0 + $0xa3] sm:$0xff]
  %v3403 = vld [vmem:[%s0 + $0xab] sm:$0xff]
  %v3404 = vld [vmem:[%s0 + $0xb3] sm:$0xff]
  %v3405 = vld [vmem:[%s0 + $0xbb] sm:$0xff]
  %v3406 = vld [vmem:[%s0 + $0xc3] sm:$0xff]
  %v3407 = vld [vmem:[%s0 + $0xcb] sm:$0xff]
  %v3408 = vld [vmem:[%s0 + $0xd3] sm:$0xff]
  %v3409 = vld [vmem:[%s0 + $0xdb] sm:$0xff]
  %v3410 = vld [vmem:[%s0 + $0xe3] sm:$0xff]
  %v3411 = vld [vmem:[%s0 + $0xeb] sm:$0xff]
  %v3412 = vld [vmem:[%s0 + $0xf3] sm:$0xff]
  %v3413 = vld [vmem:[%s0 + $0xfb] sm:$0xff]
  %v3414 = vld [vmem:[%s0 + $0x103] sm:$0xff]
  %v3415 = vld [vmem:[%s0 + $0x10b] sm:$0xff]
  %v3416 = vld [vmem:[%s0 + $0x113] sm:$0xff]
  %v3417 = vld [vmem:[%s0 + $0x11b] sm:$0xff]
  %v3418 = vld [vmem:[%s0 + $0x123] sm:$0xff]
  %v3419 = vld [vmem:[%s0 + $0x12b] sm:$0xff]
  %v3420 = vld [vmem:[%s0 + $0x133] sm:$0xff]
  %v3421 = vld [vmem:[%s0 + $0x13b] sm:$0xff]
  %v3422 = vld [vmem:[%s0 + $0x143] sm:$0xff]
  %v3423 = vld [vmem:[%s0 + $0x14b] sm:$0xff]
  %v3424 = vld [vmem:[%s0 + $0x153] sm:$0xff]
  %v3425 = vld [vmem:[%s0 + $0x15b] sm:$0xff]
  %v3426 = vld [vmem:[%s0 + $0x163] sm:$0xff]
  %v3427 = vld [vmem:[%s0 + $0x16b] sm:$0xff]
  %v3428 = vld [vmem:[%s0 + $0x173] sm:$0xff]
  %v3429 = vld [vmem:[%s0 + $0x17b] sm:$0xff]
  %v3430 = vld [vmem:[%s0 + $0x183] sm:$0xff]
  %v3431 = vld [vmem:[%s0 + $0x18b] sm:$0xff]
  %v3432 = vld [vmem:[%s0 + $0x193] sm:$0xff]
  %v3433 = vld [vmem:[%s0 + $0x19b] sm:$0xff]
  %v3434 = vld [vmem:[%s0 + $0x1a3] sm:$0xff]
  %v3435 = vld [vmem:[%s0 + $0x1ab] sm:$0xff]
  %v3436 = vld [vmem:[%s0 + $0x1b3] sm:$0xff]
  %v3437 = vld [vmem:[%s0 + $0x1bb] sm:$0xff]
  %v3438 = vld [vmem:[%s0 + $0x1c3] sm:$0xff]
  %v3439 = vld [vmem:[%s0 + $0x1cb] sm:$0xff]
  %v3440 = vld [vmem:[%s0 + $0x1d3] sm:$0xff]
  %v3441 = vld [vmem:[%s0 + $0x1db] sm:$0xff]
  %v3442 = vld [vmem:[%s0 + $0x1e3] sm:$0xff]
  %v3443 = vld [vmem:[%s0 + $0x1eb] sm:$0xff]
  %v3444 = vld [vmem:[%s0 + $0x1f3] sm:$0xff]
  %v3445 = vld [vmem:[%s0 + $0x1fb] sm:$0xff]
  %v3446 = vld [vmem:[%s0 + $0x203] sm:$0xff]
  %v3447 = vld [vmem:[%s0 + $0x20b] sm:$0xff]
  %v3448 = vld [vmem:[%s0 + $0x213] sm:$0xff]
  %v3449 = vld [vmem:[%s0 + $0x21b] sm:$0xff]
  %v3450 = vld [vmem:[%s0 + $0x223] sm:$0xff]
  %v3451 = vld [vmem:[%s0 + $0x22b] sm:$0xff]
  %v3452 = vld [vmem:[%s0 + $0x233] sm:$0xff]
  %v3453 = vld [vmem:[%s0 + $0x23b] sm:$0xff]
  %v3454 = vld [vmem:[%s0 + $0x243] sm:$0xff]
  %v3455 = vld [vmem:[%s0 + $0x24b] sm:$0xff]
  %v3456 = vld [vmem:[%s0 + $0x253] sm:$0xff]
  %v3457 = vld [vmem:[%s0 + $0x25b] sm:$0xff]
  %v3458 = vld [vmem:[%s0 + $0x263] sm:$0xff]
  %v3459 = vld [vmem:[%s0 + $0x26b] sm:$0xff]
  %v3460 = vld [vmem:[%s0 + $0x273] sm:$0xff]
  %v3461 = vld [vmem:[%s0 + $0x27b] sm:$0xff]
  %v3462 = vld [vmem:[%s0 + $0x283] sm:$0xff]
  %v3463 = vld [vmem:[%s0 + $0x28b] sm:$0xff]
  %v3464 = vld [vmem:[%s0 + $0x293] sm:$0xff]
  %v3466 = vsel %vm196, %v3384, 0
  %v3469 = vsel %vm196, %v3385, 0
  %v3472 = vsel %vm196, %v3386, 0
  %v3475 = vsel %vm196, %v3387, 0
  %v3478 = vsel %vm196, %v3388, 0
  %v3481 = vsel %vm196, %v3389, 0
  %v3484 = vsel %vm196, %v3390, 0
  %v3487 = vsel %vm196, %v3391, 0
  %v3490 = vsel %vm196, %v3392, 0
  %v3493 = vsel %vm196, %v3393, 0
  %v3496 = vsel %vm196, %v3394, 0
  %v3499 = vsel %vm196, %v3395, 0
  %v3502 = vsel %vm196, %v3396, 0
  %v3505 = vsel %vm196, %v3397, 0
  %v3508 = vsel %vm196, %v3398, 0
  %v3511 = vsel %vm196, %v3399, 0
  %v3514 = vsel %vm196, %v3400, 0
  %v3517 = vsel %vm196, %v3401, 0
  %v3520 = vsel %vm196, %v3402, 0
  %v3523 = vsel %vm196, %v3403, 0
  %v3526 = vsel %vm196, %v3404, 0
  %v3529 = vsel %vm196, %v3405, 0
  %v3532 = vsel %vm196, %v3406, 0
  %v3535 = vsel %vm196, %v3407, 0
  %v3538 = vsel %vm196, %v3408, 0
  %v3541 = vsel %vm196, %v3409, 0
  %v3544 = vsel %vm196, %v3410, 0
  %v3547 = vsel %vm196, %v3411, 0
  %v3550 = vsel %vm196, %v3412, 0
  %v3553 = vsel %vm196, %v3413, 0
  %v3556 = vsel %vm196, %v3414, 0
  %v3559 = vsel %vm196, %v3415, 0
  %v3562 = vsel %vm196, %v3416, 0
  %v3565 = vsel %vm196, %v3417, 0
  %v3568 = vsel %vm196, %v3418, 0
  %v3571 = vsel %vm196, %v3419, 0
  %v3574 = vsel %vm196, %v3420, 0
  %v3577 = vsel %vm196, %v3421, 0
  %v3580 = vsel %vm196, %v3422, 0
  %v3583 = vsel %vm196, %v3423, 0
  %v3586 = vsel %vm196, %v3424, 0
  %v3589 = vsel %vm196, %v3425, 0
  %v3592 = vsel %vm196, %v3426, 0
  %v3595 = vsel %vm196, %v3427, 0
  %v3598 = vsel %vm196, %v3428, 0
  %v3601 = vsel %vm196, %v3429, 0
  %v3604 = vsel %vm196, %v3430, 0
  %v3607 = vsel %vm196, %v3431, 0
  %v3610 = vsel %vm196, %v3432, 0
  %v3613 = vsel %vm196, %v3433, 0
  %v3616 = vsel %vm196, %v3434, 0
  %v3619 = vsel %vm196, %v3435, 0
  %v3622 = vsel %vm196, %v3436, 0
  %v3625 = vsel %vm196, %v3437, 0
  %v3628 = vsel %vm196, %v3438, 0
  %v3631 = vsel %vm196, %v3439, 0
  %v3634 = vsel %vm196, %v3440, 0
  %v3637 = vsel %vm196, %v3441, 0
  %v3640 = vsel %vm196, %v3442, 0
  %v3643 = vsel %vm196, %v3443, 0
  %v3646 = vsel %vm196, %v3444, 0
  %v3649 = vsel %vm196, %v3445, 0
  %v3652 = vsel %vm196, %v3446, 0
  %v3655 = vsel %vm196, %v3447, 0
  %v3658 = vsel %vm196, %v3448, 0
  %v3661 = vsel %vm196, %v3449, 0
  %v3664 = vsel %vm196, %v3450, 0
  %v3667 = vsel %vm196, %v3451, 0
  %v3670 = vsel %vm196, %v3452, 0
  %v3673 = vsel %vm196, %v3453, 0
  %v3676 = vsel %vm196, %v3454, 0
  %v3679 = vsel %vm196, %v3455, 0
  %v3682 = vsel %vm196, %v3456, 0
  %v3685 = vsel %vm196, %v3457, 0
  %v3688 = vsel %vm196, %v3458, 0
  %v3691 = vsel %vm196, %v3459, 0
  %v3694 = vsel %vm196, %v3460, 0
  %v3697 = vsel %vm196, %v3461, 0
  %v3700 = vsel %vm196, %v3462, 0
  %v3703 = vsel %vm196, %v3463, 0
  %v3706 = vsel %vm196, %v3464, 0
  %v3709 = vsel %vm440, %v29, 0
  %3711 = vmatprep.subr.mxu0 0.0
  %3712 = vmatpush1.msra.mxu0 %v3709
  %3713 = vmatprep.subr.mxu0 0.0
  %3714 = vmatpush1.msra.mxu0 0.0
  %3715 = vmatprep.subr.mxu0 0.0
  %3716 = vmatpush1.msra.mxu0 0.0
  %3717 = vmatprep.subr.mxu0 0.0
  %3718 = vmatpush1.msra.mxu0 0.0
  %3719 = vmatprep.subr.mxu0 0.0
  %3720 = vmatpush1.msra.mxu0 0.0
  %3721 = vmatprep.subr.mxu0 0.0
  %3722 = vmatpush1.msra.mxu0 0.0
  %3723 = vmatprep.subr.mxu0 0.0
  %3724 = vmatpush1.msra.mxu0 0.0
  %3725 = vmatprep.subr.mxu0 0.0
  %3726 = vmatpush1.msra.mxu0 0.0
  %3727 = vmatprep.subr.mxu0 0.0
  %3728 = vmatpush1.msra.mxu0 0.0
  %3729 = vmatprep.subr.mxu0 0.0
  %3730 = vmatpush1.msra.mxu0 0.0
  %3731 = vmatprep.subr.mxu0 0.0
  %3732 = vmatpush1.msra.mxu0 0.0
  %3733 = vmatprep.subr.mxu0 0.0
  %3734 = vmatpush1.msra.mxu0 0.0
  %3735 = vmatprep.subr.mxu0 0.0
  %3736 = vmatpush1.msra.mxu0 0.0
  %3737 = vmatprep.subr.mxu0 0.0
  %3738 = vmatpush1.msra.mxu0 0.0
  %3739 = vmatprep.subr.mxu0 0.0
  %3740 = vmatpush1.msra.mxu0 0.0
  %3741 = vmatprep.subr.mxu0 0.0
  %3742 = vmatpush1.msra.mxu0 0.0
  %3743 = vmatprep.subr.mxu0 0.0
  %3744 = vmatpush1.msra.mxu0 0.0
  %3745 = vmatprep.subr.mxu0 0.0
  %3746 = vmatpush1.msra.mxu0 0.0
  %3747 = vmatprep.subr.mxu0 0.0
  %3748 = vmatpush1.msra.mxu0 0.0
  %3749 = vmatprep.subr.mxu0 0.0
  %3750 = vmatpush1.msra.mxu0 0.0
  %3751 = vmatprep.subr.mxu0 0.0
  %3752 = vmatpush1.msra.mxu0 0.0
  %3753 = vmatprep.subr.mxu0 0.0
  %3754 = vmatpush1.msra.mxu0 0.0
  %3755 = vmatprep.subr.mxu0 0.0
  %3756 = vmatpush1.msra.mxu0 0.0
  %3757 = vmatprep.subr.mxu0 0.0
  %3758 = vmatpush1.msra.mxu0 0.0
  %3759 = vmatprep.subr.mxu0 0.0
  %3760 = vmatpush1.msra.mxu0 0.0
  %3761 = vmatprep.subr.mxu0 0.0
  %3762 = vmatpush1.msra.mxu0 0.0
  %3763 = vmatprep.subr.mxu0 0.0
  %3764 = vmatpush1.msra.mxu0 0.0
  %3765 = vmatprep.subr.mxu0 0.0
  %3766 = vmatpush1.msra.mxu0 0.0
  %3767 = vmatprep.subr.mxu0 0.0
  %3768 = vmatpush1.msra.mxu0 0.0
  %3769 = vmatprep.subr.mxu0 0.0
  %3770 = vmatpush1.msra.mxu0 0.0
  %3771 = vmatprep.subr.mxu0 0.0
  %3772 = vmatpush1.msra.mxu0 0.0
  %3773 = vmatprep.subr.mxu0 0.0
  %3774 = vmatpush1.msra.mxu0 0.0
  %3775 = vmatprep.mubr.f32.mxu0 0.0
  %3776 = vmatmul.mubr.f32.gmra.mrb[0].mxu0 %v3466
  %v3777 = vpop.f32.mrb[0].mxu0
  %v3778 = vadd.f32 0.0, %v3777
  %v3779 = vpop.f32.mrb[0].mxu0
  %3780 = vmatprep.mubr.f32.mxu0 0.0
  %3781 = vmatmul.mubr.f32.gmra.mrb[0].mxu0 %v3469
  %v3782 = vpop.f32.mrb[0].mxu0
  %v3783 = vadd.f32 0.0, %v3782
  %v3784 = vpop.f32.mrb[0].mxu0
  %3785 = vmatprep.mubr.f32.mxu0 0.0
  %3786 = vmatmul.mubr.f32.gmra.mrb[0].mxu0 %v3472
  %v3787 = vpop.f32.mrb[0].mxu0
  %v3788 = vadd.f32 0.0, %v3787
  %v3789 = vpop.f32.mrb[0].mxu0
  %3790 = vmatprep.mubr.f32.mxu0 0.0
  %3791 = vmatmul.mubr.f32.gmra.mrb[0].mxu0 %v3475
  %v3792 = vpop.f32.mrb[0].mxu0
  %v3793 = vadd.f32 0.0, %v3792
  %v3794 = vpop.f32.mrb[0].mxu0
  %3795 = vmatprep.mubr.f32.mxu0 0.0
  %3796 = vmatmul.mubr.f32.gmra.mrb[0].mxu0 %v3478
  %v3797 = vpop.f32.mrb[0].mxu0
  %v3798 = vadd.f32 0.0, %v3797
  %v3799 = vpop.f32.mrb[0].mxu0
  %3800 = vmatprep.mubr.f32.mxu0 0.0
  %3801 = vmatmul.mubr.f32.gmra.mrb[0].mxu0 %v3481
  %v3802 = vpop.f32.mrb[0].mxu0
  %v3803 = vadd.f32 0.0, %v3802
  %v3804 = vpop.f32.mrb[0].mxu0
  %3805 = vmatprep.mubr.f32.mxu0 0.0
  %3806 = vmatmul.mubr.f32.gmra.mrb[0].mxu0 %v3484
  %v3807 = vpop.f32.mrb[0].mxu0
  %v3808 = vadd.f32 0.0, %v3807
  %v3809 = vpop.f32.mrb[0].mxu0
  %3810 = vmatprep.mubr.f32.mxu0 0.0
  %3811 = vmatmul.mubr.f32.gmra.mrb[0].mxu0 %v3487
  %v3812 = vpop.f32.mrb[0].mxu0
  %v3813 = vadd.f32 0.0, %v3812
  %v3814 = vpop.f32.mrb[0].mxu0
  %3815 = vmatprep.mubr.f32.mxu0 0.0
  %3816 = vmatmul.mubr.f32.gmra.mrb[0].mxu0 %v3490
  %v3817 = vpop.f32.mrb[0].mxu0
  %v3818 = vadd.f32 0.0, %v3817
  %v3819 = vpop.f32.mrb[0].mxu0
  %3820 = vmatprep.mubr.f32.mxu0 0.0
  %3821 = vmatmul.mubr.f32.gmra.mrb[0].mxu0 %v3493
  %v3822 = vpop.f32.mrb[0].mxu0
  %v3823 = vadd.f32 0.0, %v3822
  %v3824 = vpop.f32.mrb[0].mxu0
  %3825 = vmatprep.mubr.f32.mxu0 0.0
  %3826 = vmatmul.mubr.f32.gmra.mrb[0].mxu0 %v3496
  %v3827 = vpop.f32.mrb[0].mxu0
  %v3828 = vadd.f32 0.0, %v3827
  %v3829 = vpop.f32.mrb[0].mxu0
  %3830 = vmatprep.mubr.f32.mxu0 0.0
  %3831 = vmatmul.mubr.f32.gmra.mrb[0].mxu0 %v3499
  %v3832 = vpop.f32.mrb[0].mxu0
  %v3833 = vadd.f32 0.0, %v3832
  %v3834 = vpop.f32.mrb[0].mxu0
  %3835 = vmatprep.mubr.f32.mxu0 0.0
  %3836 = vmatmul.mubr.f32.gmra.mrb[0].mxu0 %v3502
  %v3837 = vpop.f32.mrb[0].mxu0
  %v3838 = vadd.f32 0.0, %v3837
  %v3839 = vpop.f32.mrb[0].mxu0
  %3840 = vmatprep.mubr.f32.mxu0 0.0
  %3841 = vmatmul.mubr.f32.gmra.mrb[0].mxu0 %v3505
  %v3842 = vpop.f32.mrb[0].mxu0
  %v3843 = vadd.f32 0.0, %v3842
  %v3844 = vpop.f32.mrb[0].mxu0
  %3845 = vmatprep.mubr.f32.mxu0 0.0
  %3846 = vmatmul.mubr.f32.gmra.mrb[0].mxu0 %v3508
  %v3847 = vpop.f32.mrb[0].mxu0
  %v3848 = vadd.f32 0.0, %v3847
  %v3849 = vpop.f32.mrb[0].mxu0
  %3850 = vmatprep.mubr.f32.mxu0 0.0
  %3851 = vmatmul.mubr.f32.gmra.mrb[0].mxu0 %v3511
  %v3852 = vpop.f32.mrb[0].mxu0
  %v3853 = vadd.f32 0.0, %v3852
  %v3854 = vpop.f32.mrb[0].mxu0
  %3855 = vmatprep.mubr.f32.mxu0 0.0
  %3856 = vmatmul.mubr.f32.gmra.mrb[0].mxu0 %v3514
  %v3857 = vpop.f32.mrb[0].mxu0
  %v3858 = vadd.f32 0.0, %v3857
  %v3859 = vpop.f32.mrb[0].mxu0
  %3860 = vmatprep.mubr.f32.mxu0 0.0
  %3861 = vmatmul.mubr.f32.gmra.mrb[0].mxu0 %v3517
  %v3862 = vpop.f32.mrb[0].mxu0
  %v3863 = vadd.f32 0.0, %v3862
  %v3864 = vpop.f32.mrb[0].mxu0
  %3865 = vmatprep.mubr.f32.mxu0 0.0
  %3866 = vmatmul.mubr.f32.gmra.mrb[0].mxu0 %v3520
  %v3867 = vpop.f32.mrb[0].mxu0
  %v3868 = vadd.f32 0.0, %v3867
  %v3869 = vpop.f32.mrb[0].mxu0
  %3870 = vmatprep.mubr.f32.mxu0 0.0
  %3871 = vmatmul.mubr.f32.gmra.mrb[0].mxu0 %v3523
  %v3872 = vpop.f32.mrb[0].mxu0
  %v3873 = vadd.f32 0.0, %v3872
  %v3874 = vpop.f32.mrb[0].mxu0
  %3875 = vmatprep.mubr.f32.mxu0 0.0
  %3876 = vmatmul.mubr.f32.gmra.mrb[0].mxu0 %v3526
  %v3877 = vpop.f32.mrb[0].mxu0
  %v3878 = vadd.f32 0.0, %v3877
  %v3879 = vpop.f32.mrb[0].mxu0
  %3880 = vmatprep.mubr.f32.mxu0 0.0
  %3881 = vmatmul.mubr.f32.gmra.mrb[0].mxu0 %v3529
  %v3882 = vpop.f32.mrb[0].mxu0
  %v3883 = vadd.f32 0.0, %v3882
  %v3884 = vpop.f32.mrb[0].mxu0
  %3885 = vmatprep.mubr.f32.mxu0 0.0
  %3886 = vmatmul.mubr.f32.gmra.mrb[0].mxu0 %v3532
  %v3887 = vpop.f32.mrb[0].mxu0
  %v3888 = vadd.f32 0.0, %v3887
  %v3889 = vpop.f32.mrb[0].mxu0
  %3890 = vmatprep.mubr.f32.mxu0 0.0
  %3891 = vmatmul.mubr.f32.gmra.mrb[0].mxu0 %v3535
  %v3892 = vpop.f32.mrb[0].mxu0
  %v3893 = vadd.f32 0.0, %v3892
  %v3894 = vpop.f32.mrb[0].mxu0
  %3895 = vmatprep.mubr.f32.mxu0 0.0
  %3896 = vmatmul.mubr.f32.gmra.mrb[0].mxu0 %v3538
  %v3897 = vpop.f32.mrb[0].mxu0
  %v3898 = vadd.f32 0.0, %v3897
  %v3899 = vpop.f32.mrb[0].mxu0
  %3900 = vmatprep.mubr.f32.mxu0 0.0
  %3901 = vmatmul.mubr.f32.gmra.mrb[0].mxu0 %v3541
  %v3902 = vpop.f32.mrb[0].mxu0
  %v3903 = vadd.f32 0.0, %v3902
  %v3904 = vpop.f32.mrb[0].mxu0
  %3905 = vmatprep.mubr.f32.mxu0 0.0
  %3906 = vmatmul.mubr.f32.gmra.mrb[0].mxu0 %v3544
  %v3907 = vpop.f32.mrb[0].mxu0
  %v3908 = vadd.f32 0.0, %v3907
  %v3909 = vpop.f32.mrb[0].mxu0
  %3910 = vmatprep.mubr.f32.mxu0 0.0
  %3911 = vmatmul.mubr.f32.gmra.mrb[0].mxu0 %v3547
  %v3912 = vpop.f32.mrb[0].mxu0
  %v3913 = vadd.f32 0.0, %v3912
  %v3914 = vpop.f32.mrb[0].mxu0
  %3915 = vmatprep.mubr.f32.mxu0 0.0
  %3916 = vmatmul.mubr.f32.gmra.mrb[0].mxu0 %v3550
  %v3917 = vpop.f32.mrb[0].mxu0
  %v3918 = vadd.f32 0.0, %v3917
  %v3919 = vpop.f32.mrb[0].mxu0
  %3920 = vmatprep.mubr.f32.mxu0 0.0
  %3921 = vmatmul.mubr.f32.gmra.mrb[0].mxu0 %v3553
  %v3922 = vpop.f32.mrb[0].mxu0
  %v3923 = vadd.f32 0.0, %v3922
  %v3924 = vpop.f32.mrb[0].mxu0
  %3925 = vmatprep.mubr.f32.mxu0 0.0
  %3926 = vmatmul.mubr.f32.gmra.mrb[0].mxu0 %v3556
  %v3927 = vpop.f32.mrb[0].mxu0
  %v3928 = vadd.f32 0.0, %v3927
  %v3929 = vpop.f32.mrb[0].mxu0
  %3930 = vmatprep.mubr.f32.mxu0 0.0
  %3931 = vmatmul.mubr.f32.gmra.mrb[0].mxu0 %v3559
  %v3932 = vpop.f32.mrb[0].mxu0
  %v3933 = vadd.f32 0.0, %v3932
  %v3934 = vpop.f32.mrb[0].mxu0
  %3935 = vmatprep.mubr.f32.mxu0 0.0
  %3936 = vmatmul.mubr.f32.gmra.mrb[0].mxu0 %v3562
  %v3937 = vpop.f32.mrb[0].mxu0
  %v3938 = vadd.f32 0.0, %v3937
  %v3939 = vpop.f32.mrb[0].mxu0
  %3940 = vmatprep.mubr.f32.mxu0 0.0
  %3941 = vmatmul.mubr.f32.gmra.mrb[0].mxu0 %v3565
  %v3942 = vpop.f32.mrb[0].mxu0
  %v3943 = vadd.f32 0.0, %v3942
  %v3944 = vpop.f32.mrb[0].mxu0
  %3945 = vmatprep.mubr.f32.mxu0 0.0
  %3946 = vmatmul.mubr.f32.gmra.mrb[0].mxu0 %v3568
  %v3947 = vpop.f32.mrb[0].mxu0
  %v3948 = vadd.f32 0.0, %v3947
  %v3949 = vpop.f32.mrb[0].mxu0
  %3950 = vmatprep.mubr.f32.mxu0 0.0
  %3951 = vmatmul.mubr.f32.gmra.mrb[0].mxu0 %v3571
  %v3952 = vpop.f32.mrb[0].mxu0
  %v3953 = vadd.f32 0.0, %v3952
  %v3954 = vpop.f32.mrb[0].mxu0
  %3955 = vmatprep.mubr.f32.mxu0 0.0
  %3956 = vmatmul.mubr.f32.gmra.mrb[0].mxu0 %v3574
  %v3957 = vpop.f32.mrb[0].mxu0
  %v3958 = vadd.f32 0.0, %v3957
  %v3959 = vpop.f32.mrb[0].mxu0
  %3960 = vmatprep.mubr.f32.mxu0 0.0
  %3961 = vmatmul.mubr.f32.gmra.mrb[0].mxu0 %v3577
  %v3962 = vpop.f32.mrb[0].mxu0
  %v3963 = vadd.f32 0.0, %v3962
  %v3964 = vpop.f32.mrb[0].mxu0
  %3965 = vmatprep.mubr.f32.mxu0 0.0
  %3966 = vmatmul.mubr.f32.gmra.mrb[0].mxu0 %v3580
  %v3967 = vpop.f32.mrb[0].mxu0
  %v3968 = vadd.f32 0.0, %v3967
  %v3969 = vpop.f32.mrb[0].mxu0
  %3970 = vmatprep.mubr.f32.mxu0 0.0
  %3971 = vmatmul.mubr.f32.gmra.mrb[0].mxu0 %v3583
  %v3972 = vpop.f32.mrb[0].mxu0
  %v3973 = vadd.f32 0.0, %v3972
  %v3974 = vpop.f32.mrb[0].mxu0
  %3975 = vmatprep.mubr.f32.mxu0 0.0
  %3976 = vmatmul.mubr.f32.gmra.mrb[0].mxu0 %v3586
  %v3977 = vpop.f32.mrb[0].mxu0
  %v3978 = vadd.f32 0.0, %v3977
  %v3979 = vpop.f32.mrb[0].mxu0
  %3980 = vmatprep.mubr.f32.mxu0 0.0
  %3981 = vmatmul.mubr.f32.gmra.mrb[0].mxu0 %v3589
  %v3982 = vpop.f32.mrb[0].mxu0
  %v3983 = vadd.f32 0.0, %v3982
  %v3984 = vpop.f32.mrb[0].mxu0
  %3985 = vmatprep.mubr.f32.mxu0 0.0
  %3986 = vmatmul.mubr.f32.gmra.mrb[0].mxu0 %v3592
  %v3987 = vpop.f32.mrb[0].mxu0
  %v3988 = vadd.f32 0.0, %v3987
  %v3989 = vpop.f32.mrb[0].mxu0
  %3990 = vmatprep.mubr.f32.mxu0 0.0
  %3991 = vmatmul.mubr.f32.gmra.mrb[0].mxu0 %v3595
  %v3992 = vpop.f32.mrb[0].mxu0
  %v3993 = vadd.f32 0.0, %v3992
  %v3994 = vpop.f32.mrb[0].mxu0
  %3995 = vmatprep.mubr.f32.mxu0 0.0
  %3996 = vmatmul.mubr.f32.gmra.mrb[0].mxu0 %v3598
  %v3997 = vpop.f32.mrb[0].mxu0
  %v3998 = vadd.f32 0.0, %v3997
  %v3999 = vpop.f32.mrb[0].mxu0
  %4000 = vmatprep.mubr.f32.mxu0 0.0
  %4001 = vmatmul.mubr.f32.gmra.mrb[0].mxu0 %v3601
  %v4002 = vpop.f32.mrb[0].mxu0
  %v4003 = vadd.f32 0.0, %v4002
  %v4004 = vpop.f32.mrb[0].mxu0
  %4005 = vmatprep.mubr.f32.mxu0 0.0
  %4006 = vmatmul.mubr.f32.gmra.mrb[0].mxu0 %v3604
  %v4007 = vpop.f32.mrb[0].mxu0
  %v4008 = vadd.f32 0.0, %v4007
  %v4009 = vpop.f32.mrb[0].mxu0
  %4010 = vmatprep.mubr.f32.mxu0 0.0
  %4011 = vmatmul.mubr.f32.gmra.mrb[0].mxu0 %v3607
  %v4012 = vpop.f32.mrb[0].mxu0
  %v4013 = vadd.f32 0.0, %v4012
  %v4014 = vpop.f32.mrb[0].mxu0
  %4015 = vmatprep.mubr.f32.mxu0 0.0
  %4016 = vmatmul.mubr.f32.gmra.mrb[0].mxu0 %v3610
  %v4017 = vpop.f32.mrb[0].mxu0
  %v4018 = vadd.f32 0.0, %v4017
  %v4019 = vpop.f32.mrb[0].mxu0
  %4020 = vmatprep.mubr.f32.mxu0 0.0
  %4021 = vmatmul.mubr.f32.gmra.mrb[0].mxu0 %v3613
  %v4022 = vpop.f32.mrb[0].mxu0
  %v4023 = vadd.f32 0.0, %v4022
  %v4024 = vpop.f32.mrb[0].mxu0
  %4025 = vmatprep.mubr.f32.mxu0 0.0
  %4026 = vmatmul.mubr.f32.gmra.mrb[0].mxu0 %v3616
  %v4027 = vpop.f32.mrb[0].mxu0
  %v4028 = vadd.f32 0.0, %v4027
  %v4029 = vpop.f32.mrb[0].mxu0
  %4030 = vmatprep.mubr.f32.mxu0 0.0
  %4031 = vmatmul.mubr.f32.gmra.mrb[0].mxu0 %v3619
  %v4032 = vpop.f32.mrb[0].mxu0
  %v4033 = vadd.f32 0.0, %v4032
  %v4034 = vpop.f32.mrb[0].mxu0
  %4035 = vmatprep.mubr.f32.mxu0 0.0
  %4036 = vmatmul.mubr.f32.gmra.mrb[0].mxu0 %v3622
  %v4037 = vpop.f32.mrb[0].mxu0
  %v4038 = vadd.f32 0.0, %v4037
  %v4039 = vpop.f32.mrb[0].mxu0
  %4040 = vmatprep.mubr.f32.mxu0 0.0
  %4041 = vmatmul.mubr.f32.gmra.mrb[0].mxu0 %v3625
  %v4042 = vpop.f32.mrb[0].mxu0
  %v4043 = vadd.f32 0.0, %v4042
  %v4044 = vpop.f32.mrb[0].mxu0
  %4045 = vmatprep.mubr.f32.mxu0 0.0
  %4046 = vmatmul.mubr.f32.gmra.mrb[0].mxu0 %v3628
  %v4047 = vpop.f32.mrb[0].mxu0
  %v4048 = vadd.f32 0.0, %v4047
  %v4049 = vpop.f32.mrb[0].mxu0
  %4050 = vmatprep.mubr.f32.mxu0 0.0
  %4051 = vmatmul.mubr.f32.gmra.mrb[0].mxu0 %v3631
  %v4052 = vpop.f32.mrb[0].mxu0
  %v4053 = vadd.f32 0.0, %v4052
  %v4054 = vpop.f32.mrb[0].mxu0
  %4055 = vmatprep.mubr.f32.mxu0 0.0
  %4056 = vmatmul.mubr.f32.gmra.mrb[0].mxu0 %v3634
  %v4057 = vpop.f32.mrb[0].mxu0
  %v4058 = vadd.f32 0.0, %v4057
  %v4059 = vpop.f32.mrb[0].mxu0
  %4060 = vmatprep.mubr.f32.mxu0 0.0
  %4061 = vmatmul.mubr.f32.gmra.mrb[0].mxu0 %v3637
  %v4062 = vpop.f32.mrb[0].mxu0
  %v4063 = vadd.f32 0.0, %v4062
  %v4064 = vpop.f32.mrb[0].mxu0
  %4065 = vmatprep.mubr.f32.mxu0 0.0
  %4066 = vmatmul.mubr.f32.gmra.mrb[0].mxu0 %v3640
  %v4067 = vpop.f32.mrb[0].mxu0
  %v4068 = vadd.f32 0.0, %v4067
  %v4069 = vpop.f32.mrb[0].mxu0
  %4070 = vmatprep.mubr.f32.mxu0 0.0
  %4071 = vmatmul.mubr.f32.gmra.mrb[0].mxu0 %v3643
  %v4072 = vpop.f32.mrb[0].mxu0
  %v4073 = vadd.f32 0.0, %v4072
  %v4074 = vpop.f32.mrb[0].mxu0
  %4075 = vmatprep.mubr.f32.mxu0 0.0
  %4076 = vmatmul.mubr.f32.gmra.mrb[0].mxu0 %v3646
  %v4077 = vpop.f32.mrb[0].mxu0
  %v4078 = vadd.f32 0.0, %v4077
  %v4079 = vpop.f32.mrb[0].mxu0
  %4080 = vmatprep.mubr.f32.mxu0 0.0
  %4081 = vmatmul.mubr.f32.gmra.mrb[0].mxu0 %v3649
  %v4082 = vpop.f32.mrb[0].mxu0
  %v4083 = vadd.f32 0.0, %v4082
  %v4084 = vpop.f32.mrb[0].mxu0
  %4085 = vmatprep.mubr.f32.mxu0 0.0
  %4086 = vmatmul.mubr.f32.gmra.mrb[0].mxu0 %v3652
  %v4087 = vpop.f32.mrb[0].mxu0
  %v4088 = vadd.f32 0.0, %v4087
  %v4089 = vpop.f32.mrb[0].mxu0
  %4090 = vmatprep.mubr.f32.mxu0 0.0
  %4091 = vmatmul.mubr.f32.gmra.mrb[0].mxu0 %v3655
  %v4092 = vpop.f32.mrb[0].mxu0
  %v4093 = vadd.f32 0.0, %v4092
  %v4094 = vpop.f32.mrb[0].mxu0
  %4095 = vmatprep.mubr.f32.mxu0 0.0
  %4096 = vmatmul.mubr.f32.gmra.mrb[0].mxu0 %v3658
  %v4097 = vpop.f32.mrb[0].mxu0
  %v4098 = vadd.f32 0.0, %v4097
  %v4099 = vpop.f32.mrb[0].mxu0
  %4100 = vmatprep.mubr.f32.mxu0 0.0
  %4101 = vmatmul.mubr.f32.gmra.mrb[0].mxu0 %v3661
  %v4102 = vpop.f32.mrb[0].mxu0
  %v4103 = vadd.f32 0.0, %v4102
  %v4104 = vpop.f32.mrb[0].mxu0
  %4105 = vmatprep.mubr.f32.mxu0 0.0
  %4106 = vmatmul.mubr.f32.gmra.mrb[0].mxu0 %v3664
  %v4107 = vpop.f32.mrb[0].mxu0
  %v4108 = vadd.f32 0.0, %v4107
  %v4109 = vpop.f32.mrb[0].mxu0
  %4110 = vmatprep.mubr.f32.mxu0 0.0
  %4111 = vmatmul.mubr.f32.gmra.mrb[0].mxu0 %v3667
  %v4112 = vpop.f32.mrb[0].mxu0
  %v4113 = vadd.f32 0.0, %v4112
  %v4114 = vpop.f32.mrb[0].mxu0
  %4115 = vmatprep.mubr.f32.mxu0 0.0
  %4116 = vmatmul.mubr.f32.gmra.mrb[0].mxu0 %v3670
  %v4117 = vpop.f32.mrb[0].mxu0
  %v4118 = vadd.f32 0.0, %v4117
  %v4119 = vpop.f32.mrb[0].mxu0
  %4120 = vmatprep.mubr.f32.mxu0 0.0
  %4121 = vmatmul.mubr.f32.gmra.mrb[0].mxu0 %v3673
  %v4122 = vpop.f32.mrb[0].mxu0
  %v4123 = vadd.f32 0.0, %v4122
  %v4124 = vpop.f32.mrb[0].mxu0
  %4125 = vmatprep.mubr.f32.mxu0 0.0
  %4126 = vmatmul.mubr.f32.gmra.mrb[0].mxu0 %v3676
  %v4127 = vpop.f32.mrb[0].mxu0
  %v4128 = vadd.f32 0.0, %v4127
  %v4129 = vpop.f32.mrb[0].mxu0
  %4130 = vmatprep.mubr.f32.mxu0 0.0
  %4131 = vmatmul.mubr.f32.gmra.mrb[0].mxu0 %v3679
  %v4132 = vpop.f32.mrb[0].mxu0
  %v4133 = vadd.f32 0.0, %v4132
  %v4134 = vpop.f32.mrb[0].mxu0
  %4135 = vmatprep.mubr.f32.mxu0 0.0
  %4136 = vmatmul.mubr.f32.gmra.mrb[0].mxu0 %v3682
  %v4137 = vpop.f32.mrb[0].mxu0
  %v4138 = vadd.f32 0.0, %v4137
  %v4139 = vpop.f32.mrb[0].mxu0
  %4140 = vmatprep.mubr.f32.mxu0 0.0
  %4141 = vmatmul.mubr.f32.gmra.mrb[0].mxu0 %v3685
  %v4142 = vpop.f32.mrb[0].mxu0
  %v4143 = vadd.f32 0.0, %v4142
  %v4144 = vpop.f32.mrb[0].mxu0
  %4145 = vmatprep.mubr.f32.mxu0 0.0
  %4146 = vmatmul.mubr.f32.gmra.mrb[0].mxu0 %v3688
  %v4147 = vpop.f32.mrb[0].mxu0
  %v4148 = vadd.f32 0.0, %v4147
  %v4149 = vpop.f32.mrb[0].mxu0
  %4150 = vmatprep.mubr.f32.mxu0 0.0
  %4151 = vmatmul.mubr.f32.gmra.mrb[0].mxu0 %v3691
  %v4152 = vpop.f32.mrb[0].mxu0
  %v4153 = vadd.f32 0.0, %v4152
  %v4154 = vpop.f32.mrb[0].mxu0
  %4155 = vmatprep.mubr.f32.mxu0 0.0
  %4156 = vmatmul.mubr.f32.gmra.mrb[0].mxu0 %v3694
  %v4157 = vpop.f32.mrb[0].mxu0
  %v4158 = vadd.f32 0.0, %v4157
  %v4159 = vpop.f32.mrb[0].mxu0
  %4160 = vmatprep.mubr.f32.mxu0 0.0
  %4161 = vmatmul.mubr.f32.gmra.mrb[0].mxu0 %v3697
  %v4162 = vpop.f32.mrb[0].mxu0
  %v4163 = vadd.f32 0.0, %v4162
  %v4164 = vpop.f32.mrb[0].mxu0
  %4165 = vmatprep.mubr.f32.mxu0 0.0
  %4166 = vmatmul.mubr.f32.gmra.mrb[0].mxu0 %v3700
  %v4167 = vpop.f32.mrb[0].mxu0
  %v4168 = vadd.f32 0.0, %v4167
  %v4169 = vpop.f32.mrb[0].mxu0
  %4170 = vmatprep.mubr.f32.mxu0 0.0
  %4171 = vmatmul.mubr.f32.gmra.mrb[0].mxu0 %v3703
  %v4172 = vpop.f32.mrb[0].mxu0
  %v4173 = vadd.f32 0.0, %v4172
  %v4174 = vpop.f32.mrb[0].mxu0
  %4175 = vmatprep.mubr.f32.mxu0 0.0
  %4176 = vmatmul.mubr.f32.gmra.mrb[0].mxu0 %v3706
  %v4177 = vpop.f32.mrb[0].mxu0
  %v4178 = vadd.f32 0.0, %v4177
  %v4179 = vpop.f32.mrb[0].mxu0
  %4180 = vdwg.mxu0
  %v4181 = vadd.f32 %v3303, %v3778
  %v4182 = vadd.f32 %v3304, %v3783
  %v4183 = vadd.f32 %v3305, %v3788
  %v4184 = vadd.f32 %v3306, %v3793
  %v4185 = vadd.f32 %v3307, %v3798
  %v4186 = vadd.f32 %v3308, %v3803
  %v4187 = vadd.f32 %v3309, %v3808
  %v4188 = vadd.f32 %v3310, %v3813
  %v4189 = vadd.f32 %v3311, %v3818
  %v4190 = vadd.f32 %v3312, %v3823
  %v4191 = vadd.f32 %v3313, %v3828
  %v4192 = vadd.f32 %v3314, %v3833
  %v4193 = vadd.f32 %v3315, %v3838
  %v4194 = vadd.f32 %v3316, %v3843
  %v4195 = vadd.f32 %v3317, %v3848
  %v4196 = vadd.f32 %v3318, %v3853
  %v4197 = vadd.f32 %v3319, %v3858
  %v4198 = vadd.f32 %v3320, %v3863
  %v4199 = vadd.f32 %v3321, %v3868
  %v4200 = vadd.f32 %v3322, %v3873
  %v4201 = vadd.f32 %v3323, %v3878
  %v4202 = vadd.f32 %v3324, %v3883
  %v4203 = vadd.f32 %v3325, %v3888
  %v4204 = vadd.f32 %v3326, %v3893
  %v4205 = vadd.f32 %v3327, %v3898
  %v4206 = vadd.f32 %v3328, %v3903
  %v4207 = vadd.f32 %v3329, %v3908
  %v4208 = vadd.f32 %v3330, %v3913
  %v4209 = vadd.f32 %v3331, %v3918
  %v4210 = vadd.f32 %v3332, %v3923
  %v4211 = vadd.f32 %v3333, %v3928
  %v4212 = vadd.f32 %v3334, %v3933
  %v4213 = vadd.f32 %v3335, %v3938
  %v4214 = vadd.f32 %v3336, %v3943
  %v4215 = vadd.f32 %v3337, %v3948
  %v4216 = vadd.f32 %v3338, %v3953
  %v4217 = vadd.f32 %v3339, %v3958
  %v4218 = vadd.f32 %v3340, %v3963
  %v4219 = vadd.f32 %v3341, %v3968
  %v4220 = vadd.f32 %v3342, %v3973
  %v4221 = vadd.f32 %v3343, %v3978
  %v4222 = vadd.f32 %v3344, %v3983
  %v4223 = vadd.f32 %v3345, %v3988
  %v4224 = vadd.f32 %v3346, %v3993
  %v4225 = vadd.f32 %v3347, %v3998
  %v4226 = vadd.f32 %v3348, %v4003
  %v4227 = vadd.f32 %v3349, %v4008
  %v4228 = vadd.f32 %v3350, %v4013
  %v4229 = vadd.f32 %v3351, %v4018
  %v4230 = vadd.f32 %v3352, %v4023
  %v4231 = vadd.f32 %v3353, %v4028
  %v4232 = vadd.f32 %v3354, %v4033
  %v4233 = vadd.f32 %v3355, %v4038
  %v4234 = vadd.f32 %v3356, %v4043
  %v4235 = vadd.f32 %v3357, %v4048
  %v4236 = vadd.f32 %v3358, %v4053
  %v4237 = vadd.f32 %v3359, %v4058
  %v4238 = vadd.f32 %v3360, %v4063
  %v4239 = vadd.f32 %v3361, %v4068
  %v4240 = vadd.f32 %v3362, %v4073
  %v4241 = vadd.f32 %v3363, %v4078
  %v4242 = vadd.f32 %v3364, %v4083
  %v4243 = vadd.f32 %v3365, %v4088
  %v4244 = vadd.f32 %v3366, %v4093
  %v4245 = vadd.f32 %v3367, %v4098
  %v4246 = vadd.f32 %v3368, %v4103
  %v4247 = vadd.f32 %v3369, %v4108
  %v4248 = vadd.f32 %v3370, %v4113
  %v4249 = vadd.f32 %v3371, %v4118
  %v4250 = vadd.f32 %v3372, %v4123
  %v4251 = vadd.f32 %v3373, %v4128
  %v4252 = vadd.f32 %v3374, %v4133
  %v4253 = vadd.f32 %v3375, %v4138
  %v4254 = vadd.f32 %v3376, %v4143
  %v4255 = vadd.f32 %v3377, %v4148
  %v4256 = vadd.f32 %v3378, %v4153
  %v4257 = vadd.f32 %v3379, %v4158
  %v4258 = vadd.f32 %v3380, %v4163
  %v4259 = vadd.f32 %v3381, %v4168
  %v4260 = vadd.f32 %v3382, %v4173
  %v4261 = vadd.f32 %v3383, %v4178
  %v4262 = vld [vmem:[%s0 + $0x14] sm:$0xff]
  %v4263 = vld [vmem:[%s0 + $0x1c] sm:$0xff]
  %v4264 = vld [vmem:[%s0 + $0x24] sm:$0xff]
  %v4265 = vld [vmem:[%s0 + $0x2c] sm:$0xff]
  %v4266 = vld [vmem:[%s0 + $0x34] sm:$0xff]
  %v4267 = vld [vmem:[%s0 + $0x3c] sm:$0xff]
  %v4268 = vld [vmem:[%s0 + $0x44] sm:$0xff]
  %v4269 = vld [vmem:[%s0 + $0x4c] sm:$0xff]
  %v4270 = vld [vmem:[%s0 + $0x54] sm:$0xff]
  %v4271 = vld [vmem:[%s0 + $0x5c] sm:$0xff]
  %v4272 = vld [vmem:[%s0 + $0x64] sm:$0xff]
  %v4273 = vld [vmem:[%s0 + $0x6c] sm:$0xff]
  %v4274 = vld [vmem:[%s0 + $0x74] sm:$0xff]
  %v4275 = vld [vmem:[%s0 + $0x7c] sm:$0xff]
  %v4276 = vld [vmem:[%s0 + $0x84] sm:$0xff]
  %v4277 = vld [vmem:[%s0 + $0x8c] sm:$0xff]
  %v4278 = vld [vmem:[%s0 + $0x94] sm:$0xff]
  %v4279 = vld [vmem:[%s0 + $0x9c] sm:$0xff]
  %v4280 = vld [vmem:[%s0 + $0xa4] sm:$0xff]
  %v4281 = vld [vmem:[%s0 + $0xac] sm:$0xff]
  %v4282 = vld [vmem:[%s0 + $0xb4] sm:$0xff]
  %v4283 = vld [vmem:[%s0 + $0xbc] sm:$0xff]
  %v4284 = vld [vmem:[%s0 + $0xc4] sm:$0xff]
  %v4285 = vld [vmem:[%s0 + $0xcc] sm:$0xff]
  %v4286 = vld [vmem:[%s0 + $0xd4] sm:$0xff]
  %v4287 = vld [vmem:[%s0 + $0xdc] sm:$0xff]
  %v4288 = vld [vmem:[%s0 + $0xe4] sm:$0xff]
  %v4289 = vld [vmem:[%s0 + $0xec] sm:$0xff]
  %v4290 = vld [vmem:[%s0 + $0xf4] sm:$0xff]
  %v4291 = vld [vmem:[%s0 + $0xfc] sm:$0xff]
  %v4292 = vld [vmem:[%s0 + $0x104] sm:$0xff]
  %v4293 = vld [vmem:[%s0 + $0x10c] sm:$0xff]
  %v4294 = vld [vmem:[%s0 + $0x114] sm:$0xff]
  %v4295 = vld [vmem:[%s0 + $0x11c] sm:$0xff]
  %v4296 = vld [vmem:[%s0 + $0x124] sm:$0xff]
  %v4297 = vld [vmem:[%s0 + $0x12c] sm:$0xff]
  %v4298 = vld [vmem:[%s0 + $0x134] sm:$0xff]
  %v4299 = vld [vmem:[%s0 + $0x13c] sm:$0xff]
  %v4300 = vld [vmem:[%s0 + $0x144] sm:$0xff]
  %v4301 = vld [vmem:[%s0 + $0x14c] sm:$0xff]
  %v4302 = vld [vmem:[%s0 + $0x154] sm:$0xff]
  %v4303 = vld [vmem:[%s0 + $0x15c] sm:$0xff]
  %v4304 = vld [vmem:[%s0 + $0x164] sm:$0xff]
  %v4305 = vld [vmem:[%s0 + $0x16c] sm:$0xff]
  %v4306 = vld [vmem:[%s0 + $0x174] sm:$0xff]
  %v4307 = vld [vmem:[%s0 + $0x17c] sm:$0xff]
  %v4308 = vld [vmem:[%s0 + $0x184] sm:$0xff]
  %v4309 = vld [vmem:[%s0 + $0x18c] sm:$0xff]
  %v4310 = vld [vmem:[%s0 + $0x194] sm:$0xff]
  %v4311 = vld [vmem:[%s0 + $0x19c] sm:$0xff]
  %v4312 = vld [vmem:[%s0 + $0x1a4] sm:$0xff]
  %v4313 = vld [vmem:[%s0 + $0x1ac] sm:$0xff]
  %v4314 = vld [vmem:[%s0 + $0x1b4] sm:$0xff]
  %v4315 = vld [vmem:[%s0 + $0x1bc] sm:$0xff]
  %v4316 = vld [vmem:[%s0 + $0x1c4] sm:$0xff]
  %v4317 = vld [vmem:[%s0 + $0x1cc] sm:$0xff]
  %v4318 = vld [vmem:[%s0 + $0x1d4] sm:$0xff]
  %v4319 = vld [vmem:[%s0 + $0x1dc] sm:$0xff]
  %v4320 = vld [vmem:[%s0 + $0x1e4] sm:$0xff]
  %v4321 = vld [vmem:[%s0 + $0x1ec] sm:$0xff]
  %v4322 = vld [vmem:[%s0 + $0x1f4] sm:$0xff]
  %v4323 = vld [vmem:[%s0 + $0x1fc] sm:$0xff]
  %v4324 = vld [vmem:[%s0 + $0x204] sm:$0xff]
  %v4325 = vld [vmem:[%s0 + $0x20c] sm:$0xff]
  %v4326 = vld [vmem:[%s0 + $0x214] sm:$0xff]
  %v4327 = vld [vmem:[%s0 + $0x21c] sm:$0xff]
  %v4328 = vld [vmem:[%s0 + $0x224] sm:$0xff]
  %v4329 = vld [vmem:[%s0 + $0x22c] sm:$0xff]
  %v4330 = vld [vmem:[%s0 + $0x234] sm:$0xff]
  %v4331 = vld [vmem:[%s0 + $0x23c] sm:$0xff]
  %v4332 = vld [vmem:[%s0 + $0x244] sm:$0xff]
  %v4333 = vld [vmem:[%s0 + $0x24c] sm:$0xff]
  %v4334 = vld [vmem:[%s0 + $0x254] sm:$0xff]
  %v4335 = vld [vmem:[%s0 + $0x25c] sm:$0xff]
  %v4336 = vld [vmem:[%s0 + $0x264] sm:$0xff]
  %v4337 = vld [vmem:[%s0 + $0x26c] sm:$0xff]
  %v4338 = vld [vmem:[%s0 + $0x274] sm:$0xff]
  %v4339 = vld [vmem:[%s0 + $0x27c] sm:$0xff]
  %v4340 = vld [vmem:[%s0 + $0x284] sm:$0xff]
  %v4341 = vld [vmem:[%s0 + $0x28c] sm:$0xff]
  %v4342 = vld [vmem:[%s0 + $0x294] sm:$0xff]
  %v4343 = vrot.slane %v29, 4
  %v4345 = vsel %vm196, %v4262, 0
  %v4348 = vsel %vm196, %v4263, 0
  %v4351 = vsel %vm196, %v4264, 0
  %v4354 = vsel %vm196, %v4265, 0
  %v4357 = vsel %vm196, %v4266, 0
  %v4360 = vsel %vm196, %v4267, 0
  %v4363 = vsel %vm196, %v4268, 0
  %v4366 = vsel %vm196, %v4269, 0
  %v4369 = vsel %vm196, %v4270, 0
  %v4372 = vsel %vm196, %v4271, 0
  %v4375 = vsel %vm196, %v4272, 0
  %v4378 = vsel %vm196, %v4273, 0
  %v4381 = vsel %vm196, %v4274, 0
  %v4384 = vsel %vm196, %v4275, 0
  %v4387 = vsel %vm196, %v4276, 0
  %v4390 = vsel %vm196, %v4277, 0
  %v4393 = vsel %vm196, %v4278, 0
  %v4396 = vsel %vm196, %v4279, 0
  %v4399 = vsel %vm196, %v4280, 0
  %v4402 = vsel %vm196, %v4281, 0
  %v4405 = vsel %vm196, %v4282, 0
  %v4408 = vsel %vm196, %v4283, 0
  %v4411 = vsel %vm196, %v4284, 0
  %v4414 = vsel %vm196, %v4285, 0
  %v4417 = vsel %vm196, %v4286, 0
  %v4420 = vsel %vm196, %v4287, 0
  %v4423 = vsel %vm196, %v4288, 0
  %v4426 = vsel %vm196, %v4289, 0
  %v4429 = vsel %vm196, %v4290, 0
  %v4432 = vsel %vm196, %v4291, 0
  %v4435 = vsel %vm196, %v4292, 0
  %v4438 = vsel %vm196, %v4293, 0
  %v4441 = vsel %vm196, %v4294, 0
  %v4444 = vsel %vm196, %v4295, 0
  %v4447 = vsel %vm196, %v4296, 0
  %v4450 = vsel %vm196, %v4297, 0
  %v4453 = vsel %vm196, %v4298, 0
  %v4456 = vsel %vm196, %v4299, 0
  %v4459 = vsel %vm196, %v4300, 0
  %v4462 = vsel %vm196, %v4301, 0
  %v4465 = vsel %vm196, %v4302, 0
  %v4468 = vsel %vm196, %v4303, 0
  %v4471 = vsel %vm196, %v4304, 0
  %v4474 = vsel %vm196, %v4305, 0
  %v4477 = vsel %vm196, %v4306, 0
  %v4480 = vsel %vm196, %v4307, 0
  %v4483 = vsel %vm196, %v4308, 0
  %v4486 = vsel %vm196, %v4309, 0
  %v4489 = vsel %vm196, %v4310, 0
  %v4492 = vsel %vm196, %v4311, 0
  %v4495 = vsel %vm196, %v4312, 0
  %v4498 = vsel %vm196, %v4313, 0
  %v4501 = vsel %vm196, %v4314, 0
  %v4504 = vsel %vm196, %v4315, 0
  %v4507 = vsel %vm196, %v4316, 0
  %v4510 = vsel %vm196, %v4317, 0
  %v4513 = vsel %vm196, %v4318, 0
  %v4516 = vsel %vm196, %v4319, 0
  %v4519 = vsel %vm196, %v4320, 0
  %v4522 = vsel %vm196, %v4321, 0
  %v4525 = vsel %vm196, %v4322, 0
  %v4528 = vsel %vm196, %v4323, 0
  %v4531 = vsel %vm196, %v4324, 0
  %v4534 = vsel %vm196, %v4325, 0
  %v4537 = vsel %vm196, %v4326, 0
  %v4540 = vsel %vm196, %v4327, 0
  %v4543 = vsel %vm196, %v4328, 0
  %v4546 = vsel %vm196, %v4329, 0
  %v4549 = vsel %vm196, %v4330, 0
  %v4552 = vsel %vm196, %v4331, 0
  %v4555 = vsel %vm196, %v4332, 0
  %v4558 = vsel %vm196, %v4333, 0
  %v4561 = vsel %vm196, %v4334, 0
  %v4564 = vsel %vm196, %v4335, 0
  %v4567 = vsel %vm196, %v4336, 0
  %v4570 = vsel %vm196, %v4337, 0
  %v4573 = vsel %vm196, %v4338, 0
  %v4576 = vsel %vm196, %v4339, 0
  %v4579 = vsel %vm196, %v4340, 0
  %v4582 = vsel %vm196, %v4341, 0
  %v4585 = vsel %vm196, %v4342, 0
  %v4587 = vsel %vm440, %v4343, 0
  %4589 = vmatprep.subr.mxu0 0.0
  %4590 = vmatpush1.msra.mxu0 %v4587
  %4591 = vmatprep.subr.mxu0 0.0
  %4592 = vmatpush1.msra.mxu0 0.0
  %4593 = vmatprep.subr.mxu0 0.0
  %4594 = vmatpush1.msra.mxu0 0.0
  %4595 = vmatprep.subr.mxu0 0.0
  %4596 = vmatpush1.msra.mxu0 0.0
  %4597 = vmatprep.subr.mxu0 0.0
  %4598 = vmatpush1.msra.mxu0 0.0
  %4599 = vmatprep.subr.mxu0 0.0
  %4600 = vmatpush1.msra.mxu0 0.0
  %4601 = vmatprep.subr.mxu0 0.0
  %4602 = vmatpush1.msra.mxu0 0.0
  %4603 = vmatprep.subr.mxu0 0.0
  %4604 = vmatpush1.msra.mxu0 0.0
  %4605 = vmatprep.subr.mxu0 0.0
  %4606 = vmatpush1.msra.mxu0 0.0
  %4607 = vmatprep.subr.mxu0 0.0
  %4608 = vmatpush1.msra.mxu0 0.0
  %4609 = vmatprep.subr.mxu0 0.0
  %4610 = vmatpush1.msra.mxu0 0.0
  %4611 = vmatprep.subr.mxu0 0.0
  %4612 = vmatpush1.msra.mxu0 0.0
  %4613 = vmatprep.subr.mxu0 0.0
  %4614 = vmatpush1.msra.mxu0 0.0
  %4615 = vmatprep.subr.mxu0 0.0
  %4616 = vmatpush1.msra.mxu0 0.0
  %4617 = vmatprep.subr.mxu0 0.0
  %4618 = vmatpush1.msra.mxu0 0.0
  %4619 = vmatprep.subr.mxu0 0.0
  %4620 = vmatpush1.msra.mxu0 0.0
  %4621 = vmatprep.subr.mxu0 0.0
  %4622 = vmatpush1.msra.mxu0 0.0
  %4623 = vmatprep.subr.mxu0 0.0
  %4624 = vmatpush1.msra.mxu0 0.0
  %4625 = vmatprep.subr.mxu0 0.0
  %4626 = vmatpush1.msra.mxu0 0.0
  %4627 = vmatprep.subr.mxu0 0.0
  %4628 = vmatpush1.msra.mxu0 0.0
  %4629 = vmatprep.subr.mxu0 0.0
  %4630 = vmatpush1.msra.mxu0 0.0
  %4631 = vmatprep.subr.mxu0 0.0
  %4632 = vmatpush1.msra.mxu0 0.0
  %4633 = vmatprep.subr.mxu0 0.0
  %4634 = vmatpush1.msra.mxu0 0.0
  %4635 = vmatprep.subr.mxu0 0.0
  %4636 = vmatpush1.msra.mxu0 0.0
  %4637 = vmatprep.subr.mxu0 0.0
  %4638 = vmatpush1.msra.mxu0 0.0
  %4639 = vmatprep.subr.mxu0 0.0
  %4640 = vmatpush1.msra.mxu0 0.0
  %4641 = vmatprep.subr.mxu0 0.0
  %4642 = vmatpush1.msra.mxu0 0.0
  %4643 = vmatprep.subr.mxu0 0.0
  %4644 = vmatpush1.msra.mxu0 0.0
  %4645 = vmatprep.subr.mxu0 0.0
  %4646 = vmatpush1.msra.mxu0 0.0
  %4647 = vmatprep.subr.mxu0 0.0
  %4648 = vmatpush1.msra.mxu0 0.0
  %4649 = vmatprep.subr.mxu0 0.0
  %4650 = vmatpush1.msra.mxu0 0.0
  %4651 = vmatprep.subr.mxu0 0.0
  %4652 = vmatpush1.msra.mxu0 0.0
  %4653 = vmatprep.mubr.f32.mxu0 0.0
  %4654 = vmatmul.mubr.f32.gmra.mrb[0].mxu0 %v4345
  %v4655 = vpop.f32.mrb[0].mxu0
  %v4656 = vadd.f32 0.0, %v4655
  %v4657 = vpop.f32.mrb[0].mxu0
  %4658 = vmatprep.mubr.f32.mxu0 0.0
  %4659 = vmatmul.mubr.f32.gmra.mrb[0].mxu0 %v4348
  %v4660 = vpop.f32.mrb[0].mxu0
  %v4661 = vadd.f32 0.0, %v4660
  %v4662 = vpop.f32.mrb[0].mxu0
  %4663 = vmatprep.mubr.f32.mxu0 0.0
  %4664 = vmatmul.mubr.f32.gmra.mrb[0].mxu0 %v4351
  %v4665 = vpop.f32.mrb[0].mxu0
  %v4666 = vadd.f32 0.0, %v4665
  %v4667 = vpop.f32.mrb[0].mxu0
  %4668 = vmatprep.mubr.f32.mxu0 0.0
  %4669 = vmatmul.mubr.f32.gmra.mrb[0].mxu0 %v4354
  %v4670 = vpop.f32.mrb[0].mxu0
  %v4671 = vadd.f32 0.0, %v4670
  %v4672 = vpop.f32.mrb[0].mxu0
  %4673 = vmatprep.mubr.f32.mxu0 0.0
  %4674 = vmatmul.mubr.f32.gmra.mrb[0].mxu0 %v4357
  %v4675 = vpop.f32.mrb[0].mxu0
  %v4676 = vadd.f32 0.0, %v4675
  %v4677 = vpop.f32.mrb[0].mxu0
  %4678 = vmatprep.mubr.f32.mxu0 0.0
  %4679 = vmatmul.mubr.f32.gmra.mrb[0].mxu0 %v4360
  %v4680 = vpop.f32.mrb[0].mxu0
  %v4681 = vadd.f32 0.0, %v4680
  %v4682 = vpop.f32.mrb[0].mxu0
  %4683 = vmatprep.mubr.f32.mxu0 0.0
  %4684 = vmatmul.mubr.f32.gmra.mrb[0].mxu0 %v4363
  %v4685 = vpop.f32.mrb[0].mxu0
  %v4686 = vadd.f32 0.0, %v4685
  %v4687 = vpop.f32.mrb[0].mxu0
  %4688 = vmatprep.mubr.f32.mxu0 0.0
  %4689 = vmatmul.mubr.f32.gmra.mrb[0].mxu0 %v4366
  %v4690 = vpop.f32.mrb[0].mxu0
  %v4691 = vadd.f32 0.0, %v4690
  %v4692 = vpop.f32.mrb[0].mxu0
  %4693 = vmatprep.mubr.f32.mxu0 0.0
  %4694 = vmatmul.mubr.f32.gmra.mrb[0].mxu0 %v4369
  %v4695 = vpop.f32.mrb[0].mxu0
  %v4696 = vadd.f32 0.0, %v4695
  %v4697 = vpop.f32.mrb[0].mxu0
  %4698 = vmatprep.mubr.f32.mxu0 0.0
  %4699 = vmatmul.mubr.f32.gmra.mrb[0].mxu0 %v4372
  %v4700 = vpop.f32.mrb[0].mxu0
  %v4701 = vadd.f32 0.0, %v4700
  %v4702 = vpop.f32.mrb[0].mxu0
  %4703 = vmatprep.mubr.f32.mxu0 0.0
  %4704 = vmatmul.mubr.f32.gmra.mrb[0].mxu0 %v4375
  %v4705 = vpop.f32.mrb[0].mxu0
  %v4706 = vadd.f32 0.0, %v4705
  %v4707 = vpop.f32.mrb[0].mxu0
  %4708 = vmatprep.mubr.f32.mxu0 0.0
  %4709 = vmatmul.mubr.f32.gmra.mrb[0].mxu0 %v4378
  %v4710 = vpop.f32.mrb[0].mxu0
  %v4711 = vadd.f32 0.0, %v4710
  %v4712 = vpop.f32.mrb[0].mxu0
  %4713 = vmatprep.mubr.f32.mxu0 0.0
  %4714 = vmatmul.mubr.f32.gmra.mrb[0].mxu0 %v4381
  %v4715 = vpop.f32.mrb[0].mxu0
  %v4716 = vadd.f32 0.0, %v4715
  %v4717 = vpop.f32.mrb[0].mxu0
  %4718 = vmatprep.mubr.f32.mxu0 0.0
  %4719 = vmatmul.mubr.f32.gmra.mrb[0].mxu0 %v4384
  %v4720 = vpop.f32.mrb[0].mxu0
  %v4721 = vadd.f32 0.0, %v4720
  %v4722 = vpop.f32.mrb[0].mxu0
  %4723 = vmatprep.mubr.f32.mxu0 0.0
  %4724 = vmatmul.mubr.f32.gmra.mrb[0].mxu0 %v4387
  %v4725 = vpop.f32.mrb[0].mxu0
  %v4726 = vadd.f32 0.0, %v4725
  %v4727 = vpop.f32.mrb[0].mxu0
  %4728 = vmatprep.mubr.f32.mxu0 0.0
  %4729 = vmatmul.mubr.f32.gmra.mrb[0].mxu0 %v4390
  %v4730 = vpop.f32.mrb[0].mxu0
  %v4731 = vadd.f32 0.0, %v4730
  %v4732 = vpop.f32.mrb[0].mxu0
  %4733 = vmatprep.mubr.f32.mxu0 0.0
  %4734 = vmatmul.mubr.f32.gmra.mrb[0].mxu0 %v4393
  %v4735 = vpop.f32.mrb[0].mxu0
  %v4736 = vadd.f32 0.0, %v4735
  %v4737 = vpop.f32.mrb[0].mxu0
  %4738 = vmatprep.mubr.f32.mxu0 0.0
  %4739 = vmatmul.mubr.f32.gmra.mrb[0].mxu0 %v4396
  %v4740 = vpop.f32.mrb[0].mxu0
  %v4741 = vadd.f32 0.0, %v4740
  %v4742 = vpop.f32.mrb[0].mxu0
  %4743 = vmatprep.mubr.f32.mxu0 0.0
  %4744 = vmatmul.mubr.f32.gmra.mrb[0].mxu0 %v4399
  %v4745 = vpop.f32.mrb[0].mxu0
  %v4746 = vadd.f32 0.0, %v4745
  %v4747 = vpop.f32.mrb[0].mxu0
  %4748 = vmatprep.mubr.f32.mxu0 0.0
  %4749 = vmatmul.mubr.f32.gmra.mrb[0].mxu0 %v4402
  %v4750 = vpop.f32.mrb[0].mxu0
  %v4751 = vadd.f32 0.0, %v4750
  %v4752 = vpop.f32.mrb[0].mxu0
  %4753 = vmatprep.mubr.f32.mxu0 0.0
  %4754 = vmatmul.mubr.f32.gmra.mrb[0].mxu0 %v4405
  %v4755 = vpop.f32.mrb[0].mxu0
  %v4756 = vadd.f32 0.0, %v4755
  %v4757 = vpop.f32.mrb[0].mxu0
  %4758 = vmatprep.mubr.f32.mxu0 0.0
  %4759 = vmatmul.mubr.f32.gmra.mrb[0].mxu0 %v4408
  %v4760 = vpop.f32.mrb[0].mxu0
  %v4761 = vadd.f32 0.0, %v4760
  %v4762 = vpop.f32.mrb[0].mxu0
  %4763 = vmatprep.mubr.f32.mxu0 0.0
  %4764 = vmatmul.mubr.f32.gmra.mrb[0].mxu0 %v4411
  %v4765 = vpop.f32.mrb[0].mxu0
  %v4766 = vadd.f32 0.0, %v4765
  %v4767 = vpop.f32.mrb[0].mxu0
  %4768 = vmatprep.mubr.f32.mxu0 0.0
  %4769 = vmatmul.mubr.f32.gmra.mrb[0].mxu0 %v4414
  %v4770 = vpop.f32.mrb[0].mxu0
  %v4771 = vadd.f32 0.0, %v4770
  %v4772 = vpop.f32.mrb[0].mxu0
  %4773 = vmatprep.mubr.f32.mxu0 0.0
  %4774 = vmatmul.mubr.f32.gmra.mrb[0].mxu0 %v4417
  %v4775 = vpop.f32.mrb[0].mxu0
  %v4776 = vadd.f32 0.0, %v4775
  %v4777 = vpop.f32.mrb[0].mxu0
  %4778 = vmatprep.mubr.f32.mxu0 0.0
  %4779 = vmatmul.mubr.f32.gmra.mrb[0].mxu0 %v4420
  %v4780 = vpop.f32.mrb[0].mxu0
  %v4781 = vadd.f32 0.0, %v4780
  %v4782 = vpop.f32.mrb[0].mxu0
  %4783 = vmatprep.mubr.f32.mxu0 0.0
  %4784 = vmatmul.mubr.f32.gmra.mrb[0].mxu0 %v4423
  %v4785 = vpop.f32.mrb[0].mxu0
  %v4786 = vadd.f32 0.0, %v4785
  %v4787 = vpop.f32.mrb[0].mxu0
  %4788 = vmatprep.mubr.f32.mxu0 0.0
  %4789 = vmatmul.mubr.f32.gmra.mrb[0].mxu0 %v4426
  %v4790 = vpop.f32.mrb[0].mxu0
  %v4791 = vadd.f32 0.0, %v4790
  %v4792 = vpop.f32.mrb[0].mxu0
  %4793 = vmatprep.mubr.f32.mxu0 0.0
  %4794 = vmatmul.mubr.f32.gmra.mrb[0].mxu0 %v4429
  %v4795 = vpop.f32.mrb[0].mxu0
  %v4796 = vadd.f32 0.0, %v4795
  %v4797 = vpop.f32.mrb[0].mxu0
  %4798 = vmatprep.mubr.f32.mxu0 0.0
  %4799 = vmatmul.mubr.f32.gmra.mrb[0].mxu0 %v4432
  %v4800 = vpop.f32.mrb[0].mxu0
  %v4801 = vadd.f32 0.0, %v4800
  %v4802 = vpop.f32.mrb[0].mxu0
  %4803 = vmatprep.mubr.f32.mxu0 0.0
  %4804 = vmatmul.mubr.f32.gmra.mrb[0].mxu0 %v4435
  %v4805 = vpop.f32.mrb[0].mxu0
  %v4806 = vadd.f32 0.0, %v4805
  %v4807 = vpop.f32.mrb[0].mxu0
  %4808 = vmatprep.mubr.f32.mxu0 0.0
  %4809 = vmatmul.mubr.f32.gmra.mrb[0].mxu0 %v4438
  %v4810 = vpop.f32.mrb[0].mxu0
  %v4811 = vadd.f32 0.0, %v4810
  %v4812 = vpop.f32.mrb[0].mxu0
  %4813 = vmatprep.mubr.f32.mxu0 0.0
  %4814 = vmatmul.mubr.f32.gmra.mrb[0].mxu0 %v4441
  %v4815 = vpop.f32.mrb[0].mxu0
  %v4816 = vadd.f32 0.0, %v4815
  %v4817 = vpop.f32.mrb[0].mxu0
  %4818 = vmatprep.mubr.f32.mxu0 0.0
  %4819 = vmatmul.mubr.f32.gmra.mrb[0].mxu0 %v4444
  %v4820 = vpop.f32.mrb[0].mxu0
  %v4821 = vadd.f32 0.0, %v4820
  %v4822 = vpop.f32.mrb[0].mxu0
  %4823 = vmatprep.mubr.f32.mxu0 0.0
  %4824 = vmatmul.mubr.f32.gmra.mrb[0].mxu0 %v4447
  %v4825 = vpop.f32.mrb[0].mxu0
  %v4826 = vadd.f32 0.0, %v4825
  %v4827 = vpop.f32.mrb[0].mxu0
  %4828 = vmatprep.mubr.f32.mxu0 0.0
  %4829 = vmatmul.mubr.f32.gmra.mrb[0].mxu0 %v4450
  %v4830 = vpop.f32.mrb[0].mxu0
  %v4831 = vadd.f32 0.0, %v4830
  %v4832 = vpop.f32.mrb[0].mxu0
  %4833 = vmatprep.mubr.f32.mxu0 0.0
  %4834 = vmatmul.mubr.f32.gmra.mrb[0].mxu0 %v4453
  %v4835 = vpop.f32.mrb[0].mxu0
  %v4836 = vadd.f32 0.0, %v4835
  %v4837 = vpop.f32.mrb[0].mxu0
  %4838 = vmatprep.mubr.f32.mxu0 0.0
  %4839 = vmatmul.mubr.f32.gmra.mrb[0].mxu0 %v4456
  %v4840 = vpop.f32.mrb[0].mxu0
  %v4841 = vadd.f32 0.0, %v4840
  %v4842 = vpop.f32.mrb[0].mxu0
  %4843 = vmatprep.mubr.f32.mxu0 0.0
  %4844 = vmatmul.mubr.f32.gmra.mrb[0].mxu0 %v4459
  %v4845 = vpop.f32.mrb[0].mxu0
  %v4846 = vadd.f32 0.0, %v4845
  %v4847 = vpop.f32.mrb[0].mxu0
  %4848 = vmatprep.mubr.f32.mxu0 0.0
  %4849 = vmatmul.mubr.f32.gmra.mrb[0].mxu0 %v4462
  %v4850 = vpop.f32.mrb[0].mxu0
  %v4851 = vadd.f32 0.0, %v4850
  %v4852 = vpop.f32.mrb[0].mxu0
  %4853 = vmatprep.mubr.f32.mxu0 0.0
  %4854 = vmatmul.mubr.f32.gmra.mrb[0].mxu0 %v4465
  %v4855 = vpop.f32.mrb[0].mxu0
  %v4856 = vadd.f32 0.0, %v4855
  %v4857 = vpop.f32.mrb[0].mxu0
  %4858 = vmatprep.mubr.f32.mxu0 0.0
  %4859 = vmatmul.mubr.f32.gmra.mrb[0].mxu0 %v4468
  %v4860 = vpop.f32.mrb[0].mxu0
  %v4861 = vadd.f32 0.0, %v4860
  %v4862 = vpop.f32.mrb[0].mxu0
  %4863 = vmatprep.mubr.f32.mxu0 0.0
  %4864 = vmatmul.mubr.f32.gmra.mrb[0].mxu0 %v4471
  %v4865 = vpop.f32.mrb[0].mxu0
  %v4866 = vadd.f32 0.0, %v4865
  %v4867 = vpop.f32.mrb[0].mxu0
  %4868 = vmatprep.mubr.f32.mxu0 0.0
  %4869 = vmatmul.mubr.f32.gmra.mrb[0].mxu0 %v4474
  %v4870 = vpop.f32.mrb[0].mxu0
  %v4871 = vadd.f32 0.0, %v4870
  %v4872 = vpop.f32.mrb[0].mxu0
  %4873 = vmatprep.mubr.f32.mxu0 0.0
  %4874 = vmatmul.mubr.f32.gmra.mrb[0].mxu0 %v4477
  %v4875 = vpop.f32.mrb[0].mxu0
  %v4876 = vadd.f32 0.0, %v4875
  %v4877 = vpop.f32.mrb[0].mxu0
  %4878 = vmatprep.mubr.f32.mxu0 0.0
  %4879 = vmatmul.mubr.f32.gmra.mrb[0].mxu0 %v4480
  %v4880 = vpop.f32.mrb[0].mxu0
  %v4881 = vadd.f32 0.0, %v4880
  %v4882 = vpop.f32.mrb[0].mxu0
  %4883 = vmatprep.mubr.f32.mxu0 0.0
  %4884 = vmatmul.mubr.f32.gmra.mrb[0].mxu0 %v4483
  %v4885 = vpop.f32.mrb[0].mxu0
  %v4886 = vadd.f32 0.0, %v4885
  %v4887 = vpop.f32.mrb[0].mxu0
  %4888 = vmatprep.mubr.f32.mxu0 0.0
  %4889 = vmatmul.mubr.f32.gmra.mrb[0].mxu0 %v4486
  %v4890 = vpop.f32.mrb[0].mxu0
  %v4891 = vadd.f32 0.0, %v4890
  %v4892 = vpop.f32.mrb[0].mxu0
  %4893 = vmatprep.mubr.f32.mxu0 0.0
  %4894 = vmatmul.mubr.f32.gmra.mrb[0].mxu0 %v4489
  %v4895 = vpop.f32.mrb[0].mxu0
  %v4896 = vadd.f32 0.0, %v4895
  %v4897 = vpop.f32.mrb[0].mxu0
  %4898 = vmatprep.mubr.f32.mxu0 0.0
  %4899 = vmatmul.mubr.f32.gmra.mrb[0].mxu0 %v4492
  %v4900 = vpop.f32.mrb[0].mxu0
  %v4901 = vadd.f32 0.0, %v4900
  %v4902 = vpop.f32.mrb[0].mxu0
  %4903 = vmatprep.mubr.f32.mxu0 0.0
  %4904 = vmatmul.mubr.f32.gmra.mrb[0].mxu0 %v4495
  %v4905 = vpop.f32.mrb[0].mxu0
  %v4906 = vadd.f32 0.0, %v4905
  %v4907 = vpop.f32.mrb[0].mxu0
  %4908 = vmatprep.mubr.f32.mxu0 0.0
  %4909 = vmatmul.mubr.f32.gmra.mrb[0].mxu0 %v4498
  %v4910 = vpop.f32.mrb[0].mxu0
  %v4911 = vadd.f32 0.0, %v4910
  %v4912 = vpop.f32.mrb[0].mxu0
  %4913 = vmatprep.mubr.f32.mxu0 0.0
  %4914 = vmatmul.mubr.f32.gmra.mrb[0].mxu0 %v4501
  %v4915 = vpop.f32.mrb[0].mxu0
  %v4916 = vadd.f32 0.0, %v4915
  %v4917 = vpop.f32.mrb[0].mxu0
  %4918 = vmatprep.mubr.f32.mxu0 0.0
  %4919 = vmatmul.mubr.f32.gmra.mrb[0].mxu0 %v4504
  %v4920 = vpop.f32.mrb[0].mxu0
  %v4921 = vadd.f32 0.0, %v4920
  %v4922 = vpop.f32.mrb[0].mxu0
  %4923 = vmatprep.mubr.f32.mxu0 0.0
  %4924 = vmatmul.mubr.f32.gmra.mrb[0].mxu0 %v4507
  %v4925 = vpop.f32.mrb[0].mxu0
  %v4926 = vadd.f32 0.0, %v4925
  %v4927 = vpop.f32.mrb[0].mxu0
  %4928 = vmatprep.mubr.f32.mxu0 0.0
  %4929 = vmatmul.mubr.f32.gmra.mrb[0].mxu0 %v4510
  %v4930 = vpop.f32.mrb[0].mxu0
  %v4931 = vadd.f32 0.0, %v4930
  %v4932 = vpop.f32.mrb[0].mxu0
  %4933 = vmatprep.mubr.f32.mxu0 0.0
  %4934 = vmatmul.mubr.f32.gmra.mrb[0].mxu0 %v4513
  %v4935 = vpop.f32.mrb[0].mxu0
  %v4936 = vadd.f32 0.0, %v4935
  %v4937 = vpop.f32.mrb[0].mxu0
  %4938 = vmatprep.mubr.f32.mxu0 0.0
  %4939 = vmatmul.mubr.f32.gmra.mrb[0].mxu0 %v4516
  %v4940 = vpop.f32.mrb[0].mxu0
  %v4941 = vadd.f32 0.0, %v4940
  %v4942 = vpop.f32.mrb[0].mxu0
  %4943 = vmatprep.mubr.f32.mxu0 0.0
  %4944 = vmatmul.mubr.f32.gmra.mrb[0].mxu0 %v4519
  %v4945 = vpop.f32.mrb[0].mxu0
  %v4946 = vadd.f32 0.0, %v4945
  %v4947 = vpop.f32.mrb[0].mxu0
  %4948 = vmatprep.mubr.f32.mxu0 0.0
  %4949 = vmatmul.mubr.f32.gmra.mrb[0].mxu0 %v4522
  %v4950 = vpop.f32.mrb[0].mxu0
  %v4951 = vadd.f32 0.0, %v4950
  %v4952 = vpop.f32.mrb[0].mxu0
  %4953 = vmatprep.mubr.f32.mxu0 0.0
  %4954 = vmatmul.mubr.f32.gmra.mrb[0].mxu0 %v4525
  %v4955 = vpop.f32.mrb[0].mxu0
  %v4956 = vadd.f32 0.0, %v4955
  %v4957 = vpop.f32.mrb[0].mxu0
  %4958 = vmatprep.mubr.f32.mxu0 0.0
  %4959 = vmatmul.mubr.f32.gmra.mrb[0].mxu0 %v4528
  %v4960 = vpop.f32.mrb[0].mxu0
  %v4961 = vadd.f32 0.0, %v4960
  %v4962 = vpop.f32.mrb[0].mxu0
  %4963 = vmatprep.mubr.f32.mxu0 0.0
  %4964 = vmatmul.mubr.f32.gmra.mrb[0].mxu0 %v4531
  %v4965 = vpop.f32.mrb[0].mxu0
  %v4966 = vadd.f32 0.0, %v4965
  %v4967 = vpop.f32.mrb[0].mxu0
  %4968 = vmatprep.mubr.f32.mxu0 0.0
  %4969 = vmatmul.mubr.f32.gmra.mrb[0].mxu0 %v4534
  %v4970 = vpop.f32.mrb[0].mxu0
  %v4971 = vadd.f32 0.0, %v4970
  %v4972 = vpop.f32.mrb[0].mxu0
  %4973 = vmatprep.mubr.f32.mxu0 0.0
  %4974 = vmatmul.mubr.f32.gmra.mrb[0].mxu0 %v4537
  %v4975 = vpop.f32.mrb[0].mxu0
  %v4976 = vadd.f32 0.0, %v4975
  %v4977 = vpop.f32.mrb[0].mxu0
  %4978 = vmatprep.mubr.f32.mxu0 0.0
  %4979 = vmatmul.mubr.f32.gmra.mrb[0].mxu0 %v4540
  %v4980 = vpop.f32.mrb[0].mxu0
  %v4981 = vadd.f32 0.0, %v4980
  %v4982 = vpop.f32.mrb[0].mxu0
  %4983 = vmatprep.mubr.f32.mxu0 0.0
  %4984 = vmatmul.mubr.f32.gmra.mrb[0].mxu0 %v4543
  %v4985 = vpop.f32.mrb[0].mxu0
  %v4986 = vadd.f32 0.0, %v4985
  %v4987 = vpop.f32.mrb[0].mxu0
  %4988 = vmatprep.mubr.f32.mxu0 0.0
  %4989 = vmatmul.mubr.f32.gmra.mrb[0].mxu0 %v4546
  %v4990 = vpop.f32.mrb[0].mxu0
  %v4991 = vadd.f32 0.0, %v4990
  %v4992 = vpop.f32.mrb[0].mxu0
  %4993 = vmatprep.mubr.f32.mxu0 0.0
  %4994 = vmatmul.mubr.f32.gmra.mrb[0].mxu0 %v4549
  %v4995 = vpop.f32.mrb[0].mxu0
  %v4996 = vadd.f32 0.0, %v4995
  %v4997 = vpop.f32.mrb[0].mxu0
  %4998 = vmatprep.mubr.f32.mxu0 0.0
  %4999 = vmatmul.mubr.f32.gmra.mrb[0].mxu0 %v4552
  %v5000 = vpop.f32.mrb[0].mxu0
  %v5001 = vadd.f32 0.0, %v5000
  %v5002 = vpop.f32.mrb[0].mxu0
  %5003 = vmatprep.mubr.f32.mxu0 0.0
  %5004 = vmatmul.mubr.f32.gmra.mrb[0].mxu0 %v4555
  %v5005 = vpop.f32.mrb[0].mxu0
  %v5006 = vadd.f32 0.0, %v5005
  %v5007 = vpop.f32.mrb[0].mxu0
  %5008 = vmatprep.mubr.f32.mxu0 0.0
  %5009 = vmatmul.mubr.f32.gmra.mrb[0].mxu0 %v4558
  %v5010 = vpop.f32.mrb[0].mxu0
  %v5011 = vadd.f32 0.0, %v5010
  %v5012 = vpop.f32.mrb[0].mxu0
  %5013 = vmatprep.mubr.f32.mxu0 0.0
  %5014 = vmatmul.mubr.f32.gmra.mrb[0].mxu0 %v4561
  %v5015 = vpop.f32.mrb[0].mxu0
  %v5016 = vadd.f32 0.0, %v5015
  %v5017 = vpop.f32.mrb[0].mxu0
  %5018 = vmatprep.mubr.f32.mxu0 0.0
  %5019 = vmatmul.mubr.f32.gmra.mrb[0].mxu0 %v4564
  %v5020 = vpop.f32.mrb[0].mxu0
  %v5021 = vadd.f32 0.0, %v5020
  %v5022 = vpop.f32.mrb[0].mxu0
  %5023 = vmatprep.mubr.f32.mxu0 0.0
  %5024 = vmatmul.mubr.f32.gmra.mrb[0].mxu0 %v4567
  %v5025 = vpop.f32.mrb[0].mxu0
  %v5026 = vadd.f32 0.0, %v5025
  %v5027 = vpop.f32.mrb[0].mxu0
  %5028 = vmatprep.mubr.f32.mxu0 0.0
  %5029 = vmatmul.mubr.f32.gmra.mrb[0].mxu0 %v4570
  %v5030 = vpop.f32.mrb[0].mxu0
  %v5031 = vadd.f32 0.0, %v5030
  %v5032 = vpop.f32.mrb[0].mxu0
  %5033 = vmatprep.mubr.f32.mxu0 0.0
  %5034 = vmatmul.mubr.f32.gmra.mrb[0].mxu0 %v4573
  %v5035 = vpop.f32.mrb[0].mxu0
  %v5036 = vadd.f32 0.0, %v5035
  %v5037 = vpop.f32.mrb[0].mxu0
  %5038 = vmatprep.mubr.f32.mxu0 0.0
  %5039 = vmatmul.mubr.f32.gmra.mrb[0].mxu0 %v4576
  %v5040 = vpop.f32.mrb[0].mxu0
  %v5041 = vadd.f32 0.0, %v5040
  %v5042 = vpop.f32.mrb[0].mxu0
  %5043 = vmatprep.mubr.f32.mxu0 0.0
  %5044 = vmatmul.mubr.f32.gmra.mrb[0].mxu0 %v4579
  %v5045 = vpop.f32.mrb[0].mxu0
  %v5046 = vadd.f32 0.0, %v5045
  %v5047 = vpop.f32.mrb[0].mxu0
  %5048 = vmatprep.mubr.f32.mxu0 0.0
  %5049 = vmatmul.mubr.f32.gmra.mrb[0].mxu0 %v4582
  %v5050 = vpop.f32.mrb[0].mxu0
  %v5051 = vadd.f32 0.0, %v5050
  %v5052 = vpop.f32.mrb[0].mxu0
  %5053 = vmatprep.mubr.f32.mxu0 0.0
  %5054 = vmatmul.mubr.f32.gmra.mrb[0].mxu0 %v4585
  %v5055 = vpop.f32.mrb[0].mxu0
  %v5056 = vadd.f32 0.0, %v5055
  %v5057 = vpop.f32.mrb[0].mxu0
  %5058 = vdwg.mxu0
  %v5059 = vadd.f32 %v4181, %v4656
  %v5060 = vadd.f32 %v4182, %v4661
  %v5061 = vadd.f32 %v4183, %v4666
  %v5062 = vadd.f32 %v4184, %v4671
  %v5063 = vadd.f32 %v4185, %v4676
  %v5064 = vadd.f32 %v4186, %v4681
  %v5065 = vadd.f32 %v4187, %v4686
  %v5066 = vadd.f32 %v4188, %v4691
  %v5067 = vadd.f32 %v4189, %v4696
  %v5068 = vadd.f32 %v4190, %v4701
  %v5069 = vadd.f32 %v4191, %v4706
  %v5070 = vadd.f32 %v4192, %v4711
  %v5071 = vadd.f32 %v4193, %v4716
  %v5072 = vadd.f32 %v4194, %v4721
  %v5073 = vadd.f32 %v4195, %v4726
  %v5074 = vadd.f32 %v4196, %v4731
  %v5075 = vadd.f32 %v4197, %v4736
  %v5076 = vadd.f32 %v4198, %v4741
  %v5077 = vadd.f32 %v4199, %v4746
  %v5078 = vadd.f32 %v4200, %v4751
  %v5079 = vadd.f32 %v4201, %v4756
  %v5080 = vadd.f32 %v4202, %v4761
  %v5081 = vadd.f32 %v4203, %v4766
  %v5082 = vadd.f32 %v4204, %v4771
  %v5083 = vadd.f32 %v4205, %v4776
  %v5084 = vadd.f32 %v4206, %v4781
  %v5085 = vadd.f32 %v4207, %v4786
  %v5086 = vadd.f32 %v4208, %v4791
  %v5087 = vadd.f32 %v4209, %v4796
  %v5088 = vadd.f32 %v4210, %v4801
  %v5089 = vadd.f32 %v4211, %v4806
  %v5090 = vadd.f32 %v4212, %v4811
  %v5091 = vadd.f32 %v4213, %v4816
  %v5092 = vadd.f32 %v4214, %v4821
  %v5093 = vadd.f32 %v4215, %v4826
  %v5094 = vadd.f32 %v4216, %v4831
  %v5095 = vadd.f32 %v4217, %v4836
  %v5096 = vadd.f32 %v4218, %v4841
  %v5097 = vadd.f32 %v4219, %v4846
  %v5098 = vadd.f32 %v4220, %v4851
  %v5099 = vadd.f32 %v4221, %v4856
  %v5100 = vadd.f32 %v4222, %v4861
  %v5101 = vadd.f32 %v4223, %v4866
  %v5102 = vadd.f32 %v4224, %v4871
  %v5103 = vadd.f32 %v4225, %v4876
  %v5104 = vadd.f32 %v4226, %v4881
  %v5105 = vadd.f32 %v4227, %v4886
  %v5106 = vadd.f32 %v4228, %v4891
  %v5107 = vadd.f32 %v4229, %v4896
  %v5108 = vadd.f32 %v4230, %v4901
  %v5109 = vadd.f32 %v4231, %v4906
  %v5110 = vadd.f32 %v4232, %v4911
  %v5111 = vadd.f32 %v4233, %v4916
  %v5112 = vadd.f32 %v4234, %v4921
  %v5113 = vadd.f32 %v4235, %v4926
  %v5114 = vadd.f32 %v4236, %v4931
  %v5115 = vadd.f32 %v4237, %v4936
  %v5116 = vadd.f32 %v4238, %v4941
  %v5117 = vadd.f32 %v4239, %v4946
  %v5118 = vadd.f32 %v4240, %v4951
  %v5119 = vadd.f32 %v4241, %v4956
  %v5120 = vadd.f32 %v4242, %v4961
  %v5121 = vadd.f32 %v4243, %v4966
  %v5122 = vadd.f32 %v4244, %v4971
  %v5123 = vadd.f32 %v4245, %v4976
  %v5124 = vadd.f32 %v4246, %v4981
  %v5125 = vadd.f32 %v4247, %v4986
  %v5126 = vadd.f32 %v4248, %v4991
  %v5127 = vadd.f32 %v4249, %v4996
  %v5128 = vadd.f32 %v4250, %v5001
  %v5129 = vadd.f32 %v4251, %v5006
  %v5130 = vadd.f32 %v4252, %v5011
  %v5131 = vadd.f32 %v4253, %v5016
  %v5132 = vadd.f32 %v4254, %v5021
  %v5133 = vadd.f32 %v4255, %v5026
  %v5134 = vadd.f32 %v4256, %v5031
  %v5135 = vadd.f32 %v4257, %v5036
  %v5136 = vadd.f32 %v4258, %v5041
  %v5137 = vadd.f32 %v4259, %v5046
  %v5138 = vadd.f32 %v4260, %v5051
  %v5139 = vadd.f32 %v4261, %v5056
  %v5140 = vld [vmem:[%s0 + $0x24] sm:$0xff]
  %v5141 = vld [vmem:[%s0 + $0x2c] sm:$0xff]
  %v5142 = vld [vmem:[%s0 + $0x34] sm:$0xff]
  %v5143 = vld [vmem:[%s0 + $0x3c] sm:$0xff]
  %v5144 = vld [vmem:[%s0 + $0x44] sm:$0xff]
  %v5145 = vld [vmem:[%s0 + $0x4c] sm:$0xff]
  %v5146 = vld [vmem:[%s0 + $0x54] sm:$0xff]
  %v5147 = vld [vmem:[%s0 + $0x5c] sm:$0xff]
  %v5148 = vld [vmem:[%s0 + $0x64] sm:$0xff]
  %v5149 = vld [vmem:[%s0 + $0x6c] sm:$0xff]
  %v5150 = vld [vmem:[%s0 + $0x74] sm:$0xff]
  %v5151 = vld [vmem:[%s0 + $0x7c] sm:$0xff]
  %v5152 = vld [vmem:[%s0 + $0x84] sm:$0xff]
  %v5153 = vld [vmem:[%s0 + $0x8c] sm:$0xff]
  %v5154 = vld [vmem:[%s0 + $0x94] sm:$0xff]
  %v5155 = vld [vmem:[%s0 + $0x9c] sm:$0xff]
  %v5156 = vld [vmem:[%s0 + $0xa4] sm:$0xff]
  %v5157 = vld [vmem:[%s0 + $0xac] sm:$0xff]
  %v5158 = vld [vmem:[%s0 + $0xb4] sm:$0xff]
  %v5159 = vld [vmem:[%s0 + $0xbc] sm:$0xff]
  %v5160 = vld [vmem:[%s0 + $0xc4] sm:$0xff]
  %v5161 = vld [vmem:[%s0 + $0xcc] sm:$0xff]
  %v5162 = vld [vmem:[%s0 + $0xd4] sm:$0xff]
  %v5163 = vld [vmem:[%s0 + $0xdc] sm:$0xff]
  %v5164 = vld [vmem:[%s0 + $0xe4] sm:$0xff]
  %v5165 = vld [vmem:[%s0 + $0xec] sm:$0xff]
  %v5166 = vld [vmem:[%s0 + $0xf4] sm:$0xff]
  %v5167 = vld [vmem:[%s0 + $0xfc] sm:$0xff]
  %v5168 = vld [vmem:[%s0 + $0x104] sm:$0xff]
  %v5169 = vld [vmem:[%s0 + $0x10c] sm:$0xff]
  %v5170 = vld [vmem:[%s0 + $0x114] sm:$0xff]
  %v5171 = vld [vmem:[%s0 + $0x11c] sm:$0xff]
  %v5172 = vld [vmem:[%s0 + $0x124] sm:$0xff]
  %v5173 = vld [vmem:[%s0 + $0x12c] sm:$0xff]
  %v5174 = vld [vmem:[%s0 + $0x134] sm:$0xff]
  %v5175 = vld [vmem:[%s0 + $0x13c] sm:$0xff]
  %v5176 = vld [vmem:[%s0 + $0x144] sm:$0xff]
  %v5177 = vld [vmem:[%s0 + $0x14c] sm:$0xff]
  %v5178 = vld [vmem:[%s0 + $0x154] sm:$0xff]
  %v5179 = vld [vmem:[%s0 + $0x15c] sm:$0xff]
  %v5180 = vld [vmem:[%s0 + $0x164] sm:$0xff]
  %v5181 = vld [vmem:[%s0 + $0x16c] sm:$0xff]
  %v5182 = vld [vmem:[%s0 + $0x174] sm:$0xff]
  %v5183 = vld [vmem:[%s0 + $0x17c] sm:$0xff]
  %v5184 = vld [vmem:[%s0 + $0x184] sm:$0xff]
  %v5185 = vld [vmem:[%s0 + $0x18c] sm:$0xff]
  %v5186 = vld [vmem:[%s0 + $0x194] sm:$0xff]
  %v5187 = vld [vmem:[%s0 + $0x19c] sm:$0xff]
  %v5188 = vld [vmem:[%s0 + $0x1a4] sm:$0xff]
  %v5189 = vld [vmem:[%s0 + $0x1ac] sm:$0xff]
  %v5190 = vld [vmem:[%s0 + $0x1b4] sm:$0xff]
  %v5191 = vld [vmem:[%s0 + $0x1bc] sm:$0xff]
  %v5192 = vld [vmem:[%s0 + $0x1c4] sm:$0xff]
  %v5193 = vld [vmem:[%s0 + $0x1cc] sm:$0xff]
  %v5194 = vld [vmem:[%s0 + $0x1d4] sm:$0xff]
  %v5195 = vld [vmem:[%s0 + $0x1dc] sm:$0xff]
  %v5196 = vld [vmem:[%s0 + $0x1e4] sm:$0xff]
  %v5197 = vld [vmem:[%s0 + $0x1ec] sm:$0xff]
  %v5198 = vld [vmem:[%s0 + $0x1f4] sm:$0xff]
  %v5199 = vld [vmem:[%s0 + $0x1fc] sm:$0xff]
  %v5200 = vld [vmem:[%s0 + $0x204] sm:$0xff]
  %v5201 = vld [vmem:[%s0 + $0x20c] sm:$0xff]
  %v5202 = vld [vmem:[%s0 + $0x214] sm:$0xff]
  %v5203 = vld [vmem:[%s0 + $0x21c] sm:$0xff]
  %v5204 = vld [vmem:[%s0 + $0x224] sm:$0xff]
  %v5205 = vld [vmem:[%s0 + $0x22c] sm:$0xff]
  %v5206 = vld [vmem:[%s0 + $0x234] sm:$0xff]
  %v5207 = vld [vmem:[%s0 + $0x23c] sm:$0xff]
  %v5208 = vld [vmem:[%s0 + $0x244] sm:$0xff]
  %v5209 = vld [vmem:[%s0 + $0x24c] sm:$0xff]
  %v5210 = vld [vmem:[%s0 + $0x254] sm:$0xff]
  %v5211 = vld [vmem:[%s0 + $0x25c] sm:$0xff]
  %v5212 = vld [vmem:[%s0 + $0x264] sm:$0xff]
  %v5213 = vld [vmem:[%s0 + $0x26c] sm:$0xff]
  %v5214 = vld [vmem:[%s0 + $0x274] sm:$0xff]
  %v5215 = vld [vmem:[%s0 + $0x27c] sm:$0xff]
  %v5216 = vld [vmem:[%s0 + $0x284] sm:$0xff]
  %v5217 = vld [vmem:[%s0 + $0x28c] sm:$0xff]
  %v5218 = vld [vmem:[%s0 + $0x294] sm:$0xff]
  %v5219 = vld [vmem:[%s0 + $0x29c] sm:$0xff]
  %v5220 = vld [vmem:[%s0 + $0x2a4] sm:$0xff]
  %v5222 = vsel %vm196, %v5140, 0
  %v5225 = vsel %vm196, %v5141, 0
  %v5228 = vsel %vm196, %v5142, 0
  %v5231 = vsel %vm196, %v5143, 0
  %v5234 = vsel %vm196, %v5144, 0
  %v5237 = vsel %vm196, %v5145, 0
  %v5240 = vsel %vm196, %v5146, 0
  %v5243 = vsel %vm196, %v5147, 0
  %v5246 = vsel %vm196, %v5148, 0
  %v5249 = vsel %vm196, %v5149, 0
  %v5252 = vsel %vm196, %v5150, 0
  %v5255 = vsel %vm196, %v5151, 0
  %v5258 = vsel %vm196, %v5152, 0
  %v5261 = vsel %vm196, %v5153, 0
  %v5264 = vsel %vm196, %v5154, 0
  %v5267 = vsel %vm196, %v5155, 0
  %v5270 = vsel %vm196, %v5156, 0
  %v5273 = vsel %vm196, %v5157, 0
  %v5276 = vsel %vm196, %v5158, 0
  %v5279 = vsel %vm196, %v5159, 0
  %v5282 = vsel %vm196, %v5160, 0
  %v5285 = vsel %vm196, %v5161, 0
  %v5288 = vsel %vm196, %v5162, 0
  %v5291 = vsel %vm196, %v5163, 0
  %v5294 = vsel %vm196, %v5164, 0
  %v5297 = vsel %vm196, %v5165, 0
  %v5300 = vsel %vm196, %v5166, 0
  %v5303 = vsel %vm196, %v5167, 0
  %v5306 = vsel %vm196, %v5168, 0
  %v5309 = vsel %vm196, %v5169, 0
  %v5312 = vsel %vm196, %v5170, 0
  %v5315 = vsel %vm196, %v5171, 0
  %v5318 = vsel %vm196, %v5172, 0
  %v5321 = vsel %vm196, %v5173, 0
  %v5324 = vsel %vm196, %v5174, 0
  %v5327 = vsel %vm196, %v5175, 0
  %v5330 = vsel %vm196, %v5176, 0
  %v5333 = vsel %vm196, %v5177, 0
  %v5336 = vsel %vm196, %v5178, 0
  %v5339 = vsel %vm196, %v5179, 0
  %v5342 = vsel %vm196, %v5180, 0
  %v5345 = vsel %vm196, %v5181, 0
  %v5348 = vsel %vm196, %v5182, 0
  %v5351 = vsel %vm196, %v5183, 0
  %v5354 = vsel %vm196, %v5184, 0
  %v5357 = vsel %vm196, %v5185, 0
  %v5360 = vsel %vm196, %v5186, 0
  %v5363 = vsel %vm196, %v5187, 0
  %v5366 = vsel %vm196, %v5188, 0
  %v5369 = vsel %vm196, %v5189, 0
  %v5372 = vsel %vm196, %v5190, 0
  %v5375 = vsel %vm196, %v5191, 0
  %v5378 = vsel %vm196, %v5192, 0
  %v5381 = vsel %vm196, %v5193, 0
  %v5384 = vsel %vm196, %v5194, 0
  %v5387 = vsel %vm196, %v5195, 0
  %v5390 = vsel %vm196, %v5196, 0
  %v5393 = vsel %vm196, %v5197, 0
  %v5396 = vsel %vm196, %v5198, 0
  %v5399 = vsel %vm196, %v5199, 0
  %v5402 = vsel %vm196, %v5200, 0
  %v5405 = vsel %vm196, %v5201, 0
  %v5408 = vsel %vm196, %v5202, 0
  %v5411 = vsel %vm196, %v5203, 0
  %v5414 = vsel %vm196, %v5204, 0
  %v5417 = vsel %vm196, %v5205, 0
  %v5420 = vsel %vm196, %v5206, 0
  %v5423 = vsel %vm196, %v5207, 0
  %v5426 = vsel %vm196, %v5208, 0
  %v5429 = vsel %vm196, %v5209, 0
  %v5432 = vsel %vm196, %v5210, 0
  %v5435 = vsel %vm196, %v5211, 0
  %v5438 = vsel %vm196, %v5212, 0
  %v5441 = vsel %vm196, %v5213, 0
  %v5444 = vsel %vm196, %v5214, 0
  %v5447 = vsel %vm196, %v5215, 0
  %v5450 = vsel %vm196, %v5216, 0
  %v5453 = vsel %vm196, %v5217, 0
  %v5456 = vsel %vm196, %v5218, 0
  %v5459 = vsel %vm196, %v5219, 0
  %v5462 = vsel %vm196, %v5220, 0
  %v5465 = vsel %vm440, %v30, 0
  %5467 = vmatprep.subr.mxu0 0.0
  %5468 = vmatpush1.msra.mxu0 %v5465
  %5469 = vmatprep.subr.mxu0 0.0
  %5470 = vmatpush1.msra.mxu0 0.0
  %5471 = vmatprep.subr.mxu0 0.0
  %5472 = vmatpush1.msra.mxu0 0.0
  %5473 = vmatprep.subr.mxu0 0.0
  %5474 = vmatpush1.msra.mxu0 0.0
  %5475 = vmatprep.subr.mxu0 0.0
  %5476 = vmatpush1.msra.mxu0 0.0
  %5477 = vmatprep.subr.mxu0 0.0
  %5478 = vmatpush1.msra.mxu0 0.0
  %5479 = vmatprep.subr.mxu0 0.0
  %5480 = vmatpush1.msra.mxu0 0.0
  %5481 = vmatprep.subr.mxu0 0.0
  %5482 = vmatpush1.msra.mxu0 0.0
  %5483 = vmatprep.subr.mxu0 0.0
  %5484 = vmatpush1.msra.mxu0 0.0
  %5485 = vmatprep.subr.mxu0 0.0
  %5486 = vmatpush1.msra.mxu0 0.0
  %5487 = vmatprep.subr.mxu0 0.0
  %5488 = vmatpush1.msra.mxu0 0.0
  %5489 = vmatprep.subr.mxu0 0.0
  %5490 = vmatpush1.msra.mxu0 0.0
  %5491 = vmatprep.subr.mxu0 0.0
  %5492 = vmatpush1.msra.mxu0 0.0
  %5493 = vmatprep.subr.mxu0 0.0
  %5494 = vmatpush1.msra.mxu0 0.0
  %5495 = vmatprep.subr.mxu0 0.0
  %5496 = vmatpush1.msra.mxu0 0.0
  %5497 = vmatprep.subr.mxu0 0.0
  %5498 = vmatpush1.msra.mxu0 0.0
  %5499 = vmatprep.subr.mxu0 0.0
  %5500 = vmatpush1.msra.mxu0 0.0
  %5501 = vmatprep.subr.mxu0 0.0
  %5502 = vmatpush1.msra.mxu0 0.0
  %5503 = vmatprep.subr.mxu0 0.0
  %5504 = vmatpush1.msra.mxu0 0.0
  %5505 = vmatprep.subr.mxu0 0.0
  %5506 = vmatpush1.msra.mxu0 0.0
  %5507 = vmatprep.subr.mxu0 0.0
  %5508 = vmatpush1.msra.mxu0 0.0
  %5509 = vmatprep.subr.mxu0 0.0
  %5510 = vmatpush1.msra.mxu0 0.0
  %5511 = vmatprep.subr.mxu0 0.0
  %5512 = vmatpush1.msra.mxu0 0.0
  %5513 = vmatprep.subr.mxu0 0.0
  %5514 = vmatpush1.msra.mxu0 0.0
  %5515 = vmatprep.subr.mxu0 0.0
  %5516 = vmatpush1.msra.mxu0 0.0
  %5517 = vmatprep.subr.mxu0 0.0
  %5518 = vmatpush1.msra.mxu0 0.0
  %5519 = vmatprep.subr.mxu0 0.0
  %5520 = vmatpush1.msra.mxu0 0.0
  %5521 = vmatprep.subr.mxu0 0.0
  %5522 = vmatpush1.msra.mxu0 0.0
  %5523 = vmatprep.subr.mxu0 0.0
  %5524 = vmatpush1.msra.mxu0 0.0
  %5525 = vmatprep.subr.mxu0 0.0
  %5526 = vmatpush1.msra.mxu0 0.0
  %5527 = vmatprep.subr.mxu0 0.0
  %5528 = vmatpush1.msra.mxu0 0.0
  %5529 = vmatprep.subr.mxu0 0.0
  %5530 = vmatpush1.msra.mxu0 0.0
  %5531 = vmatprep.mubr.f32.mxu0 0.0
  %5532 = vmatmul.mubr.f32.gmra.mrb[0].mxu0 %v5222
  %v5533 = vpop.f32.mrb[0].mxu0
  %v5534 = vadd.f32 0.0, %v5533
  %v5535 = vpop.f32.mrb[0].mxu0
  %5536 = vmatprep.mubr.f32.mxu0 0.0
  %5537 = vmatmul.mubr.f32.gmra.mrb[0].mxu0 %v5225
  %v5538 = vpop.f32.mrb[0].mxu0
  %v5539 = vadd.f32 0.0, %v5538
  %v5540 = vpop.f32.mrb[0].mxu0
  %5541 = vmatprep.mubr.f32.mxu0 0.0
  %5542 = vmatmul.mubr.f32.gmra.mrb[0].mxu0 %v5228
  %v5543 = vpop.f32.mrb[0].mxu0
  %v5544 = vadd.f32 0.0, %v5543
  %v5545 = vpop.f32.mrb[0].mxu0
  %5546 = vmatprep.mubr.f32.mxu0 0.0
  %5547 = vmatmul.mubr.f32.gmra.mrb[0].mxu0 %v5231
  %v5548 = vpop.f32.mrb[0].mxu0
  %v5549 = vadd.f32 0.0, %v5548
  %v5550 = vpop.f32.mrb[0].mxu0
  %5551 = vmatprep.mubr.f32.mxu0 0.0
  %5552 = vmatmul.mubr.f32.gmra.mrb[0].mxu0 %v5234
  %v5553 = vpop.f32.mrb[0].mxu0
  %v5554 = vadd.f32 0.0, %v5553
  %v5555 = vpop.f32.mrb[0].mxu0
  %5556 = vmatprep.mubr.f32.mxu0 0.0
  %5557 = vmatmul.mubr.f32.gmra.mrb[0].mxu0 %v5237
  %v5558 = vpop.f32.mrb[0].mxu0
  %v5559 = vadd.f32 0.0, %v5558
  %v5560 = vpop.f32.mrb[0].mxu0
  %5561 = vmatprep.mubr.f32.mxu0 0.0
  %5562 = vmatmul.mubr.f32.gmra.mrb[0].mxu0 %v5240
  %v5563 = vpop.f32.mrb[0].mxu0
  %v5564 = vadd.f32 0.0, %v5563
  %v5565 = vpop.f32.mrb[0].mxu0
  %5566 = vmatprep.mubr.f32.mxu0 0.0
  %5567 = vmatmul.mubr.f32.gmra.mrb[0].mxu0 %v5243
  %v5568 = vpop.f32.mrb[0].mxu0
  %v5569 = vadd.f32 0.0, %v5568
  %v5570 = vpop.f32.mrb[0].mxu0
  %5571 = vmatprep.mubr.f32.mxu0 0.0
  %5572 = vmatmul.mubr.f32.gmra.mrb[0].mxu0 %v5246
  %v5573 = vpop.f32.mrb[0].mxu0
  %v5574 = vadd.f32 0.0, %v5573
  %v5575 = vpop.f32.mrb[0].mxu0
  %5576 = vmatprep.mubr.f32.mxu0 0.0
  %5577 = vmatmul.mubr.f32.gmra.mrb[0].mxu0 %v5249
  %v5578 = vpop.f32.mrb[0].mxu0
  %v5579 = vadd.f32 0.0, %v5578
  %v5580 = vpop.f32.mrb[0].mxu0
  %5581 = vmatprep.mubr.f32.mxu0 0.0
  %5582 = vmatmul.mubr.f32.gmra.mrb[0].mxu0 %v5252
  %v5583 = vpop.f32.mrb[0].mxu0
  %v5584 = vadd.f32 0.0, %v5583
  %v5585 = vpop.f32.mrb[0].mxu0
  %5586 = vmatprep.mubr.f32.mxu0 0.0
  %5587 = vmatmul.mubr.f32.gmra.mrb[0].mxu0 %v5255
  %v5588 = vpop.f32.mrb[0].mxu0
  %v5589 = vadd.f32 0.0, %v5588
  %v5590 = vpop.f32.mrb[0].mxu0
  %5591 = vmatprep.mubr.f32.mxu0 0.0
  %5592 = vmatmul.mubr.f32.gmra.mrb[0].mxu0 %v5258
  %v5593 = vpop.f32.mrb[0].mxu0
  %v5594 = vadd.f32 0.0, %v5593
  %v5595 = vpop.f32.mrb[0].mxu0
  %5596 = vmatprep.mubr.f32.mxu0 0.0
  %5597 = vmatmul.mubr.f32.gmra.mrb[0].mxu0 %v5261
  %v5598 = vpop.f32.mrb[0].mxu0
  %v5599 = vadd.f32 0.0, %v5598
  %v5600 = vpop.f32.mrb[0].mxu0
  %5601 = vmatprep.mubr.f32.mxu0 0.0
  %5602 = vmatmul.mubr.f32.gmra.mrb[0].mxu0 %v5264
  %v5603 = vpop.f32.mrb[0].mxu0
  %v5604 = vadd.f32 0.0, %v5603
  %v5605 = vpop.f32.mrb[0].mxu0
  %5606 = vmatprep.mubr.f32.mxu0 0.0
  %5607 = vmatmul.mubr.f32.gmra.mrb[0].mxu0 %v5267
  %v5608 = vpop.f32.mrb[0].mxu0
  %v5609 = vadd.f32 0.0, %v5608
  %v5610 = vpop.f32.mrb[0].mxu0
  %5611 = vmatprep.mubr.f32.mxu0 0.0
  %5612 = vmatmul.mubr.f32.gmra.mrb[0].mxu0 %v5270
  %v5613 = vpop.f32.mrb[0].mxu0
  %v5614 = vadd.f32 0.0, %v5613
  %v5615 = vpop.f32.mrb[0].mxu0
  %5616 = vmatprep.mubr.f32.mxu0 0.0
  %5617 = vmatmul.mubr.f32.gmra.mrb[0].mxu0 %v5273
  %v5618 = vpop.f32.mrb[0].mxu0
  %v5619 = vadd.f32 0.0, %v5618
  %v5620 = vpop.f32.mrb[0].mxu0
  %5621 = vmatprep.mubr.f32.mxu0 0.0
  %5622 = vmatmul.mubr.f32.gmra.mrb[0].mxu0 %v5276
  %v5623 = vpop.f32.mrb[0].mxu0
  %v5624 = vadd.f32 0.0, %v5623
  %v5625 = vpop.f32.mrb[0].mxu0
  %5626 = vmatprep.mubr.f32.mxu0 0.0
  %5627 = vmatmul.mubr.f32.gmra.mrb[0].mxu0 %v5279
  %v5628 = vpop.f32.mrb[0].mxu0
  %v5629 = vadd.f32 0.0, %v5628
  %v5630 = vpop.f32.mrb[0].mxu0
  %5631 = vmatprep.mubr.f32.mxu0 0.0
  %5632 = vmatmul.mubr.f32.gmra.mrb[0].mxu0 %v5282
  %v5633 = vpop.f32.mrb[0].mxu0
  %v5634 = vadd.f32 0.0, %v5633
  %v5635 = vpop.f32.mrb[0].mxu0
  %5636 = vmatprep.mubr.f32.mxu0 0.0
  %5637 = vmatmul.mubr.f32.gmra.mrb[0].mxu0 %v5285
  %v5638 = vpop.f32.mrb[0].mxu0
  %v5639 = vadd.f32 0.0, %v5638
  %v5640 = vpop.f32.mrb[0].mxu0
  %5641 = vmatprep.mubr.f32.mxu0 0.0
  %5642 = vmatmul.mubr.f32.gmra.mrb[0].mxu0 %v5288
  %v5643 = vpop.f32.mrb[0].mxu0
  %v5644 = vadd.f32 0.0, %v5643
  %v5645 = vpop.f32.mrb[0].mxu0
  %5646 = vmatprep.mubr.f32.mxu0 0.0
  %5647 = vmatmul.mubr.f32.gmra.mrb[0].mxu0 %v5291
  %v5648 = vpop.f32.mrb[0].mxu0
  %v5649 = vadd.f32 0.0, %v5648
  %v5650 = vpop.f32.mrb[0].mxu0
  %5651 = vmatprep.mubr.f32.mxu0 0.0
  %5652 = vmatmul.mubr.f32.gmra.mrb[0].mxu0 %v5294
  %v5653 = vpop.f32.mrb[0].mxu0
  %v5654 = vadd.f32 0.0, %v5653
  %v5655 = vpop.f32.mrb[0].mxu0
  %5656 = vmatprep.mubr.f32.mxu0 0.0
  %5657 = vmatmul.mubr.f32.gmra.mrb[0].mxu0 %v5297
  %v5658 = vpop.f32.mrb[0].mxu0
  %v5659 = vadd.f32 0.0, %v5658
  %v5660 = vpop.f32.mrb[0].mxu0
  %5661 = vmatprep.mubr.f32.mxu0 0.0
  %5662 = vmatmul.mubr.f32.gmra.mrb[0].mxu0 %v5300
  %v5663 = vpop.f32.mrb[0].mxu0
  %v5664 = vadd.f32 0.0, %v5663
  %v5665 = vpop.f32.mrb[0].mxu0
  %5666 = vmatprep.mubr.f32.mxu0 0.0
  %5667 = vmatmul.mubr.f32.gmra.mrb[0].mxu0 %v5303
  %v5668 = vpop.f32.mrb[0].mxu0
  %v5669 = vadd.f32 0.0, %v5668
  %v5670 = vpop.f32.mrb[0].mxu0
  %5671 = vmatprep.mubr.f32.mxu0 0.0
  %5672 = vmatmul.mubr.f32.gmra.mrb[0].mxu0 %v5306
  %v5673 = vpop.f32.mrb[0].mxu0
  %v5674 = vadd.f32 0.0, %v5673
  %v5675 = vpop.f32.mrb[0].mxu0
  %5676 = vmatprep.mubr.f32.mxu0 0.0
  %5677 = vmatmul.mubr.f32.gmra.mrb[0].mxu0 %v5309
  %v5678 = vpop.f32.mrb[0].mxu0
  %v5679 = vadd.f32 0.0, %v5678
  %v5680 = vpop.f32.mrb[0].mxu0
  %5681 = vmatprep.mubr.f32.mxu0 0.0
  %5682 = vmatmul.mubr.f32.gmra.mrb[0].mxu0 %v5312
  %v5683 = vpop.f32.mrb[0].mxu0
  %v5684 = vadd.f32 0.0, %v5683
  %v5685 = vpop.f32.mrb[0].mxu0
  %5686 = vmatprep.mubr.f32.mxu0 0.0
  %5687 = vmatmul.mubr.f32.gmra.mrb[0].mxu0 %v5315
  %v5688 = vpop.f32.mrb[0].mxu0
  %v5689 = vadd.f32 0.0, %v5688
  %v5690 = vpop.f32.mrb[0].mxu0
  %5691 = vmatprep.mubr.f32.mxu0 0.0
  %5692 = vmatmul.mubr.f32.gmra.mrb[0].mxu0 %v5318
  %v5693 = vpop.f32.mrb[0].mxu0
  %v5694 = vadd.f32 0.0, %v5693
  %v5695 = vpop.f32.mrb[0].mxu0
  %5696 = vmatprep.mubr.f32.mxu0 0.0
  %5697 = vmatmul.mubr.f32.gmra.mrb[0].mxu0 %v5321
  %v5698 = vpop.f32.mrb[0].mxu0
  %v5699 = vadd.f32 0.0, %v5698
  %v5700 = vpop.f32.mrb[0].mxu0
  %5701 = vmatprep.mubr.f32.mxu0 0.0
  %5702 = vmatmul.mubr.f32.gmra.mrb[0].mxu0 %v5324
  %v5703 = vpop.f32.mrb[0].mxu0
  %v5704 = vadd.f32 0.0, %v5703
  %v5705 = vpop.f32.mrb[0].mxu0
  %5706 = vmatprep.mubr.f32.mxu0 0.0
  %5707 = vmatmul.mubr.f32.gmra.mrb[0].mxu0 %v5327
  %v5708 = vpop.f32.mrb[0].mxu0
  %v5709 = vadd.f32 0.0, %v5708
  %v5710 = vpop.f32.mrb[0].mxu0
  %5711 = vmatprep.mubr.f32.mxu0 0.0
  %5712 = vmatmul.mubr.f32.gmra.mrb[0].mxu0 %v5330
  %v5713 = vpop.f32.mrb[0].mxu0
  %v5714 = vadd.f32 0.0, %v5713
  %v5715 = vpop.f32.mrb[0].mxu0
  %5716 = vmatprep.mubr.f32.mxu0 0.0
  %5717 = vmatmul.mubr.f32.gmra.mrb[0].mxu0 %v5333
  %v5718 = vpop.f32.mrb[0].mxu0
  %v5719 = vadd.f32 0.0, %v5718
  %v5720 = vpop.f32.mrb[0].mxu0
  %5721 = vmatprep.mubr.f32.mxu0 0.0
  %5722 = vmatmul.mubr.f32.gmra.mrb[0].mxu0 %v5336
  %v5723 = vpop.f32.mrb[0].mxu0
  %v5724 = vadd.f32 0.0, %v5723
  %v5725 = vpop.f32.mrb[0].mxu0
  %5726 = vmatprep.mubr.f32.mxu0 0.0
  %5727 = vmatmul.mubr.f32.gmra.mrb[0].mxu0 %v5339
  %v5728 = vpop.f32.mrb[0].mxu0
  %v5729 = vadd.f32 0.0, %v5728
  %v5730 = vpop.f32.mrb[0].mxu0
  %5731 = vmatprep.mubr.f32.mxu0 0.0
  %5732 = vmatmul.mubr.f32.gmra.mrb[0].mxu0 %v5342
  %v5733 = vpop.f32.mrb[0].mxu0
  %v5734 = vadd.f32 0.0, %v5733
  %v5735 = vpop.f32.mrb[0].mxu0
  %5736 = vmatprep.mubr.f32.mxu0 0.0
  %5737 = vmatmul.mubr.f32.gmra.mrb[0].mxu0 %v5345
  %v5738 = vpop.f32.mrb[0].mxu0
  %v5739 = vadd.f32 0.0, %v5738
  %v5740 = vpop.f32.mrb[0].mxu0
  %5741 = vmatprep.mubr.f32.mxu0 0.0
  %5742 = vmatmul.mubr.f32.gmra.mrb[0].mxu0 %v5348
  %v5743 = vpop.f32.mrb[0].mxu0
  %v5744 = vadd.f32 0.0, %v5743
  %v5745 = vpop.f32.mrb[0].mxu0
  %5746 = vmatprep.mubr.f32.mxu0 0.0
  %5747 = vmatmul.mubr.f32.gmra.mrb[0].mxu0 %v5351
  %v5748 = vpop.f32.mrb[0].mxu0
  %v5749 = vadd.f32 0.0, %v5748
  %v5750 = vpop.f32.mrb[0].mxu0
  %5751 = vmatprep.mubr.f32.mxu0 0.0
  %5752 = vmatmul.mubr.f32.gmra.mrb[0].mxu0 %v5354
  %v5753 = vpop.f32.mrb[0].mxu0
  %v5754 = vadd.f32 0.0, %v5753
  %v5755 = vpop.f32.mrb[0].mxu0
  %5756 = vmatprep.mubr.f32.mxu0 0.0
  %5757 = vmatmul.mubr.f32.gmra.mrb[0].mxu0 %v5357
  %v5758 = vpop.f32.mrb[0].mxu0
  %v5759 = vadd.f32 0.0, %v5758
  %v5760 = vpop.f32.mrb[0].mxu0
  %5761 = vmatprep.mubr.f32.mxu0 0.0
  %5762 = vmatmul.mubr.f32.gmra.mrb[0].mxu0 %v5360
  %v5763 = vpop.f32.mrb[0].mxu0
  %v5764 = vadd.f32 0.0, %v5763
  %v5765 = vpop.f32.mrb[0].mxu0
  %5766 = vmatprep.mubr.f32.mxu0 0.0
  %5767 = vmatmul.mubr.f32.gmra.mrb[0].mxu0 %v5363
  %v5768 = vpop.f32.mrb[0].mxu0
  %v5769 = vadd.f32 0.0, %v5768
  %v5770 = vpop.f32.mrb[0].mxu0
  %5771 = vmatprep.mubr.f32.mxu0 0.0
  %5772 = vmatmul.mubr.f32.gmra.mrb[0].mxu0 %v5366
  %v5773 = vpop.f32.mrb[0].mxu0
  %v5774 = vadd.f32 0.0, %v5773
  %v5775 = vpop.f32.mrb[0].mxu0
  %5776 = vmatprep.mubr.f32.mxu0 0.0
  %5777 = vmatmul.mubr.f32.gmra.mrb[0].mxu0 %v5369
  %v5778 = vpop.f32.mrb[0].mxu0
  %v5779 = vadd.f32 0.0, %v5778
  %v5780 = vpop.f32.mrb[0].mxu0
  %5781 = vmatprep.mubr.f32.mxu0 0.0
  %5782 = vmatmul.mubr.f32.gmra.mrb[0].mxu0 %v5372
  %v5783 = vpop.f32.mrb[0].mxu0
  %v5784 = vadd.f32 0.0, %v5783
  %v5785 = vpop.f32.mrb[0].mxu0
  %5786 = vmatprep.mubr.f32.mxu0 0.0
  %5787 = vmatmul.mubr.f32.gmra.mrb[0].mxu0 %v5375
  %v5788 = vpop.f32.mrb[0].mxu0
  %v5789 = vadd.f32 0.0, %v5788
  %v5790 = vpop.f32.mrb[0].mxu0
  %5791 = vmatprep.mubr.f32.mxu0 0.0
  %5792 = vmatmul.mubr.f32.gmra.mrb[0].mxu0 %v5378
  %v5793 = vpop.f32.mrb[0].mxu0
  %v5794 = vadd.f32 0.0, %v5793
  %v5795 = vpop.f32.mrb[0].mxu0
  %5796 = vmatprep.mubr.f32.mxu0 0.0
  %5797 = vmatmul.mubr.f32.gmra.mrb[0].mxu0 %v5381
  %v5798 = vpop.f32.mrb[0].mxu0
  %v5799 = vadd.f32 0.0, %v5798
  %v5800 = vpop.f32.mrb[0].mxu0
  %5801 = vmatprep.mubr.f32.mxu0 0.0
  %5802 = vmatmul.mubr.f32.gmra.mrb[0].mxu0 %v5384
  %v5803 = vpop.f32.mrb[0].mxu0
  %v5804 = vadd.f32 0.0, %v5803
  %v5805 = vpop.f32.mrb[0].mxu0
  %5806 = vmatprep.mubr.f32.mxu0 0.0
  %5807 = vmatmul.mubr.f32.gmra.mrb[0].mxu0 %v5387
  %v5808 = vpop.f32.mrb[0].mxu0
  %v5809 = vadd.f32 0.0, %v5808
  %v5810 = vpop.f32.mrb[0].mxu0
  %5811 = vmatprep.mubr.f32.mxu0 0.0
  %5812 = vmatmul.mubr.f32.gmra.mrb[0].mxu0 %v5390
  %v5813 = vpop.f32.mrb[0].mxu0
  %v5814 = vadd.f32 0.0, %v5813
  %v5815 = vpop.f32.mrb[0].mxu0
  %5816 = vmatprep.mubr.f32.mxu0 0.0
  %5817 = vmatmul.mubr.f32.gmra.mrb[0].mxu0 %v5393
  %v5818 = vpop.f32.mrb[0].mxu0
  %v5819 = vadd.f32 0.0, %v5818
  %v5820 = vpop.f32.mrb[0].mxu0
  %5821 = vmatprep.mubr.f32.mxu0 0.0
  %5822 = vmatmul.mubr.f32.gmra.mrb[0].mxu0 %v5396
  %v5823 = vpop.f32.mrb[0].mxu0
  %v5824 = vadd.f32 0.0, %v5823
  %v5825 = vpop.f32.mrb[0].mxu0
  %5826 = vmatprep.mubr.f32.mxu0 0.0
  %5827 = vmatmul.mubr.f32.gmra.mrb[0].mxu0 %v5399
  %v5828 = vpop.f32.mrb[0].mxu0
  %v5829 = vadd.f32 0.0, %v5828
  %v5830 = vpop.f32.mrb[0].mxu0
  %5831 = vmatprep.mubr.f32.mxu0 0.0
  %5832 = vmatmul.mubr.f32.gmra.mrb[0].mxu0 %v5402
  %v5833 = vpop.f32.mrb[0].mxu0
  %v5834 = vadd.f32 0.0, %v5833
  %v5835 = vpop.f32.mrb[0].mxu0
  %5836 = vmatprep.mubr.f32.mxu0 0.0
  %5837 = vmatmul.mubr.f32.gmra.mrb[0].mxu0 %v5405
  %v5838 = vpop.f32.mrb[0].mxu0
  %v5839 = vadd.f32 0.0, %v5838
  %v5840 = vpop.f32.mrb[0].mxu0
  %5841 = vmatprep.mubr.f32.mxu0 0.0
  %5842 = vmatmul.mubr.f32.gmra.mrb[0].mxu0 %v5408
  %v5843 = vpop.f32.mrb[0].mxu0
  %v5844 = vadd.f32 0.0, %v5843
  %v5845 = vpop.f32.mrb[0].mxu0
  %5846 = vmatprep.mubr.f32.mxu0 0.0
  %5847 = vmatmul.mubr.f32.gmra.mrb[0].mxu0 %v5411
  %v5848 = vpop.f32.mrb[0].mxu0
  %v5849 = vadd.f32 0.0, %v5848
  %v5850 = vpop.f32.mrb[0].mxu0
  %5851 = vmatprep.mubr.f32.mxu0 0.0
  %5852 = vmatmul.mubr.f32.gmra.mrb[0].mxu0 %v5414
  %v5853 = vpop.f32.mrb[0].mxu0
  %v5854 = vadd.f32 0.0, %v5853
  %v5855 = vpop.f32.mrb[0].mxu0
  %5856 = vmatprep.mubr.f32.mxu0 0.0
  %5857 = vmatmul.mubr.f32.gmra.mrb[0].mxu0 %v5417
  %v5858 = vpop.f32.mrb[0].mxu0
  %v5859 = vadd.f32 0.0, %v5858
  %v5860 = vpop.f32.mrb[0].mxu0
  %5861 = vmatprep.mubr.f32.mxu0 0.0
  %5862 = vmatmul.mubr.f32.gmra.mrb[0].mxu0 %v5420
  %v5863 = vpop.f32.mrb[0].mxu0
  %v5864 = vadd.f32 0.0, %v5863
  %v5865 = vpop.f32.mrb[0].mxu0
  %5866 = vmatprep.mubr.f32.mxu0 0.0
  %5867 = vmatmul.mubr.f32.gmra.mrb[0].mxu0 %v5423
  %v5868 = vpop.f32.mrb[0].mxu0
  %v5869 = vadd.f32 0.0, %v5868
  %v5870 = vpop.f32.mrb[0].mxu0
  %5871 = vmatprep.mubr.f32.mxu0 0.0
  %5872 = vmatmul.mubr.f32.gmra.mrb[0].mxu0 %v5426
  %v5873 = vpop.f32.mrb[0].mxu0
  %v5874 = vadd.f32 0.0, %v5873
  %v5875 = vpop.f32.mrb[0].mxu0
  %5876 = vmatprep.mubr.f32.mxu0 0.0
  %5877 = vmatmul.mubr.f32.gmra.mrb[0].mxu0 %v5429
  %v5878 = vpop.f32.mrb[0].mxu0
  %v5879 = vadd.f32 0.0, %v5878
  %v5880 = vpop.f32.mrb[0].mxu0
  %5881 = vmatprep.mubr.f32.mxu0 0.0
  %5882 = vmatmul.mubr.f32.gmra.mrb[0].mxu0 %v5432
  %v5883 = vpop.f32.mrb[0].mxu0
  %v5884 = vadd.f32 0.0, %v5883
  %v5885 = vpop.f32.mrb[0].mxu0
  %5886 = vmatprep.mubr.f32.mxu0 0.0
  %5887 = vmatmul.mubr.f32.gmra.mrb[0].mxu0 %v5435
  %v5888 = vpop.f32.mrb[0].mxu0
  %v5889 = vadd.f32 0.0, %v5888
  %v5890 = vpop.f32.mrb[0].mxu0
  %5891 = vmatprep.mubr.f32.mxu0 0.0
  %5892 = vmatmul.mubr.f32.gmra.mrb[0].mxu0 %v5438
  %v5893 = vpop.f32.mrb[0].mxu0
  %v5894 = vadd.f32 0.0, %v5893
  %v5895 = vpop.f32.mrb[0].mxu0
  %5896 = vmatprep.mubr.f32.mxu0 0.0
  %5897 = vmatmul.mubr.f32.gmra.mrb[0].mxu0 %v5441
  %v5898 = vpop.f32.mrb[0].mxu0
  %v5899 = vadd.f32 0.0, %v5898
  %v5900 = vpop.f32.mrb[0].mxu0
  %5901 = vmatprep.mubr.f32.mxu0 0.0
  %5902 = vmatmul.mubr.f32.gmra.mrb[0].mxu0 %v5444
  %v5903 = vpop.f32.mrb[0].mxu0
  %v5904 = vadd.f32 0.0, %v5903
  %v5905 = vpop.f32.mrb[0].mxu0
  %5906 = vmatprep.mubr.f32.mxu0 0.0
  %5907 = vmatmul.mubr.f32.gmra.mrb[0].mxu0 %v5447
  %v5908 = vpop.f32.mrb[0].mxu0
  %v5909 = vadd.f32 0.0, %v5908
  %v5910 = vpop.f32.mrb[0].mxu0
  %5911 = vmatprep.mubr.f32.mxu0 0.0
  %5912 = vmatmul.mubr.f32.gmra.mrb[0].mxu0 %v5450
  %v5913 = vpop.f32.mrb[0].mxu0
  %v5914 = vadd.f32 0.0, %v5913
  %v5915 = vpop.f32.mrb[0].mxu0
  %5916 = vmatprep.mubr.f32.mxu0 0.0
  %5917 = vmatmul.mubr.f32.gmra.mrb[0].mxu0 %v5453
  %v5918 = vpop.f32.mrb[0].mxu0
  %v5919 = vadd.f32 0.0, %v5918
  %v5920 = vpop.f32.mrb[0].mxu0
  %5921 = vmatprep.mubr.f32.mxu0 0.0
  %5922 = vmatmul.mubr.f32.gmra.mrb[0].mxu0 %v5456
  %v5923 = vpop.f32.mrb[0].mxu0
  %v5924 = vadd.f32 0.0, %v5923
  %v5925 = vpop.f32.mrb[0].mxu0
  %5926 = vmatprep.mubr.f32.mxu0 0.0
  %5927 = vmatmul.mubr.f32.gmra.mrb[0].mxu0 %v5459
  %v5928 = vpop.f32.mrb[0].mxu0
  %v5929 = vadd.f32 0.0, %v5928
  %v5930 = vpop.f32.mrb[0].mxu0
  %5931 = vmatprep.mubr.f32.mxu0 0.0
  %5932 = vmatmul.mubr.f32.gmra.mrb[0].mxu0 %v5462
  %v5933 = vpop.f32.mrb[0].mxu0
  %v5934 = vadd.f32 0.0, %v5933
  %v5935 = vpop.f32.mrb[0].mxu0
  %5936 = vdwg.mxu0
  %v5937 = vadd.f32 %v5059, %v5534
  %v5938 = vadd.f32 %v5060, %v5539
  %v5939 = vadd.f32 %v5061, %v5544
  %v5940 = vadd.f32 %v5062, %v5549
  %v5941 = vadd.f32 %v5063, %v5554
  %v5942 = vadd.f32 %v5064, %v5559
  %v5943 = vadd.f32 %v5065, %v5564
  %v5944 = vadd.f32 %v5066, %v5569
  %v5945 = vadd.f32 %v5067, %v5574
  %v5946 = vadd.f32 %v5068, %v5579
  %v5947 = vadd.f32 %v5069, %v5584
  %v5948 = vadd.f32 %v5070, %v5589
  %v5949 = vadd.f32 %v5071, %v5594
  %v5950 = vadd.f32 %v5072, %v5599
  %v5951 = vadd.f32 %v5073, %v5604
  %v5952 = vadd.f32 %v5074, %v5609
  %v5953 = vadd.f32 %v5075, %v5614
  %v5954 = vadd.f32 %v5076, %v5619
  %v5955 = vadd.f32 %v5077, %v5624
  %v5956 = vadd.f32 %v5078, %v5629
  %v5957 = vadd.f32 %v5079, %v5634
  %v5958 = vadd.f32 %v5080, %v5639
  %v5959 = vadd.f32 %v5081, %v5644
  %v5960 = vadd.f32 %v5082, %v5649
  %v5961 = vadd.f32 %v5083, %v5654
  %v5962 = vadd.f32 %v5084, %v5659
  %v5963 = vadd.f32 %v5085, %v5664
  %v5964 = vadd.f32 %v5086, %v5669
  %v5965 = vadd.f32 %v5087, %v5674
  %v5966 = vadd.f32 %v5088, %v5679
  %v5967 = vadd.f32 %v5089, %v5684
  %v5968 = vadd.f32 %v5090, %v5689
  %v5969 = vadd.f32 %v5091, %v5694
  %v5970 = vadd.f32 %v5092, %v5699
  %v5971 = vadd.f32 %v5093, %v5704
  %v5972 = vadd.f32 %v5094, %v5709
  %v5973 = vadd.f32 %v5095, %v5714
  %v5974 = vadd.f32 %v5096, %v5719
  %v5975 = vadd.f32 %v5097, %v5724
  %v5976 = vadd.f32 %v5098, %v5729
  %v5977 = vadd.f32 %v5099, %v5734
  %v5978 = vadd.f32 %v5100, %v5739
  %v5979 = vadd.f32 %v5101, %v5744
  %v5980 = vadd.f32 %v5102, %v5749
  %v5981 = vadd.f32 %v5103, %v5754
  %v5982 = vadd.f32 %v5104, %v5759
  %v5983 = vadd.f32 %v5105, %v5764
  %v5984 = vadd.f32 %v5106, %v5769
  %v5985 = vadd.f32 %v5107, %v5774
  %v5986 = vadd.f32 %v5108, %v5779
  %v5987 = vadd.f32 %v5109, %v5784
  %v5988 = vadd.f32 %v5110, %v5789
  %v5989 = vadd.f32 %v5111, %v5794
  %v5990 = vadd.f32 %v5112, %v5799
  %v5991 = vadd.f32 %v5113, %v5804
  %v5992 = vadd.f32 %v5114, %v5809
  %v5993 = vadd.f32 %v5115, %v5814
  %v5994 = vadd.f32 %v5116, %v5819
  %v5995 = vadd.f32 %v5117, %v5824
  %v5996 = vadd.f32 %v5118, %v5829
  %v5997 = vadd.f32 %v5119, %v5834
  %v5998 = vadd.f32 %v5120, %v5839
  %v5999 = vadd.f32 %v5121, %v5844
  %v6000 = vadd.f32 %v5122, %v5849
  %v6001 = vadd.f32 %v5123, %v5854
  %v6002 = vadd.f32 %v5124, %v5859
  %v6003 = vadd.f32 %v5125, %v5864
  %v6004 = vadd.f32 %v5126, %v5869
  %v6005 = vadd.f32 %v5127, %v5874
  %v6006 = vadd.f32 %v5128, %v5879
  %v6007 = vadd.f32 %v5129, %v5884
  %v6008 = vadd.f32 %v5130, %v5889
  %v6009 = vadd.f32 %v5131, %v5894
  %v6010 = vadd.f32 %v5132, %v5899
  %v6011 = vadd.f32 %v5133, %v5904
  %v6012 = vadd.f32 %v5134, %v5909
  %v6013 = vadd.f32 %v5135, %v5914
  %v6014 = vadd.f32 %v5136, %v5919
  %v6015 = vadd.f32 %v5137, %v5924
  %v6016 = vadd.f32 %v5138, %v5929
  %v6017 = vadd.f32 %v5139, %v5934
  %v6018 = vld [vmem:[%s0 + $0x25] sm:$0xff]
  %v6019 = vld [vmem:[%s0 + $0x2d] sm:$0xff]
  %v6020 = vld [vmem:[%s0 + $0x35] sm:$0xff]
  %v6021 = vld [vmem:[%s0 + $0x3d] sm:$0xff]
  %v6022 = vld [vmem:[%s0 + $0x45] sm:$0xff]
  %v6023 = vld [vmem:[%s0 + $0x4d] sm:$0xff]
  %v6024 = vld [vmem:[%s0 + $0x55] sm:$0xff]
  %v6025 = vld [vmem:[%s0 + $0x5d] sm:$0xff]
  %v6026 = vld [vmem:[%s0 + $0x65] sm:$0xff]
  %v6027 = vld [vmem:[%s0 + $0x6d] sm:$0xff]
  %v6028 = vld [vmem:[%s0 + $0x75] sm:$0xff]
  %v6029 = vld [vmem:[%s0 + $0x7d] sm:$0xff]
  %v6030 = vld [vmem:[%s0 + $0x85] sm:$0xff]
  %v6031 = vld [vmem:[%s0 + $0x8d] sm:$0xff]
  %v6032 = vld [vmem:[%s0 + $0x95] sm:$0xff]
  %v6033 = vld [vmem:[%s0 + $0x9d] sm:$0xff]
  %v6034 = vld [vmem:[%s0 + $0xa5] sm:$0xff]
  %v6035 = vld [vmem:[%s0 + $0xad] sm:$0xff]
  %v6036 = vld [vmem:[%s0 + $0xb5] sm:$0xff]
  %v6037 = vld [vmem:[%s0 + $0xbd] sm:$0xff]
  %v6038 = vld [vmem:[%s0 + $0xc5] sm:$0xff]
  %v6039 = vld [vmem:[%s0 + $0xcd] sm:$0xff]
  %v6040 = vld [vmem:[%s0 + $0xd5] sm:$0xff]
  %v6041 = vld [vmem:[%s0 + $0xdd] sm:$0xff]
  %v6042 = vld [vmem:[%s0 + $0xe5] sm:$0xff]
  %v6043 = vld [vmem:[%s0 + $0xed] sm:$0xff]
  %v6044 = vld [vmem:[%s0 + $0xf5] sm:$0xff]
  %v6045 = vld [vmem:[%s0 + $0xfd] sm:$0xff]
  %v6046 = vld [vmem:[%s0 + $0x105] sm:$0xff]
  %v6047 = vld [vmem:[%s0 + $0x10d] sm:$0xff]
  %v6048 = vld [vmem:[%s0 + $0x115] sm:$0xff]
  %v6049 = vld [vmem:[%s0 + $0x11d] sm:$0xff]
  %v6050 = vld [vmem:[%s0 + $0x125] sm:$0xff]
  %v6051 = vld [vmem:[%s0 + $0x12d] sm:$0xff]
  %v6052 = vld [vmem:[%s0 + $0x135] sm:$0xff]
  %v6053 = vld [vmem:[%s0 + $0x13d] sm:$0xff]
  %v6054 = vld [vmem:[%s0 + $0x145] sm:$0xff]
  %v6055 = vld [vmem:[%s0 + $0x14d] sm:$0xff]
  %v6056 = vld [vmem:[%s0 + $0x155] sm:$0xff]
  %v6057 = vld [vmem:[%s0 + $0x15d] sm:$0xff]
  %v6058 = vld [vmem:[%s0 + $0x165] sm:$0xff]
  %v6059 = vld [vmem:[%s0 + $0x16d] sm:$0xff]
  %v6060 = vld [vmem:[%s0 + $0x175] sm:$0xff]
  %v6061 = vld [vmem:[%s0 + $0x17d] sm:$0xff]
  %v6062 = vld [vmem:[%s0 + $0x185] sm:$0xff]
  %v6063 = vld [vmem:[%s0 + $0x18d] sm:$0xff]
  %v6064 = vld [vmem:[%s0 + $0x195] sm:$0xff]
  %v6065 = vld [vmem:[%s0 + $0x19d] sm:$0xff]
  %v6066 = vld [vmem:[%s0 + $0x1a5] sm:$0xff]
  %v6067 = vld [vmem:[%s0 + $0x1ad] sm:$0xff]
  %v6068 = vld [vmem:[%s0 + $0x1b5] sm:$0xff]
  %v6069 = vld [vmem:[%s0 + $0x1bd] sm:$0xff]
  %v6070 = vld [vmem:[%s0 + $0x1c5] sm:$0xff]
  %v6071 = vld [vmem:[%s0 + $0x1cd] sm:$0xff]
  %v6072 = vld [vmem:[%s0 + $0x1d5] sm:$0xff]
  %v6073 = vld [vmem:[%s0 + $0x1dd] sm:$0xff]
  %v6074 = vld [vmem:[%s0 + $0x1e5] sm:$0xff]
  %v6075 = vld [vmem:[%s0 + $0x1ed] sm:$0xff]
  %v6076 = vld [vmem:[%s0 + $0x1f5] sm:$0xff]
  %v6077 = vld [vmem:[%s0 + $0x1fd] sm:$0xff]
  %v6078 = vld [vmem:[%s0 + $0x205] sm:$0xff]
  %v6079 = vld [vmem:[%s0 + $0x20d] sm:$0xff]
  %v6080 = vld [vmem:[%s0 + $0x215] sm:$0xff]
  %v6081 = vld [vmem:[%s0 + $0x21d] sm:$0xff]
  %v6082 = vld [vmem:[%s0 + $0x225] sm:$0xff]
  %v6083 = vld [vmem:[%s0 + $0x22d] sm:$0xff]
  %v6084 = vld [vmem:[%s0 + $0x235] sm:$0xff]
  %v6085 = vld [vmem:[%s0 + $0x23d] sm:$0xff]
  %v6086 = vld [vmem:[%s0 + $0x245] sm:$0xff]
  %v6087 = vld [vmem:[%s0 + $0x24d] sm:$0xff]
  %v6088 = vld [vmem:[%s0 + $0x255] sm:$0xff]
  %v6089 = vld [vmem:[%s0 + $0x25d] sm:$0xff]
  %v6090 = vld [vmem:[%s0 + $0x265] sm:$0xff]
  %v6091 = vld [vmem:[%s0 + $0x26d] sm:$0xff]
  %v6092 = vld [vmem:[%s0 + $0x275] sm:$0xff]
  %v6093 = vld [vmem:[%s0 + $0x27d] sm:$0xff]
  %v6094 = vld [vmem:[%s0 + $0x285] sm:$0xff]
  %v6095 = vld [vmem:[%s0 + $0x28d] sm:$0xff]
  %v6096 = vld [vmem:[%s0 + $0x295] sm:$0xff]
  %v6097 = vld [vmem:[%s0 + $0x29d] sm:$0xff]
  %v6098 = vld [vmem:[%s0 + $0x2a5] sm:$0xff]
  %v6099 = vrot.slane %v30, 4
  %v6101 = vsel %vm196, %v6018, 0
  %v6104 = vsel %vm196, %v6019, 0
  %v6107 = vsel %vm196, %v6020, 0
  %v6110 = vsel %vm196, %v6021, 0
  %v6113 = vsel %vm196, %v6022, 0
  %v6116 = vsel %vm196, %v6023, 0
  %v6119 = vsel %vm196, %v6024, 0
  %v6122 = vsel %vm196, %v6025, 0
  %v6125 = vsel %vm196, %v6026, 0
  %v6128 = vsel %vm196, %v6027, 0
  %v6131 = vsel %vm196, %v6028, 0
  %v6134 = vsel %vm196, %v6029, 0
  %v6137 = vsel %vm196, %v6030, 0
  %v6140 = vsel %vm196, %v6031, 0
  %v6143 = vsel %vm196, %v6032, 0
  %v6146 = vsel %vm196, %v6033, 0
  %v6149 = vsel %vm196, %v6034, 0
  %v6152 = vsel %vm196, %v6035, 0
  %v6155 = vsel %vm196, %v6036, 0
  %v6158 = vsel %vm196, %v6037, 0
  %v6161 = vsel %vm196, %v6038, 0
  %v6164 = vsel %vm196, %v6039, 0
  %v6167 = vsel %vm196, %v6040, 0
  %v6170 = vsel %vm196, %v6041, 0
  %v6173 = vsel %vm196, %v6042, 0
  %v6176 = vsel %vm196, %v6043, 0
  %v6179 = vsel %vm196, %v6044, 0
  %v6182 = vsel %vm196, %v6045, 0
  %v6185 = vsel %vm196, %v6046, 0
  %v6188 = vsel %vm196, %v6047, 0
  %v6191 = vsel %vm196, %v6048, 0
  %v6194 = vsel %vm196, %v6049, 0
  %v6197 = vsel %vm196, %v6050, 0
  %v6200 = vsel %vm196, %v6051, 0
  %v6203 = vsel %vm196, %v6052, 0
  %v6206 = vsel %vm196, %v6053, 0
  %v6209 = vsel %vm196, %v6054, 0
  %v6212 = vsel %vm196, %v6055, 0
  %v6215 = vsel %vm196, %v6056, 0
  %v6218 = vsel %vm196, %v6057, 0
  %v6221 = vsel %vm196, %v6058, 0
  %v6224 = vsel %vm196, %v6059, 0
  %v6227 = vsel %vm196, %v6060, 0
  %v6230 = vsel %vm196, %v6061, 0
  %v6233 = vsel %vm196, %v6062, 0
  %v6236 = vsel %vm196, %v6063, 0
  %v6239 = vsel %vm196, %v6064, 0
  %v6242 = vsel %vm196, %v6065, 0
  %v6245 = vsel %vm196, %v6066, 0
  %v6248 = vsel %vm196, %v6067, 0
  %v6251 = vsel %vm196, %v6068, 0
  %v6254 = vsel %vm196, %v6069, 0
  %v6257 = vsel %vm196, %v6070, 0
  %v6260 = vsel %vm196, %v6071, 0
  %v6263 = vsel %vm196, %v6072, 0
  %v6266 = vsel %vm196, %v6073, 0
  %v6269 = vsel %vm196, %v6074, 0
  %v6272 = vsel %vm196, %v6075, 0
  %v6275 = vsel %vm196, %v6076, 0
  %v6278 = vsel %vm196, %v6077, 0
  %v6281 = vsel %vm196, %v6078, 0
  %v6284 = vsel %vm196, %v6079, 0
  %v6287 = vsel %vm196, %v6080, 0
  %v6290 = vsel %vm196, %v6081, 0
  %v6293 = vsel %vm196, %v6082, 0
  %v6296 = vsel %vm196, %v6083, 0
  %v6299 = vsel %vm196, %v6084, 0
  %v6302 = vsel %vm196, %v6085, 0
  %v6305 = vsel %vm196, %v6086, 0
  %v6308 = vsel %vm196, %v6087, 0
  %v6311 = vsel %vm196, %v6088, 0
  %v6314 = vsel %vm196, %v6089, 0
  %v6317 = vsel %vm196, %v6090, 0
  %v6320 = vsel %vm196, %v6091, 0
  %v6323 = vsel %vm196, %v6092, 0
  %v6326 = vsel %vm196, %v6093, 0
  %v6329 = vsel %vm196, %v6094, 0
  %v6332 = vsel %vm196, %v6095, 0
  %v6335 = vsel %vm196, %v6096, 0
  %v6338 = vsel %vm196, %v6097, 0
  %v6341 = vsel %vm196, %v6098, 0
  %v6343 = vsel %vm440, %v6099, 0
  %6345 = vmatprep.subr.mxu0 0.0
  %6346 = vmatpush1.msra.mxu0 %v6343
  %6347 = vmatprep.subr.mxu0 0.0
  %6348 = vmatpush1.msra.mxu0 0.0
  %6349 = vmatprep.subr.mxu0 0.0
  %6350 = vmatpush1.msra.mxu0 0.0
  %6351 = vmatprep.subr.mxu0 0.0
  %6352 = vmatpush1.msra.mxu0 0.0
  %6353 = vmatprep.subr.mxu0 0.0
  %6354 = vmatpush1.msra.mxu0 0.0
  %6355 = vmatprep.subr.mxu0 0.0
  %6356 = vmatpush1.msra.mxu0 0.0
  %6357 = vmatprep.subr.mxu0 0.0
  %6358 = vmatpush1.msra.mxu0 0.0
  %6359 = vmatprep.subr.mxu0 0.0
  %6360 = vmatpush1.msra.mxu0 0.0
  %6361 = vmatprep.subr.mxu0 0.0
  %6362 = vmatpush1.msra.mxu0 0.0
  %6363 = vmatprep.subr.mxu0 0.0
  %6364 = vmatpush1.msra.mxu0 0.0
  %6365 = vmatprep.subr.mxu0 0.0
  %6366 = vmatpush1.msra.mxu0 0.0
  %6367 = vmatprep.subr.mxu0 0.0
  %6368 = vmatpush1.msra.mxu0 0.0
  %6369 = vmatprep.subr.mxu0 0.0
  %6370 = vmatpush1.msra.mxu0 0.0
  %6371 = vmatprep.subr.mxu0 0.0
  %6372 = vmatpush1.msra.mxu0 0.0
  %6373 = vmatprep.subr.mxu0 0.0
  %6374 = vmatpush1.msra.mxu0 0.0
  %6375 = vmatprep.subr.mxu0 0.0
  %6376 = vmatpush1.msra.mxu0 0.0
  %6377 = vmatprep.subr.mxu0 0.0
  %6378 = vmatpush1.msra.mxu0 0.0
  %6379 = vmatprep.subr.mxu0 0.0
  %6380 = vmatpush1.msra.mxu0 0.0
  %6381 = vmatprep.subr.mxu0 0.0
  %6382 = vmatpush1.msra.mxu0 0.0
  %6383 = vmatprep.subr.mxu0 0.0
  %6384 = vmatpush1.msra.mxu0 0.0
  %6385 = vmatprep.subr.mxu0 0.0
  %6386 = vmatpush1.msra.mxu0 0.0
  %6387 = vmatprep.subr.mxu0 0.0
  %6388 = vmatpush1.msra.mxu0 0.0
  %6389 = vmatprep.subr.mxu0 0.0
  %6390 = vmatpush1.msra.mxu0 0.0
  %6391 = vmatprep.subr.mxu0 0.0
  %6392 = vmatpush1.msra.mxu0 0.0
  %6393 = vmatprep.subr.mxu0 0.0
  %6394 = vmatpush1.msra.mxu0 0.0
  %6395 = vmatprep.subr.mxu0 0.0
  %6396 = vmatpush1.msra.mxu0 0.0
  %6397 = vmatprep.subr.mxu0 0.0
  %6398 = vmatpush1.msra.mxu0 0.0
  %6399 = vmatprep.subr.mxu0 0.0
  %6400 = vmatpush1.msra.mxu0 0.0
  %6401 = vmatprep.subr.mxu0 0.0
  %6402 = vmatpush1.msra.mxu0 0.0
  %6403 = vmatprep.subr.mxu0 0.0
  %6404 = vmatpush1.msra.mxu0 0.0
  %6405 = vmatprep.subr.mxu0 0.0
  %6406 = vmatpush1.msra.mxu0 0.0
  %6407 = vmatprep.subr.mxu0 0.0
  %6408 = vmatpush1.msra.mxu0 0.0
  %6409 = vmatprep.mubr.f32.mxu0 0.0
  %6410 = vmatmul.mubr.f32.gmra.mrb[0].mxu0 %v6101
  %v6411 = vpop.f32.mrb[0].mxu0
  %v6412 = vadd.f32 0.0, %v6411
  %v6413 = vpop.f32.mrb[0].mxu0
  %6414 = vmatprep.mubr.f32.mxu0 0.0
  %6415 = vmatmul.mubr.f32.gmra.mrb[0].mxu0 %v6104
  %v6416 = vpop.f32.mrb[0].mxu0
  %v6417 = vadd.f32 0.0, %v6416
  %v6418 = vpop.f32.mrb[0].mxu0
  %6419 = vmatprep.mubr.f32.mxu0 0.0
  %6420 = vmatmul.mubr.f32.gmra.mrb[0].mxu0 %v6107
  %v6421 = vpop.f32.mrb[0].mxu0
  %v6422 = vadd.f32 0.0, %v6421
  %v6423 = vpop.f32.mrb[0].mxu0
  %6424 = vmatprep.mubr.f32.mxu0 0.0
  %6425 = vmatmul.mubr.f32.gmra.mrb[0].mxu0 %v6110
  %v6426 = vpop.f32.mrb[0].mxu0
  %v6427 = vadd.f32 0.0, %v6426
  %v6428 = vpop.f32.mrb[0].mxu0
  %6429 = vmatprep.mubr.f32.mxu0 0.0
  %6430 = vmatmul.mubr.f32.gmra.mrb[0].mxu0 %v6113
  %v6431 = vpop.f32.mrb[0].mxu0
  %v6432 = vadd.f32 0.0, %v6431
  %v6433 = vpop.f32.mrb[0].mxu0
  %6434 = vmatprep.mubr.f32.mxu0 0.0
  %6435 = vmatmul.mubr.f32.gmra.mrb[0].mxu0 %v6116
  %v6436 = vpop.f32.mrb[0].mxu0
  %v6437 = vadd.f32 0.0, %v6436
  %v6438 = vpop.f32.mrb[0].mxu0
  %6439 = vmatprep.mubr.f32.mxu0 0.0
  %6440 = vmatmul.mubr.f32.gmra.mrb[0].mxu0 %v6119
  %v6441 = vpop.f32.mrb[0].mxu0
  %v6442 = vadd.f32 0.0, %v6441
  %v6443 = vpop.f32.mrb[0].mxu0
  %6444 = vmatprep.mubr.f32.mxu0 0.0
  %6445 = vmatmul.mubr.f32.gmra.mrb[0].mxu0 %v6122
  %v6446 = vpop.f32.mrb[0].mxu0
  %v6447 = vadd.f32 0.0, %v6446
  %v6448 = vpop.f32.mrb[0].mxu0
  %6449 = vmatprep.mubr.f32.mxu0 0.0
  %6450 = vmatmul.mubr.f32.gmra.mrb[0].mxu0 %v6125
  %v6451 = vpop.f32.mrb[0].mxu0
  %v6452 = vadd.f32 0.0, %v6451
  %v6453 = vpop.f32.mrb[0].mxu0
  %6454 = vmatprep.mubr.f32.mxu0 0.0
  %6455 = vmatmul.mubr.f32.gmra.mrb[0].mxu0 %v6128
  %v6456 = vpop.f32.mrb[0].mxu0
  %v6457 = vadd.f32 0.0, %v6456
  %v6458 = vpop.f32.mrb[0].mxu0
  %6459 = vmatprep.mubr.f32.mxu0 0.0
  %6460 = vmatmul.mubr.f32.gmra.mrb[0].mxu0 %v6131
  %v6461 = vpop.f32.mrb[0].mxu0
  %v6462 = vadd.f32 0.0, %v6461
  %v6463 = vpop.f32.mrb[0].mxu0
  %6464 = vmatprep.mubr.f32.mxu0 0.0
  %6465 = vmatmul.mubr.f32.gmra.mrb[0].mxu0 %v6134
  %v6466 = vpop.f32.mrb[0].mxu0
  %v6467 = vadd.f32 0.0, %v6466
  %v6468 = vpop.f32.mrb[0].mxu0
  %6469 = vmatprep.mubr.f32.mxu0 0.0
  %6470 = vmatmul.mubr.f32.gmra.mrb[0].mxu0 %v6137
  %v6471 = vpop.f32.mrb[0].mxu0
  %v6472 = vadd.f32 0.0, %v6471
  %v6473 = vpop.f32.mrb[0].mxu0
  %6474 = vmatprep.mubr.f32.mxu0 0.0
  %6475 = vmatmul.mubr.f32.gmra.mrb[0].mxu0 %v6140
  %v6476 = vpop.f32.mrb[0].mxu0
  %v6477 = vadd.f32 0.0, %v6476
  %v6478 = vpop.f32.mrb[0].mxu0
  %6479 = vmatprep.mubr.f32.mxu0 0.0
  %6480 = vmatmul.mubr.f32.gmra.mrb[0].mxu0 %v6143
  %v6481 = vpop.f32.mrb[0].mxu0
  %v6482 = vadd.f32 0.0, %v6481
  %v6483 = vpop.f32.mrb[0].mxu0
  %6484 = vmatprep.mubr.f32.mxu0 0.0
  %6485 = vmatmul.mubr.f32.gmra.mrb[0].mxu0 %v6146
  %v6486 = vpop.f32.mrb[0].mxu0
  %v6487 = vadd.f32 0.0, %v6486
  %v6488 = vpop.f32.mrb[0].mxu0
  %6489 = vmatprep.mubr.f32.mxu0 0.0
  %6490 = vmatmul.mubr.f32.gmra.mrb[0].mxu0 %v6149
  %v6491 = vpop.f32.mrb[0].mxu0
  %v6492 = vadd.f32 0.0, %v6491
  %v6493 = vpop.f32.mrb[0].mxu0
  %6494 = vmatprep.mubr.f32.mxu0 0.0
  %6495 = vmatmul.mubr.f32.gmra.mrb[0].mxu0 %v6152
  %v6496 = vpop.f32.mrb[0].mxu0
  %v6497 = vadd.f32 0.0, %v6496
  %v6498 = vpop.f32.mrb[0].mxu0
  %6499 = vmatprep.mubr.f32.mxu0 0.0
  %6500 = vmatmul.mubr.f32.gmra.mrb[0].mxu0 %v6155
  %v6501 = vpop.f32.mrb[0].mxu0
  %v6502 = vadd.f32 0.0, %v6501
  %v6503 = vpop.f32.mrb[0].mxu0
  %6504 = vmatprep.mubr.f32.mxu0 0.0
  %6505 = vmatmul.mubr.f32.gmra.mrb[0].mxu0 %v6158
  %v6506 = vpop.f32.mrb[0].mxu0
  %v6507 = vadd.f32 0.0, %v6506
  %v6508 = vpop.f32.mrb[0].mxu0
  %6509 = vmatprep.mubr.f32.mxu0 0.0
  %6510 = vmatmul.mubr.f32.gmra.mrb[0].mxu0 %v6161
  %v6511 = vpop.f32.mrb[0].mxu0
  %v6512 = vadd.f32 0.0, %v6511
  %v6513 = vpop.f32.mrb[0].mxu0
  %6514 = vmatprep.mubr.f32.mxu0 0.0
  %6515 = vmatmul.mubr.f32.gmra.mrb[0].mxu0 %v6164
  %v6516 = vpop.f32.mrb[0].mxu0
  %v6517 = vadd.f32 0.0, %v6516
  %v6518 = vpop.f32.mrb[0].mxu0
  %6519 = vmatprep.mubr.f32.mxu0 0.0
  %6520 = vmatmul.mubr.f32.gmra.mrb[0].mxu0 %v6167
  %v6521 = vpop.f32.mrb[0].mxu0
  %v6522 = vadd.f32 0.0, %v6521
  %v6523 = vpop.f32.mrb[0].mxu0
  %6524 = vmatprep.mubr.f32.mxu0 0.0
  %6525 = vmatmul.mubr.f32.gmra.mrb[0].mxu0 %v6170
  %v6526 = vpop.f32.mrb[0].mxu0
  %v6527 = vadd.f32 0.0, %v6526
  %v6528 = vpop.f32.mrb[0].mxu0
  %6529 = vmatprep.mubr.f32.mxu0 0.0
  %6530 = vmatmul.mubr.f32.gmra.mrb[0].mxu0 %v6173
  %v6531 = vpop.f32.mrb[0].mxu0
  %v6532 = vadd.f32 0.0, %v6531
  %v6533 = vpop.f32.mrb[0].mxu0
  %6534 = vmatprep.mubr.f32.mxu0 0.0
  %6535 = vmatmul.mubr.f32.gmra.mrb[0].mxu0 %v6176
  %v6536 = vpop.f32.mrb[0].mxu0
  %v6537 = vadd.f32 0.0, %v6536
  %v6538 = vpop.f32.mrb[0].mxu0
  %6539 = vmatprep.mubr.f32.mxu0 0.0
  %6540 = vmatmul.mubr.f32.gmra.mrb[0].mxu0 %v6179
  %v6541 = vpop.f32.mrb[0].mxu0
  %v6542 = vadd.f32 0.0, %v6541
  %v6543 = vpop.f32.mrb[0].mxu0
  %6544 = vmatprep.mubr.f32.mxu0 0.0
  %6545 = vmatmul.mubr.f32.gmra.mrb[0].mxu0 %v6182
  %v6546 = vpop.f32.mrb[0].mxu0
  %v6547 = vadd.f32 0.0, %v6546
  %v6548 = vpop.f32.mrb[0].mxu0
  %6549 = vmatprep.mubr.f32.mxu0 0.0
  %6550 = vmatmul.mubr.f32.gmra.mrb[0].mxu0 %v6185
  %v6551 = vpop.f32.mrb[0].mxu0
  %v6552 = vadd.f32 0.0, %v6551
  %v6553 = vpop.f32.mrb[0].mxu0
  %6554 = vmatprep.mubr.f32.mxu0 0.0
  %6555 = vmatmul.mubr.f32.gmra.mrb[0].mxu0 %v6188
  %v6556 = vpop.f32.mrb[0].mxu0
  %v6557 = vadd.f32 0.0, %v6556
  %v6558 = vpop.f32.mrb[0].mxu0
  %6559 = vmatprep.mubr.f32.mxu0 0.0
  %6560 = vmatmul.mubr.f32.gmra.mrb[0].mxu0 %v6191
  %v6561 = vpop.f32.mrb[0].mxu0
  %v6562 = vadd.f32 0.0, %v6561
  %v6563 = vpop.f32.mrb[0].mxu0
  %6564 = vmatprep.mubr.f32.mxu0 0.0
  %6565 = vmatmul.mubr.f32.gmra.mrb[0].mxu0 %v6194
  %v6566 = vpop.f32.mrb[0].mxu0
  %v6567 = vadd.f32 0.0, %v6566
  %v6568 = vpop.f32.mrb[0].mxu0
  %6569 = vmatprep.mubr.f32.mxu0 0.0
  %6570 = vmatmul.mubr.f32.gmra.mrb[0].mxu0 %v6197
  %v6571 = vpop.f32.mrb[0].mxu0
  %v6572 = vadd.f32 0.0, %v6571
  %v6573 = vpop.f32.mrb[0].mxu0
  %6574 = vmatprep.mubr.f32.mxu0 0.0
  %6575 = vmatmul.mubr.f32.gmra.mrb[0].mxu0 %v6200
  %v6576 = vpop.f32.mrb[0].mxu0
  %v6577 = vadd.f32 0.0, %v6576
  %v6578 = vpop.f32.mrb[0].mxu0
  %6579 = vmatprep.mubr.f32.mxu0 0.0
  %6580 = vmatmul.mubr.f32.gmra.mrb[0].mxu0 %v6203
  %v6581 = vpop.f32.mrb[0].mxu0
  %v6582 = vadd.f32 0.0, %v6581
  %v6583 = vpop.f32.mrb[0].mxu0
  %6584 = vmatprep.mubr.f32.mxu0 0.0
  %6585 = vmatmul.mubr.f32.gmra.mrb[0].mxu0 %v6206
  %v6586 = vpop.f32.mrb[0].mxu0
  %v6587 = vadd.f32 0.0, %v6586
  %v6588 = vpop.f32.mrb[0].mxu0
  %6589 = vmatprep.mubr.f32.mxu0 0.0
  %6590 = vmatmul.mubr.f32.gmra.mrb[0].mxu0 %v6209
  %v6591 = vpop.f32.mrb[0].mxu0
  %v6592 = vadd.f32 0.0, %v6591
  %v6593 = vpop.f32.mrb[0].mxu0
  %6594 = vmatprep.mubr.f32.mxu0 0.0
  %6595 = vmatmul.mubr.f32.gmra.mrb[0].mxu0 %v6212
  %v6596 = vpop.f32.mrb[0].mxu0
  %v6597 = vadd.f32 0.0, %v6596
  %v6598 = vpop.f32.mrb[0].mxu0
  %6599 = vmatprep.mubr.f32.mxu0 0.0
  %6600 = vmatmul.mubr.f32.gmra.mrb[0].mxu0 %v6215
  %v6601 = vpop.f32.mrb[0].mxu0
  %v6602 = vadd.f32 0.0, %v6601
  %v6603 = vpop.f32.mrb[0].mxu0
  %6604 = vmatprep.mubr.f32.mxu0 0.0
  %6605 = vmatmul.mubr.f32.gmra.mrb[0].mxu0 %v6218
  %v6606 = vpop.f32.mrb[0].mxu0
  %v6607 = vadd.f32 0.0, %v6606
  %v6608 = vpop.f32.mrb[0].mxu0
  %6609 = vmatprep.mubr.f32.mxu0 0.0
  %6610 = vmatmul.mubr.f32.gmra.mrb[0].mxu0 %v6221
  %v6611 = vpop.f32.mrb[0].mxu0
  %v6612 = vadd.f32 0.0, %v6611
  %v6613 = vpop.f32.mrb[0].mxu0
  %6614 = vmatprep.mubr.f32.mxu0 0.0
  %6615 = vmatmul.mubr.f32.gmra.mrb[0].mxu0 %v6224
  %v6616 = vpop.f32.mrb[0].mxu0
  %v6617 = vadd.f32 0.0, %v6616
  %v6618 = vpop.f32.mrb[0].mxu0
  %6619 = vmatprep.mubr.f32.mxu0 0.0
  %6620 = vmatmul.mubr.f32.gmra.mrb[0].mxu0 %v6227
  %v6621 = vpop.f32.mrb[0].mxu0
  %v6622 = vadd.f32 0.0, %v6621
  %v6623 = vpop.f32.mrb[0].mxu0
  %6624 = vmatprep.mubr.f32.mxu0 0.0
  %6625 = vmatmul.mubr.f32.gmra.mrb[0].mxu0 %v6230
  %v6626 = vpop.f32.mrb[0].mxu0
  %v6627 = vadd.f32 0.0, %v6626
  %v6628 = vpop.f32.mrb[0].mxu0
  %6629 = vmatprep.mubr.f32.mxu0 0.0
  %6630 = vmatmul.mubr.f32.gmra.mrb[0].mxu0 %v6233
  %v6631 = vpop.f32.mrb[0].mxu0
  %v6632 = vadd.f32 0.0, %v6631
  %v6633 = vpop.f32.mrb[0].mxu0
  %6634 = vmatprep.mubr.f32.mxu0 0.0
  %6635 = vmatmul.mubr.f32.gmra.mrb[0].mxu0 %v6236
  %v6636 = vpop.f32.mrb[0].mxu0
  %v6637 = vadd.f32 0.0, %v6636
  %v6638 = vpop.f32.mrb[0].mxu0
  %6639 = vmatprep.mubr.f32.mxu0 0.0
  %6640 = vmatmul.mubr.f32.gmra.mrb[0].mxu0 %v6239
  %v6641 = vpop.f32.mrb[0].mxu0
  %v6642 = vadd.f32 0.0, %v6641
  %v6643 = vpop.f32.mrb[0].mxu0
  %6644 = vmatprep.mubr.f32.mxu0 0.0
  %6645 = vmatmul.mubr.f32.gmra.mrb[0].mxu0 %v6242
  %v6646 = vpop.f32.mrb[0].mxu0
  %v6647 = vadd.f32 0.0, %v6646
  %v6648 = vpop.f32.mrb[0].mxu0
  %6649 = vmatprep.mubr.f32.mxu0 0.0
  %6650 = vmatmul.mubr.f32.gmra.mrb[0].mxu0 %v6245
  %v6651 = vpop.f32.mrb[0].mxu0
  %v6652 = vadd.f32 0.0, %v6651
  %v6653 = vpop.f32.mrb[0].mxu0
  %6654 = vmatprep.mubr.f32.mxu0 0.0
  %6655 = vmatmul.mubr.f32.gmra.mrb[0].mxu0 %v6248
  %v6656 = vpop.f32.mrb[0].mxu0
  %v6657 = vadd.f32 0.0, %v6656
  %v6658 = vpop.f32.mrb[0].mxu0
  %6659 = vmatprep.mubr.f32.mxu0 0.0
  %6660 = vmatmul.mubr.f32.gmra.mrb[0].mxu0 %v6251
  %v6661 = vpop.f32.mrb[0].mxu0
  %v6662 = vadd.f32 0.0, %v6661
  %v6663 = vpop.f32.mrb[0].mxu0
  %6664 = vmatprep.mubr.f32.mxu0 0.0
  %6665 = vmatmul.mubr.f32.gmra.mrb[0].mxu0 %v6254
  %v6666 = vpop.f32.mrb[0].mxu0
  %v6667 = vadd.f32 0.0, %v6666
  %v6668 = vpop.f32.mrb[0].mxu0
  %6669 = vmatprep.mubr.f32.mxu0 0.0
  %6670 = vmatmul.mubr.f32.gmra.mrb[0].mxu0 %v6257
  %v6671 = vpop.f32.mrb[0].mxu0
  %v6672 = vadd.f32 0.0, %v6671
  %v6673 = vpop.f32.mrb[0].mxu0
  %6674 = vmatprep.mubr.f32.mxu0 0.0
  %6675 = vmatmul.mubr.f32.gmra.mrb[0].mxu0 %v6260
  %v6676 = vpop.f32.mrb[0].mxu0
  %v6677 = vadd.f32 0.0, %v6676
  %v6678 = vpop.f32.mrb[0].mxu0
  %6679 = vmatprep.mubr.f32.mxu0 0.0
  %6680 = vmatmul.mubr.f32.gmra.mrb[0].mxu0 %v6263
  %v6681 = vpop.f32.mrb[0].mxu0
  %v6682 = vadd.f32 0.0, %v6681
  %v6683 = vpop.f32.mrb[0].mxu0
  %6684 = vmatprep.mubr.f32.mxu0 0.0
  %6685 = vmatmul.mubr.f32.gmra.mrb[0].mxu0 %v6266
  %v6686 = vpop.f32.mrb[0].mxu0
  %v6687 = vadd.f32 0.0, %v6686
  %v6688 = vpop.f32.mrb[0].mxu0
  %6689 = vmatprep.mubr.f32.mxu0 0.0
  %6690 = vmatmul.mubr.f32.gmra.mrb[0].mxu0 %v6269
  %v6691 = vpop.f32.mrb[0].mxu0
  %v6692 = vadd.f32 0.0, %v6691
  %v6693 = vpop.f32.mrb[0].mxu0
  %6694 = vmatprep.mubr.f32.mxu0 0.0
  %6695 = vmatmul.mubr.f32.gmra.mrb[0].mxu0 %v6272
  %v6696 = vpop.f32.mrb[0].mxu0
  %v6697 = vadd.f32 0.0, %v6696
  %v6698 = vpop.f32.mrb[0].mxu0
  %6699 = vmatprep.mubr.f32.mxu0 0.0
  %6700 = vmatmul.mubr.f32.gmra.mrb[0].mxu0 %v6275
  %v6701 = vpop.f32.mrb[0].mxu0
  %v6702 = vadd.f32 0.0, %v6701
  %v6703 = vpop.f32.mrb[0].mxu0
  %6704 = vmatprep.mubr.f32.mxu0 0.0
  %6705 = vmatmul.mubr.f32.gmra.mrb[0].mxu0 %v6278
  %v6706 = vpop.f32.mrb[0].mxu0
  %v6707 = vadd.f32 0.0, %v6706
  %v6708 = vpop.f32.mrb[0].mxu0
  %6709 = vmatprep.mubr.f32.mxu0 0.0
  %6710 = vmatmul.mubr.f32.gmra.mrb[0].mxu0 %v6281
  %v6711 = vpop.f32.mrb[0].mxu0
  %v6712 = vadd.f32 0.0, %v6711
  %v6713 = vpop.f32.mrb[0].mxu0
  %6714 = vmatprep.mubr.f32.mxu0 0.0
  %6715 = vmatmul.mubr.f32.gmra.mrb[0].mxu0 %v6284
  %v6716 = vpop.f32.mrb[0].mxu0
  %v6717 = vadd.f32 0.0, %v6716
  %v6718 = vpop.f32.mrb[0].mxu0
  %6719 = vmatprep.mubr.f32.mxu0 0.0
  %6720 = vmatmul.mubr.f32.gmra.mrb[0].mxu0 %v6287
  %v6721 = vpop.f32.mrb[0].mxu0
  %v6722 = vadd.f32 0.0, %v6721
  %v6723 = vpop.f32.mrb[0].mxu0
  %6724 = vmatprep.mubr.f32.mxu0 0.0
  %6725 = vmatmul.mubr.f32.gmra.mrb[0].mxu0 %v6290
  %v6726 = vpop.f32.mrb[0].mxu0
  %v6727 = vadd.f32 0.0, %v6726
  %v6728 = vpop.f32.mrb[0].mxu0
  %6729 = vmatprep.mubr.f32.mxu0 0.0
  %6730 = vmatmul.mubr.f32.gmra.mrb[0].mxu0 %v6293
  %v6731 = vpop.f32.mrb[0].mxu0
  %v6732 = vadd.f32 0.0, %v6731
  %v6733 = vpop.f32.mrb[0].mxu0
  %6734 = vmatprep.mubr.f32.mxu0 0.0
  %6735 = vmatmul.mubr.f32.gmra.mrb[0].mxu0 %v6296
  %v6736 = vpop.f32.mrb[0].mxu0
  %v6737 = vadd.f32 0.0, %v6736
  %v6738 = vpop.f32.mrb[0].mxu0
  %6739 = vmatprep.mubr.f32.mxu0 0.0
  %6740 = vmatmul.mubr.f32.gmra.mrb[0].mxu0 %v6299
  %v6741 = vpop.f32.mrb[0].mxu0
  %v6742 = vadd.f32 0.0, %v6741
  %v6743 = vpop.f32.mrb[0].mxu0
  %6744 = vmatprep.mubr.f32.mxu0 0.0
  %6745 = vmatmul.mubr.f32.gmra.mrb[0].mxu0 %v6302
  %v6746 = vpop.f32.mrb[0].mxu0
  %v6747 = vadd.f32 0.0, %v6746
  %v6748 = vpop.f32.mrb[0].mxu0
  %6749 = vmatprep.mubr.f32.mxu0 0.0
  %6750 = vmatmul.mubr.f32.gmra.mrb[0].mxu0 %v6305
  %v6751 = vpop.f32.mrb[0].mxu0
  %v6752 = vadd.f32 0.0, %v6751
  %v6753 = vpop.f32.mrb[0].mxu0
  %6754 = vmatprep.mubr.f32.mxu0 0.0
  %6755 = vmatmul.mubr.f32.gmra.mrb[0].mxu0 %v6308
  %v6756 = vpop.f32.mrb[0].mxu0
  %v6757 = vadd.f32 0.0, %v6756
  %v6758 = vpop.f32.mrb[0].mxu0
  %6759 = vmatprep.mubr.f32.mxu0 0.0
  %6760 = vmatmul.mubr.f32.gmra.mrb[0].mxu0 %v6311
  %v6761 = vpop.f32.mrb[0].mxu0
  %v6762 = vadd.f32 0.0, %v6761
  %v6763 = vpop.f32.mrb[0].mxu0
  %6764 = vmatprep.mubr.f32.mxu0 0.0
  %6765 = vmatmul.mubr.f32.gmra.mrb[0].mxu0 %v6314
  %v6766 = vpop.f32.mrb[0].mxu0
  %v6767 = vadd.f32 0.0, %v6766
  %v6768 = vpop.f32.mrb[0].mxu0
  %6769 = vmatprep.mubr.f32.mxu0 0.0
  %6770 = vmatmul.mubr.f32.gmra.mrb[0].mxu0 %v6317
  %v6771 = vpop.f32.mrb[0].mxu0
  %v6772 = vadd.f32 0.0, %v6771
  %v6773 = vpop.f32.mrb[0].mxu0
  %6774 = vmatprep.mubr.f32.mxu0 0.0
  %6775 = vmatmul.mubr.f32.gmra.mrb[0].mxu0 %v6320
  %v6776 = vpop.f32.mrb[0].mxu0
  %v6777 = vadd.f32 0.0, %v6776
  %v6778 = vpop.f32.mrb[0].mxu0
  %6779 = vmatprep.mubr.f32.mxu0 0.0
  %6780 = vmatmul.mubr.f32.gmra.mrb[0].mxu0 %v6323
  %v6781 = vpop.f32.mrb[0].mxu0
  %v6782 = vadd.f32 0.0, %v6781
  %v6783 = vpop.f32.mrb[0].mxu0
  %6784 = vmatprep.mubr.f32.mxu0 0.0
  %6785 = vmatmul.mubr.f32.gmra.mrb[0].mxu0 %v6326
  %v6786 = vpop.f32.mrb[0].mxu0
  %v6787 = vadd.f32 0.0, %v6786
  %v6788 = vpop.f32.mrb[0].mxu0
  %6789 = vmatprep.mubr.f32.mxu0 0.0
  %6790 = vmatmul.mubr.f32.gmra.mrb[0].mxu0 %v6329
  %v6791 = vpop.f32.mrb[0].mxu0
  %v6792 = vadd.f32 0.0, %v6791
  %v6793 = vpop.f32.mrb[0].mxu0
  %6794 = vmatprep.mubr.f32.mxu0 0.0
  %6795 = vmatmul.mubr.f32.gmra.mrb[0].mxu0 %v6332
  %v6796 = vpop.f32.mrb[0].mxu0
  %v6797 = vadd.f32 0.0, %v6796
  %v6798 = vpop.f32.mrb[0].mxu0
  %6799 = vmatprep.mubr.f32.mxu0 0.0
  %6800 = vmatmul.mubr.f32.gmra.mrb[0].mxu0 %v6335
  %v6801 = vpop.f32.mrb[0].mxu0
  %v6802 = vadd.f32 0.0, %v6801
  %v6803 = vpop.f32.mrb[0].mxu0
  %6804 = vmatprep.mubr.f32.mxu0 0.0
  %6805 = vmatmul.mubr.f32.gmra.mrb[0].mxu0 %v6338
  %v6806 = vpop.f32.mrb[0].mxu0
  %v6807 = vadd.f32 0.0, %v6806
  %v6808 = vpop.f32.mrb[0].mxu0
  %6809 = vmatprep.mubr.f32.mxu0 0.0
  %6810 = vmatmul.mubr.f32.gmra.mrb[0].mxu0 %v6341
  %v6811 = vpop.f32.mrb[0].mxu0
  %v6812 = vadd.f32 0.0, %v6811
  %v6813 = vpop.f32.mrb[0].mxu0
  %6814 = vdwg.mxu0
  %v6815 = vadd.f32 %v5937, %v6412
  %v6816 = vadd.f32 %v5938, %v6417
  %v6817 = vadd.f32 %v5939, %v6422
  %v6818 = vadd.f32 %v5940, %v6427
  %v6819 = vadd.f32 %v5941, %v6432
  %v6820 = vadd.f32 %v5942, %v6437
  %v6821 = vadd.f32 %v5943, %v6442
  %v6822 = vadd.f32 %v5944, %v6447
  %v6823 = vadd.f32 %v5945, %v6452
  %v6824 = vadd.f32 %v5946, %v6457
  %v6825 = vadd.f32 %v5947, %v6462
  %v6826 = vadd.f32 %v5948, %v6467
  %v6827 = vadd.f32 %v5949, %v6472
  %v6828 = vadd.f32 %v5950, %v6477
  %v6829 = vadd.f32 %v5951, %v6482
  %v6830 = vadd.f32 %v5952, %v6487
  %v6831 = vadd.f32 %v5953, %v6492
  %v6832 = vadd.f32 %v5954, %v6497
  %v6833 = vadd.f32 %v5955, %v6502
  %v6834 = vadd.f32 %v5956, %v6507
  %v6835 = vadd.f32 %v5957, %v6512
  %v6836 = vadd.f32 %v5958, %v6517
  %v6837 = vadd.f32 %v5959, %v6522
  %v6838 = vadd.f32 %v5960, %v6527
  %v6839 = vadd.f32 %v5961, %v6532
  %v6840 = vadd.f32 %v5962, %v6537
  %v6841 = vadd.f32 %v5963, %v6542
  %v6842 = vadd.f32 %v5964, %v6547
  %v6843 = vadd.f32 %v5965, %v6552
  %v6844 = vadd.f32 %v5966, %v6557
  %v6845 = vadd.f32 %v5967, %v6562
  %v6846 = vadd.f32 %v5968, %v6567
  %v6847 = vadd.f32 %v5969, %v6572
  %v6848 = vadd.f32 %v5970, %v6577
  %v6849 = vadd.f32 %v5971, %v6582
  %v6850 = vadd.f32 %v5972, %v6587
  %v6851 = vadd.f32 %v5973, %v6592
  %v6852 = vadd.f32 %v5974, %v6597
  %v6853 = vadd.f32 %v5975, %v6602
  %v6854 = vadd.f32 %v5976, %v6607
  %v6855 = vadd.f32 %v5977, %v6612
  %v6856 = vadd.f32 %v5978, %v6617
  %v6857 = vadd.f32 %v5979, %v6622
  %v6858 = vadd.f32 %v5980, %v6627
  %v6859 = vadd.f32 %v5981, %v6632
  %v6860 = vadd.f32 %v5982, %v6637
  %v6861 = vadd.f32 %v5983, %v6642
  %v6862 = vadd.f32 %v5984, %v6647
  %v6863 = vadd.f32 %v5985, %v6652
  %v6864 = vadd.f32 %v5986, %v6657
  %v6865 = vadd.f32 %v5987, %v6662
  %v6866 = vadd.f32 %v5988, %v6667
  %v6867 = vadd.f32 %v5989, %v6672
  %v6868 = vadd.f32 %v5990, %v6677
  %v6869 = vadd.f32 %v5991, %v6682
  %v6870 = vadd.f32 %v5992, %v6687
  %v6871 = vadd.f32 %v5993, %v6692
  %v6872 = vadd.f32 %v5994, %v6697
  %v6873 = vadd.f32 %v5995, %v6702
  %v6874 = vadd.f32 %v5996, %v6707
  %v6875 = vadd.f32 %v5997, %v6712
  %v6876 = vadd.f32 %v5998, %v6717
  %v6877 = vadd.f32 %v5999, %v6722
  %v6878 = vadd.f32 %v6000, %v6727
  %v6879 = vadd.f32 %v6001, %v6732
  %v6880 = vadd.f32 %v6002, %v6737
  %v6881 = vadd.f32 %v6003, %v6742
  %v6882 = vadd.f32 %v6004, %v6747
  %v6883 = vadd.f32 %v6005, %v6752
  %v6884 = vadd.f32 %v6006, %v6757
  %v6885 = vadd.f32 %v6007, %v6762
  %v6886 = vadd.f32 %v6008, %v6767
  %v6887 = vadd.f32 %v6009, %v6772
  %v6888 = vadd.f32 %v6010, %v6777
  %v6889 = vadd.f32 %v6011, %v6782
  %v6890 = vadd.f32 %v6012, %v6787
  %v6891 = vadd.f32 %v6013, %v6792
  %v6892 = vadd.f32 %v6014, %v6797
  %v6893 = vadd.f32 %v6015, %v6802
  %v6894 = vadd.f32 %v6016, %v6807
  %v6895 = vadd.f32 %v6017, %v6812
  %v6896 = vld [vmem:[%s0 + $0x26] sm:$0xff]
  %v6897 = vld [vmem:[%s0 + $0x2e] sm:$0xff]
  %v6898 = vld [vmem:[%s0 + $0x36] sm:$0xff]
  %v6899 = vld [vmem:[%s0 + $0x3e] sm:$0xff]
  %v6900 = vld [vmem:[%s0 + $0x46] sm:$0xff]
  %v6901 = vld [vmem:[%s0 + $0x4e] sm:$0xff]
  %v6902 = vld [vmem:[%s0 + $0x56] sm:$0xff]
  %v6903 = vld [vmem:[%s0 + $0x5e] sm:$0xff]
  %v6904 = vld [vmem:[%s0 + $0x66] sm:$0xff]
  %v6905 = vld [vmem:[%s0 + $0x6e] sm:$0xff]
  %v6906 = vld [vmem:[%s0 + $0x76] sm:$0xff]
  %v6907 = vld [vmem:[%s0 + $0x7e] sm:$0xff]
  %v6908 = vld [vmem:[%s0 + $0x86] sm:$0xff]
  %v6909 = vld [vmem:[%s0 + $0x8e] sm:$0xff]
  %v6910 = vld [vmem:[%s0 + $0x96] sm:$0xff]
  %v6911 = vld [vmem:[%s0 + $0x9e] sm:$0xff]
  %v6912 = vld [vmem:[%s0 + $0xa6] sm:$0xff]
  %v6913 = vld [vmem:[%s0 + $0xae] sm:$0xff]
  %v6914 = vld [vmem:[%s0 + $0xb6] sm:$0xff]
  %v6915 = vld [vmem:[%s0 + $0xbe] sm:$0xff]
  %v6916 = vld [vmem:[%s0 + $0xc6] sm:$0xff]
  %v6917 = vld [vmem:[%s0 + $0xce] sm:$0xff]
  %v6918 = vld [vmem:[%s0 + $0xd6] sm:$0xff]
  %v6919 = vld [vmem:[%s0 + $0xde] sm:$0xff]
  %v6920 = vld [vmem:[%s0 + $0xe6] sm:$0xff]
  %v6921 = vld [vmem:[%s0 + $0xee] sm:$0xff]
  %v6922 = vld [vmem:[%s0 + $0xf6] sm:$0xff]
  %v6923 = vld [vmem:[%s0 + $0xfe] sm:$0xff]
  %v6924 = vld [vmem:[%s0 + $0x106] sm:$0xff]
  %v6925 = vld [vmem:[%s0 + $0x10e] sm:$0xff]
  %v6926 = vld [vmem:[%s0 + $0x116] sm:$0xff]
  %v6927 = vld [vmem:[%s0 + $0x11e] sm:$0xff]
  %v6928 = vld [vmem:[%s0 + $0x126] sm:$0xff]
  %v6929 = vld [vmem:[%s0 + $0x12e] sm:$0xff]
  %v6930 = vld [vmem:[%s0 + $0x136] sm:$0xff]
  %v6931 = vld [vmem:[%s0 + $0x13e] sm:$0xff]
  %v6932 = vld [vmem:[%s0 + $0x146] sm:$0xff]
  %v6933 = vld [vmem:[%s0 + $0x14e] sm:$0xff]
  %v6934 = vld [vmem:[%s0 + $0x156] sm:$0xff]
  %v6935 = vld [vmem:[%s0 + $0x15e] sm:$0xff]
  %v6936 = vld [vmem:[%s0 + $0x166] sm:$0xff]
  %v6937 = vld [vmem:[%s0 + $0x16e] sm:$0xff]
  %v6938 = vld [vmem:[%s0 + $0x176] sm:$0xff]
  %v6939 = vld [vmem:[%s0 + $0x17e] sm:$0xff]
  %v6940 = vld [vmem:[%s0 + $0x186] sm:$0xff]
  %v6941 = vld [vmem:[%s0 + $0x18e] sm:$0xff]
  %v6942 = vld [vmem:[%s0 + $0x196] sm:$0xff]
  %v6943 = vld [vmem:[%s0 + $0x19e] sm:$0xff]
  %v6944 = vld [vmem:[%s0 + $0x1a6] sm:$0xff]
  %v6945 = vld [vmem:[%s0 + $0x1ae] sm:$0xff]
  %v6946 = vld [vmem:[%s0 + $0x1b6] sm:$0xff]
  %v6947 = vld [vmem:[%s0 + $0x1be] sm:$0xff]
  %v6948 = vld [vmem:[%s0 + $0x1c6] sm:$0xff]
  %v6949 = vld [vmem:[%s0 + $0x1ce] sm:$0xff]
  %v6950 = vld [vmem:[%s0 + $0x1d6] sm:$0xff]
  %v6951 = vld [vmem:[%s0 + $0x1de] sm:$0xff]
  %v6952 = vld [vmem:[%s0 + $0x1e6] sm:$0xff]
  %v6953 = vld [vmem:[%s0 + $0x1ee] sm:$0xff]
  %v6954 = vld [vmem:[%s0 + $0x1f6] sm:$0xff]
  %v6955 = vld [vmem:[%s0 + $0x1fe] sm:$0xff]
  %v6956 = vld [vmem:[%s0 + $0x206] sm:$0xff]
  %v6957 = vld [vmem:[%s0 + $0x20e] sm:$0xff]
  %v6958 = vld [vmem:[%s0 + $0x216] sm:$0xff]
  %v6959 = vld [vmem:[%s0 + $0x21e] sm:$0xff]
  %v6960 = vld [vmem:[%s0 + $0x226] sm:$0xff]
  %v6961 = vld [vmem:[%s0 + $0x22e] sm:$0xff]
  %v6962 = vld [vmem:[%s0 + $0x236] sm:$0xff]
  %v6963 = vld [vmem:[%s0 + $0x23e] sm:$0xff]
  %v6964 = vld [vmem:[%s0 + $0x246] sm:$0xff]
  %v6965 = vld [vmem:[%s0 + $0x24e] sm:$0xff]
  %v6966 = vld [vmem:[%s0 + $0x256] sm:$0xff]
  %v6967 = vld [vmem:[%s0 + $0x25e] sm:$0xff]
  %v6968 = vld [vmem:[%s0 + $0x266] sm:$0xff]
  %v6969 = vld [vmem:[%s0 + $0x26e] sm:$0xff]
  %v6970 = vld [vmem:[%s0 + $0x276] sm:$0xff]
  %v6971 = vld [vmem:[%s0 + $0x27e] sm:$0xff]
  %v6972 = vld [vmem:[%s0 + $0x286] sm:$0xff]
  %v6973 = vld [vmem:[%s0 + $0x28e] sm:$0xff]
  %v6974 = vld [vmem:[%s0 + $0x296] sm:$0xff]
  %v6975 = vld [vmem:[%s0 + $0x29e] sm:$0xff]
  %v6976 = vld [vmem:[%s0 + $0x2a6] sm:$0xff]
  %v6978 = vsel %vm196, %v6896, 0
  %v6981 = vsel %vm196, %v6897, 0
  %v6984 = vsel %vm196, %v6898, 0
  %v6987 = vsel %vm196, %v6899, 0
  %v6990 = vsel %vm196, %v6900, 0
  %v6993 = vsel %vm196, %v6901, 0
  %v6996 = vsel %vm196, %v6902, 0
  %v6999 = vsel %vm196, %v6903, 0
  %v7002 = vsel %vm196, %v6904, 0
  %v7005 = vsel %vm196, %v6905, 0
  %v7008 = vsel %vm196, %v6906, 0
  %v7011 = vsel %vm196, %v6907, 0
  %v7014 = vsel %vm196, %v6908, 0
  %v7017 = vsel %vm196, %v6909, 0
  %v7020 = vsel %vm196, %v6910, 0
  %v7023 = vsel %vm196, %v6911, 0
  %v7026 = vsel %vm196, %v6912, 0
  %v7029 = vsel %vm196, %v6913, 0
  %v7032 = vsel %vm196, %v6914, 0
  %v7035 = vsel %vm196, %v6915, 0
  %v7038 = vsel %vm196, %v6916, 0
  %v7041 = vsel %vm196, %v6917, 0
  %v7044 = vsel %vm196, %v6918, 0
  %v7047 = vsel %vm196, %v6919, 0
  %v7050 = vsel %vm196, %v6920, 0
  %v7053 = vsel %vm196, %v6921, 0
  %v7056 = vsel %vm196, %v6922, 0
  %v7059 = vsel %vm196, %v6923, 0
  %v7062 = vsel %vm196, %v6924, 0
  %v7065 = vsel %vm196, %v6925, 0
  %v7068 = vsel %vm196, %v6926, 0
  %v7071 = vsel %vm196, %v6927, 0
  %v7074 = vsel %vm196, %v6928, 0
  %v7077 = vsel %vm196, %v6929, 0
  %v7080 = vsel %vm196, %v6930, 0
  %v7083 = vsel %vm196, %v6931, 0
  %v7086 = vsel %vm196, %v6932, 0
  %v7089 = vsel %vm196, %v6933, 0
  %v7092 = vsel %vm196, %v6934, 0
  %v7095 = vsel %vm196, %v6935, 0
  %v7098 = vsel %vm196, %v6936, 0
  %v7101 = vsel %vm196, %v6937, 0
  %v7104 = vsel %vm196, %v6938, 0
  %v7107 = vsel %vm196, %v6939, 0
  %v7110 = vsel %vm196, %v6940, 0
  %v7113 = vsel %vm196, %v6941, 0
  %v7116 = vsel %vm196, %v6942, 0
  %v7119 = vsel %vm196, %v6943, 0
  %v7122 = vsel %vm196, %v6944, 0
  %v7125 = vsel %vm196, %v6945, 0
  %v7128 = vsel %vm196, %v6946, 0
  %v7131 = vsel %vm196, %v6947, 0
  %v7134 = vsel %vm196, %v6948, 0
  %v7137 = vsel %vm196, %v6949, 0
  %v7140 = vsel %vm196, %v6950, 0
  %v7143 = vsel %vm196, %v6951, 0
  %v7146 = vsel %vm196, %v6952, 0
  %v7149 = vsel %vm196, %v6953, 0
  %v7152 = vsel %vm196, %v6954, 0
  %v7155 = vsel %vm196, %v6955, 0
  %v7158 = vsel %vm196, %v6956, 0
  %v7161 = vsel %vm196, %v6957, 0
  %v7164 = vsel %vm196, %v6958, 0
  %v7167 = vsel %vm196, %v6959, 0
  %v7170 = vsel %vm196, %v6960, 0
  %v7173 = vsel %vm196, %v6961, 0
  %v7176 = vsel %vm196, %v6962, 0
  %v7179 = vsel %vm196, %v6963, 0
  %v7182 = vsel %vm196, %v6964, 0
  %v7185 = vsel %vm196, %v6965, 0
  %v7188 = vsel %vm196, %v6966, 0
  %v7191 = vsel %vm196, %v6967, 0
  %v7194 = vsel %vm196, %v6968, 0
  %v7197 = vsel %vm196, %v6969, 0
  %v7200 = vsel %vm196, %v6970, 0
  %v7203 = vsel %vm196, %v6971, 0
  %v7206 = vsel %vm196, %v6972, 0
  %v7209 = vsel %vm196, %v6973, 0
  %v7212 = vsel %vm196, %v6974, 0
  %v7215 = vsel %vm196, %v6975, 0
  %v7218 = vsel %vm196, %v6976, 0
  %v7221 = vsel %vm440, %v31, 0
  %7223 = vmatprep.subr.mxu0 0.0
  %7224 = vmatpush1.msra.mxu0 %v7221
  %7225 = vmatprep.subr.mxu0 0.0
  %7226 = vmatpush1.msra.mxu0 0.0
  %7227 = vmatprep.subr.mxu0 0.0
  %7228 = vmatpush1.msra.mxu0 0.0
  %7229 = vmatprep.subr.mxu0 0.0
  %7230 = vmatpush1.msra.mxu0 0.0
  %7231 = vmatprep.subr.mxu0 0.0
  %7232 = vmatpush1.msra.mxu0 0.0
  %7233 = vmatprep.subr.mxu0 0.0
  %7234 = vmatpush1.msra.mxu0 0.0
  %7235 = vmatprep.subr.mxu0 0.0
  %7236 = vmatpush1.msra.mxu0 0.0
  %7237 = vmatprep.subr.mxu0 0.0
  %7238 = vmatpush1.msra.mxu0 0.0
  %7239 = vmatprep.subr.mxu0 0.0
  %7240 = vmatpush1.msra.mxu0 0.0
  %7241 = vmatprep.subr.mxu0 0.0
  %7242 = vmatpush1.msra.mxu0 0.0
  %7243 = vmatprep.subr.mxu0 0.0
  %7244 = vmatpush1.msra.mxu0 0.0
  %7245 = vmatprep.subr.mxu0 0.0
  %7246 = vmatpush1.msra.mxu0 0.0
  %7247 = vmatprep.subr.mxu0 0.0
  %7248 = vmatpush1.msra.mxu0 0.0
  %7249 = vmatprep.subr.mxu0 0.0
  %7250 = vmatpush1.msra.mxu0 0.0
  %7251 = vmatprep.subr.mxu0 0.0
  %7252 = vmatpush1.msra.mxu0 0.0
  %7253 = vmatprep.subr.mxu0 0.0
  %7254 = vmatpush1.msra.mxu0 0.0
  %7255 = vmatprep.subr.mxu0 0.0
  %7256 = vmatpush1.msra.mxu0 0.0
  %7257 = vmatprep.subr.mxu0 0.0
  %7258 = vmatpush1.msra.mxu0 0.0
  %7259 = vmatprep.subr.mxu0 0.0
  %7260 = vmatpush1.msra.mxu0 0.0
  %7261 = vmatprep.subr.mxu0 0.0
  %7262 = vmatpush1.msra.mxu0 0.0
  %7263 = vmatprep.subr.mxu0 0.0
  %7264 = vmatpush1.msra.mxu0 0.0
  %7265 = vmatprep.subr.mxu0 0.0
  %7266 = vmatpush1.msra.mxu0 0.0
  %7267 = vmatprep.subr.mxu0 0.0
  %7268 = vmatpush1.msra.mxu0 0.0
  %7269 = vmatprep.subr.mxu0 0.0
  %7270 = vmatpush1.msra.mxu0 0.0
  %7271 = vmatprep.subr.mxu0 0.0
  %7272 = vmatpush1.msra.mxu0 0.0
  %7273 = vmatprep.subr.mxu0 0.0
  %7274 = vmatpush1.msra.mxu0 0.0
  %7275 = vmatprep.subr.mxu0 0.0
  %7276 = vmatpush1.msra.mxu0 0.0
  %7277 = vmatprep.subr.mxu0 0.0
  %7278 = vmatpush1.msra.mxu0 0.0
  %7279 = vmatprep.subr.mxu0 0.0
  %7280 = vmatpush1.msra.mxu0 0.0
  %7281 = vmatprep.subr.mxu0 0.0
  %7282 = vmatpush1.msra.mxu0 0.0
  %7283 = vmatprep.subr.mxu0 0.0
  %7284 = vmatpush1.msra.mxu0 0.0
  %7285 = vmatprep.subr.mxu0 0.0
  %7286 = vmatpush1.msra.mxu0 0.0
  %7287 = vmatprep.mubr.f32.mxu0 0.0
  %7288 = vmatmul.mubr.f32.gmra.mrb[0].mxu0 %v6978
  %v7289 = vpop.f32.mrb[0].mxu0
  %v7290 = vadd.f32 0.0, %v7289
  %v7291 = vpop.f32.mrb[0].mxu0
  %7292 = vmatprep.mubr.f32.mxu0 0.0
  %7293 = vmatmul.mubr.f32.gmra.mrb[0].mxu0 %v6981
  %v7294 = vpop.f32.mrb[0].mxu0
  %v7295 = vadd.f32 0.0, %v7294
  %v7296 = vpop.f32.mrb[0].mxu0
  %7297 = vmatprep.mubr.f32.mxu0 0.0
  %7298 = vmatmul.mubr.f32.gmra.mrb[0].mxu0 %v6984
  %v7299 = vpop.f32.mrb[0].mxu0
  %v7300 = vadd.f32 0.0, %v7299
  %v7301 = vpop.f32.mrb[0].mxu0
  %7302 = vmatprep.mubr.f32.mxu0 0.0
  %7303 = vmatmul.mubr.f32.gmra.mrb[0].mxu0 %v6987
  %v7304 = vpop.f32.mrb[0].mxu0
  %v7305 = vadd.f32 0.0, %v7304
  %v7306 = vpop.f32.mrb[0].mxu0
  %7307 = vmatprep.mubr.f32.mxu0 0.0
  %7308 = vmatmul.mubr.f32.gmra.mrb[0].mxu0 %v6990
  %v7309 = vpop.f32.mrb[0].mxu0
  %v7310 = vadd.f32 0.0, %v7309
  %v7311 = vpop.f32.mrb[0].mxu0
  %7312 = vmatprep.mubr.f32.mxu0 0.0
  %7313 = vmatmul.mubr.f32.gmra.mrb[0].mxu0 %v6993
  %v7314 = vpop.f32.mrb[0].mxu0
  %v7315 = vadd.f32 0.0, %v7314
  %v7316 = vpop.f32.mrb[0].mxu0
  %7317 = vmatprep.mubr.f32.mxu0 0.0
  %7318 = vmatmul.mubr.f32.gmra.mrb[0].mxu0 %v6996
  %v7319 = vpop.f32.mrb[0].mxu0
  %v7320 = vadd.f32 0.0, %v7319
  %v7321 = vpop.f32.mrb[0].mxu0
  %7322 = vmatprep.mubr.f32.mxu0 0.0
  %7323 = vmatmul.mubr.f32.gmra.mrb[0].mxu0 %v6999
  %v7324 = vpop.f32.mrb[0].mxu0
  %v7325 = vadd.f32 0.0, %v7324
  %v7326 = vpop.f32.mrb[0].mxu0
  %7327 = vmatprep.mubr.f32.mxu0 0.0
  %7328 = vmatmul.mubr.f32.gmra.mrb[0].mxu0 %v7002
  %v7329 = vpop.f32.mrb[0].mxu0
  %v7330 = vadd.f32 0.0, %v7329
  %v7331 = vpop.f32.mrb[0].mxu0
  %7332 = vmatprep.mubr.f32.mxu0 0.0
  %7333 = vmatmul.mubr.f32.gmra.mrb[0].mxu0 %v7005
  %v7334 = vpop.f32.mrb[0].mxu0
  %v7335 = vadd.f32 0.0, %v7334
  %v7336 = vpop.f32.mrb[0].mxu0
  %7337 = vmatprep.mubr.f32.mxu0 0.0
  %7338 = vmatmul.mubr.f32.gmra.mrb[0].mxu0 %v7008
  %v7339 = vpop.f32.mrb[0].mxu0
  %v7340 = vadd.f32 0.0, %v7339
  %v7341 = vpop.f32.mrb[0].mxu0
  %7342 = vmatprep.mubr.f32.mxu0 0.0
  %7343 = vmatmul.mubr.f32.gmra.mrb[0].mxu0 %v7011
  %v7344 = vpop.f32.mrb[0].mxu0
  %v7345 = vadd.f32 0.0, %v7344
  %v7346 = vpop.f32.mrb[0].mxu0
  %7347 = vmatprep.mubr.f32.mxu0 0.0
  %7348 = vmatmul.mubr.f32.gmra.mrb[0].mxu0 %v7014
  %v7349 = vpop.f32.mrb[0].mxu0
  %v7350 = vadd.f32 0.0, %v7349
  %v7351 = vpop.f32.mrb[0].mxu0
  %7352 = vmatprep.mubr.f32.mxu0 0.0
  %7353 = vmatmul.mubr.f32.gmra.mrb[0].mxu0 %v7017
  %v7354 = vpop.f32.mrb[0].mxu0
  %v7355 = vadd.f32 0.0, %v7354
  %v7356 = vpop.f32.mrb[0].mxu0
  %7357 = vmatprep.mubr.f32.mxu0 0.0
  %7358 = vmatmul.mubr.f32.gmra.mrb[0].mxu0 %v7020
  %v7359 = vpop.f32.mrb[0].mxu0
  %v7360 = vadd.f32 0.0, %v7359
  %v7361 = vpop.f32.mrb[0].mxu0
  %7362 = vmatprep.mubr.f32.mxu0 0.0
  %7363 = vmatmul.mubr.f32.gmra.mrb[0].mxu0 %v7023
  %v7364 = vpop.f32.mrb[0].mxu0
  %v7365 = vadd.f32 0.0, %v7364
  %v7366 = vpop.f32.mrb[0].mxu0
  %7367 = vmatprep.mubr.f32.mxu0 0.0
  %7368 = vmatmul.mubr.f32.gmra.mrb[0].mxu0 %v7026
  %v7369 = vpop.f32.mrb[0].mxu0
  %v7370 = vadd.f32 0.0, %v7369
  %v7371 = vpop.f32.mrb[0].mxu0
  %7372 = vmatprep.mubr.f32.mxu0 0.0
  %7373 = vmatmul.mubr.f32.gmra.mrb[0].mxu0 %v7029
  %v7374 = vpop.f32.mrb[0].mxu0
  %v7375 = vadd.f32 0.0, %v7374
  %v7376 = vpop.f32.mrb[0].mxu0
  %7377 = vmatprep.mubr.f32.mxu0 0.0
  %7378 = vmatmul.mubr.f32.gmra.mrb[0].mxu0 %v7032
  %v7379 = vpop.f32.mrb[0].mxu0
  %v7380 = vadd.f32 0.0, %v7379
  %v7381 = vpop.f32.mrb[0].mxu0
  %7382 = vmatprep.mubr.f32.mxu0 0.0
  %7383 = vmatmul.mubr.f32.gmra.mrb[0].mxu0 %v7035
  %v7384 = vpop.f32.mrb[0].mxu0
  %v7385 = vadd.f32 0.0, %v7384
  %v7386 = vpop.f32.mrb[0].mxu0
  %7387 = vmatprep.mubr.f32.mxu0 0.0
  %7388 = vmatmul.mubr.f32.gmra.mrb[0].mxu0 %v7038
  %v7389 = vpop.f32.mrb[0].mxu0
  %v7390 = vadd.f32 0.0, %v7389
  %v7391 = vpop.f32.mrb[0].mxu0
  %7392 = vmatprep.mubr.f32.mxu0 0.0
  %7393 = vmatmul.mubr.f32.gmra.mrb[0].mxu0 %v7041
  %v7394 = vpop.f32.mrb[0].mxu0
  %v7395 = vadd.f32 0.0, %v7394
  %v7396 = vpop.f32.mrb[0].mxu0
  %7397 = vmatprep.mubr.f32.mxu0 0.0
  %7398 = vmatmul.mubr.f32.gmra.mrb[0].mxu0 %v7044
  %v7399 = vpop.f32.mrb[0].mxu0
  %v7400 = vadd.f32 0.0, %v7399
  %v7401 = vpop.f32.mrb[0].mxu0
  %7402 = vmatprep.mubr.f32.mxu0 0.0
  %7403 = vmatmul.mubr.f32.gmra.mrb[0].mxu0 %v7047
  %v7404 = vpop.f32.mrb[0].mxu0
  %v7405 = vadd.f32 0.0, %v7404
  %v7406 = vpop.f32.mrb[0].mxu0
  %7407 = vmatprep.mubr.f32.mxu0 0.0
  %7408 = vmatmul.mubr.f32.gmra.mrb[0].mxu0 %v7050
  %v7409 = vpop.f32.mrb[0].mxu0
  %v7410 = vadd.f32 0.0, %v7409
  %v7411 = vpop.f32.mrb[0].mxu0
  %7412 = vmatprep.mubr.f32.mxu0 0.0
  %7413 = vmatmul.mubr.f32.gmra.mrb[0].mxu0 %v7053
  %v7414 = vpop.f32.mrb[0].mxu0
  %v7415 = vadd.f32 0.0, %v7414
  %v7416 = vpop.f32.mrb[0].mxu0
  %7417 = vmatprep.mubr.f32.mxu0 0.0
  %7418 = vmatmul.mubr.f32.gmra.mrb[0].mxu0 %v7056
  %v7419 = vpop.f32.mrb[0].mxu0
  %v7420 = vadd.f32 0.0, %v7419
  %v7421 = vpop.f32.mrb[0].mxu0
  %7422 = vmatprep.mubr.f32.mxu0 0.0
  %7423 = vmatmul.mubr.f32.gmra.mrb[0].mxu0 %v7059
  %v7424 = vpop.f32.mrb[0].mxu0
  %v7425 = vadd.f32 0.0, %v7424
  %v7426 = vpop.f32.mrb[0].mxu0
  %7427 = vmatprep.mubr.f32.mxu0 0.0
  %7428 = vmatmul.mubr.f32.gmra.mrb[0].mxu0 %v7062
  %v7429 = vpop.f32.mrb[0].mxu0
  %v7430 = vadd.f32 0.0, %v7429
  %v7431 = vpop.f32.mrb[0].mxu0
  %7432 = vmatprep.mubr.f32.mxu0 0.0
  %7433 = vmatmul.mubr.f32.gmra.mrb[0].mxu0 %v7065
  %v7434 = vpop.f32.mrb[0].mxu0
  %v7435 = vadd.f32 0.0, %v7434
  %v7436 = vpop.f32.mrb[0].mxu0
  %7437 = vmatprep.mubr.f32.mxu0 0.0
  %7438 = vmatmul.mubr.f32.gmra.mrb[0].mxu0 %v7068
  %v7439 = vpop.f32.mrb[0].mxu0
  %v7440 = vadd.f32 0.0, %v7439
  %v7441 = vpop.f32.mrb[0].mxu0
  %7442 = vmatprep.mubr.f32.mxu0 0.0
  %7443 = vmatmul.mubr.f32.gmra.mrb[0].mxu0 %v7071
  %v7444 = vpop.f32.mrb[0].mxu0
  %v7445 = vadd.f32 0.0, %v7444
  %v7446 = vpop.f32.mrb[0].mxu0
  %7447 = vmatprep.mubr.f32.mxu0 0.0
  %7448 = vmatmul.mubr.f32.gmra.mrb[0].mxu0 %v7074
  %v7449 = vpop.f32.mrb[0].mxu0
  %v7450 = vadd.f32 0.0, %v7449
  %v7451 = vpop.f32.mrb[0].mxu0
  %7452 = vmatprep.mubr.f32.mxu0 0.0
  %7453 = vmatmul.mubr.f32.gmra.mrb[0].mxu0 %v7077
  %v7454 = vpop.f32.mrb[0].mxu0
  %v7455 = vadd.f32 0.0, %v7454
  %v7456 = vpop.f32.mrb[0].mxu0
  %7457 = vmatprep.mubr.f32.mxu0 0.0
  %7458 = vmatmul.mubr.f32.gmra.mrb[0].mxu0 %v7080
  %v7459 = vpop.f32.mrb[0].mxu0
  %v7460 = vadd.f32 0.0, %v7459
  %v7461 = vpop.f32.mrb[0].mxu0
  %7462 = vmatprep.mubr.f32.mxu0 0.0
  %7463 = vmatmul.mubr.f32.gmra.mrb[0].mxu0 %v7083
  %v7464 = vpop.f32.mrb[0].mxu0
  %v7465 = vadd.f32 0.0, %v7464
  %v7466 = vpop.f32.mrb[0].mxu0
  %7467 = vmatprep.mubr.f32.mxu0 0.0
  %7468 = vmatmul.mubr.f32.gmra.mrb[0].mxu0 %v7086
  %v7469 = vpop.f32.mrb[0].mxu0
  %v7470 = vadd.f32 0.0, %v7469
  %v7471 = vpop.f32.mrb[0].mxu0
  %7472 = vmatprep.mubr.f32.mxu0 0.0
  %7473 = vmatmul.mubr.f32.gmra.mrb[0].mxu0 %v7089
  %v7474 = vpop.f32.mrb[0].mxu0
  %v7475 = vadd.f32 0.0, %v7474
  %v7476 = vpop.f32.mrb[0].mxu0
  %7477 = vmatprep.mubr.f32.mxu0 0.0
  %7478 = vmatmul.mubr.f32.gmra.mrb[0].mxu0 %v7092
  %v7479 = vpop.f32.mrb[0].mxu0
  %v7480 = vadd.f32 0.0, %v7479
  %v7481 = vpop.f32.mrb[0].mxu0
  %7482 = vmatprep.mubr.f32.mxu0 0.0
  %7483 = vmatmul.mubr.f32.gmra.mrb[0].mxu0 %v7095
  %v7484 = vpop.f32.mrb[0].mxu0
  %v7485 = vadd.f32 0.0, %v7484
  %v7486 = vpop.f32.mrb[0].mxu0
  %7487 = vmatprep.mubr.f32.mxu0 0.0
  %7488 = vmatmul.mubr.f32.gmra.mrb[0].mxu0 %v7098
  %v7489 = vpop.f32.mrb[0].mxu0
  %v7490 = vadd.f32 0.0, %v7489
  %v7491 = vpop.f32.mrb[0].mxu0
  %7492 = vmatprep.mubr.f32.mxu0 0.0
  %7493 = vmatmul.mubr.f32.gmra.mrb[0].mxu0 %v7101
  %v7494 = vpop.f32.mrb[0].mxu0
  %v7495 = vadd.f32 0.0, %v7494
  %v7496 = vpop.f32.mrb[0].mxu0
  %7497 = vmatprep.mubr.f32.mxu0 0.0
  %7498 = vmatmul.mubr.f32.gmra.mrb[0].mxu0 %v7104
  %v7499 = vpop.f32.mrb[0].mxu0
  %v7500 = vadd.f32 0.0, %v7499
  %v7501 = vpop.f32.mrb[0].mxu0
  %7502 = vmatprep.mubr.f32.mxu0 0.0
  %7503 = vmatmul.mubr.f32.gmra.mrb[0].mxu0 %v7107
  %v7504 = vpop.f32.mrb[0].mxu0
  %v7505 = vadd.f32 0.0, %v7504
  %v7506 = vpop.f32.mrb[0].mxu0
  %7507 = vmatprep.mubr.f32.mxu0 0.0
  %7508 = vmatmul.mubr.f32.gmra.mrb[0].mxu0 %v7110
  %v7509 = vpop.f32.mrb[0].mxu0
  %v7510 = vadd.f32 0.0, %v7509
  %v7511 = vpop.f32.mrb[0].mxu0
  %7512 = vmatprep.mubr.f32.mxu0 0.0
  %7513 = vmatmul.mubr.f32.gmra.mrb[0].mxu0 %v7113
  %v7514 = vpop.f32.mrb[0].mxu0
  %v7515 = vadd.f32 0.0, %v7514
  %v7516 = vpop.f32.mrb[0].mxu0
  %7517 = vmatprep.mubr.f32.mxu0 0.0
  %7518 = vmatmul.mubr.f32.gmra.mrb[0].mxu0 %v7116
  %v7519 = vpop.f32.mrb[0].mxu0
  %v7520 = vadd.f32 0.0, %v7519
  %v7521 = vpop.f32.mrb[0].mxu0
  %7522 = vmatprep.mubr.f32.mxu0 0.0
  %7523 = vmatmul.mubr.f32.gmra.mrb[0].mxu0 %v7119
  %v7524 = vpop.f32.mrb[0].mxu0
  %v7525 = vadd.f32 0.0, %v7524
  %v7526 = vpop.f32.mrb[0].mxu0
  %7527 = vmatprep.mubr.f32.mxu0 0.0
  %7528 = vmatmul.mubr.f32.gmra.mrb[0].mxu0 %v7122
  %v7529 = vpop.f32.mrb[0].mxu0
  %v7530 = vadd.f32 0.0, %v7529
  %v7531 = vpop.f32.mrb[0].mxu0
  %7532 = vmatprep.mubr.f32.mxu0 0.0
  %7533 = vmatmul.mubr.f32.gmra.mrb[0].mxu0 %v7125
  %v7534 = vpop.f32.mrb[0].mxu0
  %v7535 = vadd.f32 0.0, %v7534
  %v7536 = vpop.f32.mrb[0].mxu0
  %7537 = vmatprep.mubr.f32.mxu0 0.0
  %7538 = vmatmul.mubr.f32.gmra.mrb[0].mxu0 %v7128
  %v7539 = vpop.f32.mrb[0].mxu0
  %v7540 = vadd.f32 0.0, %v7539
  %v7541 = vpop.f32.mrb[0].mxu0
  %7542 = vmatprep.mubr.f32.mxu0 0.0
  %7543 = vmatmul.mubr.f32.gmra.mrb[0].mxu0 %v7131
  %v7544 = vpop.f32.mrb[0].mxu0
  %v7545 = vadd.f32 0.0, %v7544
  %v7546 = vpop.f32.mrb[0].mxu0
  %7547 = vmatprep.mubr.f32.mxu0 0.0
  %7548 = vmatmul.mubr.f32.gmra.mrb[0].mxu0 %v7134
  %v7549 = vpop.f32.mrb[0].mxu0
  %v7550 = vadd.f32 0.0, %v7549
  %v7551 = vpop.f32.mrb[0].mxu0
  %7552 = vmatprep.mubr.f32.mxu0 0.0
  %7553 = vmatmul.mubr.f32.gmra.mrb[0].mxu0 %v7137
  %v7554 = vpop.f32.mrb[0].mxu0
  %v7555 = vadd.f32 0.0, %v7554
  %v7556 = vpop.f32.mrb[0].mxu0
  %7557 = vmatprep.mubr.f32.mxu0 0.0
  %7558 = vmatmul.mubr.f32.gmra.mrb[0].mxu0 %v7140
  %v7559 = vpop.f32.mrb[0].mxu0
  %v7560 = vadd.f32 0.0, %v7559
  %v7561 = vpop.f32.mrb[0].mxu0
  %7562 = vmatprep.mubr.f32.mxu0 0.0
  %7563 = vmatmul.mubr.f32.gmra.mrb[0].mxu0 %v7143
  %v7564 = vpop.f32.mrb[0].mxu0
  %v7565 = vadd.f32 0.0, %v7564
  %v7566 = vpop.f32.mrb[0].mxu0
  %7567 = vmatprep.mubr.f32.mxu0 0.0
  %7568 = vmatmul.mubr.f32.gmra.mrb[0].mxu0 %v7146
  %v7569 = vpop.f32.mrb[0].mxu0
  %v7570 = vadd.f32 0.0, %v7569
  %v7571 = vpop.f32.mrb[0].mxu0
  %7572 = vmatprep.mubr.f32.mxu0 0.0
  %7573 = vmatmul.mubr.f32.gmra.mrb[0].mxu0 %v7149
  %v7574 = vpop.f32.mrb[0].mxu0
  %v7575 = vadd.f32 0.0, %v7574
  %v7576 = vpop.f32.mrb[0].mxu0
  %7577 = vmatprep.mubr.f32.mxu0 0.0
  %7578 = vmatmul.mubr.f32.gmra.mrb[0].mxu0 %v7152
  %v7579 = vpop.f32.mrb[0].mxu0
  %v7580 = vadd.f32 0.0, %v7579
  %v7581 = vpop.f32.mrb[0].mxu0
  %7582 = vmatprep.mubr.f32.mxu0 0.0
  %7583 = vmatmul.mubr.f32.gmra.mrb[0].mxu0 %v7155
  %v7584 = vpop.f32.mrb[0].mxu0
  %v7585 = vadd.f32 0.0, %v7584
  %v7586 = vpop.f32.mrb[0].mxu0
  %7587 = vmatprep.mubr.f32.mxu0 0.0
  %7588 = vmatmul.mubr.f32.gmra.mrb[0].mxu0 %v7158
  %v7589 = vpop.f32.mrb[0].mxu0
  %v7590 = vadd.f32 0.0, %v7589
  %v7591 = vpop.f32.mrb[0].mxu0
  %7592 = vmatprep.mubr.f32.mxu0 0.0
  %7593 = vmatmul.mubr.f32.gmra.mrb[0].mxu0 %v7161
  %v7594 = vpop.f32.mrb[0].mxu0
  %v7595 = vadd.f32 0.0, %v7594
  %v7596 = vpop.f32.mrb[0].mxu0
  %7597 = vmatprep.mubr.f32.mxu0 0.0
  %7598 = vmatmul.mubr.f32.gmra.mrb[0].mxu0 %v7164
  %v7599 = vpop.f32.mrb[0].mxu0
  %v7600 = vadd.f32 0.0, %v7599
  %v7601 = vpop.f32.mrb[0].mxu0
  %7602 = vmatprep.mubr.f32.mxu0 0.0
  %7603 = vmatmul.mubr.f32.gmra.mrb[0].mxu0 %v7167
  %v7604 = vpop.f32.mrb[0].mxu0
  %v7605 = vadd.f32 0.0, %v7604
  %v7606 = vpop.f32.mrb[0].mxu0
  %7607 = vmatprep.mubr.f32.mxu0 0.0
  %7608 = vmatmul.mubr.f32.gmra.mrb[0].mxu0 %v7170
  %v7609 = vpop.f32.mrb[0].mxu0
  %v7610 = vadd.f32 0.0, %v7609
  %v7611 = vpop.f32.mrb[0].mxu0
  %7612 = vmatprep.mubr.f32.mxu0 0.0
  %7613 = vmatmul.mubr.f32.gmra.mrb[0].mxu0 %v7173
  %v7614 = vpop.f32.mrb[0].mxu0
  %v7615 = vadd.f32 0.0, %v7614
  %v7616 = vpop.f32.mrb[0].mxu0
  %7617 = vmatprep.mubr.f32.mxu0 0.0
  %7618 = vmatmul.mubr.f32.gmra.mrb[0].mxu0 %v7176
  %v7619 = vpop.f32.mrb[0].mxu0
  %v7620 = vadd.f32 0.0, %v7619
  %v7621 = vpop.f32.mrb[0].mxu0
  %7622 = vmatprep.mubr.f32.mxu0 0.0
  %7623 = vmatmul.mubr.f32.gmra.mrb[0].mxu0 %v7179
  %v7624 = vpop.f32.mrb[0].mxu0
  %v7625 = vadd.f32 0.0, %v7624
  %v7626 = vpop.f32.mrb[0].mxu0
  %7627 = vmatprep.mubr.f32.mxu0 0.0
  %7628 = vmatmul.mubr.f32.gmra.mrb[0].mxu0 %v7182
  %v7629 = vpop.f32.mrb[0].mxu0
  %v7630 = vadd.f32 0.0, %v7629
  %v7631 = vpop.f32.mrb[0].mxu0
  %7632 = vmatprep.mubr.f32.mxu0 0.0
  %7633 = vmatmul.mubr.f32.gmra.mrb[0].mxu0 %v7185
  %v7634 = vpop.f32.mrb[0].mxu0
  %v7635 = vadd.f32 0.0, %v7634
  %v7636 = vpop.f32.mrb[0].mxu0
  %7637 = vmatprep.mubr.f32.mxu0 0.0
  %7638 = vmatmul.mubr.f32.gmra.mrb[0].mxu0 %v7188
  %v7639 = vpop.f32.mrb[0].mxu0
  %v7640 = vadd.f32 0.0, %v7639
  %v7641 = vpop.f32.mrb[0].mxu0
  %7642 = vmatprep.mubr.f32.mxu0 0.0
  %7643 = vmatmul.mubr.f32.gmra.mrb[0].mxu0 %v7191
  %v7644 = vpop.f32.mrb[0].mxu0
  %v7645 = vadd.f32 0.0, %v7644
  %v7646 = vpop.f32.mrb[0].mxu0
  %7647 = vmatprep.mubr.f32.mxu0 0.0
  %7648 = vmatmul.mubr.f32.gmra.mrb[0].mxu0 %v7194
  %v7649 = vpop.f32.mrb[0].mxu0
  %v7650 = vadd.f32 0.0, %v7649
  %v7651 = vpop.f32.mrb[0].mxu0
  %7652 = vmatprep.mubr.f32.mxu0 0.0
  %7653 = vmatmul.mubr.f32.gmra.mrb[0].mxu0 %v7197
  %v7654 = vpop.f32.mrb[0].mxu0
  %v7655 = vadd.f32 0.0, %v7654
  %v7656 = vpop.f32.mrb[0].mxu0
  %7657 = vmatprep.mubr.f32.mxu0 0.0
  %7658 = vmatmul.mubr.f32.gmra.mrb[0].mxu0 %v7200
  %v7659 = vpop.f32.mrb[0].mxu0
  %v7660 = vadd.f32 0.0, %v7659
  %v7661 = vpop.f32.mrb[0].mxu0
  %7662 = vmatprep.mubr.f32.mxu0 0.0
  %7663 = vmatmul.mubr.f32.gmra.mrb[0].mxu0 %v7203
  %v7664 = vpop.f32.mrb[0].mxu0
  %v7665 = vadd.f32 0.0, %v7664
  %v7666 = vpop.f32.mrb[0].mxu0
  %7667 = vmatprep.mubr.f32.mxu0 0.0
  %7668 = vmatmul.mubr.f32.gmra.mrb[0].mxu0 %v7206
  %v7669 = vpop.f32.mrb[0].mxu0
  %v7670 = vadd.f32 0.0, %v7669
  %v7671 = vpop.f32.mrb[0].mxu0
  %7672 = vmatprep.mubr.f32.mxu0 0.0
  %7673 = vmatmul.mubr.f32.gmra.mrb[0].mxu0 %v7209
  %v7674 = vpop.f32.mrb[0].mxu0
  %v7675 = vadd.f32 0.0, %v7674
  %v7676 = vpop.f32.mrb[0].mxu0
  %7677 = vmatprep.mubr.f32.mxu0 0.0
  %7678 = vmatmul.mubr.f32.gmra.mrb[0].mxu0 %v7212
  %v7679 = vpop.f32.mrb[0].mxu0
  %v7680 = vadd.f32 0.0, %v7679
  %v7681 = vpop.f32.mrb[0].mxu0
  %7682 = vmatprep.mubr.f32.mxu0 0.0
  %7683 = vmatmul.mubr.f32.gmra.mrb[0].mxu0 %v7215
  %v7684 = vpop.f32.mrb[0].mxu0
  %v7685 = vadd.f32 0.0, %v7684
  %v7686 = vpop.f32.mrb[0].mxu0
  %7687 = vmatprep.mubr.f32.mxu0 0.0
  %7688 = vmatmul.mubr.f32.gmra.mrb[0].mxu0 %v7218
  %v7689 = vpop.f32.mrb[0].mxu0
  %v7690 = vadd.f32 0.0, %v7689
  %v7691 = vpop.f32.mrb[0].mxu0
  %7692 = vdwg.mxu0
  %v7693 = vadd.f32 %v6815, %v7290
  %v7694 = vadd.f32 %v6816, %v7295
  %v7695 = vadd.f32 %v6817, %v7300
  %v7696 = vadd.f32 %v6818, %v7305
  %v7697 = vadd.f32 %v6819, %v7310
  %v7698 = vadd.f32 %v6820, %v7315
  %v7699 = vadd.f32 %v6821, %v7320
  %v7700 = vadd.f32 %v6822, %v7325
  %v7701 = vadd.f32 %v6823, %v7330
  %v7702 = vadd.f32 %v6824, %v7335
  %v7703 = vadd.f32 %v6825, %v7340
  %v7704 = vadd.f32 %v6826, %v7345
  %v7705 = vadd.f32 %v6827, %v7350
  %v7706 = vadd.f32 %v6828, %v7355
  %v7707 = vadd.f32 %v6829, %v7360
  %v7708 = vadd.f32 %v6830, %v7365
  %v7709 = vadd.f32 %v6831, %v7370
  %v7710 = vadd.f32 %v6832, %v7375
  %v7711 = vadd.f32 %v6833, %v7380
  %v7712 = vadd.f32 %v6834, %v7385
  %v7713 = vadd.f32 %v6835, %v7390
  %v7714 = vadd.f32 %v6836, %v7395
  %v7715 = vadd.f32 %v6837, %v7400
  %v7716 = vadd.f32 %v6838, %v7405
  %v7717 = vadd.f32 %v6839, %v7410
  %v7718 = vadd.f32 %v6840, %v7415
  %v7719 = vadd.f32 %v6841, %v7420
  %v7720 = vadd.f32 %v6842, %v7425
  %v7721 = vadd.f32 %v6843, %v7430
  %v7722 = vadd.f32 %v6844, %v7435
  %v7723 = vadd.f32 %v6845, %v7440
  %v7724 = vadd.f32 %v6846, %v7445
  %v7725 = vadd.f32 %v6847, %v7450
  %v7726 = vadd.f32 %v6848, %v7455
  %v7727 = vadd.f32 %v6849, %v7460
  %v7728 = vadd.f32 %v6850, %v7465
  %v7729 = vadd.f32 %v6851, %v7470
  %v7730 = vadd.f32 %v6852, %v7475
  %v7731 = vadd.f32 %v6853, %v7480
  %v7732 = vadd.f32 %v6854, %v7485
  %v7733 = vadd.f32 %v6855, %v7490
  %v7734 = vadd.f32 %v6856, %v7495
  %v7735 = vadd.f32 %v6857, %v7500
  %v7736 = vadd.f32 %v6858, %v7505
  %v7737 = vadd.f32 %v6859, %v7510
  %v7738 = vadd.f32 %v6860, %v7515
  %v7739 = vadd.f32 %v6861, %v7520
  %v7740 = vadd.f32 %v6862, %v7525
  %v7741 = vadd.f32 %v6863, %v7530
  %v7742 = vadd.f32 %v6864, %v7535
  %v7743 = vadd.f32 %v6865, %v7540
  %v7744 = vadd.f32 %v6866, %v7545
  %v7745 = vadd.f32 %v6867, %v7550
  %v7746 = vadd.f32 %v6868, %v7555
  %v7747 = vadd.f32 %v6869, %v7560
  %v7748 = vadd.f32 %v6870, %v7565
  %v7749 = vadd.f32 %v6871, %v7570
  %v7750 = vadd.f32 %v6872, %v7575
  %v7751 = vadd.f32 %v6873, %v7580
  %v7752 = vadd.f32 %v6874, %v7585
  %v7753 = vadd.f32 %v6875, %v7590
  %v7754 = vadd.f32 %v6876, %v7595
  %v7755 = vadd.f32 %v6877, %v7600
  %v7756 = vadd.f32 %v6878, %v7605
  %v7757 = vadd.f32 %v6879, %v7610
  %v7758 = vadd.f32 %v6880, %v7615
  %v7759 = vadd.f32 %v6881, %v7620
  %v7760 = vadd.f32 %v6882, %v7625
  %v7761 = vadd.f32 %v6883, %v7630
  %v7762 = vadd.f32 %v6884, %v7635
  %v7763 = vadd.f32 %v6885, %v7640
  %v7764 = vadd.f32 %v6886, %v7645
  %v7765 = vadd.f32 %v6887, %v7650
  %v7766 = vadd.f32 %v6888, %v7655
  %v7767 = vadd.f32 %v6889, %v7660
  %v7768 = vadd.f32 %v6890, %v7665
  %v7769 = vadd.f32 %v6891, %v7670
  %v7770 = vadd.f32 %v6892, %v7675
  %v7771 = vadd.f32 %v6893, %v7680
  %v7772 = vadd.f32 %v6894, %v7685
  %v7773 = vadd.f32 %v6895, %v7690
  %v7774 = vlaneseq
  %v7775 = vshrl.u32 %v7774, 7
  %v7776 = vsub.s32 0, %v7775
  %v7777 = vrot.slane %v26, %v7776
  %v7778 = vadd.f32 %v7693, %v7777
  %v7779 = vadd.f32 %v7694, %v7777
  %v7780 = vadd.f32 %v7695, %v7777
  %v7781 = vadd.f32 %v7696, %v7777
  %v7782 = vadd.f32 %v7697, %v7777
  %v7783 = vadd.f32 %v7698, %v7777
  %v7784 = vadd.f32 %v7699, %v7777
  %v7785 = vadd.f32 %v7700, %v7777
  %v7786 = vadd.f32 %v7701, %v7777
  %v7787 = vadd.f32 %v7702, %v7777
  %v7788 = vadd.f32 %v7703, %v7777
  %v7789 = vadd.f32 %v7704, %v7777
  %v7790 = vadd.f32 %v7705, %v7777
  %v7791 = vadd.f32 %v7706, %v7777
  %v7792 = vadd.f32 %v7707, %v7777
  %v7793 = vadd.f32 %v7708, %v7777
  %v7794 = vadd.f32 %v7709, %v7777
  %v7795 = vadd.f32 %v7710, %v7777
  %v7796 = vadd.f32 %v7711, %v7777
  %v7797 = vadd.f32 %v7712, %v7777
  %v7798 = vadd.f32 %v7713, %v7777
  %v7799 = vadd.f32 %v7714, %v7777
  %v7800 = vadd.f32 %v7715, %v7777
  %v7801 = vadd.f32 %v7716, %v7777
  %v7802 = vadd.f32 %v7717, %v7777
  %v7803 = vadd.f32 %v7718, %v7777
  %v7804 = vadd.f32 %v7719, %v7777
  %v7805 = vadd.f32 %v7720, %v7777
  %v7806 = vadd.f32 %v7721, %v7777
  %v7807 = vadd.f32 %v7722, %v7777
  %v7808 = vadd.f32 %v7723, %v7777
  %v7809 = vadd.f32 %v7724, %v7777
  %v7810 = vadd.f32 %v7725, %v7777
  %v7811 = vadd.f32 %v7726, %v7777
  %v7812 = vadd.f32 %v7727, %v7777
  %v7813 = vadd.f32 %v7728, %v7777
  %v7814 = vadd.f32 %v7729, %v7777
  %v7815 = vadd.f32 %v7730, %v7777
  %v7816 = vadd.f32 %v7731, %v7777
  %v7817 = vadd.f32 %v7732, %v7777
  %v7818 = vadd.f32 %v7733, %v7777
  %v7819 = vadd.f32 %v7734, %v7777
  %v7820 = vadd.f32 %v7735, %v7777
  %v7821 = vadd.f32 %v7736, %v7777
  %v7822 = vadd.f32 %v7737, %v7777
  %v7823 = vadd.f32 %v7738, %v7777
  %v7824 = vadd.f32 %v7739, %v7777
  %v7825 = vadd.f32 %v7740, %v7777
  %v7826 = vadd.f32 %v7741, %v7777
  %v7827 = vadd.f32 %v7742, %v7777
  %v7828 = vadd.f32 %v7743, %v7777
  %v7829 = vadd.f32 %v7744, %v7777
  %v7830 = vadd.f32 %v7745, %v7777
  %v7831 = vadd.f32 %v7746, %v7777
  %v7832 = vadd.f32 %v7747, %v7777
  %v7833 = vadd.f32 %v7748, %v7777
  %v7834 = vadd.f32 %v7749, %v7777
  %v7835 = vadd.f32 %v7750, %v7777
  %v7836 = vadd.f32 %v7751, %v7777
  %v7837 = vadd.f32 %v7752, %v7777
  %v7838 = vadd.f32 %v7753, %v7777
  %v7839 = vadd.f32 %v7754, %v7777
  %v7840 = vadd.f32 %v7755, %v7777
  %v7841 = vadd.f32 %v7756, %v7777
  %v7842 = vadd.f32 %v7757, %v7777
  %v7843 = vadd.f32 %v7758, %v7777
  %v7844 = vadd.f32 %v7759, %v7777
  %v7845 = vadd.f32 %v7760, %v7777
  %v7846 = vadd.f32 %v7761, %v7777
  %v7847 = vadd.f32 %v7762, %v7777
  %v7848 = vadd.f32 %v7763, %v7777
  %v7849 = vadd.f32 %v7764, %v7777
  %v7850 = vadd.f32 %v7765, %v7777
  %v7851 = vadd.f32 %v7766, %v7777
  %v7852 = vadd.f32 %v7767, %v7777
  %v7853 = vadd.f32 %v7768, %v7777
  %v7854 = vadd.f32 %v7769, %v7777
  %v7855 = vadd.f32 %v7770, %v7777
  %v7856 = vadd.f32 %v7771, %v7777
  %v7857 = vadd.f32 %v7772, %v7777
  %v7858 = vadd.f32 %v7773, %v7777
  %v7859 = vmax.f32 %v7778, 0.0
  %v7860 = vmax.f32 %v7779, 0.0
  %v7861 = vmax.f32 %v7780, 0.0
  %v7862 = vmax.f32 %v7781, 0.0
  %v7863 = vmax.f32 %v7782, 0.0
  %v7864 = vmax.f32 %v7783, 0.0
  %v7865 = vmax.f32 %v7784, 0.0
  %v7866 = vmax.f32 %v7785, 0.0
  %v7867 = vmax.f32 %v7786, 0.0
  %v7868 = vmax.f32 %v7787, 0.0
  %v7869 = vmax.f32 %v7788, 0.0
  %v7870 = vmax.f32 %v7789, 0.0
  %v7871 = vmax.f32 %v7790, 0.0
  %v7872 = vmax.f32 %v7791, 0.0
  %v7873 = vmax.f32 %v7792, 0.0
  %v7874 = vmax.f32 %v7793, 0.0
  %v7875 = vmax.f32 %v7794, 0.0
  %v7876 = vmax.f32 %v7795, 0.0
  %v7877 = vmax.f32 %v7796, 0.0
  %v7878 = vmax.f32 %v7797, 0.0
  %v7879 = vmax.f32 %v7798, 0.0
  %v7880 = vmax.f32 %v7799, 0.0
  %v7881 = vmax.f32 %v7800, 0.0
  %v7882 = vmax.f32 %v7801, 0.0
  %v7883 = vmax.f32 %v7802, 0.0
  %v7884 = vmax.f32 %v7803, 0.0
  %v7885 = vmax.f32 %v7804, 0.0
  %v7886 = vmax.f32 %v7805, 0.0
  %v7887 = vmax.f32 %v7806, 0.0
  %v7888 = vmax.f32 %v7807, 0.0
  %v7889 = vmax.f32 %v7808, 0.0
  %v7890 = vmax.f32 %v7809, 0.0
  %v7891 = vmax.f32 %v7810, 0.0
  %v7892 = vmax.f32 %v7811, 0.0
  %v7893 = vmax.f32 %v7812, 0.0
  %v7894 = vmax.f32 %v7813, 0.0
  %v7895 = vmax.f32 %v7814, 0.0
  %v7896 = vmax.f32 %v7815, 0.0
  %v7897 = vmax.f32 %v7816, 0.0
  %v7898 = vmax.f32 %v7817, 0.0
  %v7899 = vmax.f32 %v7818, 0.0
  %v7900 = vmax.f32 %v7819, 0.0
  %v7901 = vmax.f32 %v7820, 0.0
  %v7902 = vmax.f32 %v7821, 0.0
  %v7903 = vmax.f32 %v7822, 0.0
  %v7904 = vmax.f32 %v7823, 0.0
  %v7905 = vmax.f32 %v7824, 0.0
  %v7906 = vmax.f32 %v7825, 0.0
  %v7907 = vmax.f32 %v7826, 0.0
  %v7908 = vmax.f32 %v7827, 0.0
  %v7909 = vmax.f32 %v7828, 0.0
  %v7910 = vmax.f32 %v7829, 0.0
  %v7911 = vmax.f32 %v7830, 0.0
  %v7912 = vmax.f32 %v7831, 0.0
  %v7913 = vmax.f32 %v7832, 0.0
  %v7914 = vmax.f32 %v7833, 0.0
  %v7915 = vmax.f32 %v7834, 0.0
  %v7916 = vmax.f32 %v7835, 0.0
  %v7917 = vmax.f32 %v7836, 0.0
  %v7918 = vmax.f32 %v7837, 0.0
  %v7919 = vmax.f32 %v7838, 0.0
  %v7920 = vmax.f32 %v7839, 0.0
  %v7921 = vmax.f32 %v7840, 0.0
  %v7922 = vmax.f32 %v7841, 0.0
  %v7923 = vmax.f32 %v7842, 0.0
  %v7924 = vmax.f32 %v7843, 0.0
  %v7925 = vmax.f32 %v7844, 0.0
  %v7926 = vmax.f32 %v7845, 0.0
  %v7927 = vmax.f32 %v7846, 0.0
  %v7928 = vmax.f32 %v7847, 0.0
  %v7929 = vmax.f32 %v7848, 0.0
  %v7930 = vmax.f32 %v7849, 0.0
  %v7931 = vmax.f32 %v7850, 0.0
  %v7932 = vmax.f32 %v7851, 0.0
  %v7933 = vmax.f32 %v7852, 0.0
  %v7934 = vmax.f32 %v7853, 0.0
  %v7935 = vmax.f32 %v7854, 0.0
  %v7936 = vmax.f32 %v7855, 0.0
  %v7937 = vmax.f32 %v7856, 0.0
  %v7938 = vmax.f32 %v7857, 0.0
  %v7939 = vmax.f32 %v7858, 0.0
  %v7940 = vld [vmem:[%s1] sm:$0xff]
  %v7941 = vld [vmem:[%s1 + $0x8] sm:$0xf]
  %v7944 = vcombine.high %v7940, %v7940
  %v7946 = vunpack.c.l.s4 1983009808
  %v7947 = vunpack.c.0.s8 %v7946
  %v7948 = vlaneseq
  %v7949 = vshrl.u32 %v7948, 7
  %v7950 = vsub.s32 %v7947, %v7949
  %v7951 = vrot.slane %v7940, %v7950
  %v7953 = vunpack.c.l.s4 1983009808
  %v7954 = vunpack.c.0.s8 %v7953
  %v7955 = vlaneseq
  %v7956 = vshrl.u32 %v7955, 7
  %v7957 = vsub.s32 %v7954, %v7956
  %v7958 = vrot.slane %v7944, %v7957
  %v7959 = vcombine.high %v7951, %v7951
  %v7960 = vcombine.high %v7958, %v7958
  %v7962 = vunpack.c.l.s4 1983009808
  %v7963 = vunpack.c.0.s8 %v7962
  %v7964 = vlaneseq
  %v7965 = vshrl.u32 %v7964, 7
  %v7966 = vsub.s32 %v7963, %v7965
  %v7967 = vrot.slane %v7941, %v7966
  %v7968 = vcombine.high %v7967, %v7967
  %vm7974 = vcmask 64512
  %v7975 = vsel %vm7974, %v7968, 0
  %7977 = vmatprep.subr.mxu0 0.0
  %7978 = vmatpush1.msra.mxu0 %v7859
  %7979 = vmatprep.subr.mxu0 0.0
  %7980 = vmatpush1.msra.mxu0 %v7860
  %7981 = vmatprep.subr.mxu0 0.0
  %7982 = vmatpush1.msra.mxu0 %v7861
  %7983 = vmatprep.subr.mxu0 0.0
  %7984 = vmatpush1.msra.mxu0 %v7862
  %7985 = vmatprep.subr.mxu0 0.0
  %7986 = vmatpush1.msra.mxu0 %v7863
  %7987 = vmatprep.subr.mxu0 0.0
  %7988 = vmatpush1.msra.mxu0 %v7864
  %7989 = vmatprep.subr.mxu0 0.0
  %7990 = vmatpush1.msra.mxu0 %v7865
  %7991 = vmatprep.subr.mxu0 0.0
  %7992 = vmatpush1.msra.mxu0 %v7866
  %7993 = vmatprep.subr.mxu0 0.0
  %7994 = vmatpush1.msra.mxu0 %v7867
  %7995 = vmatprep.subr.mxu0 0.0
  %7996 = vmatpush1.msra.mxu0 %v7868
  %7997 = vmatprep.subr.mxu0 0.0
  %7998 = vmatpush1.msra.mxu0 %v7869
  %7999 = vmatprep.subr.mxu0 0.0
  %8000 = vmatpush1.msra.mxu0 %v7870
  %8001 = vmatprep.subr.mxu0 0.0
  %8002 = vmatpush1.msra.mxu0 %v7871
  %8003 = vmatprep.subr.mxu0 0.0
  %8004 = vmatpush1.msra.mxu0 %v7872
  %8005 = vmatprep.subr.mxu0 0.0
  %8006 = vmatpush1.msra.mxu0 %v7873
  %8007 = vmatprep.subr.mxu0 0.0
  %8008 = vmatpush1.msra.mxu0 %v7874
  %8009 = vmatprep.subr.mxu0 0.0
  %8010 = vmatpush1.msra.mxu0 %v7875
  %8011 = vmatprep.subr.mxu0 0.0
  %8012 = vmatpush1.msra.mxu0 %v7876
  %8013 = vmatprep.subr.mxu0 0.0
  %8014 = vmatpush1.msra.mxu0 %v7877
  %8015 = vmatprep.subr.mxu0 0.0
  %8016 = vmatpush1.msra.mxu0 %v7878
  %8017 = vmatprep.subr.mxu0 0.0
  %8018 = vmatpush1.msra.mxu0 %v7879
  %8019 = vmatprep.subr.mxu0 0.0
  %8020 = vmatpush1.msra.mxu0 %v7880
  %8021 = vmatprep.subr.mxu0 0.0
  %8022 = vmatpush1.msra.mxu0 %v7881
  %8023 = vmatprep.subr.mxu0 0.0
  %8024 = vmatpush1.msra.mxu0 %v7882
  %8025 = vmatprep.subr.mxu0 0.0
  %8026 = vmatpush1.msra.mxu0 %v7883
  %8027 = vmatprep.subr.mxu0 0.0
  %8028 = vmatpush1.msra.mxu0 %v7884
  %8029 = vmatprep.subr.mxu0 0.0
  %8030 = vmatpush1.msra.mxu0 %v7885
  %8031 = vmatprep.subr.mxu0 0.0
  %8032 = vmatpush1.msra.mxu0 %v7886
  %8033 = vmatprep.subr.mxu0 0.0
  %8034 = vmatpush1.msra.mxu0 %v7887
  %8035 = vmatprep.subr.mxu0 0.0
  %8036 = vmatpush1.msra.mxu0 %v7888
  %8037 = vmatprep.subr.mxu0 0.0
  %8038 = vmatpush1.msra.mxu0 %v7889
  %8039 = vmatprep.subr.mxu0 0.0
  %8040 = vmatpush1.msra.mxu0 %v7890
  %8041 = vmatprep.mubr.f32.mxu0 %v7959
  %8042 = vmatmul.mubr.f32.gmra.mrb[0].mxu0 %v7951
  %v8043 = vpop.f32.mrb[0].mxu0
  %v8044 = vadd.f32 0.0, %v8043
  %v8045 = vpop.f32.mrb[0].mxu0
  %8046 = vdwg.mxu0
  %8047 = vmatprep.subr.mxu0 0.0
  %8048 = vmatpush1.msra.mxu0 %v7891
  %8049 = vmatprep.subr.mxu0 0.0
  %8050 = vmatpush1.msra.mxu0 %v7892
  %8051 = vmatprep.subr.mxu0 0.0
  %8052 = vmatpush1.msra.mxu0 %v7893
  %8053 = vmatprep.subr.mxu0 0.0
  %8054 = vmatpush1.msra.mxu0 %v7894
  %8055 = vmatprep.subr.mxu0 0.0
  %8056 = vmatpush1.msra.mxu0 %v7895
  %8057 = vmatprep.subr.mxu0 0.0
  %8058 = vmatpush1.msra.mxu0 %v7896
  %8059 = vmatprep.subr.mxu0 0.0
  %8060 = vmatpush1.msra.mxu0 %v7897
  %8061 = vmatprep.subr.mxu0 0.0
  %8062 = vmatpush1.msra.mxu0 %v7898
  %8063 = vmatprep.subr.mxu0 0.0
  %8064 = vmatpush1.msra.mxu0 %v7899
  %8065 = vmatprep.subr.mxu0 0.0
  %8066 = vmatpush1.msra.mxu0 %v7900
  %8067 = vmatprep.subr.mxu0 0.0
  %8068 = vmatpush1.msra.mxu0 %v7901
  %8069 = vmatprep.subr.mxu0 0.0
  %8070 = vmatpush1.msra.mxu0 %v7902
  %8071 = vmatprep.subr.mxu0 0.0
  %8072 = vmatpush1.msra.mxu0 %v7903
  %8073 = vmatprep.subr.mxu0 0.0
  %8074 = vmatpush1.msra.mxu0 %v7904
  %8075 = vmatprep.subr.mxu0 0.0
  %8076 = vmatpush1.msra.mxu0 %v7905
  %8077 = vmatprep.subr.mxu0 0.0
  %8078 = vmatpush1.msra.mxu0 %v7906
  %8079 = vmatprep.subr.mxu0 0.0
  %8080 = vmatpush1.msra.mxu0 %v7907
  %8081 = vmatprep.subr.mxu0 0.0
  %8082 = vmatpush1.msra.mxu0 %v7908
  %8083 = vmatprep.subr.mxu0 0.0
  %8084 = vmatpush1.msra.mxu0 %v7909
  %8085 = vmatprep.subr.mxu0 0.0
  %8086 = vmatpush1.msra.mxu0 %v7910
  %8087 = vmatprep.subr.mxu0 0.0
  %8088 = vmatpush1.msra.mxu0 %v7911
  %8089 = vmatprep.subr.mxu0 0.0
  %8090 = vmatpush1.msra.mxu0 %v7912
  %8091 = vmatprep.subr.mxu0 0.0
  %8092 = vmatpush1.msra.mxu0 %v7913
  %8093 = vmatprep.subr.mxu0 0.0
  %8094 = vmatpush1.msra.mxu0 %v7914
  %8095 = vmatprep.subr.mxu0 0.0
  %8096 = vmatpush1.msra.mxu0 %v7915
  %8097 = vmatprep.subr.mxu0 0.0
  %8098 = vmatpush1.msra.mxu0 %v7916
  %8099 = vmatprep.subr.mxu0 0.0
  %8100 = vmatpush1.msra.mxu0 %v7917
  %8101 = vmatprep.subr.mxu0 0.0
  %8102 = vmatpush1.msra.mxu0 %v7918
  %8103 = vmatprep.subr.mxu0 0.0
  %8104 = vmatpush1.msra.mxu0 %v7919
  %8105 = vmatprep.subr.mxu0 0.0
  %8106 = vmatpush1.msra.mxu0 %v7920
  %8107 = vmatprep.subr.mxu0 0.0
  %8108 = vmatpush1.msra.mxu0 %v7921
  %8109 = vmatprep.subr.mxu0 0.0
  %8110 = vmatpush1.msra.mxu0 %v7922
  %8111 = vmatprep.mubr.f32.mxu0 %v7960
  %8112 = vmatmul.mubr.f32.gmra.mrb[0].mxu0 %v7958
  %v8113 = vpop.f32.mrb[0].mxu0
  %v8114 = vadd.f32 %v8044, %v8113
  %v8115 = vpop.f32.mrb[0].mxu0
  %8116 = vdwg.mxu0
  %8117 = vmatprep.subr.mxu0 0.0
  %8118 = vmatpush1.msra.mxu0 %v7923
  %8119 = vmatprep.subr.mxu0 0.0
  %8120 = vmatpush1.msra.mxu0 %v7924
  %8121 = vmatprep.subr.mxu0 0.0
  %8122 = vmatpush1.msra.mxu0 %v7925
  %8123 = vmatprep.subr.mxu0 0.0
  %8124 = vmatpush1.msra.mxu0 %v7926
  %8125 = vmatprep.subr.mxu0 0.0
  %8126 = vmatpush1.msra.mxu0 %v7927
  %8127 = vmatprep.subr.mxu0 0.0
  %8128 = vmatpush1.msra.mxu0 %v7928
  %8129 = vmatprep.subr.mxu0 0.0
  %8130 = vmatpush1.msra.mxu0 %v7929
  %8131 = vmatprep.subr.mxu0 0.0
  %8132 = vmatpush1.msra.mxu0 %v7930
  %8133 = vmatprep.subr.mxu0 0.0
  %8134 = vmatpush1.msra.mxu0 %v7931
  %8135 = vmatprep.subr.mxu0 0.0
  %8136 = vmatpush1.msra.mxu0 %v7932
  %8137 = vmatprep.subr.mxu0 0.0
  %8138 = vmatpush1.msra.mxu0 %v7933
  %8139 = vmatprep.subr.mxu0 0.0
  %8140 = vmatpush1.msra.mxu0 %v7934
  %8141 = vmatprep.subr.mxu0 0.0
  %8142 = vmatpush1.msra.mxu0 %v7935
  %8143 = vmatprep.subr.mxu0 0.0
  %8144 = vmatpush1.msra.mxu0 %v7936
  %8145 = vmatprep.subr.mxu0 0.0
  %8146 = vmatpush1.msra.mxu0 %v7937
  %8147 = vmatprep.subr.mxu0 0.0
  %8148 = vmatpush1.msra.mxu0 %v7938
  %8149 = vmatprep.subr.mxu0 0.0
  %8150 = vmatpush1.msra.mxu0 %v7939
  %8151 = vmatprep.subr.mxu0 0.0
  %8152 = vmatpush1.msra.mxu0 0.0
  %8153 = vmatprep.subr.mxu0 0.0
  %8154 = vmatpush1.msra.mxu0 0.0
  %8155 = vmatprep.subr.mxu0 0.0
  %8156 = vmatpush1.msra.mxu0 0.0
  %8157 = vmatprep.subr.mxu0 0.0
  %8158 = vmatpush1.msra.mxu0 0.0
  %8159 = vmatprep.subr.mxu0 0.0
  %8160 = vmatpush1.msra.mxu0 0.0
  %8161 = vmatprep.subr.mxu0 0.0
  %8162 = vmatpush1.msra.mxu0 0.0
  %8163 = vmatprep.subr.mxu0 0.0
  %8164 = vmatpush1.msra.mxu0 0.0
  %8165 = vmatprep.subr.mxu0 0.0
  %8166 = vmatpush1.msra.mxu0 0.0
  %8167 = vmatprep.subr.mxu0 0.0
  %8168 = vmatpush1.msra.mxu0 0.0
  %8169 = vmatprep.subr.mxu0 0.0
  %8170 = vmatpush1.msra.mxu0 0.0
  %8171 = vmatprep.subr.mxu0 0.0
  %8172 = vmatpush1.msra.mxu0 0.0
  %8173 = vmatprep.subr.mxu0 0.0
  %8174 = vmatpush1.msra.mxu0 0.0
  %8175 = vmatprep.subr.mxu0 0.0
  %8176 = vmatpush1.msra.mxu0 0.0
  %8177 = vmatprep.subr.mxu0 0.0
  %8178 = vmatpush1.msra.mxu0 0.0
  %8179 = vmatprep.subr.mxu0 0.0
  %8180 = vmatpush1.msra.mxu0 0.0
  %8181 = vmatprep.mubr.f32.mxu0 %v7975
  %8182 = vmatmul.mubr.f32.gmra.mrb[0].mxu0 %v7967
  %v8183 = vpop.f32.mrb[0].mxu0
  %v8184 = vadd.f32 %v8114, %v8183
  %v8185 = vpop.f32.mrb[0].mxu0
  %8186 = vdwg.mxu0
  %v8187 = vld [vmem:[%s3] sm:$0xff]
  %v8188 = vlaneseq
  %v8189 = vshrl.u32 %v8188, 7
  %v8190 = vsub.s32 1, %v8189
  %v8191 = vrot.slane %v26, %v8190
  %v8193 = vsel %vm7974, %v8184, 0
  %8195 = vmatprep.subr.mxu0 0.0
  %8196 = vmatpush1.msra.mxu0 %v8187
  %8197 = vmatprep.subr.mxu0 0.0
  %8198 = vmatpush1.msra.mxu0 0.0
  %8199 = vmatprep.subr.mxu0 0.0
  %8200 = vmatpush1.msra.mxu0 0.0
  %8201 = vmatprep.subr.mxu0 0.0
  %8202 = vmatpush1.msra.mxu0 0.0
  %8203 = vmatprep.subr.mxu0 0.0
  %8204 = vmatpush1.msra.mxu0 0.0
  %8205 = vmatprep.subr.mxu0 0.0
  %8206 = vmatpush1.msra.mxu0 0.0
  %8207 = vmatprep.subr.mxu0 0.0
  %8208 = vmatpush1.msra.mxu0 0.0
  %8209 = vmatprep.subr.mxu0 0.0
  %8210 = vmatpush1.msra.mxu0 0.0
  %8211 = vmatprep.subr.mxu0 0.0
  %8212 = vmatpush1.msra.mxu0 0.0
  %8213 = vmatprep.subr.mxu0 0.0
  %8214 = vmatpush1.msra.mxu0 0.0
  %8215 = vmatprep.subr.mxu0 0.0
  %8216 = vmatpush1.msra.mxu0 0.0
  %8217 = vmatprep.subr.mxu0 0.0
  %8218 = vmatpush1.msra.mxu0 0.0
  %8219 = vmatprep.subr.mxu0 0.0
  %8220 = vmatpush1.msra.mxu0 0.0
  %8221 = vmatprep.subr.mxu0 0.0
  %8222 = vmatpush1.msra.mxu0 0.0
  %8223 = vmatprep.subr.mxu0 0.0
  %8224 = vmatpush1.msra.mxu0 0.0
  %8225 = vmatprep.subr.mxu0 0.0
  %8226 = vmatpush1.msra.mxu0 0.0
  %8227 = vmatprep.subr.mxu0 0.0
  %8228 = vmatpush1.msra.mxu0 0.0
  %8229 = vmatprep.subr.mxu0 0.0
  %8230 = vmatpush1.msra.mxu0 0.0
  %8231 = vmatprep.subr.mxu0 0.0
  %8232 = vmatpush1.msra.mxu0 0.0
  %8233 = vmatprep.subr.mxu0 0.0
  %8234 = vmatpush1.msra.mxu0 0.0
  %8235 = vmatprep.subr.mxu0 0.0
  %8236 = vmatpush1.msra.mxu0 0.0
  %8237 = vmatprep.subr.mxu0 0.0
  %8238 = vmatpush1.msra.mxu0 0.0
  %8239 = vmatprep.subr.mxu0 0.0
  %8240 = vmatpush1.msra.mxu0 0.0
  %8241 = vmatprep.subr.mxu0 0.0
  %8242 = vmatpush1.msra.mxu0 0.0
  %8243 = vmatprep.subr.mxu0 0.0
  %8244 = vmatpush1.msra.mxu0 0.0
  %8245 = vmatprep.subr.mxu0 0.0
  %8246 = vmatpush1.msra.mxu0 0.0
  %8247 = vmatprep.subr.mxu0 0.0
  %8248 = vmatpush1.msra.mxu0 0.0
  %8249 = vmatprep.subr.mxu0 0.0
  %8250 = vmatpush1.msra.mxu0 0.0
  %8251 = vmatprep.subr.mxu0 0.0
  %8252 = vmatpush1.msra.mxu0 0.0
  %8253 = vmatprep.subr.mxu0 0.0
  %8254 = vmatpush1.msra.mxu0 0.0
  %8255 = vmatprep.subr.mxu0 0.0
  %8256 = vmatpush1.msra.mxu0 0.0
  %8257 = vmatprep.subr.mxu0 0.0
  %8258 = vmatpush1.msra.mxu0 0.0
  %8259 = vmatprep.mubr.f32.mxu0 0.0
  %8260 = vmatmul.mubr.f32.gmra.mrb[0].mxu0 %v8193
  %v8261 = vpop.f32.mrb[0].mxu0
  %v8262 = vadd.f32 %v8191, %v8261
  %v8263 = vpop.f32.mrb[0].mxu0
  %8264 = vdwg.mxu0
  %vm8265 = vcmask 254976
  %v8266 = vsel %vm8265, %v8262, 0.0
  %v8267 = vrot.slane %v8266, 4
  %v8268 = vadd.f32 %v8266, %v8267
  %v8269 = vrot.slane %v8268, 2
  %v8270 = vadd.f32 %v8268, %v8269
  %v8271 = vrot.slane %v8270, 1
  %v8272 = vadd.f32 %v8270, %v8271
  %v8273 = vrcp.pop 2.0
  %v8274 = vmul.f32 %v8272, %v8273
  %v8275 = vsub.f32 %v8262, %v8274
  %v8276 = vmul.f32 %v8275, %v8275
  %v8277 = vsel %vm8265, %v8276, 0.0
  %v8278 = vrot.slane %v8277, 4
  %v8279 = vadd.f32 %v8277, %v8278
  %v8280 = vrot.slane %v8279, 2
  %v8281 = vadd.f32 %v8279, %v8280
  %v8282 = vrot.slane %v8281, 1
  %v8283 = vadd.f32 %v8281, %v8282
  %v8284 = vmul.f32 %v8283, %v8273
  %v8285 = vadd.f32 %v8284, 1e-05
  %v8286 = vrsqrt.pop %v8285
  %v8287 = vmul.f32 %v8275, %v8286
  %v8288 = vlaneseq
  %v8289 = vshrl.u32 %v8288, 7
  %v8290 = vsub.s32 2, %v8289
  %v8291 = vrot.slane %v26, %v8290
  %v8292 = vmul.f32 %v8287, %v8291
  %v8293 = vlaneseq
  %v8294 = vshrl.u32 %v8293, 7
  %v8295 = vsub.s32 3, %v8294
  %v8296 = vrot.slane %v26, %v8295
  %v8297 = vadd.f32 %v8292, %v8296
  %v8298 = vmax.f32 %v8297, 0.0
  %v8299 = vld [vmem:[%s4] sm:$0xff]
  %v8300 = vld [vmem:[%s4 + $0x8] sm:$0xff]
  %v8301 = vld [vmem:[%s4 + $0x10] sm:$0xff]
  %v8302 = vld [vmem:[%s4 + $0x18] sm:$0xff]
  %v8303 = vld [vmem:[%s5] sm:$0xff]
  %8304 = vmatprep.subr.mxu0 0.0
  %8305 = vmatpush1.msra.mxu0 %v8303
  %8306 = vmatprep.subr.mxu0 0.0
  %8307 = vmatpush1.msra.mxu0 0.0
  %8308 = vmatprep.subr.mxu0 0.0
  %8309 = vmatpush1.msra.mxu0 0.0
  %8310 = vmatprep.subr.mxu0 0.0
  %8311 = vmatpush1.msra.mxu0 0.0
  %8312 = vmatprep.subr.mxu0 0.0
  %8313 = vmatpush1.msra.mxu0 0.0
  %8314 = vmatprep.subr.mxu0 0.0
  %8315 = vmatpush1.msra.mxu0 0.0
  %8316 = vmatprep.subr.mxu0 0.0
  %8317 = vmatpush1.msra.mxu0 0.0
  %8318 = vmatprep.subr.mxu0 0.0
  %8319 = vmatpush1.msra.mxu0 0.0
  %8320 = vmatprep.subr.mxu0 0.0
  %8321 = vmatpush1.msra.mxu0 0.0
  %8322 = vmatprep.subr.mxu0 0.0
  %8323 = vmatpush1.msra.mxu0 0.0
  %8324 = vmatprep.subr.mxu0 0.0
  %8325 = vmatpush1.msra.mxu0 0.0
  %8326 = vmatprep.subr.mxu0 0.0
  %8327 = vmatpush1.msra.mxu0 0.0
  %8328 = vmatprep.subr.mxu0 0.0
  %8329 = vmatpush1.msra.mxu0 0.0
  %8330 = vmatprep.subr.mxu0 0.0
  %8331 = vmatpush1.msra.mxu0 0.0
  %8332 = vmatprep.subr.mxu0 0.0
  %8333 = vmatpush1.msra.mxu0 0.0
  %8334 = vmatprep.subr.mxu0 0.0
  %8335 = vmatpush1.msra.mxu0 0.0
  %8336 = vmatprep.subr.mxu0 0.0
  %8337 = vmatpush1.msra.mxu0 0.0
  %8338 = vmatprep.subr.mxu0 0.0
  %8339 = vmatpush1.msra.mxu0 0.0
  %8340 = vmatprep.subr.mxu0 0.0
  %8341 = vmatpush1.msra.mxu0 0.0
  %8342 = vmatprep.subr.mxu0 0.0
  %8343 = vmatpush1.msra.mxu0 0.0
  %8344 = vmatprep.subr.mxu0 0.0
  %8345 = vmatpush1.msra.mxu0 0.0
  %8346 = vmatprep.subr.mxu0 0.0
  %8347 = vmatpush1.msra.mxu0 0.0
  %8348 = vmatprep.subr.mxu0 0.0
  %8349 = vmatpush1.msra.mxu0 0.0
  %8350 = vmatprep.subr.mxu0 0.0
  %8351 = vmatpush1.msra.mxu0 0.0
  %8352 = vmatprep.subr.mxu0 0.0
  %8353 = vmatpush1.msra.mxu0 0.0
  %8354 = vmatprep.subr.mxu0 0.0
  %8355 = vmatpush1.msra.mxu0 0.0
  %8356 = vmatprep.subr.mxu0 0.0
  %8357 = vmatpush1.msra.mxu0 0.0
  %8358 = vmatprep.subr.mxu0 0.0
  %8359 = vmatpush1.msra.mxu0 0.0
  %8360 = vmatprep.subr.mxu0 0.0
  %8361 = vmatpush1.msra.mxu0 0.0
  %8362 = vmatprep.subr.mxu0 0.0
  %8363 = vmatpush1.msra.mxu0 0.0
  %8364 = vmatprep.subr.mxu0 0.0
  %8365 = vmatpush1.msra.mxu0 0.0
  %8366 = vmatprep.subr.mxu0 0.0
  %8367 = vmatpush1.msra.mxu0 0.0
  %8368 = vmatprep.mubr.f32.mxu0 0.0
  %8369 = vmatmul.mubr.f32.gmra.mrb[0].mxu0 %v8193
  %v8370 = vpop.f32.mrb[0].mxu0
  %v8371 = vadd.f32 0.0, %v8370
  %v8372 = vpop.f32.mrb[0].mxu0
  %8373 = vdwg.mxu0
  %vm8374 = vcmask 261120
  %v8376 = vsel %vm8374, %v8298, 0
  %8378 = vmatprep.subr.mxu0 0.0
  %8379 = vmatpush1.msra.mxu0 %v8299
  %8380 = vmatprep.subr.mxu0 0.0
  %8381 = vmatpush1.msra.mxu0 %v8300
  %8382 = vmatprep.subr.mxu0 0.0
  %8383 = vmatpush1.msra.mxu0 %v8301
  %8384 = vmatprep.subr.mxu0 0.0
  %8385 = vmatpush1.msra.mxu0 %v8302
  %8386 = vmatprep.subr.mxu0 0.0
  %8387 = vmatpush1.msra.mxu0 0.0
  %8388 = vmatprep.subr.mxu0 0.0
  %8389 = vmatpush1.msra.mxu0 0.0
  %8390 = vmatprep.subr.mxu0 0.0
  %8391 = vmatpush1.msra.mxu0 0.0
  %8392 = vmatprep.subr.mxu0 0.0
  %8393 = vmatpush1.msra.mxu0 0.0
  %8394 = vmatprep.subr.mxu0 0.0
  %8395 = vmatpush1.msra.mxu0 0.0
  %8396 = vmatprep.subr.mxu0 0.0
  %8397 = vmatpush1.msra.mxu0 0.0
  %8398 = vmatprep.subr.mxu0 0.0
  %8399 = vmatpush1.msra.mxu0 0.0
  %8400 = vmatprep.subr.mxu0 0.0
  %8401 = vmatpush1.msra.mxu0 0.0
  %8402 = vmatprep.subr.mxu0 0.0
  %8403 = vmatpush1.msra.mxu0 0.0
  %8404 = vmatprep.subr.mxu0 0.0
  %8405 = vmatpush1.msra.mxu0 0.0
  %8406 = vmatprep.subr.mxu0 0.0
  %8407 = vmatpush1.msra.mxu0 0.0
  %8408 = vmatprep.subr.mxu0 0.0
  %8409 = vmatpush1.msra.mxu0 0.0
  %8410 = vmatprep.subr.mxu0 0.0
  %8411 = vmatpush1.msra.mxu0 0.0
  %8412 = vmatprep.subr.mxu0 0.0
  %8413 = vmatpush1.msra.mxu0 0.0
  %8414 = vmatprep.subr.mxu0 0.0
  %8415 = vmatpush1.msra.mxu0 0.0
  %8416 = vmatprep.subr.mxu0 0.0
  %8417 = vmatpush1.msra.mxu0 0.0
  %8418 = vmatprep.subr.mxu0 0.0
  %8419 = vmatpush1.msra.mxu0 0.0
  %8420 = vmatprep.subr.mxu0 0.0
  %8421 = vmatpush1.msra.mxu0 0.0
  %8422 = vmatprep.subr.mxu0 0.0
  %8423 = vmatpush1.msra.mxu0 0.0
  %8424 = vmatprep.subr.mxu0 0.0
  %8425 = vmatpush1.msra.mxu0 0.0
  %8426 = vmatprep.subr.mxu0 0.0
  %8427 = vmatpush1.msra.mxu0 0.0
  %8428 = vmatprep.subr.mxu0 0.0
  %8429 = vmatpush1.msra.mxu0 0.0
  %8430 = vmatprep.subr.mxu0 0.0
  %8431 = vmatpush1.msra.mxu0 0.0
  %8432 = vmatprep.subr.mxu0 0.0
  %8433 = vmatpush1.msra.mxu0 0.0
  %8434 = vmatprep.subr.mxu0 0.0
  %8435 = vmatpush1.msra.mxu0 0.0
  %8436 = vmatprep.subr.mxu0 0.0
  %8437 = vmatpush1.msra.mxu0 0.0
  %8438 = vmatprep.subr.mxu0 0.0
  %8439 = vmatpush1.msra.mxu0 0.0
  %8440 = vmatprep.subr.mxu0 0.0
  %8441 = vmatpush1.msra.mxu0 0.0
  %8442 = vmatprep.mubr.f32.mxu0 0.0
  %8443 = vmatmul.mubr.f32.gmra.mrb[0].mxu0 %v8376
  %v8444 = vpop.f32.mrb[0].mxu0
  %v8445 = vadd.f32 %v8371, %v8444
  %v8446 = vpop.f32.mrb[0].mxu0
  %8447 = vdwg.mxu0
  %v8448 = vlaneseq
  %v8449 = vshrl.u32 %v8448, 7
  %v8450 = vsub.s32 4, %v8449
  %v8451 = vrot.slane %v26, %v8450
  %v8452 = vadd.f32 %v8445, %v8451
  %8453 = vst [vmem:[%s7] sm:$0x3] %v8452
  // Predicated region
  $region30: #{net_wrapper_forward.1} parent=0 // pred_check
    _
  $region31: #{net_wrapper_forward.1} parent=0 // pred_check_branch
    %8455 = sbr.rel (0) target = $region33
  $region32: #{net_wrapper_forward.1} parent=0 // pred_region
    _
  $region33: #{net_wrapper_forward.1} parent=0 // pred_fallthru
    _
  // Predicated region
  $region34: #{net_wrapper_forward.1} parent=0 // pred_check
    _
  $region35: #{net_wrapper_forward.1} parent=0 // pred_check_branch
    %8457 = sbr.rel (0) target = $region37
  $region36: #{net_wrapper_forward.1} parent=0 // pred_region
    _
  $region37: #{net_wrapper_forward.1} parent=0 // pred_fallthru
    _

</llo_original>
